<compile_context>
chip_gen: v7x
topology: tpu7x:2x2x1
jax: 0.10.0
libtpu: 0.0.40
codegen_flags: <defaults>
</compile_context>

<pallas_src>
import functools
import math

import jax
import jax.numpy as jnp
from jax import lax
from jax.experimental import pallas as pl
from jax.experimental.pallas import tpu as pltpu


def _image_embedding_kernel(x_ref, w1_ref, b1_ref, w2_ref, b2_ref,
                            w3_ref, b3_ref, wl_ref, bl_ref, out_ref,
                            *, H, W):
    f32 = jnp.float32

    # Static shape bookkeeping (3x3 valid convs, 2x2 stride-2 max pools).
    H1, W1 = H - 2, W - 2              # conv1 output
    P1h, P1w = H1 // 2, W1 // 2        # pool1 output
    H2, W2 = P1h - 2, P1w - 2          # conv2 output
    # conv3 output is (H2-2, W2-2); pool2 output is 1x1 (asserted by wrapper),
    # so only the top-left 2x2 window of conv3's output is ever consumed.

    C1 = w1_ref.shape[2]               # hidden
    C2 = w2_ref.shape[2]               # 2*hidden
    C3 = w3_ref.shape[2]               # 2*hidden

    n_wide = H1 * W                    # rows of the "wide" conv1 result

    # ---------------- conv1: 9 shifted matmuls on the flattened image --------
    # x_ref[0] is the zero-padded flattened image (H*W + 2W, Cin) with flat
    # index p = y*W + x.  For tap (dy, dx) the contribution to output position
    # p is x_flat[p + dy*W + dx] @ W1[dy*3+dx].  Rows with x >= W1 are garbage
    # (row wrap) and are never selected by the pooling below.
    acc1 = jnp.zeros((n_wide, C1), f32)
    for k in range(9):
        dy, dx = k // 3, k % 3
        s = dy * W + dx
        acc1 = acc1 + jnp.dot(x_ref[0, s:s + n_wide, :], w1_ref[k],
                              preferred_element_type=f32)
    a1 = jnp.maximum(acc1 + b1_ref[...], 0.0)       # relu(conv1), wide layout

    # ---------------- maxpool 2x2 (+ compaction of the wide layout) ----------
    # One-hot matrices selecting even / odd columns of a width-W image row.
    ri = lax.broadcasted_iota(jnp.int32, (P1w, W), 0)
    ci = lax.broadcasted_iota(jnp.int32, (P1w, W), 1)
    sel_even = (ci == 2 * ri).astype(f32)           # (P1w, W)
    sel_odd = (ci == 2 * ri + 1).astype(f32)

    p1 = []                                         # pooled rows, each (P1w, C1)
    for yo in range(P1h):
        r0 = a1[(2 * yo) * W:(2 * yo) * W + W, :]       # image row 2*yo
        r1 = a1[(2 * yo + 1) * W:(2 * yo + 1) * W + W, :]
        rm = jnp.maximum(r0, r1)                        # max over the y-pair
        p1.append(jnp.maximum(
            jnp.dot(sel_even, rm, preferred_element_type=f32),
            jnp.dot(sel_odd, rm, preferred_element_type=f32)))

    # ---------------- conv2 + relu (statically unrolled row loop) ------------
    b2 = b2_ref[...]
    a2 = []                                         # rows, each (W2, C2)
    for y in range(H2):
        acc = jnp.zeros((W2, C2), f32)
        for dy in range(3):
            row = p1[y + dy]                        # (P1w, C1)
            for dx in range(3):
                acc = acc + jnp.dot(row[dx:dx + W2, :], w2_ref[dy * 3 + dx],
                                    preferred_element_type=f32)
        a2.append(jnp.maximum(acc + b2, 0.0))

    # -------- conv3 + relu (only the 2x2 window that pool2 consumes) ---------
    b3 = b3_ref[...]
    c3 = []
    for y in range(2):
        acc = jnp.zeros((2, C3), f32)
        for dy in range(3):
            row = a2[y + dy]                        # (W2, C2)
            for dx in range(3):
                acc = acc + jnp.dot(row[dx:dx + 2, :], w3_ref[dy * 3 + dx],
                                    preferred_element_type=f32)
        c3.append(jnp.maximum(acc + b3, 0.0))

    # ---------------- maxpool 2x2  ->  (1, C3) --------------------------------
    m = jnp.maximum(c3[0], c3[1])                   # (2, C3), max over y
    pooled = jnp.maximum(m[0:1, :], m[1:2, :])      # (1, C3), max over x

    # ---------------- final linear + relu -------------------------------------
    y_out = jnp.dot(pooled, wl_ref[...], preferred_element_type=f32) + bl_ref[...]
    out_ref[0] = jnp.maximum(y_out, 0.0)


def image_embedding_forward(x_nchw, params):
    B, Cin, H, W = x_nchw.shape
    hidden = params["w1"].shape[-1]
    c2 = params["w2"].shape[-1]
    out_dim = params["wl"].shape[-1]

    H1, W1 = H - 2, W - 2
    P1h, P1w = H1 // 2, W1 // 2
    H2, W2 = P1h - 2, P1w - 2
    H3, W3 = H2 - 2, W2 - 2
    assert H3 >= 2 and W3 >= 2 and H3 // 2 == 1 and W3 // 2 == 1, (
        "kernel is specialised to CNN stacks whose final pooled map is 1x1")
    # TODO(synk): for inputs whose final pooled feature map is larger than 1x1,
    # the flatten feeding the linear layer must follow PyTorch's channel-major
    # order (permute `wl` accordingly); not implemented here.

    # Host-side layout plumbing only: NCHW -> NHWC -> flatten spatial -> pad
    # so all 9 tap shifts of conv1 stay in bounds.
    x_flat = jnp.transpose(x_nchw, (0, 2, 3, 1)).reshape(B, H * W, Cin)
    x_flat = jnp.pad(x_flat, ((0, 0), (0, 2 * W), (0, 0)))

    # Pack each layer's 9 taps into one (9, Cin, Cout) array (one DMA each).
    w1p = params["w1"].reshape(9, Cin, hidden)
    w2p = params["w2"].reshape(9, hidden, c2)
    w3p = params["w3"].reshape(9, c2, c2)
    b1 = params["b1"].reshape(1, hidden)
    b2 = params["b2"].reshape(1, c2)
    b3 = params["b3"].reshape(1, c2)
    wl = params["wl"]
    bl = params["bl"].reshape(1, out_dim)

    def full(shape):
        return pl.BlockSpec(shape, lambda b, _s=shape: (0,) * len(_s))

    kernel = functools.partial(_image_embedding_kernel, H=H, W=W)

    out = pl.pallas_call(
        kernel,
        out_shape=jax.ShapeDtypeStruct((B, 1, out_dim), jnp.float32),
        grid=(B,),
        in_specs=[
            pl.BlockSpec((1, H * W + 2 * W, Cin), lambda b: (b, 0, 0)),
            full(w1p.shape), full(b1.shape),
            full(w2p.shape), full(b2.shape),
            full(w3p.shape), full(b3.shape),
            full(wl.shape), full(bl.shape),
        ],
        out_specs=pl.BlockSpec((1, 1, out_dim), lambda b: (b, 0, 0)),
        compiler_params=pltpu.CompilerParams(
            dimension_semantics=("parallel",)),
    )(x_flat, w1p, b1, w2p, b2, w3p, b3, wl, bl)
    return out.reshape(B, out_dim)


def init_params(key, in_channels=3, hidden_dim=64, output_dim=64,
                cnn_output_dim=128):
    ks = jax.random.split(key, 8)

    def uconv(k, cin, cout):
        bound = 1.0 / math.sqrt(9 * cin)
        return jax.random.uniform(k, (3, 3, cin, cout), jnp.float32, -bound, bound)

    def ubias(k, fan_in, n):
        bound = 1.0 / math.sqrt(fan_in)
        return jax.random.uniform(k, (n,), jnp.float32, -bound, bound)

    lb = 1.0 / math.sqrt(cnn_output_dim)
    return {
        "w1": uconv(ks[0], in_channels, hidden_dim),
        "b1": ubias(ks[1], 9 * in_channels, hidden_dim),
        "w2": uconv(ks[2], hidden_dim, 2 * hidden_dim),
        "b2": ubias(ks[3], 9 * hidden_dim, 2 * hidden_dim),
        "w3": uconv(ks[4], 2 * hidden_dim, 2 * hidden_dim),
        "b3": ubias(ks[5], 9 * 2 * hidden_dim, 2 * hidden_dim),
        "wl": jax.random.uniform(ks[6], (cnn_output_dim, output_dim),
                                 jnp.float32, -lb, lb),
        "bl": jax.random.uniform(ks[7], (output_dim,), jnp.float32, -lb, lb),
    }


def reference_forward(x_nchw, params):
    # Pure-JAX/XLA reference of the same forward pass (for a sanity check).
    dn = ("NHWC", "HWIO", "NHWC")
    hi = lax.Precision.HIGHEST

    def conv(v, w, b):
        y = lax.conv_general_dilated(v, w, (1, 1), "VALID",
                                     dimension_numbers=dn, precision=hi)
        return jax.nn.relu(y + b)

    def pool(v):
        return lax.reduce_window(v, -jnp.inf, lax.max,
                                 (1, 2, 2, 1), (1, 2, 2, 1), "VALID")

    x = jnp.transpose(x_nchw, (0, 2, 3, 1))
    y = pool(conv(x, params["w1"], params["b1"]))
    y = conv(y, params["w2"], params["b2"])
    y = pool(conv(y, params["w3"], params["b3"]))
    flat = y.reshape(y.shape[0], -1)   # final map is 1x1 -> matches torch flatten
    return jax.nn.relu(jnp.dot(flat, params["wl"], precision=hi) + params["bl"])


if __name__ == "__main__":
    key = jax.random.PRNGKey(0)
    k_in, k_par = jax.random.split(key)

    B, C, H, W = 2, 3, 16, 16
    hidden_dim, output_dim = 64, 64
    cnn_output_dim = 2 * hidden_dim * 1 * 1   # CNN stack ends at a (1,1,128) map

    params = init_params(k_par, C, hidden_dim, output_dim, cnn_output_dim)
    x = jax.random.normal(k_in, (B, C, H, W), jnp.float32)

    out = jax.jit(image_embedding_forward)(x, params)
    out = jax.block_until_ready(out)

    ref = reference_forward(x, params)
    assert out.shape == (B, output_dim)
    err = float(jnp.max(jnp.abs(out - ref)))
    assert jnp.allclose(out, ref, atol=5e-3, rtol=1e-2), f"max abs err {err}"

    print("KERNEL_OK")
</pallas_src>

<mosaic_0001>
module attributes {stable_mosaic.version = 11 : i64} {
  func.func @_image_embedding_kernel(%arg0: i32, %arg1: memref<1x288x3xf32, #tpu.memory_space<vmem>>, %arg2: memref<9x3x64xf32, #tpu.memory_space<vmem>>, %arg3: memref<1x64xf32, #tpu.memory_space<vmem>>, %arg4: memref<9x64x128xf32, #tpu.memory_space<vmem>>, %arg5: memref<1x128xf32, #tpu.memory_space<vmem>>, %arg6: memref<9x128x128xf32, #tpu.memory_space<vmem>>, %arg7: memref<1x128xf32, #tpu.memory_space<vmem>>, %arg8: memref<128x64xf32, #tpu.memory_space<vmem>>, %arg9: memref<1x64xf32, #tpu.memory_space<vmem>>, %arg10: memref<1x1x64xf32, #tpu.memory_space<vmem>>) attributes {dimension_semantics = [#tpu.dimension_semantics<parallel>], iteration_bounds = array<i64: 2>, scalar_prefetch = 0 : i64, scratch_operands = 0 : i64, tpu.core_type = #tpu.core_type<tc>, window_params = [{transform_indices = @transform_0, window_bounds = array<i64: 1, 288, 3>}, {pipeline_mode = #tpu.pipeline_mode<synchronous>, transform_indices = @transform_1, window_bounds = array<i64: 9, 3, 64>}, {pipeline_mode = #tpu.pipeline_mode<synchronous>, transform_indices = @transform_2, window_bounds = array<i64: 1, 64>}, {pipeline_mode = #tpu.pipeline_mode<synchronous>, transform_indices = @transform_3, window_bounds = array<i64: 9, 64, 128>}, {pipeline_mode = #tpu.pipeline_mode<synchronous>, transform_indices = @transform_4, window_bounds = array<i64: 1, 128>}, {pipeline_mode = #tpu.pipeline_mode<synchronous>, transform_indices = @transform_5, window_bounds = array<i64: 9, 128, 128>}, {pipeline_mode = #tpu.pipeline_mode<synchronous>, transform_indices = @transform_6, window_bounds = array<i64: 1, 128>}, {pipeline_mode = #tpu.pipeline_mode<synchronous>, transform_indices = @transform_7, window_bounds = array<i64: 128, 64>}, {pipeline_mode = #tpu.pipeline_mode<synchronous>, transform_indices = @transform_8, window_bounds = array<i64: 1, 64>}, {transform_indices = @transform_9, window_bounds = array<i64: 1, 1, 64>}]} {
    %cst = arith.constant 0.000000e+00 : f32
    %0 = vector.broadcast %cst : f32 to vector<224x64xf32>
    %c0 = arith.constant 0 : index
    %c0_0 = arith.constant 0 : index
    %c0_1 = arith.constant 0 : index
    %1 = vector.load %arg1[%c0, %c0_0, %c0_1] : memref<1x288x3xf32, #tpu.memory_space<vmem>>, vector<1x224x3xf32>
    %2 = vector.shape_cast %1 : vector<1x224x3xf32> to vector<224x3xf32>
    %c0_2 = arith.constant 0 : index
    %c0_3 = arith.constant 0 : index
    %c0_4 = arith.constant 0 : index
    %3 = vector.load %arg2[%c0_2, %c0_3, %c0_4] : memref<9x3x64xf32, #tpu.memory_space<vmem>>, vector<1x3x64xf32>
    %4 = vector.shape_cast %3 : vector<1x3x64xf32> to vector<3x64xf32>
    %cst_5 = arith.constant dense<0.000000e+00> : vector<224x64xf32>
    %5 = tpu.matmul %2, %4, %cst_5 {dimension_numbers = #tpu.dot_dimension_numbers<[1], [0], [0], [1], [0, 0, 1, 1], [], []>} : vector<224x3xf32>, vector<3x64xf32>, vector<224x64xf32> -> vector<224x64xf32>
    %6 = arith.addf %0, %5 : vector<224x64xf32>
    %c0_6 = arith.constant 0 : index
    %c1 = arith.constant 1 : index
    %c0_7 = arith.constant 0 : index
    %7 = vector.load %arg1[%c0_6, %c1, %c0_7] : memref<1x288x3xf32, #tpu.memory_space<vmem>>, vector<1x224x3xf32>
    %8 = vector.shape_cast %7 : vector<1x224x3xf32> to vector<224x3xf32>
    %c1_8 = arith.constant 1 : index
    %c0_9 = arith.constant 0 : index
    %c0_10 = arith.constant 0 : index
    %9 = vector.load %arg2[%c1_8, %c0_9, %c0_10] : memref<9x3x64xf32, #tpu.memory_space<vmem>>, vector<1x3x64xf32>
    %10 = vector.shape_cast %9 : vector<1x3x64xf32> to vector<3x64xf32>
    %cst_11 = arith.constant dense<0.000000e+00> : vector<224x64xf32>
    %11 = tpu.matmul %8, %10, %cst_11 {dimension_numbers = #tpu.dot_dimension_numbers<[1], [0], [0], [1], [0, 0, 1, 1], [], []>} : vector<224x3xf32>, vector<3x64xf32>, vector<224x64xf32> -> vector<224x64xf32>
    %12 = arith.addf %6, %11 : vector<224x64xf32>
    %c0_12 = arith.constant 0 : index
    %c2 = arith.constant 2 : index
    %c0_13 = arith.constant 0 : index
    %13 = vector.load %arg1[%c0_12, %c2, %c0_13] : memref<1x288x3xf32, #tpu.memory_space<vmem>>, vector<1x224x3xf32>
    %14 = vector.shape_cast %13 : vector<1x224x3xf32> to vector<224x3xf32>
    %c2_14 = arith.constant 2 : index
    %c0_15 = arith.constant 0 : index
    %c0_16 = arith.constant 0 : index
    %15 = vector.load %arg2[%c2_14, %c0_15, %c0_16] : memref<9x3x64xf32, #tpu.memory_space<vmem>>, vector<1x3x64xf32>
    %16 = vector.shape_cast %15 : vector<1x3x64xf32> to vector<3x64xf32>
    %cst_17 = arith.constant dense<0.000000e+00> : vector<224x64xf32>
    %17 = tpu.matmul %14, %16, %cst_17 {dimension_numbers = #tpu.dot_dimension_numbers<[1], [0], [0], [1], [0, 0, 1, 1], [], []>} : vector<224x3xf32>, vector<3x64xf32>, vector<224x64xf32> -> vector<224x64xf32>
    %18 = arith.addf %12, %17 : vector<224x64xf32>
    %c0_18 = arith.constant 0 : index
    %c16 = arith.constant 16 : index
    %c0_19 = arith.constant 0 : index
    %19 = vector.load %arg1[%c0_18, %c16, %c0_19] : memref<1x288x3xf32, #tpu.memory_space<vmem>>, vector<1x224x3xf32>
    %20 = vector.shape_cast %19 : vector<1x224x3xf32> to vector<224x3xf32>
    %c3 = arith.constant 3 : index
    %c0_20 = arith.constant 0 : index
    %c0_21 = arith.constant 0 : index
    %21 = vector.load %arg2[%c3, %c0_20, %c0_21] : memref<9x3x64xf32, #tpu.memory_space<vmem>>, vector<1x3x64xf32>
    %22 = vector.shape_cast %21 : vector<1x3x64xf32> to vector<3x64xf32>
    %cst_22 = arith.constant dense<0.000000e+00> : vector<224x64xf32>
    %23 = tpu.matmul %20, %22, %cst_22 {dimension_numbers = #tpu.dot_dimension_numbers<[1], [0], [0], [1], [0, 0, 1, 1], [], []>} : vector<224x3xf32>, vector<3x64xf32>, vector<224x64xf32> -> vector<224x64xf32>
    %24 = arith.addf %18, %23 : vector<224x64xf32>
    %c0_23 = arith.constant 0 : index
    %c17 = arith.constant 17 : index
    %c0_24 = arith.constant 0 : index
    %25 = vector.load %arg1[%c0_23, %c17, %c0_24] : memref<1x288x3xf32, #tpu.memory_space<vmem>>, vector<1x224x3xf32>
    %26 = vector.shape_cast %25 : vector<1x224x3xf32> to vector<224x3xf32>
    %c4 = arith.constant 4 : index
    %c0_25 = arith.constant 0 : index
    %c0_26 = arith.constant 0 : index
    %27 = vector.load %arg2[%c4, %c0_25, %c0_26] : memref<9x3x64xf32, #tpu.memory_space<vmem>>, vector<1x3x64xf32>
    %28 = vector.shape_cast %27 : vector<1x3x64xf32> to vector<3x64xf32>
    %cst_27 = arith.constant dense<0.000000e+00> : vector<224x64xf32>
    %29 = tpu.matmul %26, %28, %cst_27 {dimension_numbers = #tpu.dot_dimension_numbers<[1], [0], [0], [1], [0, 0, 1, 1], [], []>} : vector<224x3xf32>, vector<3x64xf32>, vector<224x64xf32> -> vector<224x64xf32>
    %30 = arith.addf %24, %29 : vector<224x64xf32>
    %c0_28 = arith.constant 0 : index
    %c18 = arith.constant 18 : index
    %c0_29 = arith.constant 0 : index
    %31 = vector.load %arg1[%c0_28, %c18, %c0_29] : memref<1x288x3xf32, #tpu.memory_space<vmem>>, vector<1x224x3xf32>
    %32 = vector.shape_cast %31 : vector<1x224x3xf32> to vector<224x3xf32>
    %c5 = arith.constant 5 : index
    %c0_30 = arith.constant 0 : index
    %c0_31 = arith.constant 0 : index
    %33 = vector.load %arg2[%c5, %c0_30, %c0_31] : memref<9x3x64xf32, #tpu.memory_space<vmem>>, vector<1x3x64xf32>
    %34 = vector.shape_cast %33 : vector<1x3x64xf32> to vector<3x64xf32>
    %cst_32 = arith.constant dense<0.000000e+00> : vector<224x64xf32>
    %35 = tpu.matmul %32, %34, %cst_32 {dimension_numbers = #tpu.dot_dimension_numbers<[1], [0], [0], [1], [0, 0, 1, 1], [], []>} : vector<224x3xf32>, vector<3x64xf32>, vector<224x64xf32> -> vector<224x64xf32>
    %36 = arith.addf %30, %35 : vector<224x64xf32>
    %c0_33 = arith.constant 0 : index
    %c32 = arith.constant 32 : index
    %c0_34 = arith.constant 0 : index
    %37 = vector.load %arg1[%c0_33, %c32, %c0_34] : memref<1x288x3xf32, #tpu.memory_space<vmem>>, vector<1x224x3xf32>
    %38 = vector.shape_cast %37 : vector<1x224x3xf32> to vector<224x3xf32>
    %c6 = arith.constant 6 : index
    %c0_35 = arith.constant 0 : index
    %c0_36 = arith.constant 0 : index
    %39 = vector.load %arg2[%c6, %c0_35, %c0_36] : memref<9x3x64xf32, #tpu.memory_space<vmem>>, vector<1x3x64xf32>
    %40 = vector.shape_cast %39 : vector<1x3x64xf32> to vector<3x64xf32>
    %cst_37 = arith.constant dense<0.000000e+00> : vector<224x64xf32>
    %41 = tpu.matmul %38, %40, %cst_37 {dimension_numbers = #tpu.dot_dimension_numbers<[1], [0], [0], [1], [0, 0, 1, 1], [], []>} : vector<224x3xf32>, vector<3x64xf32>, vector<224x64xf32> -> vector<224x64xf32>
    %42 = arith.addf %36, %41 : vector<224x64xf32>
    %c0_38 = arith.constant 0 : index
    %c33 = arith.constant 33 : index
    %c0_39 = arith.constant 0 : index
    %43 = vector.load %arg1[%c0_38, %c33, %c0_39] : memref<1x288x3xf32, #tpu.memory_space<vmem>>, vector<1x224x3xf32>
    %44 = vector.shape_cast %43 : vector<1x224x3xf32> to vector<224x3xf32>
    %c7 = arith.constant 7 : index
    %c0_40 = arith.constant 0 : index
    %c0_41 = arith.constant 0 : index
    %45 = vector.load %arg2[%c7, %c0_40, %c0_41] : memref<9x3x64xf32, #tpu.memory_space<vmem>>, vector<1x3x64xf32>
    %46 = vector.shape_cast %45 : vector<1x3x64xf32> to vector<3x64xf32>
    %cst_42 = arith.constant dense<0.000000e+00> : vector<224x64xf32>
    %47 = tpu.matmul %44, %46, %cst_42 {dimension_numbers = #tpu.dot_dimension_numbers<[1], [0], [0], [1], [0, 0, 1, 1], [], []>} : vector<224x3xf32>, vector<3x64xf32>, vector<224x64xf32> -> vector<224x64xf32>
    %48 = arith.addf %42, %47 : vector<224x64xf32>
    %c0_43 = arith.constant 0 : index
    %c34 = arith.constant 34 : index
    %c0_44 = arith.constant 0 : index
    %49 = vector.load %arg1[%c0_43, %c34, %c0_44] : memref<1x288x3xf32, #tpu.memory_space<vmem>>, vector<1x224x3xf32>
    %50 = vector.shape_cast %49 : vector<1x224x3xf32> to vector<224x3xf32>
    %c8 = arith.constant 8 : index
    %c0_45 = arith.constant 0 : index
    %c0_46 = arith.constant 0 : index
    %51 = vector.load %arg2[%c8, %c0_45, %c0_46] : memref<9x3x64xf32, #tpu.memory_space<vmem>>, vector<1x3x64xf32>
    %52 = vector.shape_cast %51 : vector<1x3x64xf32> to vector<3x64xf32>
    %cst_47 = arith.constant dense<0.000000e+00> : vector<224x64xf32>
    %53 = tpu.matmul %50, %52, %cst_47 {dimension_numbers = #tpu.dot_dimension_numbers<[1], [0], [0], [1], [0, 0, 1, 1], [], []>} : vector<224x3xf32>, vector<3x64xf32>, vector<224x64xf32> -> vector<224x64xf32>
    %54 = arith.addf %48, %53 : vector<224x64xf32>
    %c0_48 = arith.constant 0 : index
    %c0_49 = arith.constant 0 : index
    %55 = vector.load %arg3[%c0_48, %c0_49] : memref<1x64xf32, #tpu.memory_space<vmem>>, vector<1x64xf32>
    %56 = vector.broadcast %55 : vector<1x64xf32> to vector<224x64xf32>
    %57 = arith.addf %54, %56 : vector<224x64xf32>
    %cst_50 = arith.constant 0.000000e+00 : f32
    %58 = vector.broadcast %cst_50 : f32 to vector<224x64xf32>
    %59 = arith.maximumf %57, %58 : vector<224x64xf32>
    %60 = tpu.iota {dimensions = array<i32: 0>} : vector<7x16xi32>
    %61 = tpu.iota {dimensions = array<i32: 1>} : vector<7x16xi32>
    %c2_i32 = arith.constant 2 : i32
    %62 = vector.broadcast %c2_i32 : i32 to vector<7x16xi32>
    %63 = arith.muli %62, %60 : vector<7x16xi32>
    %64 = arith.cmpi eq, %61, %63 : vector<7x16xi32>
    %65 = arith.extui %64 : vector<7x16xi1> to vector<7x16xi32>
    %66 = arith.sitofp %65 : vector<7x16xi32> to vector<7x16xf32>
    %c2_i32_51 = arith.constant 2 : i32
    %67 = vector.broadcast %c2_i32_51 : i32 to vector<7x16xi32>
    %68 = arith.muli %67, %60 : vector<7x16xi32>
    %c1_i32 = arith.constant 1 : i32
    %69 = vector.broadcast %c1_i32 : i32 to vector<7x16xi32>
    %70 = arith.addi %68, %69 : vector<7x16xi32>
    %71 = arith.cmpi eq, %61, %70 : vector<7x16xi32>
    %72 = arith.extui %71 : vector<7x16xi1> to vector<7x16xi32>
    %73 = arith.sitofp %72 : vector<7x16xi32> to vector<7x16xf32>
    %74 = vector.extract_strided_slice %59 {offsets = [0, 0], sizes = [16, 64], strides = [1, 1]} : vector<224x64xf32> to vector<16x64xf32>
    %75 = vector.extract_strided_slice %59 {offsets = [16, 0], sizes = [16, 64], strides = [1, 1]} : vector<224x64xf32> to vector<16x64xf32>
    %76 = arith.maximumf %74, %75 : vector<16x64xf32>
    %cst_52 = arith.constant dense<0.000000e+00> : vector<7x64xf32>
    %77 = tpu.matmul %66, %76, %cst_52 {dimension_numbers = #tpu.dot_dimension_numbers<[1], [0], [0], [1], [0, 0, 1, 1], [], []>} : vector<7x16xf32>, vector<16x64xf32>, vector<7x64xf32> -> vector<7x64xf32>
    %cst_53 = arith.constant dense<0.000000e+00> : vector<7x64xf32>
    %78 = tpu.matmul %73, %76, %cst_53 {dimension_numbers = #tpu.dot_dimension_numbers<[1], [0], [0], [1], [0, 0, 1, 1], [], []>} : vector<7x16xf32>, vector<16x64xf32>, vector<7x64xf32> -> vector<7x64xf32>
    %79 = arith.maximumf %77, %78 : vector<7x64xf32>
    %80 = vector.extract_strided_slice %59 {offsets = [32, 0], sizes = [16, 64], strides = [1, 1]} : vector<224x64xf32> to vector<16x64xf32>
    %81 = vector.extract_strided_slice %59 {offsets = [48, 0], sizes = [16, 64], strides = [1, 1]} : vector<224x64xf32> to vector<16x64xf32>
    %82 = arith.maximumf %80, %81 : vector<16x64xf32>
    %cst_54 = arith.constant dense<0.000000e+00> : vector<7x64xf32>
    %83 = tpu.matmul %66, %82, %cst_54 {dimension_numbers = #tpu.dot_dimension_numbers<[1], [0], [0], [1], [0, 0, 1, 1], [], []>} : vector<7x16xf32>, vector<16x64xf32>, vector<7x64xf32> -> vector<7x64xf32>
    %cst_55 = arith.constant dense<0.000000e+00> : vector<7x64xf32>
    %84 = tpu.matmul %73, %82, %cst_55 {dimension_numbers = #tpu.dot_dimension_numbers<[1], [0], [0], [1], [0, 0, 1, 1], [], []>} : vector<7x16xf32>, vector<16x64xf32>, vector<7x64xf32> -> vector<7x64xf32>
    %85 = arith.maximumf %83, %84 : vector<7x64xf32>
    %86 = vector.extract_strided_slice %59 {offsets = [64, 0], sizes = [16, 64], strides = [1, 1]} : vector<224x64xf32> to vector<16x64xf32>
    %87 = vector.extract_strided_slice %59 {offsets = [80, 0], sizes = [16, 64], strides = [1, 1]} : vector<224x64xf32> to vector<16x64xf32>
    %88 = arith.maximumf %86, %87 : vector<16x64xf32>
    %cst_56 = arith.constant dense<0.000000e+00> : vector<7x64xf32>
    %89 = tpu.matmul %66, %88, %cst_56 {dimension_numbers = #tpu.dot_dimension_numbers<[1], [0], [0], [1], [0, 0, 1, 1], [], []>} : vector<7x16xf32>, vector<16x64xf32>, vector<7x64xf32> -> vector<7x64xf32>
    %cst_57 = arith.constant dense<0.000000e+00> : vector<7x64xf32>
    %90 = tpu.matmul %73, %88, %cst_57 {dimension_numbers = #tpu.dot_dimension_numbers<[1], [0], [0], [1], [0, 0, 1, 1], [], []>} : vector<7x16xf32>, vector<16x64xf32>, vector<7x64xf32> -> vector<7x64xf32>
    %91 = arith.maximumf %89, %90 : vector<7x64xf32>
    %92 = vector.extract_strided_slice %59 {offsets = [96, 0], sizes = [16, 64], strides = [1, 1]} : vector<224x64xf32> to vector<16x64xf32>
    %93 = vector.extract_strided_slice %59 {offsets = [112, 0], sizes = [16, 64], strides = [1, 1]} : vector<224x64xf32> to vector<16x64xf32>
    %94 = arith.maximumf %92, %93 : vector<16x64xf32>
    %cst_58 = arith.constant dense<0.000000e+00> : vector<7x64xf32>
    %95 = tpu.matmul %66, %94, %cst_58 {dimension_numbers = #tpu.dot_dimension_numbers<[1], [0], [0], [1], [0, 0, 1, 1], [], []>} : vector<7x16xf32>, vector<16x64xf32>, vector<7x64xf32> -> vector<7x64xf32>
    %cst_59 = arith.constant dense<0.000000e+00> : vector<7x64xf32>
    %96 = tpu.matmul %73, %94, %cst_59 {dimension_numbers = #tpu.dot_dimension_numbers<[1], [0], [0], [1], [0, 0, 1, 1], [], []>} : vector<7x16xf32>, vector<16x64xf32>, vector<7x64xf32> -> vector<7x64xf32>
    %97 = arith.maximumf %95, %96 : vector<7x64xf32>
    %98 = vector.extract_strided_slice %59 {offsets = [128, 0], sizes = [16, 64], strides = [1, 1]} : vector<224x64xf32> to vector<16x64xf32>
    %99 = vector.extract_strided_slice %59 {offsets = [144, 0], sizes = [16, 64], strides = [1, 1]} : vector<224x64xf32> to vector<16x64xf32>
    %100 = arith.maximumf %98, %99 : vector<16x64xf32>
    %cst_60 = arith.constant dense<0.000000e+00> : vector<7x64xf32>
    %101 = tpu.matmul %66, %100, %cst_60 {dimension_numbers = #tpu.dot_dimension_numbers<[1], [0], [0], [1], [0, 0, 1, 1], [], []>} : vector<7x16xf32>, vector<16x64xf32>, vector<7x64xf32> -> vector<7x64xf32>
    %cst_61 = arith.constant dense<0.000000e+00> : vector<7x64xf32>
    %102 = tpu.matmul %73, %100, %cst_61 {dimension_numbers = #tpu.dot_dimension_numbers<[1], [0], [0], [1], [0, 0, 1, 1], [], []>} : vector<7x16xf32>, vector<16x64xf32>, vector<7x64xf32> -> vector<7x64xf32>
    %103 = arith.maximumf %101, %102 : vector<7x64xf32>
    %104 = vector.extract_strided_slice %59 {offsets = [160, 0], sizes = [16, 64], strides = [1, 1]} : vector<224x64xf32> to vector<16x64xf32>
    %105 = vector.extract_strided_slice %59 {offsets = [176, 0], sizes = [16, 64], strides = [1, 1]} : vector<224x64xf32> to vector<16x64xf32>
    %106 = arith.maximumf %104, %105 : vector<16x64xf32>
    %cst_62 = arith.constant dense<0.000000e+00> : vector<7x64xf32>
    %107 = tpu.matmul %66, %106, %cst_62 {dimension_numbers = #tpu.dot_dimension_numbers<[1], [0], [0], [1], [0, 0, 1, 1], [], []>} : vector<7x16xf32>, vector<16x64xf32>, vector<7x64xf32> -> vector<7x64xf32>
    %cst_63 = arith.constant dense<0.000000e+00> : vector<7x64xf32>
    %108 = tpu.matmul %73, %106, %cst_63 {dimension_numbers = #tpu.dot_dimension_numbers<[1], [0], [0], [1], [0, 0, 1, 1], [], []>} : vector<7x16xf32>, vector<16x64xf32>, vector<7x64xf32> -> vector<7x64xf32>
    %109 = arith.maximumf %107, %108 : vector<7x64xf32>
    %c0_64 = arith.constant 0 : index
    %c0_65 = arith.constant 0 : index
    %110 = vector.load %arg5[%c0_64, %c0_65] : memref<1x128xf32, #tpu.memory_space<vmem>>, vector<1x128xf32>
    %cst_66 = arith.constant 0.000000e+00 : f32
    %111 = vector.broadcast %cst_66 : f32 to vector<5x128xf32>
    %112 = vector.extract_strided_slice %79 {offsets = [0, 0], sizes = [5, 64], strides = [1, 1]} : vector<7x64xf32> to vector<5x64xf32>
    %c0_67 = arith.constant 0 : index
    %c0_68 = arith.constant 0 : index
    %c0_69 = arith.constant 0 : index
    %113 = vector.load %arg4[%c0_67, %c0_68, %c0_69] : memref<9x64x128xf32, #tpu.memory_space<vmem>>, vector<1x64x128xf32>
    %114 = vector.shape_cast %113 : vector<1x64x128xf32> to vector<64x128xf32>
    %cst_70 = arith.constant dense<0.000000e+00> : vector<5x128xf32>
    %115 = tpu.matmul %112, %114, %cst_70 {dimension_numbers = #tpu.dot_dimension_numbers<[1], [0], [0], [1], [0, 0, 1, 1], [], []>} : vector<5x64xf32>, vector<64x128xf32>, vector<5x128xf32> -> vector<5x128xf32>
    %116 = arith.addf %111, %115 : vector<5x128xf32>
    %117 = vector.extract_strided_slice %79 {offsets = [1, 0], sizes = [5, 64], strides = [1, 1]} : vector<7x64xf32> to vector<5x64xf32>
    %c1_71 = arith.constant 1 : index
    %c0_72 = arith.constant 0 : index
    %c0_73 = arith.constant 0 : index
    %118 = vector.load %arg4[%c1_71, %c0_72, %c0_73] : memref<9x64x128xf32, #tpu.memory_space<vmem>>, vector<1x64x128xf32>
    %119 = vector.shape_cast %118 : vector<1x64x128xf32> to vector<64x128xf32>
    %cst_74 = arith.constant dense<0.000000e+00> : vector<5x128xf32>
    %120 = tpu.matmul %117, %119, %cst_74 {dimension_numbers = #tpu.dot_dimension_numbers<[1], [0], [0], [1], [0, 0, 1, 1], [], []>} : vector<5x64xf32>, vector<64x128xf32>, vector<5x128xf32> -> vector<5x128xf32>
    %121 = arith.addf %116, %120 : vector<5x128xf32>
    %122 = vector.extract_strided_slice %79 {offsets = [2, 0], sizes = [5, 64], strides = [1, 1]} : vector<7x64xf32> to vector<5x64xf32>
    %c2_75 = arith.constant 2 : index
    %c0_76 = arith.constant 0 : index
    %c0_77 = arith.constant 0 : index
    %123 = vector.load %arg4[%c2_75, %c0_76, %c0_77] : memref<9x64x128xf32, #tpu.memory_space<vmem>>, vector<1x64x128xf32>
    %124 = vector.shape_cast %123 : vector<1x64x128xf32> to vector<64x128xf32>
    %cst_78 = arith.constant dense<0.000000e+00> : vector<5x128xf32>
    %125 = tpu.matmul %122, %124, %cst_78 {dimension_numbers = #tpu.dot_dimension_numbers<[1], [0], [0], [1], [0, 0, 1, 1], [], []>} : vector<5x64xf32>, vector<64x128xf32>, vector<5x128xf32> -> vector<5x128xf32>
    %126 = arith.addf %121, %125 : vector<5x128xf32>
    %127 = vector.extract_strided_slice %85 {offsets = [0, 0], sizes = [5, 64], strides = [1, 1]} : vector<7x64xf32> to vector<5x64xf32>
    %c3_79 = arith.constant 3 : index
    %c0_80 = arith.constant 0 : index
    %c0_81 = arith.constant 0 : index
    %128 = vector.load %arg4[%c3_79, %c0_80, %c0_81] : memref<9x64x128xf32, #tpu.memory_space<vmem>>, vector<1x64x128xf32>
    %129 = vector.shape_cast %128 : vector<1x64x128xf32> to vector<64x128xf32>
    %cst_82 = arith.constant dense<0.000000e+00> : vector<5x128xf32>
    %130 = tpu.matmul %127, %129, %cst_82 {dimension_numbers = #tpu.dot_dimension_numbers<[1], [0], [0], [1], [0, 0, 1, 1], [], []>} : vector<5x64xf32>, vector<64x128xf32>, vector<5x128xf32> -> vector<5x128xf32>
    %131 = arith.addf %126, %130 : vector<5x128xf32>
    %132 = vector.extract_strided_slice %85 {offsets = [1, 0], sizes = [5, 64], strides = [1, 1]} : vector<7x64xf32> to vector<5x64xf32>
    %c4_83 = arith.constant 4 : index
    %c0_84 = arith.constant 0 : index
    %c0_85 = arith.constant 0 : index
    %133 = vector.load %arg4[%c4_83, %c0_84, %c0_85] : memref<9x64x128xf32, #tpu.memory_space<vmem>>, vector<1x64x128xf32>
    %134 = vector.shape_cast %133 : vector<1x64x128xf32> to vector<64x128xf32>
    %cst_86 = arith.constant dense<0.000000e+00> : vector<5x128xf32>
    %135 = tpu.matmul %132, %134, %cst_86 {dimension_numbers = #tpu.dot_dimension_numbers<[1], [0], [0], [1], [0, 0, 1, 1], [], []>} : vector<5x64xf32>, vector<64x128xf32>, vector<5x128xf32> -> vector<5x128xf32>
    %136 = arith.addf %131, %135 : vector<5x128xf32>
    %137 = vector.extract_strided_slice %85 {offsets = [2, 0], sizes = [5, 64], strides = [1, 1]} : vector<7x64xf32> to vector<5x64xf32>
    %c5_87 = arith.constant 5 : index
    %c0_88 = arith.constant 0 : index
    %c0_89 = arith.constant 0 : index
    %138 = vector.load %arg4[%c5_87, %c0_88, %c0_89] : memref<9x64x128xf32, #tpu.memory_space<vmem>>, vector<1x64x128xf32>
    %139 = vector.shape_cast %138 : vector<1x64x128xf32> to vector<64x128xf32>
    %cst_90 = arith.constant dense<0.000000e+00> : vector<5x128xf32>
    %140 = tpu.matmul %137, %139, %cst_90 {dimension_numbers = #tpu.dot_dimension_numbers<[1], [0], [0], [1], [0, 0, 1, 1], [], []>} : vector<5x64xf32>, vector<64x128xf32>, vector<5x128xf32> -> vector<5x128xf32>
    %141 = arith.addf %136, %140 : vector<5x128xf32>
    %142 = vector.extract_strided_slice %91 {offsets = [0, 0], sizes = [5, 64], strides = [1, 1]} : vector<7x64xf32> to vector<5x64xf32>
    %c6_91 = arith.constant 6 : index
    %c0_92 = arith.constant 0 : index
    %c0_93 = arith.constant 0 : index
    %143 = vector.load %arg4[%c6_91, %c0_92, %c0_93] : memref<9x64x128xf32, #tpu.memory_space<vmem>>, vector<1x64x128xf32>
    %144 = vector.shape_cast %143 : vector<1x64x128xf32> to vector<64x128xf32>
    %cst_94 = arith.constant dense<0.000000e+00> : vector<5x128xf32>
    %145 = tpu.matmul %142, %144, %cst_94 {dimension_numbers = #tpu.dot_dimension_numbers<[1], [0], [0], [1], [0, 0, 1, 1], [], []>} : vector<5x64xf32>, vector<64x128xf32>, vector<5x128xf32> -> vector<5x128xf32>
    %146 = arith.addf %141, %145 : vector<5x128xf32>
    %147 = vector.extract_strided_slice %91 {offsets = [1, 0], sizes = [5, 64], strides = [1, 1]} : vector<7x64xf32> to vector<5x64xf32>
    %c7_95 = arith.constant 7 : index
    %c0_96 = arith.constant 0 : index
    %c0_97 = arith.constant 0 : index
    %148 = vector.load %arg4[%c7_95, %c0_96, %c0_97] : memref<9x64x128xf32, #tpu.memory_space<vmem>>, vector<1x64x128xf32>
    %149 = vector.shape_cast %148 : vector<1x64x128xf32> to vector<64x128xf32>
    %cst_98 = arith.constant dense<0.000000e+00> : vector<5x128xf32>
    %150 = tpu.matmul %147, %149, %cst_98 {dimension_numbers = #tpu.dot_dimension_numbers<[1], [0], [0], [1], [0, 0, 1, 1], [], []>} : vector<5x64xf32>, vector<64x128xf32>, vector<5x128xf32> -> vector<5x128xf32>
    %151 = arith.addf %146, %150 : vector<5x128xf32>
    %152 = vector.extract_strided_slice %91 {offsets = [2, 0], sizes = [5, 64], strides = [1, 1]} : vector<7x64xf32> to vector<5x64xf32>
    %c8_99 = arith.constant 8 : index
    %c0_100 = arith.constant 0 : index
    %c0_101 = arith.constant 0 : index
    %153 = vector.load %arg4[%c8_99, %c0_100, %c0_101] : memref<9x64x128xf32, #tpu.memory_space<vmem>>, vector<1x64x128xf32>
    %154 = vector.shape_cast %153 : vector<1x64x128xf32> to vector<64x128xf32>
    %cst_102 = arith.constant dense<0.000000e+00> : vector<5x128xf32>
    %155 = tpu.matmul %152, %154, %cst_102 {dimension_numbers = #tpu.dot_dimension_numbers<[1], [0], [0], [1], [0, 0, 1, 1], [], []>} : vector<5x64xf32>, vector<64x128xf32>, vector<5x128xf32> -> vector<5x128xf32>
    %156 = arith.addf %151, %155 : vector<5x128xf32>
    %157 = vector.broadcast %110 : vector<1x128xf32> to vector<5x128xf32>
    %158 = arith.addf %156, %157 : vector<5x128xf32>
    %cst_103 = arith.constant 0.000000e+00 : f32
    %159 = vector.broadcast %cst_103 : f32 to vector<5x128xf32>
    %160 = arith.maximumf %158, %159 : vector<5x128xf32>
    %cst_104 = arith.constant 0.000000e+00 : f32
    %161 = vector.broadcast %cst_104 : f32 to vector<5x128xf32>
    %162 = vector.extract_strided_slice %85 {offsets = [0, 0], sizes = [5, 64], strides = [1, 1]} : vector<7x64xf32> to vector<5x64xf32>
    %c0_105 = arith.constant 0 : index
    %c0_106 = arith.constant 0 : index
    %c0_107 = arith.constant 0 : index
    %163 = vector.load %arg4[%c0_105, %c0_106, %c0_107] : memref<9x64x128xf32, #tpu.memory_space<vmem>>, vector<1x64x128xf32>
    %164 = vector.shape_cast %163 : vector<1x64x128xf32> to vector<64x128xf32>
    %cst_108 = arith.constant dense<0.000000e+00> : vector<5x128xf32>
    %165 = tpu.matmul %162, %164, %cst_108 {dimension_numbers = #tpu.dot_dimension_numbers<[1], [0], [0], [1], [0, 0, 1, 1], [], []>} : vector<5x64xf32>, vector<64x128xf32>, vector<5x128xf32> -> vector<5x128xf32>
    %166 = arith.addf %161, %165 : vector<5x128xf32>
    %167 = vector.extract_strided_slice %85 {offsets = [1, 0], sizes = [5, 64], strides = [1, 1]} : vector<7x64xf32> to vector<5x64xf32>
    %c1_109 = arith.constant 1 : index
    %c0_110 = arith.constant 0 : index
    %c0_111 = arith.constant 0 : index
    %168 = vector.load %arg4[%c1_109, %c0_110, %c0_111] : memref<9x64x128xf32, #tpu.memory_space<vmem>>, vector<1x64x128xf32>
    %169 = vector.shape_cast %168 : vector<1x64x128xf32> to vector<64x128xf32>
    %cst_112 = arith.constant dense<0.000000e+00> : vector<5x128xf32>
    %170 = tpu.matmul %167, %169, %cst_112 {dimension_numbers = #tpu.dot_dimension_numbers<[1], [0], [0], [1], [0, 0, 1, 1], [], []>} : vector<5x64xf32>, vector<64x128xf32>, vector<5x128xf32> -> vector<5x128xf32>
    %171 = arith.addf %166, %170 : vector<5x128xf32>
    %172 = vector.extract_strided_slice %85 {offsets = [2, 0], sizes = [5, 64], strides = [1, 1]} : vector<7x64xf32> to vector<5x64xf32>
    %c2_113 = arith.constant 2 : index
    %c0_114 = arith.constant 0 : index
    %c0_115 = arith.constant 0 : index
    %173 = vector.load %arg4[%c2_113, %c0_114, %c0_115] : memref<9x64x128xf32, #tpu.memory_space<vmem>>, vector<1x64x128xf32>
    %174 = vector.shape_cast %173 : vector<1x64x128xf32> to vector<64x128xf32>
    %cst_116 = arith.constant dense<0.000000e+00> : vector<5x128xf32>
    %175 = tpu.matmul %172, %174, %cst_116 {dimension_numbers = #tpu.dot_dimension_numbers<[1], [0], [0], [1], [0, 0, 1, 1], [], []>} : vector<5x64xf32>, vector<64x128xf32>, vector<5x128xf32> -> vector<5x128xf32>
    %176 = arith.addf %171, %175 : vector<5x128xf32>
    %177 = vector.extract_strided_slice %91 {offsets = [0, 0], sizes = [5, 64], strides = [1, 1]} : vector<7x64xf32> to vector<5x64xf32>
    %c3_117 = arith.constant 3 : index
    %c0_118 = arith.constant 0 : index
    %c0_119 = arith.constant 0 : index
    %178 = vector.load %arg4[%c3_117, %c0_118, %c0_119] : memref<9x64x128xf32, #tpu.memory_space<vmem>>, vector<1x64x128xf32>
    %179 = vector.shape_cast %178 : vector<1x64x128xf32> to vector<64x128xf32>
    %cst_120 = arith.constant dense<0.000000e+00> : vector<5x128xf32>
    %180 = tpu.matmul %177, %179, %cst_120 {dimension_numbers = #tpu.dot_dimension_numbers<[1], [0], [0], [1], [0, 0, 1, 1], [], []>} : vector<5x64xf32>, vector<64x128xf32>, vector<5x128xf32> -> vector<5x128xf32>
    %181 = arith.addf %176, %180 : vector<5x128xf32>
    %182 = vector.extract_strided_slice %91 {offsets = [1, 0], sizes = [5, 64], strides = [1, 1]} : vector<7x64xf32> to vector<5x64xf32>
    %c4_121 = arith.constant 4 : index
    %c0_122 = arith.constant 0 : index
    %c0_123 = arith.constant 0 : index
    %183 = vector.load %arg4[%c4_121, %c0_122, %c0_123] : memref<9x64x128xf32, #tpu.memory_space<vmem>>, vector<1x64x128xf32>
    %184 = vector.shape_cast %183 : vector<1x64x128xf32> to vector<64x128xf32>
    %cst_124 = arith.constant dense<0.000000e+00> : vector<5x128xf32>
    %185 = tpu.matmul %182, %184, %cst_124 {dimension_numbers = #tpu.dot_dimension_numbers<[1], [0], [0], [1], [0, 0, 1, 1], [], []>} : vector<5x64xf32>, vector<64x128xf32>, vector<5x128xf32> -> vector<5x128xf32>
    %186 = arith.addf %181, %185 : vector<5x128xf32>
    %187 = vector.extract_strided_slice %91 {offsets = [2, 0], sizes = [5, 64], strides = [1, 1]} : vector<7x64xf32> to vector<5x64xf32>
    %c5_125 = arith.constant 5 : index
    %c0_126 = arith.constant 0 : index
    %c0_127 = arith.constant 0 : index
    %188 = vector.load %arg4[%c5_125, %c0_126, %c0_127] : memref<9x64x128xf32, #tpu.memory_space<vmem>>, vector<1x64x128xf32>
    %189 = vector.shape_cast %188 : vector<1x64x128xf32> to vector<64x128xf32>
    %cst_128 = arith.constant dense<0.000000e+00> : vector<5x128xf32>
    %190 = tpu.matmul %187, %189, %cst_128 {dimension_numbers = #tpu.dot_dimension_numbers<[1], [0], [0], [1], [0, 0, 1, 1], [], []>} : vector<5x64xf32>, vector<64x128xf32>, vector<5x128xf32> -> vector<5x128xf32>
    %191 = arith.addf %186, %190 : vector<5x128xf32>
    %192 = vector.extract_strided_slice %97 {offsets = [0, 0], sizes = [5, 64], strides = [1, 1]} : vector<7x64xf32> to vector<5x64xf32>
    %c6_129 = arith.constant 6 : index
    %c0_130 = arith.constant 0 : index
    %c0_131 = arith.constant 0 : index
    %193 = vector.load %arg4[%c6_129, %c0_130, %c0_131] : memref<9x64x128xf32, #tpu.memory_space<vmem>>, vector<1x64x128xf32>
    %194 = vector.shape_cast %193 : vector<1x64x128xf32> to vector<64x128xf32>
    %cst_132 = arith.constant dense<0.000000e+00> : vector<5x128xf32>
    %195 = tpu.matmul %192, %194, %cst_132 {dimension_numbers = #tpu.dot_dimension_numbers<[1], [0], [0], [1], [0, 0, 1, 1], [], []>} : vector<5x64xf32>, vector<64x128xf32>, vector<5x128xf32> -> vector<5x128xf32>
    %196 = arith.addf %191, %195 : vector<5x128xf32>
    %197 = vector.extract_strided_slice %97 {offsets = [1, 0], sizes = [5, 64], strides = [1, 1]} : vector<7x64xf32> to vector<5x64xf32>
    %c7_133 = arith.constant 7 : index
    %c0_134 = arith.constant 0 : index
    %c0_135 = arith.constant 0 : index
    %198 = vector.load %arg4[%c7_133, %c0_134, %c0_135] : memref<9x64x128xf32, #tpu.memory_space<vmem>>, vector<1x64x128xf32>
    %199 = vector.shape_cast %198 : vector<1x64x128xf32> to vector<64x128xf32>
    %cst_136 = arith.constant dense<0.000000e+00> : vector<5x128xf32>
    %200 = tpu.matmul %197, %199, %cst_136 {dimension_numbers = #tpu.dot_dimension_numbers<[1], [0], [0], [1], [0, 0, 1, 1], [], []>} : vector<5x64xf32>, vector<64x128xf32>, vector<5x128xf32> -> vector<5x128xf32>
    %201 = arith.addf %196, %200 : vector<5x128xf32>
    %202 = vector.extract_strided_slice %97 {offsets = [2, 0], sizes = [5, 64], strides = [1, 1]} : vector<7x64xf32> to vector<5x64xf32>
    %c8_137 = arith.constant 8 : index
    %c0_138 = arith.constant 0 : index
    %c0_139 = arith.constant 0 : index
    %203 = vector.load %arg4[%c8_137, %c0_138, %c0_139] : memref<9x64x128xf32, #tpu.memory_space<vmem>>, vector<1x64x128xf32>
    %204 = vector.shape_cast %203 : vector<1x64x128xf32> to vector<64x128xf32>
    %cst_140 = arith.constant dense<0.000000e+00> : vector<5x128xf32>
    %205 = tpu.matmul %202, %204, %cst_140 {dimension_numbers = #tpu.dot_dimension_numbers<[1], [0], [0], [1], [0, 0, 1, 1], [], []>} : vector<5x64xf32>, vector<64x128xf32>, vector<5x128xf32> -> vector<5x128xf32>
    %206 = arith.addf %201, %205 : vector<5x128xf32>
    %207 = vector.broadcast %110 : vector<1x128xf32> to vector<5x128xf32>
    %208 = arith.addf %206, %207 : vector<5x128xf32>
    %cst_141 = arith.constant 0.000000e+00 : f32
    %209 = vector.broadcast %cst_141 : f32 to vector<5x128xf32>
    %210 = arith.maximumf %208, %209 : vector<5x128xf32>
    %cst_142 = arith.constant 0.000000e+00 : f32
    %211 = vector.broadcast %cst_142 : f32 to vector<5x128xf32>
    %212 = vector.extract_strided_slice %91 {offsets = [0, 0], sizes = [5, 64], strides = [1, 1]} : vector<7x64xf32> to vector<5x64xf32>
    %c0_143 = arith.constant 0 : index
    %c0_144 = arith.constant 0 : index
    %c0_145 = arith.constant 0 : index
    %213 = vector.load %arg4[%c0_143, %c0_144, %c0_145] : memref<9x64x128xf32, #tpu.memory_space<vmem>>, vector<1x64x128xf32>
    %214 = vector.shape_cast %213 : vector<1x64x128xf32> to vector<64x128xf32>
    %cst_146 = arith.constant dense<0.000000e+00> : vector<5x128xf32>
    %215 = tpu.matmul %212, %214, %cst_146 {dimension_numbers = #tpu.dot_dimension_numbers<[1], [0], [0], [1], [0, 0, 1, 1], [], []>} : vector<5x64xf32>, vector<64x128xf32>, vector<5x128xf32> -> vector<5x128xf32>
    %216 = arith.addf %211, %215 : vector<5x128xf32>
    %217 = vector.extract_strided_slice %91 {offsets = [1, 0], sizes = [5, 64], strides = [1, 1]} : vector<7x64xf32> to vector<5x64xf32>
    %c1_147 = arith.constant 1 : index
    %c0_148 = arith.constant 0 : index
    %c0_149 = arith.constant 0 : index
    %218 = vector.load %arg4[%c1_147, %c0_148, %c0_149] : memref<9x64x128xf32, #tpu.memory_space<vmem>>, vector<1x64x128xf32>
    %219 = vector.shape_cast %218 : vector<1x64x128xf32> to vector<64x128xf32>
    %cst_150 = arith.constant dense<0.000000e+00> : vector<5x128xf32>
    %220 = tpu.matmul %217, %219, %cst_150 {dimension_numbers = #tpu.dot_dimension_numbers<[1], [0], [0], [1], [0, 0, 1, 1], [], []>} : vector<5x64xf32>, vector<64x128xf32>, vector<5x128xf32> -> vector<5x128xf32>
    %221 = arith.addf %216, %220 : vector<5x128xf32>
    %222 = vector.extract_strided_slice %91 {offsets = [2, 0], sizes = [5, 64], strides = [1, 1]} : vector<7x64xf32> to vector<5x64xf32>
    %c2_151 = arith.constant 2 : index
    %c0_152 = arith.constant 0 : index
    %c0_153 = arith.constant 0 : index
    %223 = vector.load %arg4[%c2_151, %c0_152, %c0_153] : memref<9x64x128xf32, #tpu.memory_space<vmem>>, vector<1x64x128xf32>
    %224 = vector.shape_cast %223 : vector<1x64x128xf32> to vector<64x128xf32>
    %cst_154 = arith.constant dense<0.000000e+00> : vector<5x128xf32>
    %225 = tpu.matmul %222, %224, %cst_154 {dimension_numbers = #tpu.dot_dimension_numbers<[1], [0], [0], [1], [0, 0, 1, 1], [], []>} : vector<5x64xf32>, vector<64x128xf32>, vector<5x128xf32> -> vector<5x128xf32>
    %226 = arith.addf %221, %225 : vector<5x128xf32>
    %227 = vector.extract_strided_slice %97 {offsets = [0, 0], sizes = [5, 64], strides = [1, 1]} : vector<7x64xf32> to vector<5x64xf32>
    %c3_155 = arith.constant 3 : index
    %c0_156 = arith.constant 0 : index
    %c0_157 = arith.constant 0 : index
    %228 = vector.load %arg4[%c3_155, %c0_156, %c0_157] : memref<9x64x128xf32, #tpu.memory_space<vmem>>, vector<1x64x128xf32>
    %229 = vector.shape_cast %228 : vector<1x64x128xf32> to vector<64x128xf32>
    %cst_158 = arith.constant dense<0.000000e+00> : vector<5x128xf32>
    %230 = tpu.matmul %227, %229, %cst_158 {dimension_numbers = #tpu.dot_dimension_numbers<[1], [0], [0], [1], [0, 0, 1, 1], [], []>} : vector<5x64xf32>, vector<64x128xf32>, vector<5x128xf32> -> vector<5x128xf32>
    %231 = arith.addf %226, %230 : vector<5x128xf32>
    %232 = vector.extract_strided_slice %97 {offsets = [1, 0], sizes = [5, 64], strides = [1, 1]} : vector<7x64xf32> to vector<5x64xf32>
    %c4_159 = arith.constant 4 : index
    %c0_160 = arith.constant 0 : index
    %c0_161 = arith.constant 0 : index
    %233 = vector.load %arg4[%c4_159, %c0_160, %c0_161] : memref<9x64x128xf32, #tpu.memory_space<vmem>>, vector<1x64x128xf32>
    %234 = vector.shape_cast %233 : vector<1x64x128xf32> to vector<64x128xf32>
    %cst_162 = arith.constant dense<0.000000e+00> : vector<5x128xf32>
    %235 = tpu.matmul %232, %234, %cst_162 {dimension_numbers = #tpu.dot_dimension_numbers<[1], [0], [0], [1], [0, 0, 1, 1], [], []>} : vector<5x64xf32>, vector<64x128xf32>, vector<5x128xf32> -> vector<5x128xf32>
    %236 = arith.addf %231, %235 : vector<5x128xf32>
    %237 = vector.extract_strided_slice %97 {offsets = [2, 0], sizes = [5, 64], strides = [1, 1]} : vector<7x64xf32> to vector<5x64xf32>
    %c5_163 = arith.constant 5 : index
    %c0_164 = arith.constant 0 : index
    %c0_165 = arith.constant 0 : index
    %238 = vector.load %arg4[%c5_163, %c0_164, %c0_165] : memref<9x64x128xf32, #tpu.memory_space<vmem>>, vector<1x64x128xf32>
    %239 = vector.shape_cast %238 : vector<1x64x128xf32> to vector<64x128xf32>
    %cst_166 = arith.constant dense<0.000000e+00> : vector<5x128xf32>
    %240 = tpu.matmul %237, %239, %cst_166 {dimension_numbers = #tpu.dot_dimension_numbers<[1], [0], [0], [1], [0, 0, 1, 1], [], []>} : vector<5x64xf32>, vector<64x128xf32>, vector<5x128xf32> -> vector<5x128xf32>
    %241 = arith.addf %236, %240 : vector<5x128xf32>
    %242 = vector.extract_strided_slice %103 {offsets = [0, 0], sizes = [5, 64], strides = [1, 1]} : vector<7x64xf32> to vector<5x64xf32>
    %c6_167 = arith.constant 6 : index
    %c0_168 = arith.constant 0 : index
    %c0_169 = arith.constant 0 : index
    %243 = vector.load %arg4[%c6_167, %c0_168, %c0_169] : memref<9x64x128xf32, #tpu.memory_space<vmem>>, vector<1x64x128xf32>
    %244 = vector.shape_cast %243 : vector<1x64x128xf32> to vector<64x128xf32>
    %cst_170 = arith.constant dense<0.000000e+00> : vector<5x128xf32>
    %245 = tpu.matmul %242, %244, %cst_170 {dimension_numbers = #tpu.dot_dimension_numbers<[1], [0], [0], [1], [0, 0, 1, 1], [], []>} : vector<5x64xf32>, vector<64x128xf32>, vector<5x128xf32> -> vector<5x128xf32>
    %246 = arith.addf %241, %245 : vector<5x128xf32>
    %247 = vector.extract_strided_slice %103 {offsets = [1, 0], sizes = [5, 64], strides = [1, 1]} : vector<7x64xf32> to vector<5x64xf32>
    %c7_171 = arith.constant 7 : index
    %c0_172 = arith.constant 0 : index
    %c0_173 = arith.constant 0 : index
    %248 = vector.load %arg4[%c7_171, %c0_172, %c0_173] : memref<9x64x128xf32, #tpu.memory_space<vmem>>, vector<1x64x128xf32>
    %249 = vector.shape_cast %248 : vector<1x64x128xf32> to vector<64x128xf32>
    %cst_174 = arith.constant dense<0.000000e+00> : vector<5x128xf32>
    %250 = tpu.matmul %247, %249, %cst_174 {dimension_numbers = #tpu.dot_dimension_numbers<[1], [0], [0], [1], [0, 0, 1, 1], [], []>} : vector<5x64xf32>, vector<64x128xf32>, vector<5x128xf32> -> vector<5x128xf32>
    %251 = arith.addf %246, %250 : vector<5x128xf32>
    %252 = vector.extract_strided_slice %103 {offsets = [2, 0], sizes = [5, 64], strides = [1, 1]} : vector<7x64xf32> to vector<5x64xf32>
    %c8_175 = arith.constant 8 : index
    %c0_176 = arith.constant 0 : index
    %c0_177 = arith.constant 0 : index
    %253 = vector.load %arg4[%c8_175, %c0_176, %c0_177] : memref<9x64x128xf32, #tpu.memory_space<vmem>>, vector<1x64x128xf32>
    %254 = vector.shape_cast %253 : vector<1x64x128xf32> to vector<64x128xf32>
    %cst_178 = arith.constant dense<0.000000e+00> : vector<5x128xf32>
    %255 = tpu.matmul %252, %254, %cst_178 {dimension_numbers = #tpu.dot_dimension_numbers<[1], [0], [0], [1], [0, 0, 1, 1], [], []>} : vector<5x64xf32>, vector<64x128xf32>, vector<5x128xf32> -> vector<5x128xf32>
    %256 = arith.addf %251, %255 : vector<5x128xf32>
    %257 = vector.broadcast %110 : vector<1x128xf32> to vector<5x128xf32>
    %258 = arith.addf %256, %257 : vector<5x128xf32>
    %cst_179 = arith.constant 0.000000e+00 : f32
    %259 = vector.broadcast %cst_179 : f32 to vector<5x128xf32>
    %260 = arith.maximumf %258, %259 : vector<5x128xf32>
    %cst_180 = arith.constant 0.000000e+00 : f32
    %261 = vector.broadcast %cst_180 : f32 to vector<5x128xf32>
    %262 = vector.extract_strided_slice %97 {offsets = [0, 0], sizes = [5, 64], strides = [1, 1]} : vector<7x64xf32> to vector<5x64xf32>
    %c0_181 = arith.constant 0 : index
    %c0_182 = arith.constant 0 : index
    %c0_183 = arith.constant 0 : index
    %263 = vector.load %arg4[%c0_181, %c0_182, %c0_183] : memref<9x64x128xf32, #tpu.memory_space<vmem>>, vector<1x64x128xf32>
    %264 = vector.shape_cast %263 : vector<1x64x128xf32> to vector<64x128xf32>
    %cst_184 = arith.constant dense<0.000000e+00> : vector<5x128xf32>
    %265 = tpu.matmul %262, %264, %cst_184 {dimension_numbers = #tpu.dot_dimension_numbers<[1], [0], [0], [1], [0, 0, 1, 1], [], []>} : vector<5x64xf32>, vector<64x128xf32>, vector<5x128xf32> -> vector<5x128xf32>
    %266 = arith.addf %261, %265 : vector<5x128xf32>
    %267 = vector.extract_strided_slice %97 {offsets = [1, 0], sizes = [5, 64], strides = [1, 1]} : vector<7x64xf32> to vector<5x64xf32>
    %c1_185 = arith.constant 1 : index
    %c0_186 = arith.constant 0 : index
    %c0_187 = arith.constant 0 : index
    %268 = vector.load %arg4[%c1_185, %c0_186, %c0_187] : memref<9x64x128xf32, #tpu.memory_space<vmem>>, vector<1x64x128xf32>
    %269 = vector.shape_cast %268 : vector<1x64x128xf32> to vector<64x128xf32>
    %cst_188 = arith.constant dense<0.000000e+00> : vector<5x128xf32>
    %270 = tpu.matmul %267, %269, %cst_188 {dimension_numbers = #tpu.dot_dimension_numbers<[1], [0], [0], [1], [0, 0, 1, 1], [], []>} : vector<5x64xf32>, vector<64x128xf32>, vector<5x128xf32> -> vector<5x128xf32>
    %271 = arith.addf %266, %270 : vector<5x128xf32>
    %272 = vector.extract_strided_slice %97 {offsets = [2, 0], sizes = [5, 64], strides = [1, 1]} : vector<7x64xf32> to vector<5x64xf32>
    %c2_189 = arith.constant 2 : index
    %c0_190 = arith.constant 0 : index
    %c0_191 = arith.constant 0 : index
    %273 = vector.load %arg4[%c2_189, %c0_190, %c0_191] : memref<9x64x128xf32, #tpu.memory_space<vmem>>, vector<1x64x128xf32>
    %274 = vector.shape_cast %273 : vector<1x64x128xf32> to vector<64x128xf32>
    %cst_192 = arith.constant dense<0.000000e+00> : vector<5x128xf32>
    %275 = tpu.matmul %272, %274, %cst_192 {dimension_numbers = #tpu.dot_dimension_numbers<[1], [0], [0], [1], [0, 0, 1, 1], [], []>} : vector<5x64xf32>, vector<64x128xf32>, vector<5x128xf32> -> vector<5x128xf32>
    %276 = arith.addf %271, %275 : vector<5x128xf32>
    %277 = vector.extract_strided_slice %103 {offsets = [0, 0], sizes = [5, 64], strides = [1, 1]} : vector<7x64xf32> to vector<5x64xf32>
    %c3_193 = arith.constant 3 : index
    %c0_194 = arith.constant 0 : index
    %c0_195 = arith.constant 0 : index
    %278 = vector.load %arg4[%c3_193, %c0_194, %c0_195] : memref<9x64x128xf32, #tpu.memory_space<vmem>>, vector<1x64x128xf32>
    %279 = vector.shape_cast %278 : vector<1x64x128xf32> to vector<64x128xf32>
    %cst_196 = arith.constant dense<0.000000e+00> : vector<5x128xf32>
    %280 = tpu.matmul %277, %279, %cst_196 {dimension_numbers = #tpu.dot_dimension_numbers<[1], [0], [0], [1], [0, 0, 1, 1], [], []>} : vector<5x64xf32>, vector<64x128xf32>, vector<5x128xf32> -> vector<5x128xf32>
    %281 = arith.addf %276, %280 : vector<5x128xf32>
    %282 = vector.extract_strided_slice %103 {offsets = [1, 0], sizes = [5, 64], strides = [1, 1]} : vector<7x64xf32> to vector<5x64xf32>
    %c4_197 = arith.constant 4 : index
    %c0_198 = arith.constant 0 : index
    %c0_199 = arith.constant 0 : index
    %283 = vector.load %arg4[%c4_197, %c0_198, %c0_199] : memref<9x64x128xf32, #tpu.memory_space<vmem>>, vector<1x64x128xf32>
    %284 = vector.shape_cast %283 : vector<1x64x128xf32> to vector<64x128xf32>
    %cst_200 = arith.constant dense<0.000000e+00> : vector<5x128xf32>
    %285 = tpu.matmul %282, %284, %cst_200 {dimension_numbers = #tpu.dot_dimension_numbers<[1], [0], [0], [1], [0, 0, 1, 1], [], []>} : vector<5x64xf32>, vector<64x128xf32>, vector<5x128xf32> -> vector<5x128xf32>
    %286 = arith.addf %281, %285 : vector<5x128xf32>
    %287 = vector.extract_strided_slice %103 {offsets = [2, 0], sizes = [5, 64], strides = [1, 1]} : vector<7x64xf32> to vector<5x64xf32>
    %c5_201 = arith.constant 5 : index
    %c0_202 = arith.constant 0 : index
    %c0_203 = arith.constant 0 : index
    %288 = vector.load %arg4[%c5_201, %c0_202, %c0_203] : memref<9x64x128xf32, #tpu.memory_space<vmem>>, vector<1x64x128xf32>
    %289 = vector.shape_cast %288 : vector<1x64x128xf32> to vector<64x128xf32>
    %cst_204 = arith.constant dense<0.000000e+00> : vector<5x128xf32>
    %290 = tpu.matmul %287, %289, %cst_204 {dimension_numbers = #tpu.dot_dimension_numbers<[1], [0], [0], [1], [0, 0, 1, 1], [], []>} : vector<5x64xf32>, vector<64x128xf32>, vector<5x128xf32> -> vector<5x128xf32>
    %291 = arith.addf %286, %290 : vector<5x128xf32>
    %292 = vector.extract_strided_slice %109 {offsets = [0, 0], sizes = [5, 64], strides = [1, 1]} : vector<7x64xf32> to vector<5x64xf32>
    %c6_205 = arith.constant 6 : index
    %c0_206 = arith.constant 0 : index
    %c0_207 = arith.constant 0 : index
    %293 = vector.load %arg4[%c6_205, %c0_206, %c0_207] : memref<9x64x128xf32, #tpu.memory_space<vmem>>, vector<1x64x128xf32>
    %294 = vector.shape_cast %293 : vector<1x64x128xf32> to vector<64x128xf32>
    %cst_208 = arith.constant dense<0.000000e+00> : vector<5x128xf32>
    %295 = tpu.matmul %292, %294, %cst_208 {dimension_numbers = #tpu.dot_dimension_numbers<[1], [0], [0], [1], [0, 0, 1, 1], [], []>} : vector<5x64xf32>, vector<64x128xf32>, vector<5x128xf32> -> vector<5x128xf32>
    %296 = arith.addf %291, %295 : vector<5x128xf32>
    %297 = vector.extract_strided_slice %109 {offsets = [1, 0], sizes = [5, 64], strides = [1, 1]} : vector<7x64xf32> to vector<5x64xf32>
    %c7_209 = arith.constant 7 : index
    %c0_210 = arith.constant 0 : index
    %c0_211 = arith.constant 0 : index
    %298 = vector.load %arg4[%c7_209, %c0_210, %c0_211] : memref<9x64x128xf32, #tpu.memory_space<vmem>>, vector<1x64x128xf32>
    %299 = vector.shape_cast %298 : vector<1x64x128xf32> to vector<64x128xf32>
    %cst_212 = arith.constant dense<0.000000e+00> : vector<5x128xf32>
    %300 = tpu.matmul %297, %299, %cst_212 {dimension_numbers = #tpu.dot_dimension_numbers<[1], [0], [0], [1], [0, 0, 1, 1], [], []>} : vector<5x64xf32>, vector<64x128xf32>, vector<5x128xf32> -> vector<5x128xf32>
    %301 = arith.addf %296, %300 : vector<5x128xf32>
    %302 = vector.extract_strided_slice %109 {offsets = [2, 0], sizes = [5, 64], strides = [1, 1]} : vector<7x64xf32> to vector<5x64xf32>
    %c8_213 = arith.constant 8 : index
    %c0_214 = arith.constant 0 : index
    %c0_215 = arith.constant 0 : index
    %303 = vector.load %arg4[%c8_213, %c0_214, %c0_215] : memref<9x64x128xf32, #tpu.memory_space<vmem>>, vector<1x64x128xf32>
    %304 = vector.shape_cast %303 : vector<1x64x128xf32> to vector<64x128xf32>
    %cst_216 = arith.constant dense<0.000000e+00> : vector<5x128xf32>
    %305 = tpu.matmul %302, %304, %cst_216 {dimension_numbers = #tpu.dot_dimension_numbers<[1], [0], [0], [1], [0, 0, 1, 1], [], []>} : vector<5x64xf32>, vector<64x128xf32>, vector<5x128xf32> -> vector<5x128xf32>
    %306 = arith.addf %301, %305 : vector<5x128xf32>
    %307 = vector.broadcast %110 : vector<1x128xf32> to vector<5x128xf32>
    %308 = arith.addf %306, %307 : vector<5x128xf32>
    %cst_217 = arith.constant 0.000000e+00 : f32
    %309 = vector.broadcast %cst_217 : f32 to vector<5x128xf32>
    %310 = arith.maximumf %308, %309 : vector<5x128xf32>
    %c0_218 = arith.constant 0 : index
    %c0_219 = arith.constant 0 : index
    %311 = vector.load %arg7[%c0_218, %c0_219] : memref<1x128xf32, #tpu.memory_space<vmem>>, vector<1x128xf32>
    %cst_220 = arith.constant 0.000000e+00 : f32
    %312 = vector.broadcast %cst_220 : f32 to vector<2x128xf32>
    %313 = vector.extract_strided_slice %160 {offsets = [0, 0], sizes = [2, 128], strides = [1, 1]} : vector<5x128xf32> to vector<2x128xf32>
    %c0_221 = arith.constant 0 : index
    %c0_222 = arith.constant 0 : index
    %c0_223 = arith.constant 0 : index
    %314 = vector.load %arg6[%c0_221, %c0_222, %c0_223] : memref<9x128x128xf32, #tpu.memory_space<vmem>>, vector<1x128x128xf32>
    %315 = vector.shape_cast %314 : vector<1x128x128xf32> to vector<128x128xf32>
    %cst_224 = arith.constant dense<0.000000e+00> : vector<2x128xf32>
    %316 = tpu.matmul %313, %315, %cst_224 {dimension_numbers = #tpu.dot_dimension_numbers<[1], [0], [0], [1], [0, 0, 1, 1], [], []>} : vector<2x128xf32>, vector<128x128xf32>, vector<2x128xf32> -> vector<2x128xf32>
    %317 = arith.addf %312, %316 : vector<2x128xf32>
    %318 = vector.extract_strided_slice %160 {offsets = [1, 0], sizes = [2, 128], strides = [1, 1]} : vector<5x128xf32> to vector<2x128xf32>
    %c1_225 = arith.constant 1 : index
    %c0_226 = arith.constant 0 : index
    %c0_227 = arith.constant 0 : index
    %319 = vector.load %arg6[%c1_225, %c0_226, %c0_227] : memref<9x128x128xf32, #tpu.memory_space<vmem>>, vector<1x128x128xf32>
    %320 = vector.shape_cast %319 : vector<1x128x128xf32> to vector<128x128xf32>
    %cst_228 = arith.constant dense<0.000000e+00> : vector<2x128xf32>
    %321 = tpu.matmul %318, %320, %cst_228 {dimension_numbers = #tpu.dot_dimension_numbers<[1], [0], [0], [1], [0, 0, 1, 1], [], []>} : vector<2x128xf32>, vector<128x128xf32>, vector<2x128xf32> -> vector<2x128xf32>
    %322 = arith.addf %317, %321 : vector<2x128xf32>
    %323 = vector.extract_strided_slice %160 {offsets = [2, 0], sizes = [2, 128], strides = [1, 1]} : vector<5x128xf32> to vector<2x128xf32>
    %c2_229 = arith.constant 2 : index
    %c0_230 = arith.constant 0 : index
    %c0_231 = arith.constant 0 : index
    %324 = vector.load %arg6[%c2_229, %c0_230, %c0_231] : memref<9x128x128xf32, #tpu.memory_space<vmem>>, vector<1x128x128xf32>
    %325 = vector.shape_cast %324 : vector<1x128x128xf32> to vector<128x128xf32>
    %cst_232 = arith.constant dense<0.000000e+00> : vector<2x128xf32>
    %326 = tpu.matmul %323, %325, %cst_232 {dimension_numbers = #tpu.dot_dimension_numbers<[1], [0], [0], [1], [0, 0, 1, 1], [], []>} : vector<2x128xf32>, vector<128x128xf32>, vector<2x128xf32> -> vector<2x128xf32>
    %327 = arith.addf %322, %326 : vector<2x128xf32>
    %328 = vector.extract_strided_slice %210 {offsets = [0, 0], sizes = [2, 128], strides = [1, 1]} : vector<5x128xf32> to vector<2x128xf32>
    %c3_233 = arith.constant 3 : index
    %c0_234 = arith.constant 0 : index
    %c0_235 = arith.constant 0 : index
    %329 = vector.load %arg6[%c3_233, %c0_234, %c0_235] : memref<9x128x128xf32, #tpu.memory_space<vmem>>, vector<1x128x128xf32>
    %330 = vector.shape_cast %329 : vector<1x128x128xf32> to vector<128x128xf32>
    %cst_236 = arith.constant dense<0.000000e+00> : vector<2x128xf32>
    %331 = tpu.matmul %328, %330, %cst_236 {dimension_numbers = #tpu.dot_dimension_numbers<[1], [0], [0], [1], [0, 0, 1, 1], [], []>} : vector<2x128xf32>, vector<128x128xf32>, vector<2x128xf32> -> vector<2x128xf32>
    %332 = arith.addf %327, %331 : vector<2x128xf32>
    %333 = vector.extract_strided_slice %210 {offsets = [1, 0], sizes = [2, 128], strides = [1, 1]} : vector<5x128xf32> to vector<2x128xf32>
    %c4_237 = arith.constant 4 : index
    %c0_238 = arith.constant 0 : index
    %c0_239 = arith.constant 0 : index
    %334 = vector.load %arg6[%c4_237, %c0_238, %c0_239] : memref<9x128x128xf32, #tpu.memory_space<vmem>>, vector<1x128x128xf32>
    %335 = vector.shape_cast %334 : vector<1x128x128xf32> to vector<128x128xf32>
    %cst_240 = arith.constant dense<0.000000e+00> : vector<2x128xf32>
    %336 = tpu.matmul %333, %335, %cst_240 {dimension_numbers = #tpu.dot_dimension_numbers<[1], [0], [0], [1], [0, 0, 1, 1], [], []>} : vector<2x128xf32>, vector<128x128xf32>, vector<2x128xf32> -> vector<2x128xf32>
    %337 = arith.addf %332, %336 : vector<2x128xf32>
    %338 = vector.extract_strided_slice %210 {offsets = [2, 0], sizes = [2, 128], strides = [1, 1]} : vector<5x128xf32> to vector<2x128xf32>
    %c5_241 = arith.constant 5 : index
    %c0_242 = arith.constant 0 : index
    %c0_243 = arith.constant 0 : index
    %339 = vector.load %arg6[%c5_241, %c0_242, %c0_243] : memref<9x128x128xf32, #tpu.memory_space<vmem>>, vector<1x128x128xf32>
    %340 = vector.shape_cast %339 : vector<1x128x128xf32> to vector<128x128xf32>
    %cst_244 = arith.constant dense<0.000000e+00> : vector<2x128xf32>
    %341 = tpu.matmul %338, %340, %cst_244 {dimension_numbers = #tpu.dot_dimension_numbers<[1], [0], [0], [1], [0, 0, 1, 1], [], []>} : vector<2x128xf32>, vector<128x128xf32>, vector<2x128xf32> -> vector<2x128xf32>
    %342 = arith.addf %337, %341 : vector<2x128xf32>
    %343 = vector.extract_strided_slice %260 {offsets = [0, 0], sizes = [2, 128], strides = [1, 1]} : vector<5x128xf32> to vector<2x128xf32>
    %c6_245 = arith.constant 6 : index
    %c0_246 = arith.constant 0 : index
    %c0_247 = arith.constant 0 : index
    %344 = vector.load %arg6[%c6_245, %c0_246, %c0_247] : memref<9x128x128xf32, #tpu.memory_space<vmem>>, vector<1x128x128xf32>
    %345 = vector.shape_cast %344 : vector<1x128x128xf32> to vector<128x128xf32>
    %cst_248 = arith.constant dense<0.000000e+00> : vector<2x128xf32>
    %346 = tpu.matmul %343, %345, %cst_248 {dimension_numbers = #tpu.dot_dimension_numbers<[1], [0], [0], [1], [0, 0, 1, 1], [], []>} : vector<2x128xf32>, vector<128x128xf32>, vector<2x128xf32> -> vector<2x128xf32>
    %347 = arith.addf %342, %346 : vector<2x128xf32>
    %348 = vector.extract_strided_slice %260 {offsets = [1, 0], sizes = [2, 128], strides = [1, 1]} : vector<5x128xf32> to vector<2x128xf32>
    %c7_249 = arith.constant 7 : index
    %c0_250 = arith.constant 0 : index
    %c0_251 = arith.constant 0 : index
    %349 = vector.load %arg6[%c7_249, %c0_250, %c0_251] : memref<9x128x128xf32, #tpu.memory_space<vmem>>, vector<1x128x128xf32>
    %350 = vector.shape_cast %349 : vector<1x128x128xf32> to vector<128x128xf32>
    %cst_252 = arith.constant dense<0.000000e+00> : vector<2x128xf32>
    %351 = tpu.matmul %348, %350, %cst_252 {dimension_numbers = #tpu.dot_dimension_numbers<[1], [0], [0], [1], [0, 0, 1, 1], [], []>} : vector<2x128xf32>, vector<128x128xf32>, vector<2x128xf32> -> vector<2x128xf32>
    %352 = arith.addf %347, %351 : vector<2x128xf32>
    %353 = vector.extract_strided_slice %260 {offsets = [2, 0], sizes = [2, 128], strides = [1, 1]} : vector<5x128xf32> to vector<2x128xf32>
    %c8_253 = arith.constant 8 : index
    %c0_254 = arith.constant 0 : index
    %c0_255 = arith.constant 0 : index
    %354 = vector.load %arg6[%c8_253, %c0_254, %c0_255] : memref<9x128x128xf32, #tpu.memory_space<vmem>>, vector<1x128x128xf32>
    %355 = vector.shape_cast %354 : vector<1x128x128xf32> to vector<128x128xf32>
    %cst_256 = arith.constant dense<0.000000e+00> : vector<2x128xf32>
    %356 = tpu.matmul %353, %355, %cst_256 {dimension_numbers = #tpu.dot_dimension_numbers<[1], [0], [0], [1], [0, 0, 1, 1], [], []>} : vector<2x128xf32>, vector<128x128xf32>, vector<2x128xf32> -> vector<2x128xf32>
    %357 = arith.addf %352, %356 : vector<2x128xf32>
    %358 = vector.broadcast %311 : vector<1x128xf32> to vector<2x128xf32>
    %359 = arith.addf %357, %358 : vector<2x128xf32>
    %cst_257 = arith.constant 0.000000e+00 : f32
    %360 = vector.broadcast %cst_257 : f32 to vector<2x128xf32>
    %361 = arith.maximumf %359, %360 : vector<2x128xf32>
    %cst_258 = arith.constant 0.000000e+00 : f32
    %362 = vector.broadcast %cst_258 : f32 to vector<2x128xf32>
    %363 = vector.extract_strided_slice %210 {offsets = [0, 0], sizes = [2, 128], strides = [1, 1]} : vector<5x128xf32> to vector<2x128xf32>
    %c0_259 = arith.constant 0 : index
    %c0_260 = arith.constant 0 : index
    %c0_261 = arith.constant 0 : index
    %364 = vector.load %arg6[%c0_259, %c0_260, %c0_261] : memref<9x128x128xf32, #tpu.memory_space<vmem>>, vector<1x128x128xf32>
    %365 = vector.shape_cast %364 : vector<1x128x128xf32> to vector<128x128xf32>
    %cst_262 = arith.constant dense<0.000000e+00> : vector<2x128xf32>
    %366 = tpu.matmul %363, %365, %cst_262 {dimension_numbers = #tpu.dot_dimension_numbers<[1], [0], [0], [1], [0, 0, 1, 1], [], []>} : vector<2x128xf32>, vector<128x128xf32>, vector<2x128xf32> -> vector<2x128xf32>
    %367 = arith.addf %362, %366 : vector<2x128xf32>
    %368 = vector.extract_strided_slice %210 {offsets = [1, 0], sizes = [2, 128], strides = [1, 1]} : vector<5x128xf32> to vector<2x128xf32>
    %c1_263 = arith.constant 1 : index
    %c0_264 = arith.constant 0 : index
    %c0_265 = arith.constant 0 : index
    %369 = vector.load %arg6[%c1_263, %c0_264, %c0_265] : memref<9x128x128xf32, #tpu.memory_space<vmem>>, vector<1x128x128xf32>
    %370 = vector.shape_cast %369 : vector<1x128x128xf32> to vector<128x128xf32>
    %cst_266 = arith.constant dense<0.000000e+00> : vector<2x128xf32>
    %371 = tpu.matmul %368, %370, %cst_266 {dimension_numbers = #tpu.dot_dimension_numbers<[1], [0], [0], [1], [0, 0, 1, 1], [], []>} : vector<2x128xf32>, vector<128x128xf32>, vector<2x128xf32> -> vector<2x128xf32>
    %372 = arith.addf %367, %371 : vector<2x128xf32>
    %373 = vector.extract_strided_slice %210 {offsets = [2, 0], sizes = [2, 128], strides = [1, 1]} : vector<5x128xf32> to vector<2x128xf32>
    %c2_267 = arith.constant 2 : index
    %c0_268 = arith.constant 0 : index
    %c0_269 = arith.constant 0 : index
    %374 = vector.load %arg6[%c2_267, %c0_268, %c0_269] : memref<9x128x128xf32, #tpu.memory_space<vmem>>, vector<1x128x128xf32>
    %375 = vector.shape_cast %374 : vector<1x128x128xf32> to vector<128x128xf32>
    %cst_270 = arith.constant dense<0.000000e+00> : vector<2x128xf32>
    %376 = tpu.matmul %373, %375, %cst_270 {dimension_numbers = #tpu.dot_dimension_numbers<[1], [0], [0], [1], [0, 0, 1, 1], [], []>} : vector<2x128xf32>, vector<128x128xf32>, vector<2x128xf32> -> vector<2x128xf32>
    %377 = arith.addf %372, %376 : vector<2x128xf32>
    %378 = vector.extract_strided_slice %260 {offsets = [0, 0], sizes = [2, 128], strides = [1, 1]} : vector<5x128xf32> to vector<2x128xf32>
    %c3_271 = arith.constant 3 : index
    %c0_272 = arith.constant 0 : index
    %c0_273 = arith.constant 0 : index
    %379 = vector.load %arg6[%c3_271, %c0_272, %c0_273] : memref<9x128x128xf32, #tpu.memory_space<vmem>>, vector<1x128x128xf32>
    %380 = vector.shape_cast %379 : vector<1x128x128xf32> to vector<128x128xf32>
    %cst_274 = arith.constant dense<0.000000e+00> : vector<2x128xf32>
    %381 = tpu.matmul %378, %380, %cst_274 {dimension_numbers = #tpu.dot_dimension_numbers<[1], [0], [0], [1], [0, 0, 1, 1], [], []>} : vector<2x128xf32>, vector<128x128xf32>, vector<2x128xf32> -> vector<2x128xf32>
    %382 = arith.addf %377, %381 : vector<2x128xf32>
    %383 = vector.extract_strided_slice %260 {offsets = [1, 0], sizes = [2, 128], strides = [1, 1]} : vector<5x128xf32> to vector<2x128xf32>
    %c4_275 = arith.constant 4 : index
    %c0_276 = arith.constant 0 : index
    %c0_277 = arith.constant 0 : index
    %384 = vector.load %arg6[%c4_275, %c0_276, %c0_277] : memref<9x128x128xf32, #tpu.memory_space<vmem>>, vector<1x128x128xf32>
    %385 = vector.shape_cast %384 : vector<1x128x128xf32> to vector<128x128xf32>
    %cst_278 = arith.constant dense<0.000000e+00> : vector<2x128xf32>
    %386 = tpu.matmul %383, %385, %cst_278 {dimension_numbers = #tpu.dot_dimension_numbers<[1], [0], [0], [1], [0, 0, 1, 1], [], []>} : vector<2x128xf32>, vector<128x128xf32>, vector<2x128xf32> -> vector<2x128xf32>
    %387 = arith.addf %382, %386 : vector<2x128xf32>
    %388 = vector.extract_strided_slice %260 {offsets = [2, 0], sizes = [2, 128], strides = [1, 1]} : vector<5x128xf32> to vector<2x128xf32>
    %c5_279 = arith.constant 5 : index
    %c0_280 = arith.constant 0 : index
    %c0_281 = arith.constant 0 : index
    %389 = vector.load %arg6[%c5_279, %c0_280, %c0_281] : memref<9x128x128xf32, #tpu.memory_space<vmem>>, vector<1x128x128xf32>
    %390 = vector.shape_cast %389 : vector<1x128x128xf32> to vector<128x128xf32>
    %cst_282 = arith.constant dense<0.000000e+00> : vector<2x128xf32>
    %391 = tpu.matmul %388, %390, %cst_282 {dimension_numbers = #tpu.dot_dimension_numbers<[1], [0], [0], [1], [0, 0, 1, 1], [], []>} : vector<2x128xf32>, vector<128x128xf32>, vector<2x128xf32> -> vector<2x128xf32>
    %392 = arith.addf %387, %391 : vector<2x128xf32>
    %393 = vector.extract_strided_slice %310 {offsets = [0, 0], sizes = [2, 128], strides = [1, 1]} : vector<5x128xf32> to vector<2x128xf32>
    %c6_283 = arith.constant 6 : index
    %c0_284 = arith.constant 0 : index
    %c0_285 = arith.constant 0 : index
    %394 = vector.load %arg6[%c6_283, %c0_284, %c0_285] : memref<9x128x128xf32, #tpu.memory_space<vmem>>, vector<1x128x128xf32>
    %395 = vector.shape_cast %394 : vector<1x128x128xf32> to vector<128x128xf32>
    %cst_286 = arith.constant dense<0.000000e+00> : vector<2x128xf32>
    %396 = tpu.matmul %393, %395, %cst_286 {dimension_numbers = #tpu.dot_dimension_numbers<[1], [0], [0], [1], [0, 0, 1, 1], [], []>} : vector<2x128xf32>, vector<128x128xf32>, vector<2x128xf32> -> vector<2x128xf32>
    %397 = arith.addf %392, %396 : vector<2x128xf32>
    %398 = vector.extract_strided_slice %310 {offsets = [1, 0], sizes = [2, 128], strides = [1, 1]} : vector<5x128xf32> to vector<2x128xf32>
    %c7_287 = arith.constant 7 : index
    %c0_288 = arith.constant 0 : index
    %c0_289 = arith.constant 0 : index
    %399 = vector.load %arg6[%c7_287, %c0_288, %c0_289] : memref<9x128x128xf32, #tpu.memory_space<vmem>>, vector<1x128x128xf32>
    %400 = vector.shape_cast %399 : vector<1x128x128xf32> to vector<128x128xf32>
    %cst_290 = arith.constant dense<0.000000e+00> : vector<2x128xf32>
    %401 = tpu.matmul %398, %400, %cst_290 {dimension_numbers = #tpu.dot_dimension_numbers<[1], [0], [0], [1], [0, 0, 1, 1], [], []>} : vector<2x128xf32>, vector<128x128xf32>, vector<2x128xf32> -> vector<2x128xf32>
    %402 = arith.addf %397, %401 : vector<2x128xf32>
    %403 = vector.extract_strided_slice %310 {offsets = [2, 0], sizes = [2, 128], strides = [1, 1]} : vector<5x128xf32> to vector<2x128xf32>
    %c8_291 = arith.constant 8 : index
    %c0_292 = arith.constant 0 : index
    %c0_293 = arith.constant 0 : index
    %404 = vector.load %arg6[%c8_291, %c0_292, %c0_293] : memref<9x128x128xf32, #tpu.memory_space<vmem>>, vector<1x128x128xf32>
    %405 = vector.shape_cast %404 : vector<1x128x128xf32> to vector<128x128xf32>
    %cst_294 = arith.constant dense<0.000000e+00> : vector<2x128xf32>
    %406 = tpu.matmul %403, %405, %cst_294 {dimension_numbers = #tpu.dot_dimension_numbers<[1], [0], [0], [1], [0, 0, 1, 1], [], []>} : vector<2x128xf32>, vector<128x128xf32>, vector<2x128xf32> -> vector<2x128xf32>
    %407 = arith.addf %402, %406 : vector<2x128xf32>
    %408 = vector.broadcast %311 : vector<1x128xf32> to vector<2x128xf32>
    %409 = arith.addf %407, %408 : vector<2x128xf32>
    %cst_295 = arith.constant 0.000000e+00 : f32
    %410 = vector.broadcast %cst_295 : f32 to vector<2x128xf32>
    %411 = arith.maximumf %409, %410 : vector<2x128xf32>
    %412 = arith.maximumf %361, %411 : vector<2x128xf32>
    %413 = vector.extract_strided_slice %412 {offsets = [0, 0], sizes = [1, 128], strides = [1, 1]} : vector<2x128xf32> to vector<1x128xf32>
    %414 = vector.extract_strided_slice %412 {offsets = [1, 0], sizes = [1, 128], strides = [1, 1]} : vector<2x128xf32> to vector<1x128xf32>
    %415 = arith.maximumf %413, %414 : vector<1x128xf32>
    %c0_296 = arith.constant 0 : index
    %c0_297 = arith.constant 0 : index
    %416 = vector.load %arg8[%c0_296, %c0_297] : memref<128x64xf32, #tpu.memory_space<vmem>>, vector<128x64xf32>
    %cst_298 = arith.constant dense<0.000000e+00> : vector<1x64xf32>
    %417 = tpu.matmul %415, %416, %cst_298 {dimension_numbers = #tpu.dot_dimension_numbers<[1], [0], [0], [1], [0, 0, 1, 1], [], []>} : vector<1x128xf32>, vector<128x64xf32>, vector<1x64xf32> -> vector<1x64xf32>
    %c0_299 = arith.constant 0 : index
    %c0_300 = arith.constant 0 : index
    %418 = vector.load %arg9[%c0_299, %c0_300] : memref<1x64xf32, #tpu.memory_space<vmem>>, vector<1x64xf32>
    %419 = arith.addf %417, %418 : vector<1x64xf32>
    %cst_301 = arith.constant 0.000000e+00 : f32
    %420 = vector.broadcast %cst_301 : f32 to vector<1x64xf32>
    %421 = arith.maximumf %419, %420 : vector<1x64xf32>
    %c0_302 = arith.constant 0 : index
    %c0_303 = arith.constant 0 : index
    %c0_304 = arith.constant 0 : index
    %422 = vector.load %arg10[%c0_302, %c0_303, %c0_304] : memref<1x1x64xf32, #tpu.memory_space<vmem>>, vector<1x1x64xf32>
    %423 = vector.shape_cast %422 : vector<1x1x64xf32> to vector<1x64xf32>
    %424 = vector.shape_cast %421 : vector<1x64xf32> to vector<1x1x64xf32>
    tpu.vector_store %arg10[%c0_302, %c0_303, %c0_304], %424 {strides = array<i32>} : memref<1x1x64xf32, #tpu.memory_space<vmem>>, vector<1x1x64xf32>,
    return
  }
  func.func @transform_0(%arg0: i32) -> (i32, i32, i32) {
    %c0_i32 = arith.constant 0 : i32
    %c0_i32_0 = arith.constant 0 : i32
    %c0_i32_1 = arith.constant 0 : i32
    return %arg0, %c0_i32, %c0_i32_0 : i32, i32, i32
  }
  func.func @transform_1(%arg0: i32) -> (i32, i32, i32) {
    %c0_i32 = arith.constant 0 : i32
    %c0_i32_0 = arith.constant 0 : i32
    %c0_i32_1 = arith.constant 0 : i32
    %c0_i32_2 = arith.constant 0 : i32
    return %c0_i32, %c0_i32_0, %c0_i32_1 : i32, i32, i32
  }
  func.func @transform_2(%arg0: i32) -> (i32, i32) {
    %c0_i32 = arith.constant 0 : i32
    %c0_i32_0 = arith.constant 0 : i32
    %c0_i32_1 = arith.constant 0 : i32
    return %c0_i32, %c0_i32_0 : i32, i32
  }
  func.func @transform_3(%arg0: i32) -> (i32, i32, i32) {
    %c0_i32 = arith.constant 0 : i32
    %c0_i32_0 = arith.constant 0 : i32
    %c0_i32_1 = arith.constant 0 : i32
    %c0_i32_2 = arith.constant 0 : i32
    return %c0_i32, %c0_i32_0, %c0_i32_1 : i32, i32, i32
  }
  func.func @transform_4(%arg0: i32) -> (i32, i32) {
    %c0_i32 = arith.constant 0 : i32
    %c0_i32_0 = arith.constant 0 : i32
    %c0_i32_1 = arith.constant 0 : i32
    return %c0_i32, %c0_i32_0 : i32, i32
  }
  func.func @transform_5(%arg0: i32) -> (i32, i32, i32) {
    %c0_i32 = arith.constant 0 : i32
    %c0_i32_0 = arith.constant 0 : i32
    %c0_i32_1 = arith.constant 0 : i32
    %c0_i32_2 = arith.constant 0 : i32
    return %c0_i32, %c0_i32_0, %c0_i32_1 : i32, i32, i32
  }
  func.func @transform_6(%arg0: i32) -> (i32, i32) {
    %c0_i32 = arith.constant 0 : i32
    %c0_i32_0 = arith.constant 0 : i32
    %c0_i32_1 = arith.constant 0 : i32
    return %c0_i32, %c0_i32_0 : i32, i32
  }
  func.func @transform_7(%arg0: i32) -> (i32, i32) {
    %c0_i32 = arith.constant 0 : i32
    %c0_i32_0 = arith.constant 0 : i32
    %c0_i32_1 = arith.constant 0 : i32
    return %c0_i32, %c0_i32_0 : i32, i32
  }
  func.func @transform_8(%arg0: i32) -> (i32, i32) {
    %c0_i32 = arith.constant 0 : i32
    %c0_i32_0 = arith.constant 0 : i32
    %c0_i32_1 = arith.constant 0 : i32
    return %c0_i32, %c0_i32_0 : i32, i32
  }
  func.func @transform_9(%arg0: i32) -> (i32, i32, i32) {
    %c0_i32 = arith.constant 0 : i32
    %c0_i32_0 = arith.constant 0 : i32
    %c0_i32_1 = arith.constant 0 : i32
    return %arg0, %c0_i32, %c0_i32_0 : i32, i32, i32
  }
}

</mosaic_0001>

<llo_original>
// kernel: image_embedding_forward.1
$region0: #{image_embedding_forward.1}
  #allocation0 [shape = 'u32[]', space=smem, size = 0x4, offset = 0x4, fixed_abs, tag = 'smem constant byte address 0x4 - core index']
  #allocation1 [shape = 'u32[144,128]{1,0:T(1,128)}', space=vmem, size = 0x12000, scoped, tag = 'internal scratch']
  %s0 = inlined_call_operand.vmem [shape: f32[2,288,3], index: 0, kind: input, shape index: {}]
  %s1 = inlined_call_operand.vmem [shape: f32[9,3,64], index: 1, kind: input, shape index: {}]
  %s2 = inlined_call_operand.vmem [shape: f32[1,64], index: 2, kind: input, shape index: {}]
  %s3 = inlined_call_operand.vmem [shape: f32[9,64,128], index: 3, kind: input, shape index: {}]
  %s4 = inlined_call_operand.vmem [shape: f32[1,128], index: 4, kind: input, shape index: {}]
  %s5 = inlined_call_operand.vmem [shape: f32[9,128,128], index: 5, kind: input, shape index: {}]
  %s6 = inlined_call_operand.vmem [shape: f32[1,128], index: 6, kind: input, shape index: {}]
  %s7 = inlined_call_operand.vmem [shape: f32[128,64], index: 7, kind: input, shape index: {}]
  %s8 = inlined_call_operand.vmem [shape: f32[1,64], index: 8, kind: input, shape index: {}]
  %s9 = inlined_call_operand.hbm [shape: f32[2,1,64], index: 9, kind: output, shape index: {}]
  %s10 = sld [smem:[#allocation0]]
  $region69: #{image_embedding_forward.1} parent=0
    _
  %s12 = ssub.s32 1, %s10
  %s13 = scalar_select 0, %s12, %s10
  $region1: #{image_embedding_forward.1} parent=0
    #allocation2 [shape = 'u8[1024]{0}', space=vmem, size = 0x400, scoped, tag = 'output window, operand 0']
    #allocation3 [shape = 's32[2]{0}', space=sflag, size = 0x8, scoped, tag = 'scoped memory for image_embedding_forward.1']
    %14 = vsyncpa [#allocation3], 0
    %s15 = scalar_lea.sflag [#allocation3], 1
    %16 = vsyncpa %s15, 0
    loop: start=0, step=1, limit=4
    $region2: #{image_embedding_forward.1} parent=1 // loop_pre_header
      _
    $region3: #{image_embedding_forward.1} parent=1 // loop_header
      %s18 = sphi 0, %s22
      %p19 = scmp.ge.s32.totalorder %s18, 4
      %s28 = sphi 0, %s30
      %s31 = sphi 0, %s28
      %s32 = sphi 0, %s31
      %s48 = sphi 0, %s32
      %s52 = sphi 0, %s52
      %s54 = sphi 0, %s52
      %s55 = sphi 0, %s54
      %s69 = sphi 0, %s55
      %s73 = sphi 0, %s73
      %s75 = sphi 0, %s73
      %s76 = sphi 0, %s75
      %s90 = sphi 0, %s76
      %s94 = sphi 0, %s94
      %s96 = sphi 0, %s94
      %s97 = sphi 0, %s96
      %s111 = sphi 0, %s97
      %s115 = sphi 0, %s115
      %s117 = sphi 0, %s115
      %s118 = sphi 0, %s117
      %s132 = sphi 0, %s118
      %s136 = sphi 0, %s136
      %s138 = sphi 0, %s136
      %s139 = sphi 0, %s138
      %s153 = sphi 0, %s139
      %s157 = sphi 0, %s157
      %s159 = sphi 0, %s157
      %s160 = sphi 0, %s159
      %s174 = sphi 0, %s160
      %s178 = sphi 0, %s178
      %s180 = sphi 0, %s178
      %s181 = sphi 0, %s180
      %s195 = sphi 0, %s181
      %s199 = sphi 0, %s199
      %s201 = sphi 0, %s199
      %s202 = sphi 0, %s201
      %s216 = sphi 0, %s202
      %s222 = sphi 0, %s224
      %s225 = sphi 0, %s222
      %s226 = sphi 0, %s225
      %s242 = sphi 0, %s226
    $region4: #{image_embedding_forward.1} parent=1 // loop_header_branch
      %21 = sbr.rel (%p19) target = $region8
    $region5: #{image_embedding_forward.1} parent=1 // loop_body
      %s23 = ssub.s32 %s18, 1
      %s24 = ssub.s32 %s18, 2
      %s25 = sadd.s32 %s18, 1
      %s26 = ssub.s32 %s18, %s25
      %p27 = scmp.eq.s32.totalorder %s26, 0
      %s29 = sadd.s32 %s28, 1
      %s30 = scalar_select %p27, %s28, %s29
      %p33 = pneg %p27
      %p34 = scmp.eq.s32.totalorder %s18, 1
      %p35 = por %p33, %p34
      %p36 = scmp.ne.s32.totalorder %s28, %s31
      %p37 = scmp.eq.s32.totalorder %s18, 0
      %p38 = por %p36, %p37
      %p39 = scmp.ne.s32.totalorder %s28, %s31
      %p40 = scmp.eq.s32.totalorder %s23, 1
      %p41 = por %p39, %p40
      %p42 = scmp.ne.s32.totalorder %s31, %s32
      %p43 = scmp.eq.s32.totalorder %s23, 0
      %p44 = por %p42, %p43
      %p45 = scmp.ne.s32.totalorder %s31, %s32
      %p46 = scmp.eq.s32.totalorder %s24, 1
      %p47 = por %p45, %p46
      %p49 = scmp.ne.s32.totalorder %s32, %s48
      %p50 = scmp.eq.s32.totalorder %s24, 0
      %p51 = por %p49, %p50
      %s53 = sadd.s32 %s52, 1
      %p56 = scmp.eq.s32.totalorder %s18, 1
      %p57 = scmp.ne.s32.totalorder %s52, %s54
      %p58 = scmp.eq.s32.totalorder %s18, 0
      %p59 = por %p57, %p58
      %p60 = scmp.ne.s32.totalorder %s52, %s54
      %p61 = scmp.eq.s32.totalorder %s23, 1
      %p62 = por %p60, %p61
      %p63 = scmp.ne.s32.totalorder %s54, %s55
      %p64 = scmp.eq.s32.totalorder %s23, 0
      %p65 = por %p63, %p64
      %p66 = scmp.ne.s32.totalorder %s54, %s55
      %p67 = scmp.eq.s32.totalorder %s24, 1
      %p68 = por %p66, %p67
      %p70 = scmp.ne.s32.totalorder %s55, %s69
      %p71 = scmp.eq.s32.totalorder %s24, 0
      %p72 = por %p70, %p71
      %s74 = sadd.s32 %s73, 1
      %p77 = scmp.eq.s32.totalorder %s18, 1
      %p78 = scmp.ne.s32.totalorder %s73, %s75
      %p79 = scmp.eq.s32.totalorder %s18, 0
      %p80 = por %p78, %p79
      %p81 = scmp.ne.s32.totalorder %s73, %s75
      %p82 = scmp.eq.s32.totalorder %s23, 1
      %p83 = por %p81, %p82
      %p84 = scmp.ne.s32.totalorder %s75, %s76
      %p85 = scmp.eq.s32.totalorder %s23, 0
      %p86 = por %p84, %p85
      %p87 = scmp.ne.s32.totalorder %s75, %s76
      %p88 = scmp.eq.s32.totalorder %s24, 1
      %p89 = por %p87, %p88
      %p91 = scmp.ne.s32.totalorder %s76, %s90
      %p92 = scmp.eq.s32.totalorder %s24, 0
      %p93 = por %p91, %p92
      %s95 = sadd.s32 %s94, 1
      %p98 = scmp.eq.s32.totalorder %s18, 1
      %p99 = scmp.ne.s32.totalorder %s94, %s96
      %p100 = scmp.eq.s32.totalorder %s18, 0
      %p101 = por %p99, %p100
      %p102 = scmp.ne.s32.totalorder %s94, %s96
      %p103 = scmp.eq.s32.totalorder %s23, 1
      %p104 = por %p102, %p103
      %p105 = scmp.ne.s32.totalorder %s96, %s97
      %p106 = scmp.eq.s32.totalorder %s23, 0
      %p107 = por %p105, %p106
      %p108 = scmp.ne.s32.totalorder %s96, %s97
      %p109 = scmp.eq.s32.totalorder %s24, 1
      %p110 = por %p108, %p109
      %p112 = scmp.ne.s32.totalorder %s97, %s111
      %p113 = scmp.eq.s32.totalorder %s24, 0
      %p114 = por %p112, %p113
      %s116 = sadd.s32 %s115, 1
      %p119 = scmp.eq.s32.totalorder %s18, 1
      %p120 = scmp.ne.s32.totalorder %s115, %s117
      %p121 = scmp.eq.s32.totalorder %s18, 0
      %p122 = por %p120, %p121
      %p123 = scmp.ne.s32.totalorder %s115, %s117
      %p124 = scmp.eq.s32.totalorder %s23, 1
      %p125 = por %p123, %p124
      %p126 = scmp.ne.s32.totalorder %s117, %s118
      %p127 = scmp.eq.s32.totalorder %s23, 0
      %p128 = por %p126, %p127
      %p129 = scmp.ne.s32.totalorder %s117, %s118
      %p130 = scmp.eq.s32.totalorder %s24, 1
      %p131 = por %p129, %p130
      %p133 = scmp.ne.s32.totalorder %s118, %s132
      %p134 = scmp.eq.s32.totalorder %s24, 0
      %p135 = por %p133, %p134
      %s137 = sadd.s32 %s136, 1
      %p140 = scmp.eq.s32.totalorder %s18, 1
      %p141 = scmp.ne.s32.totalorder %s136, %s138
      %p142 = scmp.eq.s32.totalorder %s18, 0
      %p143 = por %p141, %p142
      %p144 = scmp.ne.s32.totalorder %s136, %s138
      %p145 = scmp.eq.s32.totalorder %s23, 1
      %p146 = por %p144, %p145
      %p147 = scmp.ne.s32.totalorder %s138, %s139
      %p148 = scmp.eq.s32.totalorder %s23, 0
      %p149 = por %p147, %p148
      %p150 = scmp.ne.s32.totalorder %s138, %s139
      %p151 = scmp.eq.s32.totalorder %s24, 1
      %p152 = por %p150, %p151
      %p154 = scmp.ne.s32.totalorder %s139, %s153
      %p155 = scmp.eq.s32.totalorder %s24, 0
      %p156 = por %p154, %p155
      %s158 = sadd.s32 %s157, 1
      %p161 = scmp.eq.s32.totalorder %s18, 1
      %p162 = scmp.ne.s32.totalorder %s157, %s159
      %p163 = scmp.eq.s32.totalorder %s18, 0
      %p164 = por %p162, %p163
      %p165 = scmp.ne.s32.totalorder %s157, %s159
      %p166 = scmp.eq.s32.totalorder %s23, 1
      %p167 = por %p165, %p166
      %p168 = scmp.ne.s32.totalorder %s159, %s160
      %p169 = scmp.eq.s32.totalorder %s23, 0
      %p170 = por %p168, %p169
      %p171 = scmp.ne.s32.totalorder %s159, %s160
      %p172 = scmp.eq.s32.totalorder %s24, 1
      %p173 = por %p171, %p172
      %p175 = scmp.ne.s32.totalorder %s160, %s174
      %p176 = scmp.eq.s32.totalorder %s24, 0
      %p177 = por %p175, %p176
      %s179 = sadd.s32 %s178, 1
      %p182 = scmp.eq.s32.totalorder %s18, 1
      %p183 = scmp.ne.s32.totalorder %s178, %s180
      %p184 = scmp.eq.s32.totalorder %s18, 0
      %p185 = por %p183, %p184
      %p186 = scmp.ne.s32.totalorder %s178, %s180
      %p187 = scmp.eq.s32.totalorder %s23, 1
      %p188 = por %p186, %p187
      %p189 = scmp.ne.s32.totalorder %s180, %s181
      %p190 = scmp.eq.s32.totalorder %s23, 0
      %p191 = por %p189, %p190
      %p192 = scmp.ne.s32.totalorder %s180, %s181
      %p193 = scmp.eq.s32.totalorder %s24, 1
      %p194 = por %p192, %p193
      %p196 = scmp.ne.s32.totalorder %s181, %s195
      %p197 = scmp.eq.s32.totalorder %s24, 0
      %p198 = por %p196, %p197
      %s200 = sadd.s32 %s199, 1
      %p203 = scmp.eq.s32.totalorder %s18, 1
      %p204 = scmp.ne.s32.totalorder %s199, %s201
      %p205 = scmp.eq.s32.totalorder %s18, 0
      %p206 = por %p204, %p205
      %p207 = scmp.ne.s32.totalorder %s199, %s201
      %p208 = scmp.eq.s32.totalorder %s23, 1
      %p209 = por %p207, %p208
      %p210 = scmp.ne.s32.totalorder %s201, %s202
      %p211 = scmp.eq.s32.totalorder %s23, 0
      %p212 = por %p210, %p211
      %p213 = scmp.ne.s32.totalorder %s201, %s202
      %p214 = scmp.eq.s32.totalorder %s24, 1
      %p215 = por %p213, %p214
      %p217 = scmp.ne.s32.totalorder %s202, %s216
      %p218 = scmp.eq.s32.totalorder %s24, 0
      %p219 = por %p217, %p218
      %s220 = ssub.s32 %s18, %s25
      %p221 = scmp.eq.s32.totalorder %s220, 0
      %s223 = sadd.s32 %s222, 1
      %s224 = scalar_select %p221, %s222, %s223
      %p227 = pneg %p221
      %p228 = scmp.eq.s32.totalorder %s18, 1
      %p229 = por %p227, %p228
      %p230 = scmp.ne.s32.totalorder %s222, %s225
      %p231 = scmp.eq.s32.totalorder %s18, 0
      %p232 = por %p230, %p231
      %p233 = scmp.ne.s32.totalorder %s222, %s225
      %p234 = scmp.eq.s32.totalorder %s23, 1
      %p235 = por %p233, %p234
      %p236 = scmp.ne.s32.totalorder %s225, %s226
      %p237 = scmp.eq.s32.totalorder %s23, 0
      %p238 = por %p236, %p237
      %p239 = scmp.ne.s32.totalorder %s225, %s226
      %p240 = scmp.eq.s32.totalorder %s24, 1
      %p241 = por %p239, %p240
      %p243 = scmp.ne.s32.totalorder %s226, %s242
      %p244 = scmp.eq.s32.totalorder %s24, 0
      %p245 = por %p243, %p244
      %p246 = scmp.le.s32.totalorder 1, %s18
      %p247 = scmp.lt.s32.totalorder %s18, 3
      %p248 = pnand %p246, %p247
      %p249 = pneg %p248
      // Predicated region
      $region9: #{image_embedding_forward.1} parent=5 // pred_check
        _
      $region10: #{image_embedding_forward.1} parent=5 // pred_check_branch
        %251 = sbr.rel (%p248) target = $region12
      $region11: #{image_embedding_forward.1} parent=5 // pred_region
        %s252 = ssub.s32 %s18, 1
        // Predicated region
        $region13: #{image_embedding_forward.1} parent=11 // pred_check
          %p253 = pneg %p65
        $region14: #{image_embedding_forward.1} parent=11 // pred_check_branch
          %255 = sbr.rel (%p253) target = $region16
        $region15: #{image_embedding_forward.1} parent=11 // pred_region
          _
        $region16: #{image_embedding_forward.1} parent=11 // pred_fallthru
          _
        // Predicated region
        $region17: #{image_embedding_forward.1} parent=11 // pred_check
          %p256 = pneg %p86
        $region18: #{image_embedding_forward.1} parent=11 // pred_check_branch
          %258 = sbr.rel (%p256) target = $region20
        $region19: #{image_embedding_forward.1} parent=11 // pred_region
          _
        $region20: #{image_embedding_forward.1} parent=11 // pred_fallthru
          _
        // Predicated region
        $region21: #{image_embedding_forward.1} parent=11 // pred_check
          %p259 = pneg %p107
        $region22: #{image_embedding_forward.1} parent=11 // pred_check_branch
          %261 = sbr.rel (%p259) target = $region24
        $region23: #{image_embedding_forward.1} parent=11 // pred_region
          _
        $region24: #{image_embedding_forward.1} parent=11 // pred_fallthru
          _
        // Predicated region
        $region25: #{image_embedding_forward.1} parent=11 // pred_check
          %p262 = pneg %p128
        $region26: #{image_embedding_forward.1} parent=11 // pred_check_branch
          %264 = sbr.rel (%p262) target = $region28
        $region27: #{image_embedding_forward.1} parent=11 // pred_region
          _
        $region28: #{image_embedding_forward.1} parent=11 // pred_fallthru
          _
        // Predicated region
        $region29: #{image_embedding_forward.1} parent=11 // pred_check
          %p265 = pneg %p149
        $region30: #{image_embedding_forward.1} parent=11 // pred_check_branch
          %267 = sbr.rel (%p265) target = $region32
        $region31: #{image_embedding_forward.1} parent=11 // pred_region
          _
        $region32: #{image_embedding_forward.1} parent=11 // pred_fallthru
          _
        // Predicated region
        $region33: #{image_embedding_forward.1} parent=11 // pred_check
          %p268 = pneg %p170
        $region34: #{image_embedding_forward.1} parent=11 // pred_check_branch
          %270 = sbr.rel (%p268) target = $region36
        $region35: #{image_embedding_forward.1} parent=11 // pred_region
          _
        $region36: #{image_embedding_forward.1} parent=11 // pred_fallthru
          _
        // Predicated region
        $region37: #{image_embedding_forward.1} parent=11 // pred_check
          %p271 = pneg %p191
        $region38: #{image_embedding_forward.1} parent=11 // pred_check_branch
          %273 = sbr.rel (%p271) target = $region40
        $region39: #{image_embedding_forward.1} parent=11 // pred_region
          _
        $region40: #{image_embedding_forward.1} parent=11 // pred_fallthru
          _
        // Predicated region
        $region41: #{image_embedding_forward.1} parent=11 // pred_check
          %p274 = pneg %p212
        $region42: #{image_embedding_forward.1} parent=11 // pred_check_branch
          %276 = sbr.rel (%p274) target = $region44
        $region43: #{image_embedding_forward.1} parent=11 // pred_region
          _
        $region44: #{image_embedding_forward.1} parent=11 // pred_fallthru
          _
      $region12: #{image_embedding_forward.1} parent=5 // pred_fallthru
        _
      %p277 = scmp.lt.s32.totalorder %s18, 2
      // Predicated region
      $region45: #{image_embedding_forward.1} parent=5 // pred_check
        %p278 = pneg %p277
      $region46: #{image_embedding_forward.1} parent=5 // pred_check_branch
        %280 = sbr.rel (%p278) target = $region48
      $region47: #{image_embedding_forward.1} parent=5 // pred_region
        // Predicated region
        $region49: #{image_embedding_forward.1} parent=47 // pred_check
          %p281 = pneg %p38
        $region50: #{image_embedding_forward.1} parent=47 // pred_check_branch
          %283 = sbr.rel (%p281) target = $region52
        $region51: #{image_embedding_forward.1} parent=47 // pred_region
          %p284 = scmp.lt.s32.totalorder %s18, 1
          %s285 = scalar_select %p284, %s18, 1
          %s286 = smul.addr %s285, 36
          %s287 = smul.addr %s286, 8
          %s288 = scalar_lea.vmem %s0, %s287
        $region52: #{image_embedding_forward.1} parent=47 // pred_fallthru
          _
      $region48: #{image_embedding_forward.1} parent=5 // pred_fallthru
        _
      %p289 = scmp.le.s32.totalorder 1, %s18
      %p290 = scmp.lt.s32.totalorder %s18, 3
      %p291 = pnand %p289, %p290
      %p292 = pneg %p291
      // Predicated region
      $region53: #{image_embedding_forward.1} parent=5 // pred_check
        _
      $region54: #{image_embedding_forward.1} parent=5 // pred_check_branch
        %294 = sbr.rel (%p291) target = $region56
      $region55: #{image_embedding_forward.1} parent=5 // pred_region
        %s295 = ssub.s32 %s18, 1
        %p296 = scmp.lt.s32.totalorder %s23, 1
        %s297 = scalar_select %p296, %s23, 1
        %s298 = smul.addr %s297, 36
        %s299 = smul.addr %s298, 8
        %s300 = scalar_lea.vmem %s0, %s299
        %p301 = pneg %p44
        %p302 = pneg %p41
        %p303 = pneg %p65
        %p304 = pneg %p62
        %p305 = pneg %p86
        %p306 = pneg %p83
        %p307 = pneg %p107
        %p308 = pneg %p104
        %p309 = pneg %p128
        %p310 = pneg %p125
        %p311 = pneg %p149
        %p312 = pneg %p146
        %p313 = pneg %p170
        %p314 = pneg %p167
        %p315 = pneg %p191
        %p316 = pneg %p188
        %p317 = pneg %p212
        %p318 = pneg %p209
        %p319 = pneg %p238
        %p320 = pneg %p235
        %s321 = sand.u32 %s225, 1
        %s322 = scalar_lea.sflag [#allocation3], %s321
        %s323 = sand.u32 %s225, 1
        %s324 = scalar_lea.vmem [#allocation2], %s323
        %p325 = scmp.lt.s32.totalorder %s23, 1
        %s326 = scalar_select %p325, %s23, 1
        %s327 = smul.addr %s326, 36
        %s328 = smul.addr %s327, 8
        %s329 = scalar_lea.vmem %s0, %s328
        %v330 = vld [vmem:[%s329] sm:$0xff]
        %v331 = vld [vmem:[%s329 + $0x8] sm:$0xff]
        %v332 = vld [vmem:[%s329 + $0x10] sm:$0xff]
        %v333 = vld [vmem:[%s329 + $0x18] sm:$0xff]
        %v334 = vld [vmem:[%s329 + $0x20] sm:$0xff]
        %v335 = vld [vmem:[%s329 + $0x28] sm:$0xff]
        %v336 = vld [vmem:[%s329 + $0x30] sm:$0xff]
        %v337 = vld [vmem:[%s329 + $0x38] sm:$0xff]
        %v338 = vld [vmem:[%s329 + $0x40] sm:$0xff]
        %v339 = vld [vmem:[%s329 + $0x48] sm:$0xff]
        %v340 = vld [vmem:[%s329 + $0x50] sm:$0xff]
        %v341 = vld [vmem:[%s329 + $0x58] sm:$0xff]
        %v342 = vld [vmem:[%s329 + $0x60] sm:$0xff]
        %v343 = vld [vmem:[%s329 + $0x68] sm:$0xff]
        %v344 = vld [vmem:[%s329 + $0x70] sm:$0xff]
        %v345 = vld [vmem:[%s329 + $0x78] sm:$0xff]
        %v346 = vld [vmem:[%s329 + $0x80] sm:$0xff]
        %v347 = vld [vmem:[%s329 + $0x88] sm:$0xff]
        %v348 = vld [vmem:[%s329 + $0x90] sm:$0xff]
        %v349 = vld [vmem:[%s329 + $0x98] sm:$0xff]
        %v350 = vld [vmem:[%s329 + $0xa0] sm:$0xff]
        %v351 = vld [vmem:[%s329 + $0xa8] sm:$0xff]
        %v352 = vld [vmem:[%s329 + $0xb0] sm:$0xff]
        %v353 = vld [vmem:[%s329 + $0xb8] sm:$0xff]
        %v354 = vld [vmem:[%s329 + $0xc0] sm:$0xff]
        %v355 = vld [vmem:[%s329 + $0xc8] sm:$0xff]
        %v356 = vld [vmem:[%s329 + $0xd0] sm:$0xff]
        %v357 = vld [vmem:[%s329 + $0xd8] sm:$0xff]
        %v358 = vld [vmem:[%s1] sm:$0x7]
        %v359 = vld [vmem:[%s329 + $0x1] sm:$0xff]
        %v360 = vld [vmem:[%s329 + $0x9] sm:$0xff]
        %v361 = vld [vmem:[%s329 + $0x11] sm:$0xff]
        %v362 = vld [vmem:[%s329 + $0x19] sm:$0xff]
        %v363 = vld [vmem:[%s329 + $0x21] sm:$0xff]
        %v364 = vld [vmem:[%s329 + $0x29] sm:$0xff]
        %v365 = vld [vmem:[%s329 + $0x31] sm:$0xff]
        %v366 = vld [vmem:[%s329 + $0x39] sm:$0xff]
        %v367 = vld [vmem:[%s329 + $0x41] sm:$0xff]
        %v368 = vld [vmem:[%s329 + $0x49] sm:$0xff]
        %v369 = vld [vmem:[%s329 + $0x51] sm:$0xff]
        %v370 = vld [vmem:[%s329 + $0x59] sm:$0xff]
        %v371 = vld [vmem:[%s329 + $0x61] sm:$0xff]
        %v372 = vld [vmem:[%s329 + $0x69] sm:$0xff]
        %v373 = vld [vmem:[%s329 + $0x71] sm:$0xff]
        %v374 = vld [vmem:[%s329 + $0x79] sm:$0xff]
        %v375 = vld [vmem:[%s329 + $0x81] sm:$0xff]
        %v376 = vld [vmem:[%s329 + $0x89] sm:$0xff]
        %v377 = vld [vmem:[%s329 + $0x91] sm:$0xff]
        %v378 = vld [vmem:[%s329 + $0x99] sm:$0xff]
        %v379 = vld [vmem:[%s329 + $0xa1] sm:$0xff]
        %v380 = vld [vmem:[%s329 + $0xa9] sm:$0xff]
        %v381 = vld [vmem:[%s329 + $0xb1] sm:$0xff]
        %v382 = vld [vmem:[%s329 + $0xb9] sm:$0xff]
        %v383 = vld [vmem:[%s329 + $0xc1] sm:$0xff]
        %v384 = vld [vmem:[%s329 + $0xc9] sm:$0xff]
        %v385 = vld [vmem:[%s329 + $0xd1] sm:$0xff]
        %v386 = vld [vmem:[%s329 + $0xd9] sm:$0xff]
        %s387 = scalar_lea.vmem %s1, 4
        %v388 = vld [vmem:[%s387] sm:$0x7]
        %vm389 = vcmask 23552
        %v391 = vsel %vm389, %v359, 0
        %v394 = vsel %vm389, %v360, 0
        %v397 = vsel %vm389, %v361, 0
        %v400 = vsel %vm389, %v362, 0
        %v403 = vsel %vm389, %v363, 0
        %v406 = vsel %vm389, %v364, 0
        %v409 = vsel %vm389, %v365, 0
        %v412 = vsel %vm389, %v366, 0
        %v415 = vsel %vm389, %v367, 0
        %v418 = vsel %vm389, %v368, 0
        %v421 = vsel %vm389, %v369, 0
        %v424 = vsel %vm389, %v370, 0
        %v427 = vsel %vm389, %v371, 0
        %v430 = vsel %vm389, %v372, 0
        %v433 = vsel %vm389, %v373, 0
        %v436 = vsel %vm389, %v374, 0
        %v439 = vsel %vm389, %v375, 0
        %v442 = vsel %vm389, %v376, 0
        %v445 = vsel %vm389, %v377, 0
        %v448 = vsel %vm389, %v378, 0
        %v451 = vsel %vm389, %v379, 0
        %v454 = vsel %vm389, %v380, 0
        %v457 = vsel %vm389, %v381, 0
        %v460 = vsel %vm389, %v382, 0
        %v463 = vsel %vm389, %v383, 0
        %v466 = vsel %vm389, %v384, 0
        %v469 = vsel %vm389, %v385, 0
        %v472 = vsel %vm389, %v386, 0
        %vm474 = vcmask 1042432
        %v476 = vsel %vm474, %v388, 0
        %478 = vmatprep.subr.mxu0 0.0
        %479 = vmatpush1.msra.mxu0 %v476
        %480 = vmatprep.subr.mxu0 0.0
        %481 = vmatpush1.msra.mxu0 0.0
        %482 = vmatprep.subr.mxu0 0.0
        %483 = vmatpush1.msra.mxu0 0.0
        %484 = vmatprep.subr.mxu0 0.0
        %485 = vmatpush1.msra.mxu0 0.0
        %486 = vmatprep.subr.mxu0 0.0
        %487 = vmatpush1.msra.mxu0 0.0
        %488 = vmatprep.subr.mxu0 0.0
        %489 = vmatpush1.msra.mxu0 0.0
        %490 = vmatprep.subr.mxu0 0.0
        %491 = vmatpush1.msra.mxu0 0.0
        %492 = vmatprep.subr.mxu0 0.0
        %493 = vmatpush1.msra.mxu0 0.0
        %494 = vmatprep.subr.mxu0 0.0
        %495 = vmatpush1.msra.mxu0 0.0
        %496 = vmatprep.subr.mxu0 0.0
        %497 = vmatpush1.msra.mxu0 0.0
        %498 = vmatprep.subr.mxu0 0.0
        %499 = vmatpush1.msra.mxu0 0.0
        %500 = vmatprep.subr.mxu0 0.0
        %501 = vmatpush1.msra.mxu0 0.0
        %502 = vmatprep.subr.mxu0 0.0
        %503 = vmatpush1.msra.mxu0 0.0
        %504 = vmatprep.subr.mxu0 0.0
        %505 = vmatpush1.msra.mxu0 0.0
        %506 = vmatprep.subr.mxu0 0.0
        %507 = vmatpush1.msra.mxu0 0.0
        %508 = vmatprep.subr.mxu0 0.0
        %509 = vmatpush1.msra.mxu0 0.0
        %510 = vmatprep.subr.mxu0 0.0
        %511 = vmatpush1.msra.mxu0 0.0
        %512 = vmatprep.subr.mxu0 0.0
        %513 = vmatpush1.msra.mxu0 0.0
        %514 = vmatprep.subr.mxu0 0.0
        %515 = vmatpush1.msra.mxu0 0.0
        %516 = vmatprep.subr.mxu0 0.0
        %517 = vmatpush1.msra.mxu0 0.0
        %518 = vmatprep.subr.mxu0 0.0
        %519 = vmatpush1.msra.mxu0 0.0
        %520 = vmatprep.subr.mxu0 0.0
        %521 = vmatpush1.msra.mxu0 0.0
        %522 = vmatprep.subr.mxu0 0.0
        %523 = vmatpush1.msra.mxu0 0.0
        %524 = vmatprep.subr.mxu0 0.0
        %525 = vmatpush1.msra.mxu0 0.0
        %526 = vmatprep.subr.mxu0 0.0
        %527 = vmatpush1.msra.mxu0 0.0
        %528 = vmatprep.subr.mxu0 0.0
        %529 = vmatpush1.msra.mxu0 0.0
        %530 = vmatprep.subr.mxu0 0.0
        %531 = vmatpush1.msra.mxu0 0.0
        %532 = vmatprep.subr.mxu0 0.0
        %533 = vmatpush1.msra.mxu0 0.0
        %534 = vmatprep.subr.mxu0 0.0
        %535 = vmatpush1.msra.mxu0 0.0
        %536 = vmatprep.subr.mxu0 0.0
        %537 = vmatpush1.msra.mxu0 0.0
        %538 = vmatprep.subr.mxu0 0.0
        %539 = vmatpush1.msra.mxu0 0.0
        %540 = vmatprep.subr.mxu0 0.0
        %541 = vmatpush1.msra.mxu0 0.0
        %542 = vmatprep.mubr.f32.mxu0 0.0
        %543 = vmatmul.mubr.f32.gmra.mrb[0].mxu0 %v391
        %v544 = vpop.f32.mrb[0].mxu0
        %v545 = vadd.f32 0.0, %v544
        %v546 = vpop.f32.mrb[0].mxu0
        %547 = vmatprep.mubr.f32.mxu0 0.0
        %548 = vmatmul.mubr.f32.gmra.mrb[0].mxu0 %v394
        %v549 = vpop.f32.mrb[0].mxu0
        %v550 = vadd.f32 0.0, %v549
        %v551 = vpop.f32.mrb[0].mxu0
        %552 = vmatprep.mubr.f32.mxu0 0.0
        %553 = vmatmul.mubr.f32.gmra.mrb[0].mxu0 %v397
        %v554 = vpop.f32.mrb[0].mxu0
        %v555 = vadd.f32 0.0, %v554
        %v556 = vpop.f32.mrb[0].mxu0
        %557 = vmatprep.mubr.f32.mxu0 0.0
        %558 = vmatmul.mubr.f32.gmra.mrb[0].mxu0 %v400
        %v559 = vpop.f32.mrb[0].mxu0
        %v560 = vadd.f32 0.0, %v559
        %v561 = vpop.f32.mrb[0].mxu0
        %562 = vmatprep.mubr.f32.mxu0 0.0
        %563 = vmatmul.mubr.f32.gmra.mrb[0].mxu0 %v403
        %v564 = vpop.f32.mrb[0].mxu0
        %v565 = vadd.f32 0.0, %v564
        %v566 = vpop.f32.mrb[0].mxu0
        %567 = vmatprep.mubr.f32.mxu0 0.0
        %568 = vmatmul.mubr.f32.gmra.mrb[0].mxu0 %v406
        %v569 = vpop.f32.mrb[0].mxu0
        %v570 = vadd.f32 0.0, %v569
        %v571 = vpop.f32.mrb[0].mxu0
        %572 = vmatprep.mubr.f32.mxu0 0.0
        %573 = vmatmul.mubr.f32.gmra.mrb[0].mxu0 %v409
        %v574 = vpop.f32.mrb[0].mxu0
        %v575 = vadd.f32 0.0, %v574
        %v576 = vpop.f32.mrb[0].mxu0
        %577 = vmatprep.mubr.f32.mxu0 0.0
        %578 = vmatmul.mubr.f32.gmra.mrb[0].mxu0 %v412
        %v579 = vpop.f32.mrb[0].mxu0
        %v580 = vadd.f32 0.0, %v579
        %v581 = vpop.f32.mrb[0].mxu0
        %582 = vmatprep.mubr.f32.mxu0 0.0
        %583 = vmatmul.mubr.f32.gmra.mrb[0].mxu0 %v415
        %v584 = vpop.f32.mrb[0].mxu0
        %v585 = vadd.f32 0.0, %v584
        %v586 = vpop.f32.mrb[0].mxu0
        %587 = vmatprep.mubr.f32.mxu0 0.0
        %588 = vmatmul.mubr.f32.gmra.mrb[0].mxu0 %v418
        %v589 = vpop.f32.mrb[0].mxu0
        %v590 = vadd.f32 0.0, %v589
        %v591 = vpop.f32.mrb[0].mxu0
        %592 = vmatprep.mubr.f32.mxu0 0.0
        %593 = vmatmul.mubr.f32.gmra.mrb[0].mxu0 %v421
        %v594 = vpop.f32.mrb[0].mxu0
        %v595 = vadd.f32 0.0, %v594
        %v596 = vpop.f32.mrb[0].mxu0
        %597 = vmatprep.mubr.f32.mxu0 0.0
        %598 = vmatmul.mubr.f32.gmra.mrb[0].mxu0 %v424
        %v599 = vpop.f32.mrb[0].mxu0
        %v600 = vadd.f32 0.0, %v599
        %v601 = vpop.f32.mrb[0].mxu0
        %602 = vmatprep.mubr.f32.mxu0 0.0
        %603 = vmatmul.mubr.f32.gmra.mrb[0].mxu0 %v427
        %v604 = vpop.f32.mrb[0].mxu0
        %v605 = vadd.f32 0.0, %v604
        %v606 = vpop.f32.mrb[0].mxu0
        %607 = vmatprep.mubr.f32.mxu0 0.0
        %608 = vmatmul.mubr.f32.gmra.mrb[0].mxu0 %v430
        %v609 = vpop.f32.mrb[0].mxu0
        %v610 = vadd.f32 0.0, %v609
        %v611 = vpop.f32.mrb[0].mxu0
        %612 = vmatprep.mubr.f32.mxu0 0.0
        %613 = vmatmul.mubr.f32.gmra.mrb[0].mxu0 %v433
        %v614 = vpop.f32.mrb[0].mxu0
        %v615 = vadd.f32 0.0, %v614
        %v616 = vpop.f32.mrb[0].mxu0
        %617 = vmatprep.mubr.f32.mxu0 0.0
        %618 = vmatmul.mubr.f32.gmra.mrb[0].mxu0 %v436
        %v619 = vpop.f32.mrb[0].mxu0
        %v620 = vadd.f32 0.0, %v619
        %v621 = vpop.f32.mrb[0].mxu0
        %622 = vmatprep.mubr.f32.mxu0 0.0
        %623 = vmatmul.mubr.f32.gmra.mrb[0].mxu0 %v439
        %v624 = vpop.f32.mrb[0].mxu0
        %v625 = vadd.f32 0.0, %v624
        %v626 = vpop.f32.mrb[0].mxu0
        %627 = vmatprep.mubr.f32.mxu0 0.0
        %628 = vmatmul.mubr.f32.gmra.mrb[0].mxu0 %v442
        %v629 = vpop.f32.mrb[0].mxu0
        %v630 = vadd.f32 0.0, %v629
        %v631 = vpop.f32.mrb[0].mxu0
        %632 = vmatprep.mubr.f32.mxu0 0.0
        %633 = vmatmul.mubr.f32.gmra.mrb[0].mxu0 %v445
        %v634 = vpop.f32.mrb[0].mxu0
        %v635 = vadd.f32 0.0, %v634
        %v636 = vpop.f32.mrb[0].mxu0
        %637 = vmatprep.mubr.f32.mxu0 0.0
        %638 = vmatmul.mubr.f32.gmra.mrb[0].mxu0 %v448
        %v639 = vpop.f32.mrb[0].mxu0
        %v640 = vadd.f32 0.0, %v639
        %v641 = vpop.f32.mrb[0].mxu0
        %642 = vmatprep.mubr.f32.mxu0 0.0
        %643 = vmatmul.mubr.f32.gmra.mrb[0].mxu0 %v451
        %v644 = vpop.f32.mrb[0].mxu0
        %v645 = vadd.f32 0.0, %v644
        %v646 = vpop.f32.mrb[0].mxu0
        %647 = vmatprep.mubr.f32.mxu0 0.0
        %648 = vmatmul.mubr.f32.gmra.mrb[0].mxu0 %v454
        %v649 = vpop.f32.mrb[0].mxu0
        %v650 = vadd.f32 0.0, %v649
        %v651 = vpop.f32.mrb[0].mxu0
        %652 = vmatprep.mubr.f32.mxu0 0.0
        %653 = vmatmul.mubr.f32.gmra.mrb[0].mxu0 %v457
        %v654 = vpop.f32.mrb[0].mxu0
        %v655 = vadd.f32 0.0, %v654
        %v656 = vpop.f32.mrb[0].mxu0
        %657 = vmatprep.mubr.f32.mxu0 0.0
        %658 = vmatmul.mubr.f32.gmra.mrb[0].mxu0 %v460
        %v659 = vpop.f32.mrb[0].mxu0
        %v660 = vadd.f32 0.0, %v659
        %v661 = vpop.f32.mrb[0].mxu0
        %662 = vmatprep.mubr.f32.mxu0 0.0
        %663 = vmatmul.mubr.f32.gmra.mrb[0].mxu0 %v463
        %v664 = vpop.f32.mrb[0].mxu0
        %v665 = vpop.f32.mrb[0].mxu0
        %666 = vmatprep.mubr.f32.mxu0 0.0
        %667 = vmatmul.mubr.f32.gmra.mrb[0].mxu0 %v466
        %v668 = vpop.f32.mrb[0].mxu0
        %v669 = vpop.f32.mrb[0].mxu0
        %670 = vmatprep.mubr.f32.mxu0 0.0
        %671 = vmatmul.mubr.f32.gmra.mrb[0].mxu0 %v469
        %v672 = vpop.f32.mrb[0].mxu0
        %v673 = vpop.f32.mrb[0].mxu0
        %674 = vmatprep.mubr.f32.mxu0 0.0
        %675 = vmatmul.mubr.f32.gmra.mrb[0].mxu0 %v472
        %v676 = vpop.f32.mrb[0].mxu0
        %v677 = vpop.f32.mrb[0].mxu0
        %678 = vdwg.mxu0
        %v680 = vsel %vm389, %v330, 0
        %v683 = vsel %vm389, %v331, 0
        %v686 = vsel %vm389, %v332, 0
        %v689 = vsel %vm389, %v333, 0
        %v692 = vsel %vm389, %v334, 0
        %v695 = vsel %vm389, %v335, 0
        %v698 = vsel %vm389, %v336, 0
        %v701 = vsel %vm389, %v337, 0
        %v704 = vsel %vm389, %v338, 0
        %v707 = vsel %vm389, %v339, 0
        %v710 = vsel %vm389, %v340, 0
        %v713 = vsel %vm389, %v341, 0
        %v716 = vsel %vm389, %v342, 0
        %v719 = vsel %vm389, %v343, 0
        %v722 = vsel %vm389, %v344, 0
        %v725 = vsel %vm389, %v345, 0
        %v728 = vsel %vm389, %v346, 0
        %v731 = vsel %vm389, %v347, 0
        %v734 = vsel %vm389, %v348, 0
        %v737 = vsel %vm389, %v349, 0
        %v740 = vsel %vm389, %v350, 0
        %v743 = vsel %vm389, %v351, 0
        %v746 = vsel %vm389, %v352, 0
        %v749 = vsel %vm389, %v353, 0
        %v752 = vsel %vm389, %v354, 0
        %v755 = vsel %vm389, %v355, 0
        %v758 = vsel %vm389, %v356, 0
        %v761 = vsel %vm389, %v357, 0
        %v764 = vsel %vm474, %v358, 0
        %766 = vmatprep.subr.mxu0 0.0
        %767 = vmatpush1.msra.mxu0 %v764
        %768 = vmatprep.subr.mxu0 0.0
        %769 = vmatpush1.msra.mxu0 0.0
        %770 = vmatprep.subr.mxu0 0.0
        %771 = vmatpush1.msra.mxu0 0.0
        %772 = vmatprep.subr.mxu0 0.0
        %773 = vmatpush1.msra.mxu0 0.0
        %774 = vmatprep.subr.mxu0 0.0
        %775 = vmatpush1.msra.mxu0 0.0
        %776 = vmatprep.subr.mxu0 0.0
        %777 = vmatpush1.msra.mxu0 0.0
        %778 = vmatprep.subr.mxu0 0.0
        %779 = vmatpush1.msra.mxu0 0.0
        %780 = vmatprep.subr.mxu0 0.0
        %781 = vmatpush1.msra.mxu0 0.0
        %782 = vmatprep.subr.mxu0 0.0
        %783 = vmatpush1.msra.mxu0 0.0
        %784 = vmatprep.subr.mxu0 0.0
        %785 = vmatpush1.msra.mxu0 0.0
        %786 = vmatprep.subr.mxu0 0.0
        %787 = vmatpush1.msra.mxu0 0.0
        %788 = vmatprep.subr.mxu0 0.0
        %789 = vmatpush1.msra.mxu0 0.0
        %790 = vmatprep.subr.mxu0 0.0
        %791 = vmatpush1.msra.mxu0 0.0
        %792 = vmatprep.subr.mxu0 0.0
        %793 = vmatpush1.msra.mxu0 0.0
        %794 = vmatprep.subr.mxu0 0.0
        %795 = vmatpush1.msra.mxu0 0.0
        %796 = vmatprep.subr.mxu0 0.0
        %797 = vmatpush1.msra.mxu0 0.0
        %798 = vmatprep.subr.mxu0 0.0
        %799 = vmatpush1.msra.mxu0 0.0
        %800 = vmatprep.subr.mxu0 0.0
        %801 = vmatpush1.msra.mxu0 0.0
        %802 = vmatprep.subr.mxu0 0.0
        %803 = vmatpush1.msra.mxu0 0.0
        %804 = vmatprep.subr.mxu0 0.0
        %805 = vmatpush1.msra.mxu0 0.0
        %806 = vmatprep.subr.mxu0 0.0
        %807 = vmatpush1.msra.mxu0 0.0
        %808 = vmatprep.subr.mxu0 0.0
        %809 = vmatpush1.msra.mxu0 0.0
        %810 = vmatprep.subr.mxu0 0.0
        %811 = vmatpush1.msra.mxu0 0.0
        %812 = vmatprep.subr.mxu0 0.0
        %813 = vmatpush1.msra.mxu0 0.0
        %814 = vmatprep.subr.mxu0 0.0
        %815 = vmatpush1.msra.mxu0 0.0
        %816 = vmatprep.subr.mxu0 0.0
        %817 = vmatpush1.msra.mxu0 0.0
        %818 = vmatprep.subr.mxu0 0.0
        %819 = vmatpush1.msra.mxu0 0.0
        %820 = vmatprep.subr.mxu0 0.0
        %821 = vmatpush1.msra.mxu0 0.0
        %822 = vmatprep.subr.mxu0 0.0
        %823 = vmatpush1.msra.mxu0 0.0
        %824 = vmatprep.subr.mxu0 0.0
        %825 = vmatpush1.msra.mxu0 0.0
        %826 = vmatprep.subr.mxu0 0.0
        %827 = vmatpush1.msra.mxu0 0.0
        %828 = vmatprep.subr.mxu0 0.0
        %829 = vmatpush1.msra.mxu0 0.0
        %830 = vmatprep.mubr.f32.mxu0 0.0
        %831 = vmatmul.mubr.f32.gmra.mrb[0].mxu0 %v680
        %v832 = vpop.f32.mrb[0].mxu0
        %v833 = vadd.f32 %v545, %v832
        %v834 = vpop.f32.mrb[0].mxu0
        %835 = vmatprep.mubr.f32.mxu0 0.0
        %836 = vmatmul.mubr.f32.gmra.mrb[0].mxu0 %v683
        %v837 = vpop.f32.mrb[0].mxu0
        %v838 = vadd.f32 %v550, %v837
        %v839 = vpop.f32.mrb[0].mxu0
        %840 = vmatprep.mubr.f32.mxu0 0.0
        %841 = vmatmul.mubr.f32.gmra.mrb[0].mxu0 %v686
        %v842 = vpop.f32.mrb[0].mxu0
        %v843 = vadd.f32 %v555, %v842
        %v844 = vpop.f32.mrb[0].mxu0
        %845 = vmatprep.mubr.f32.mxu0 0.0
        %846 = vmatmul.mubr.f32.gmra.mrb[0].mxu0 %v689
        %v847 = vpop.f32.mrb[0].mxu0
        %v848 = vadd.f32 %v560, %v847
        %v849 = vpop.f32.mrb[0].mxu0
        %850 = vmatprep.mubr.f32.mxu0 0.0
        %851 = vmatmul.mubr.f32.gmra.mrb[0].mxu0 %v692
        %v852 = vpop.f32.mrb[0].mxu0
        %v853 = vadd.f32 %v565, %v852
        %v854 = vpop.f32.mrb[0].mxu0
        %855 = vmatprep.mubr.f32.mxu0 0.0
        %856 = vmatmul.mubr.f32.gmra.mrb[0].mxu0 %v695
        %v857 = vpop.f32.mrb[0].mxu0
        %v858 = vadd.f32 %v570, %v857
        %v859 = vpop.f32.mrb[0].mxu0
        %860 = vmatprep.mubr.f32.mxu0 0.0
        %861 = vmatmul.mubr.f32.gmra.mrb[0].mxu0 %v698
        %v862 = vpop.f32.mrb[0].mxu0
        %v863 = vadd.f32 %v575, %v862
        %v864 = vpop.f32.mrb[0].mxu0
        %865 = vmatprep.mubr.f32.mxu0 0.0
        %866 = vmatmul.mubr.f32.gmra.mrb[0].mxu0 %v701
        %v867 = vpop.f32.mrb[0].mxu0
        %v868 = vadd.f32 %v580, %v867
        %v869 = vpop.f32.mrb[0].mxu0
        %870 = vmatprep.mubr.f32.mxu0 0.0
        %871 = vmatmul.mubr.f32.gmra.mrb[0].mxu0 %v704
        %v872 = vpop.f32.mrb[0].mxu0
        %v873 = vadd.f32 %v585, %v872
        %v874 = vpop.f32.mrb[0].mxu0
        %875 = vmatprep.mubr.f32.mxu0 0.0
        %876 = vmatmul.mubr.f32.gmra.mrb[0].mxu0 %v707
        %v877 = vpop.f32.mrb[0].mxu0
        %v878 = vadd.f32 %v590, %v877
        %v879 = vpop.f32.mrb[0].mxu0
        %880 = vmatprep.mubr.f32.mxu0 0.0
        %881 = vmatmul.mubr.f32.gmra.mrb[0].mxu0 %v710
        %v882 = vpop.f32.mrb[0].mxu0
        %v883 = vadd.f32 %v595, %v882
        %v884 = vpop.f32.mrb[0].mxu0
        %885 = vmatprep.mubr.f32.mxu0 0.0
        %886 = vmatmul.mubr.f32.gmra.mrb[0].mxu0 %v713
        %v887 = vpop.f32.mrb[0].mxu0
        %v888 = vadd.f32 %v600, %v887
        %v889 = vpop.f32.mrb[0].mxu0
        %890 = vmatprep.mubr.f32.mxu0 0.0
        %891 = vmatmul.mubr.f32.gmra.mrb[0].mxu0 %v716
        %v892 = vpop.f32.mrb[0].mxu0
        %v893 = vadd.f32 %v605, %v892
        %v894 = vpop.f32.mrb[0].mxu0
        %895 = vmatprep.mubr.f32.mxu0 0.0
        %896 = vmatmul.mubr.f32.gmra.mrb[0].mxu0 %v719
        %v897 = vpop.f32.mrb[0].mxu0
        %v898 = vadd.f32 %v610, %v897
        %v899 = vpop.f32.mrb[0].mxu0
        %900 = vmatprep.mubr.f32.mxu0 0.0
        %901 = vmatmul.mubr.f32.gmra.mrb[0].mxu0 %v722
        %v902 = vpop.f32.mrb[0].mxu0
        %v903 = vadd.f32 %v615, %v902
        %v904 = vpop.f32.mrb[0].mxu0
        %905 = vmatprep.mubr.f32.mxu0 0.0
        %906 = vmatmul.mubr.f32.gmra.mrb[0].mxu0 %v725
        %v907 = vpop.f32.mrb[0].mxu0
        %v908 = vadd.f32 %v620, %v907
        %v909 = vpop.f32.mrb[0].mxu0
        %910 = vmatprep.mubr.f32.mxu0 0.0
        %911 = vmatmul.mubr.f32.gmra.mrb[0].mxu0 %v728
        %v912 = vpop.f32.mrb[0].mxu0
        %v913 = vadd.f32 %v625, %v912
        %v914 = vpop.f32.mrb[0].mxu0
        %915 = vmatprep.mubr.f32.mxu0 0.0
        %916 = vmatmul.mubr.f32.gmra.mrb[0].mxu0 %v731
        %v917 = vpop.f32.mrb[0].mxu0
        %v918 = vadd.f32 %v630, %v917
        %v919 = vpop.f32.mrb[0].mxu0
        %920 = vmatprep.mubr.f32.mxu0 0.0
        %921 = vmatmul.mubr.f32.gmra.mrb[0].mxu0 %v734
        %v922 = vpop.f32.mrb[0].mxu0
        %v923 = vadd.f32 %v635, %v922
        %v924 = vpop.f32.mrb[0].mxu0
        %925 = vmatprep.mubr.f32.mxu0 0.0
        %926 = vmatmul.mubr.f32.gmra.mrb[0].mxu0 %v737
        %v927 = vpop.f32.mrb[0].mxu0
        %v928 = vadd.f32 %v640, %v927
        %v929 = vpop.f32.mrb[0].mxu0
        %930 = vmatprep.mubr.f32.mxu0 0.0
        %931 = vmatmul.mubr.f32.gmra.mrb[0].mxu0 %v740
        %v932 = vpop.f32.mrb[0].mxu0
        %v933 = vadd.f32 %v645, %v932
        %v934 = vpop.f32.mrb[0].mxu0
        %935 = vmatprep.mubr.f32.mxu0 0.0
        %936 = vmatmul.mubr.f32.gmra.mrb[0].mxu0 %v743
        %v937 = vpop.f32.mrb[0].mxu0
        %v938 = vadd.f32 %v650, %v937
        %v939 = vpop.f32.mrb[0].mxu0
        %940 = vmatprep.mubr.f32.mxu0 0.0
        %941 = vmatmul.mubr.f32.gmra.mrb[0].mxu0 %v746
        %v942 = vpop.f32.mrb[0].mxu0
        %v943 = vadd.f32 %v655, %v942
        %v944 = vpop.f32.mrb[0].mxu0
        %945 = vmatprep.mubr.f32.mxu0 0.0
        %946 = vmatmul.mubr.f32.gmra.mrb[0].mxu0 %v749
        %v947 = vpop.f32.mrb[0].mxu0
        %v948 = vadd.f32 %v660, %v947
        %v949 = vpop.f32.mrb[0].mxu0
        %950 = vmatprep.mubr.f32.mxu0 0.0
        %951 = vmatmul.mubr.f32.gmra.mrb[0].mxu0 %v752
        %v952 = vpop.f32.mrb[0].mxu0
        %v953 = vpop.f32.mrb[0].mxu0
        %954 = vmatprep.mubr.f32.mxu0 0.0
        %955 = vmatmul.mubr.f32.gmra.mrb[0].mxu0 %v755
        %v956 = vpop.f32.mrb[0].mxu0
        %v957 = vpop.f32.mrb[0].mxu0
        %958 = vmatprep.mubr.f32.mxu0 0.0
        %959 = vmatmul.mubr.f32.gmra.mrb[0].mxu0 %v758
        %v960 = vpop.f32.mrb[0].mxu0
        %v961 = vpop.f32.mrb[0].mxu0
        %962 = vmatprep.mubr.f32.mxu0 0.0
        %963 = vmatmul.mubr.f32.gmra.mrb[0].mxu0 %v761
        %v964 = vpop.f32.mrb[0].mxu0
        %v965 = vpop.f32.mrb[0].mxu0
        %966 = vdwg.mxu0
        %v967 = vld [vmem:[%s329 + $0x2] sm:$0xff]
        %v968 = vld [vmem:[%s329 + $0xa] sm:$0xff]
        %v969 = vld [vmem:[%s329 + $0x12] sm:$0xff]
        %v970 = vld [vmem:[%s329 + $0x1a] sm:$0xff]
        %v971 = vld [vmem:[%s329 + $0x22] sm:$0xff]
        %v972 = vld [vmem:[%s329 + $0x2a] sm:$0xff]
        %v973 = vld [vmem:[%s329 + $0x32] sm:$0xff]
        %v974 = vld [vmem:[%s329 + $0x3a] sm:$0xff]
        %v975 = vld [vmem:[%s329 + $0x42] sm:$0xff]
        %v976 = vld [vmem:[%s329 + $0x4a] sm:$0xff]
        %v977 = vld [vmem:[%s329 + $0x52] sm:$0xff]
        %v978 = vld [vmem:[%s329 + $0x5a] sm:$0xff]
        %v979 = vld [vmem:[%s329 + $0x62] sm:$0xff]
        %v980 = vld [vmem:[%s329 + $0x6a] sm:$0xff]
        %v981 = vld [vmem:[%s329 + $0x72] sm:$0xff]
        %v982 = vld [vmem:[%s329 + $0x7a] sm:$0xff]
        %v983 = vld [vmem:[%s329 + $0x82] sm:$0xff]
        %v984 = vld [vmem:[%s329 + $0x8a] sm:$0xff]
        %v985 = vld [vmem:[%s329 + $0x92] sm:$0xff]
        %v986 = vld [vmem:[%s329 + $0x9a] sm:$0xff]
        %v987 = vld [vmem:[%s329 + $0xa2] sm:$0xff]
        %v988 = vld [vmem:[%s329 + $0xaa] sm:$0xff]
        %v989 = vld [vmem:[%s329 + $0xb2] sm:$0xff]
        %v990 = vld [vmem:[%s329 + $0xba] sm:$0xff]
        %v991 = vld [vmem:[%s329 + $0xc2] sm:$0xff]
        %v992 = vld [vmem:[%s329 + $0xca] sm:$0xff]
        %v993 = vld [vmem:[%s329 + $0xd2] sm:$0xff]
        %v994 = vld [vmem:[%s329 + $0xda] sm:$0xff]
        %s995 = scalar_lea.vmem %s1, 8
        %v996 = vld [vmem:[%s995] sm:$0x7]
        %v998 = vsel %vm389, %v967, 0
        %v1001 = vsel %vm389, %v968, 0
        %v1004 = vsel %vm389, %v969, 0
        %v1007 = vsel %vm389, %v970, 0
        %v1010 = vsel %vm389, %v971, 0
        %v1013 = vsel %vm389, %v972, 0
        %v1016 = vsel %vm389, %v973, 0
        %v1019 = vsel %vm389, %v974, 0
        %v1022 = vsel %vm389, %v975, 0
        %v1025 = vsel %vm389, %v976, 0
        %v1028 = vsel %vm389, %v977, 0
        %v1031 = vsel %vm389, %v978, 0
        %v1034 = vsel %vm389, %v979, 0
        %v1037 = vsel %vm389, %v980, 0
        %v1040 = vsel %vm389, %v981, 0
        %v1043 = vsel %vm389, %v982, 0
        %v1046 = vsel %vm389, %v983, 0
        %v1049 = vsel %vm389, %v984, 0
        %v1052 = vsel %vm389, %v985, 0
        %v1055 = vsel %vm389, %v986, 0
        %v1058 = vsel %vm389, %v987, 0
        %v1061 = vsel %vm389, %v988, 0
        %v1064 = vsel %vm389, %v989, 0
        %v1067 = vsel %vm389, %v990, 0
        %v1070 = vsel %vm389, %v991, 0
        %v1073 = vsel %vm389, %v992, 0
        %v1076 = vsel %vm389, %v993, 0
        %v1079 = vsel %vm389, %v994, 0
        %v1082 = vsel %vm474, %v996, 0
        %1084 = vmatprep.subr.mxu0 0.0
        %1085 = vmatpush1.msra.mxu0 %v1082
        %1086 = vmatprep.subr.mxu0 0.0
        %1087 = vmatpush1.msra.mxu0 0.0
        %1088 = vmatprep.subr.mxu0 0.0
        %1089 = vmatpush1.msra.mxu0 0.0
        %1090 = vmatprep.subr.mxu0 0.0
        %1091 = vmatpush1.msra.mxu0 0.0
        %1092 = vmatprep.subr.mxu0 0.0
        %1093 = vmatpush1.msra.mxu0 0.0
        %1094 = vmatprep.subr.mxu0 0.0
        %1095 = vmatpush1.msra.mxu0 0.0
        %1096 = vmatprep.subr.mxu0 0.0
        %1097 = vmatpush1.msra.mxu0 0.0
        %1098 = vmatprep.subr.mxu0 0.0
        %1099 = vmatpush1.msra.mxu0 0.0
        %1100 = vmatprep.subr.mxu0 0.0
        %1101 = vmatpush1.msra.mxu0 0.0
        %1102 = vmatprep.subr.mxu0 0.0
        %1103 = vmatpush1.msra.mxu0 0.0
        %1104 = vmatprep.subr.mxu0 0.0
        %1105 = vmatpush1.msra.mxu0 0.0
        %1106 = vmatprep.subr.mxu0 0.0
        %1107 = vmatpush1.msra.mxu0 0.0
        %1108 = vmatprep.subr.mxu0 0.0
        %1109 = vmatpush1.msra.mxu0 0.0
        %1110 = vmatprep.subr.mxu0 0.0
        %1111 = vmatpush1.msra.mxu0 0.0
        %1112 = vmatprep.subr.mxu0 0.0
        %1113 = vmatpush1.msra.mxu0 0.0
        %1114 = vmatprep.subr.mxu0 0.0
        %1115 = vmatpush1.msra.mxu0 0.0
        %1116 = vmatprep.subr.mxu0 0.0
        %1117 = vmatpush1.msra.mxu0 0.0
        %1118 = vmatprep.subr.mxu0 0.0
        %1119 = vmatpush1.msra.mxu0 0.0
        %1120 = vmatprep.subr.mxu0 0.0
        %1121 = vmatpush1.msra.mxu0 0.0
        %1122 = vmatprep.subr.mxu0 0.0
        %1123 = vmatpush1.msra.mxu0 0.0
        %1124 = vmatprep.subr.mxu0 0.0
        %1125 = vmatpush1.msra.mxu0 0.0
        %1126 = vmatprep.subr.mxu0 0.0
        %1127 = vmatpush1.msra.mxu0 0.0
        %1128 = vmatprep.subr.mxu0 0.0
        %1129 = vmatpush1.msra.mxu0 0.0
        %1130 = vmatprep.subr.mxu0 0.0
        %1131 = vmatpush1.msra.mxu0 0.0
        %1132 = vmatprep.subr.mxu0 0.0
        %1133 = vmatpush1.msra.mxu0 0.0
        %1134 = vmatprep.subr.mxu0 0.0
        %1135 = vmatpush1.msra.mxu0 0.0
        %1136 = vmatprep.subr.mxu0 0.0
        %1137 = vmatpush1.msra.mxu0 0.0
        %1138 = vmatprep.subr.mxu0 0.0
        %1139 = vmatpush1.msra.mxu0 0.0
        %1140 = vmatprep.subr.mxu0 0.0
        %1141 = vmatpush1.msra.mxu0 0.0
        %1142 = vmatprep.subr.mxu0 0.0
        %1143 = vmatpush1.msra.mxu0 0.0
        %1144 = vmatprep.subr.mxu0 0.0
        %1145 = vmatpush1.msra.mxu0 0.0
        %1146 = vmatprep.subr.mxu0 0.0
        %1147 = vmatpush1.msra.mxu0 0.0
        %1148 = vmatprep.mubr.f32.mxu0 0.0
        %1149 = vmatmul.mubr.f32.gmra.mrb[0].mxu0 %v998
        %v1150 = vpop.f32.mrb[0].mxu0
        %v1151 = vadd.f32 0.0, %v1150
        %v1152 = vpop.f32.mrb[0].mxu0
        %1153 = vmatprep.mubr.f32.mxu0 0.0
        %1154 = vmatmul.mubr.f32.gmra.mrb[0].mxu0 %v1001
        %v1155 = vpop.f32.mrb[0].mxu0
        %v1156 = vadd.f32 0.0, %v1155
        %v1157 = vpop.f32.mrb[0].mxu0
        %1158 = vmatprep.mubr.f32.mxu0 0.0
        %1159 = vmatmul.mubr.f32.gmra.mrb[0].mxu0 %v1004
        %v1160 = vpop.f32.mrb[0].mxu0
        %v1161 = vadd.f32 0.0, %v1160
        %v1162 = vpop.f32.mrb[0].mxu0
        %1163 = vmatprep.mubr.f32.mxu0 0.0
        %1164 = vmatmul.mubr.f32.gmra.mrb[0].mxu0 %v1007
        %v1165 = vpop.f32.mrb[0].mxu0
        %v1166 = vadd.f32 0.0, %v1165
        %v1167 = vpop.f32.mrb[0].mxu0
        %1168 = vmatprep.mubr.f32.mxu0 0.0
        %1169 = vmatmul.mubr.f32.gmra.mrb[0].mxu0 %v1010
        %v1170 = vpop.f32.mrb[0].mxu0
        %v1171 = vadd.f32 0.0, %v1170
        %v1172 = vpop.f32.mrb[0].mxu0
        %1173 = vmatprep.mubr.f32.mxu0 0.0
        %1174 = vmatmul.mubr.f32.gmra.mrb[0].mxu0 %v1013
        %v1175 = vpop.f32.mrb[0].mxu0
        %v1176 = vadd.f32 0.0, %v1175
        %v1177 = vpop.f32.mrb[0].mxu0
        %1178 = vmatprep.mubr.f32.mxu0 0.0
        %1179 = vmatmul.mubr.f32.gmra.mrb[0].mxu0 %v1016
        %v1180 = vpop.f32.mrb[0].mxu0
        %v1181 = vadd.f32 0.0, %v1180
        %v1182 = vpop.f32.mrb[0].mxu0
        %1183 = vmatprep.mubr.f32.mxu0 0.0
        %1184 = vmatmul.mubr.f32.gmra.mrb[0].mxu0 %v1019
        %v1185 = vpop.f32.mrb[0].mxu0
        %v1186 = vadd.f32 0.0, %v1185
        %v1187 = vpop.f32.mrb[0].mxu0
        %1188 = vmatprep.mubr.f32.mxu0 0.0
        %1189 = vmatmul.mubr.f32.gmra.mrb[0].mxu0 %v1022
        %v1190 = vpop.f32.mrb[0].mxu0
        %v1191 = vadd.f32 0.0, %v1190
        %v1192 = vpop.f32.mrb[0].mxu0
        %1193 = vmatprep.mubr.f32.mxu0 0.0
        %1194 = vmatmul.mubr.f32.gmra.mrb[0].mxu0 %v1025
        %v1195 = vpop.f32.mrb[0].mxu0
        %v1196 = vadd.f32 0.0, %v1195
        %v1197 = vpop.f32.mrb[0].mxu0
        %1198 = vmatprep.mubr.f32.mxu0 0.0
        %1199 = vmatmul.mubr.f32.gmra.mrb[0].mxu0 %v1028
        %v1200 = vpop.f32.mrb[0].mxu0
        %v1201 = vadd.f32 0.0, %v1200
        %v1202 = vpop.f32.mrb[0].mxu0
        %1203 = vmatprep.mubr.f32.mxu0 0.0
        %1204 = vmatmul.mubr.f32.gmra.mrb[0].mxu0 %v1031
        %v1205 = vpop.f32.mrb[0].mxu0
        %v1206 = vadd.f32 0.0, %v1205
        %v1207 = vpop.f32.mrb[0].mxu0
        %1208 = vmatprep.mubr.f32.mxu0 0.0
        %1209 = vmatmul.mubr.f32.gmra.mrb[0].mxu0 %v1034
        %v1210 = vpop.f32.mrb[0].mxu0
        %v1211 = vadd.f32 0.0, %v1210
        %v1212 = vpop.f32.mrb[0].mxu0
        %1213 = vmatprep.mubr.f32.mxu0 0.0
        %1214 = vmatmul.mubr.f32.gmra.mrb[0].mxu0 %v1037
        %v1215 = vpop.f32.mrb[0].mxu0
        %v1216 = vadd.f32 0.0, %v1215
        %v1217 = vpop.f32.mrb[0].mxu0
        %1218 = vmatprep.mubr.f32.mxu0 0.0
        %1219 = vmatmul.mubr.f32.gmra.mrb[0].mxu0 %v1040
        %v1220 = vpop.f32.mrb[0].mxu0
        %v1221 = vadd.f32 0.0, %v1220
        %v1222 = vpop.f32.mrb[0].mxu0
        %1223 = vmatprep.mubr.f32.mxu0 0.0
        %1224 = vmatmul.mubr.f32.gmra.mrb[0].mxu0 %v1043
        %v1225 = vpop.f32.mrb[0].mxu0
        %v1226 = vadd.f32 0.0, %v1225
        %v1227 = vpop.f32.mrb[0].mxu0
        %1228 = vmatprep.mubr.f32.mxu0 0.0
        %1229 = vmatmul.mubr.f32.gmra.mrb[0].mxu0 %v1046
        %v1230 = vpop.f32.mrb[0].mxu0
        %v1231 = vadd.f32 0.0, %v1230
        %v1232 = vpop.f32.mrb[0].mxu0
        %1233 = vmatprep.mubr.f32.mxu0 0.0
        %1234 = vmatmul.mubr.f32.gmra.mrb[0].mxu0 %v1049
        %v1235 = vpop.f32.mrb[0].mxu0
        %v1236 = vadd.f32 0.0, %v1235
        %v1237 = vpop.f32.mrb[0].mxu0
        %1238 = vmatprep.mubr.f32.mxu0 0.0
        %1239 = vmatmul.mubr.f32.gmra.mrb[0].mxu0 %v1052
        %v1240 = vpop.f32.mrb[0].mxu0
        %v1241 = vadd.f32 0.0, %v1240
        %v1242 = vpop.f32.mrb[0].mxu0
        %1243 = vmatprep.mubr.f32.mxu0 0.0
        %1244 = vmatmul.mubr.f32.gmra.mrb[0].mxu0 %v1055
        %v1245 = vpop.f32.mrb[0].mxu0
        %v1246 = vadd.f32 0.0, %v1245
        %v1247 = vpop.f32.mrb[0].mxu0
        %1248 = vmatprep.mubr.f32.mxu0 0.0
        %1249 = vmatmul.mubr.f32.gmra.mrb[0].mxu0 %v1058
        %v1250 = vpop.f32.mrb[0].mxu0
        %v1251 = vadd.f32 0.0, %v1250
        %v1252 = vpop.f32.mrb[0].mxu0
        %1253 = vmatprep.mubr.f32.mxu0 0.0
        %1254 = vmatmul.mubr.f32.gmra.mrb[0].mxu0 %v1061
        %v1255 = vpop.f32.mrb[0].mxu0
        %v1256 = vadd.f32 0.0, %v1255
        %v1257 = vpop.f32.mrb[0].mxu0
        %1258 = vmatprep.mubr.f32.mxu0 0.0
        %1259 = vmatmul.mubr.f32.gmra.mrb[0].mxu0 %v1064
        %v1260 = vpop.f32.mrb[0].mxu0
        %v1261 = vadd.f32 0.0, %v1260
        %v1262 = vpop.f32.mrb[0].mxu0
        %1263 = vmatprep.mubr.f32.mxu0 0.0
        %1264 = vmatmul.mubr.f32.gmra.mrb[0].mxu0 %v1067
        %v1265 = vpop.f32.mrb[0].mxu0
        %v1266 = vadd.f32 0.0, %v1265
        %v1267 = vpop.f32.mrb[0].mxu0
        %1268 = vmatprep.mubr.f32.mxu0 0.0
        %1269 = vmatmul.mubr.f32.gmra.mrb[0].mxu0 %v1070
        %v1270 = vpop.f32.mrb[0].mxu0
        %v1271 = vpop.f32.mrb[0].mxu0
        %1272 = vmatprep.mubr.f32.mxu0 0.0
        %1273 = vmatmul.mubr.f32.gmra.mrb[0].mxu0 %v1073
        %v1274 = vpop.f32.mrb[0].mxu0
        %v1275 = vpop.f32.mrb[0].mxu0
        %1276 = vmatprep.mubr.f32.mxu0 0.0
        %1277 = vmatmul.mubr.f32.gmra.mrb[0].mxu0 %v1076
        %v1278 = vpop.f32.mrb[0].mxu0
        %v1279 = vpop.f32.mrb[0].mxu0
        %1280 = vmatprep.mubr.f32.mxu0 0.0
        %1281 = vmatmul.mubr.f32.gmra.mrb[0].mxu0 %v1079
        %v1282 = vpop.f32.mrb[0].mxu0
        %v1283 = vpop.f32.mrb[0].mxu0
        %1284 = vdwg.mxu0
        %v1285 = vadd.f32 %v833, %v1151
        %v1286 = vadd.f32 %v838, %v1156
        %v1287 = vadd.f32 %v843, %v1161
        %v1288 = vadd.f32 %v848, %v1166
        %v1289 = vadd.f32 %v853, %v1171
        %v1290 = vadd.f32 %v858, %v1176
        %v1291 = vadd.f32 %v863, %v1181
        %v1292 = vadd.f32 %v868, %v1186
        %v1293 = vadd.f32 %v873, %v1191
        %v1294 = vadd.f32 %v878, %v1196
        %v1295 = vadd.f32 %v883, %v1201
        %v1296 = vadd.f32 %v888, %v1206
        %v1297 = vadd.f32 %v893, %v1211
        %v1298 = vadd.f32 %v898, %v1216
        %v1299 = vadd.f32 %v903, %v1221
        %v1300 = vadd.f32 %v908, %v1226
        %v1301 = vadd.f32 %v913, %v1231
        %v1302 = vadd.f32 %v918, %v1236
        %v1303 = vadd.f32 %v923, %v1241
        %v1304 = vadd.f32 %v928, %v1246
        %v1305 = vadd.f32 %v933, %v1251
        %v1306 = vadd.f32 %v938, %v1256
        %v1307 = vadd.f32 %v943, %v1261
        %v1308 = vadd.f32 %v948, %v1266
        %v1309 = vld [vmem:[%s329 + $0x10] sm:$0xff]
        %v1310 = vld [vmem:[%s329 + $0x18] sm:$0xff]
        %v1311 = vld [vmem:[%s329 + $0x20] sm:$0xff]
        %v1312 = vld [vmem:[%s329 + $0x28] sm:$0xff]
        %v1313 = vld [vmem:[%s329 + $0x30] sm:$0xff]
        %v1314 = vld [vmem:[%s329 + $0x38] sm:$0xff]
        %v1315 = vld [vmem:[%s329 + $0x40] sm:$0xff]
        %v1316 = vld [vmem:[%s329 + $0x48] sm:$0xff]
        %v1317 = vld [vmem:[%s329 + $0x50] sm:$0xff]
        %v1318 = vld [vmem:[%s329 + $0x58] sm:$0xff]
        %v1319 = vld [vmem:[%s329 + $0x60] sm:$0xff]
        %v1320 = vld [vmem:[%s329 + $0x68] sm:$0xff]
        %v1321 = vld [vmem:[%s329 + $0x70] sm:$0xff]
        %v1322 = vld [vmem:[%s329 + $0x78] sm:$0xff]
        %v1323 = vld [vmem:[%s329 + $0x80] sm:$0xff]
        %v1324 = vld [vmem:[%s329 + $0x88] sm:$0xff]
        %v1325 = vld [vmem:[%s329 + $0x90] sm:$0xff]
        %v1326 = vld [vmem:[%s329 + $0x98] sm:$0xff]
        %v1327 = vld [vmem:[%s329 + $0xa0] sm:$0xff]
        %v1328 = vld [vmem:[%s329 + $0xa8] sm:$0xff]
        %v1329 = vld [vmem:[%s329 + $0xb0] sm:$0xff]
        %v1330 = vld [vmem:[%s329 + $0xb8] sm:$0xff]
        %v1331 = vld [vmem:[%s329 + $0xc0] sm:$0xff]
        %v1332 = vld [vmem:[%s329 + $0xc8] sm:$0xff]
        %v1333 = vld [vmem:[%s329 + $0xd0] sm:$0xff]
        %v1334 = vld [vmem:[%s329 + $0xd8] sm:$0xff]
        %v1335 = vld [vmem:[%s329 + $0xe0] sm:$0xff]
        %v1336 = vld [vmem:[%s329 + $0xe8] sm:$0xff]
        %s1337 = scalar_lea.vmem %s1, 12
        %v1338 = vld [vmem:[%s1337] sm:$0x7]
        %v1340 = vsel %vm389, %v1309, 0
        %v1343 = vsel %vm389, %v1310, 0
        %v1346 = vsel %vm389, %v1311, 0
        %v1349 = vsel %vm389, %v1312, 0
        %v1352 = vsel %vm389, %v1313, 0
        %v1355 = vsel %vm389, %v1314, 0
        %v1358 = vsel %vm389, %v1315, 0
        %v1361 = vsel %vm389, %v1316, 0
        %v1364 = vsel %vm389, %v1317, 0
        %v1367 = vsel %vm389, %v1318, 0
        %v1370 = vsel %vm389, %v1319, 0
        %v1373 = vsel %vm389, %v1320, 0
        %v1376 = vsel %vm389, %v1321, 0
        %v1379 = vsel %vm389, %v1322, 0
        %v1382 = vsel %vm389, %v1323, 0
        %v1385 = vsel %vm389, %v1324, 0
        %v1388 = vsel %vm389, %v1325, 0
        %v1391 = vsel %vm389, %v1326, 0
        %v1394 = vsel %vm389, %v1327, 0
        %v1397 = vsel %vm389, %v1328, 0
        %v1400 = vsel %vm389, %v1329, 0
        %v1403 = vsel %vm389, %v1330, 0
        %v1406 = vsel %vm389, %v1331, 0
        %v1409 = vsel %vm389, %v1332, 0
        %v1412 = vsel %vm389, %v1333, 0
        %v1415 = vsel %vm389, %v1334, 0
        %v1418 = vsel %vm389, %v1335, 0
        %v1421 = vsel %vm389, %v1336, 0
        %v1424 = vsel %vm474, %v1338, 0
        %1426 = vmatprep.subr.mxu0 0.0
        %1427 = vmatpush1.msra.mxu0 %v1424
        %1428 = vmatprep.subr.mxu0 0.0
        %1429 = vmatpush1.msra.mxu0 0.0
        %1430 = vmatprep.subr.mxu0 0.0
        %1431 = vmatpush1.msra.mxu0 0.0
        %1432 = vmatprep.subr.mxu0 0.0
        %1433 = vmatpush1.msra.mxu0 0.0
        %1434 = vmatprep.subr.mxu0 0.0
        %1435 = vmatpush1.msra.mxu0 0.0
        %1436 = vmatprep.subr.mxu0 0.0
        %1437 = vmatpush1.msra.mxu0 0.0
        %1438 = vmatprep.subr.mxu0 0.0
        %1439 = vmatpush1.msra.mxu0 0.0
        %1440 = vmatprep.subr.mxu0 0.0
        %1441 = vmatpush1.msra.mxu0 0.0
        %1442 = vmatprep.subr.mxu0 0.0
        %1443 = vmatpush1.msra.mxu0 0.0
        %1444 = vmatprep.subr.mxu0 0.0
        %1445 = vmatpush1.msra.mxu0 0.0
        %1446 = vmatprep.subr.mxu0 0.0
        %1447 = vmatpush1.msra.mxu0 0.0
        %1448 = vmatprep.subr.mxu0 0.0
        %1449 = vmatpush1.msra.mxu0 0.0
        %1450 = vmatprep.subr.mxu0 0.0
        %1451 = vmatpush1.msra.mxu0 0.0
        %1452 = vmatprep.subr.mxu0 0.0
        %1453 = vmatpush1.msra.mxu0 0.0
        %1454 = vmatprep.subr.mxu0 0.0
        %1455 = vmatpush1.msra.mxu0 0.0
        %1456 = vmatprep.subr.mxu0 0.0
        %1457 = vmatpush1.msra.mxu0 0.0
        %1458 = vmatprep.subr.mxu0 0.0
        %1459 = vmatpush1.msra.mxu0 0.0
        %1460 = vmatprep.subr.mxu0 0.0
        %1461 = vmatpush1.msra.mxu0 0.0
        %1462 = vmatprep.subr.mxu0 0.0
        %1463 = vmatpush1.msra.mxu0 0.0
        %1464 = vmatprep.subr.mxu0 0.0
        %1465 = vmatpush1.msra.mxu0 0.0
        %1466 = vmatprep.subr.mxu0 0.0
        %1467 = vmatpush1.msra.mxu0 0.0
        %1468 = vmatprep.subr.mxu0 0.0
        %1469 = vmatpush1.msra.mxu0 0.0
        %1470 = vmatprep.subr.mxu0 0.0
        %1471 = vmatpush1.msra.mxu0 0.0
        %1472 = vmatprep.subr.mxu0 0.0
        %1473 = vmatpush1.msra.mxu0 0.0
        %1474 = vmatprep.subr.mxu0 0.0
        %1475 = vmatpush1.msra.mxu0 0.0
        %1476 = vmatprep.subr.mxu0 0.0
        %1477 = vmatpush1.msra.mxu0 0.0
        %1478 = vmatprep.subr.mxu0 0.0
        %1479 = vmatpush1.msra.mxu0 0.0
        %1480 = vmatprep.subr.mxu0 0.0
        %1481 = vmatpush1.msra.mxu0 0.0
        %1482 = vmatprep.subr.mxu0 0.0
        %1483 = vmatpush1.msra.mxu0 0.0
        %1484 = vmatprep.subr.mxu0 0.0
        %1485 = vmatpush1.msra.mxu0 0.0
        %1486 = vmatprep.subr.mxu0 0.0
        %1487 = vmatpush1.msra.mxu0 0.0
        %1488 = vmatprep.subr.mxu0 0.0
        %1489 = vmatpush1.msra.mxu0 0.0
        %1490 = vmatprep.mubr.f32.mxu0 0.0
        %1491 = vmatmul.mubr.f32.gmra.mrb[0].mxu0 %v1340
        %v1492 = vpop.f32.mrb[0].mxu0
        %v1493 = vadd.f32 0.0, %v1492
        %v1494 = vpop.f32.mrb[0].mxu0
        %1495 = vmatprep.mubr.f32.mxu0 0.0
        %1496 = vmatmul.mubr.f32.gmra.mrb[0].mxu0 %v1343
        %v1497 = vpop.f32.mrb[0].mxu0
        %v1498 = vadd.f32 0.0, %v1497
        %v1499 = vpop.f32.mrb[0].mxu0
        %1500 = vmatprep.mubr.f32.mxu0 0.0
        %1501 = vmatmul.mubr.f32.gmra.mrb[0].mxu0 %v1346
        %v1502 = vpop.f32.mrb[0].mxu0
        %v1503 = vadd.f32 0.0, %v1502
        %v1504 = vpop.f32.mrb[0].mxu0
        %1505 = vmatprep.mubr.f32.mxu0 0.0
        %1506 = vmatmul.mubr.f32.gmra.mrb[0].mxu0 %v1349
        %v1507 = vpop.f32.mrb[0].mxu0
        %v1508 = vadd.f32 0.0, %v1507
        %v1509 = vpop.f32.mrb[0].mxu0
        %1510 = vmatprep.mubr.f32.mxu0 0.0
        %1511 = vmatmul.mubr.f32.gmra.mrb[0].mxu0 %v1352
        %v1512 = vpop.f32.mrb[0].mxu0
        %v1513 = vadd.f32 0.0, %v1512
        %v1514 = vpop.f32.mrb[0].mxu0
        %1515 = vmatprep.mubr.f32.mxu0 0.0
        %1516 = vmatmul.mubr.f32.gmra.mrb[0].mxu0 %v1355
        %v1517 = vpop.f32.mrb[0].mxu0
        %v1518 = vadd.f32 0.0, %v1517
        %v1519 = vpop.f32.mrb[0].mxu0
        %1520 = vmatprep.mubr.f32.mxu0 0.0
        %1521 = vmatmul.mubr.f32.gmra.mrb[0].mxu0 %v1358
        %v1522 = vpop.f32.mrb[0].mxu0
        %v1523 = vadd.f32 0.0, %v1522
        %v1524 = vpop.f32.mrb[0].mxu0
        %1525 = vmatprep.mubr.f32.mxu0 0.0
        %1526 = vmatmul.mubr.f32.gmra.mrb[0].mxu0 %v1361
        %v1527 = vpop.f32.mrb[0].mxu0
        %v1528 = vadd.f32 0.0, %v1527
        %v1529 = vpop.f32.mrb[0].mxu0
        %1530 = vmatprep.mubr.f32.mxu0 0.0
        %1531 = vmatmul.mubr.f32.gmra.mrb[0].mxu0 %v1364
        %v1532 = vpop.f32.mrb[0].mxu0
        %v1533 = vadd.f32 0.0, %v1532
        %v1534 = vpop.f32.mrb[0].mxu0
        %1535 = vmatprep.mubr.f32.mxu0 0.0
        %1536 = vmatmul.mubr.f32.gmra.mrb[0].mxu0 %v1367
        %v1537 = vpop.f32.mrb[0].mxu0
        %v1538 = vadd.f32 0.0, %v1537
        %v1539 = vpop.f32.mrb[0].mxu0
        %1540 = vmatprep.mubr.f32.mxu0 0.0
        %1541 = vmatmul.mubr.f32.gmra.mrb[0].mxu0 %v1370
        %v1542 = vpop.f32.mrb[0].mxu0
        %v1543 = vadd.f32 0.0, %v1542
        %v1544 = vpop.f32.mrb[0].mxu0
        %1545 = vmatprep.mubr.f32.mxu0 0.0
        %1546 = vmatmul.mubr.f32.gmra.mrb[0].mxu0 %v1373
        %v1547 = vpop.f32.mrb[0].mxu0
        %v1548 = vadd.f32 0.0, %v1547
        %v1549 = vpop.f32.mrb[0].mxu0
        %1550 = vmatprep.mubr.f32.mxu0 0.0
        %1551 = vmatmul.mubr.f32.gmra.mrb[0].mxu0 %v1376
        %v1552 = vpop.f32.mrb[0].mxu0
        %v1553 = vadd.f32 0.0, %v1552
        %v1554 = vpop.f32.mrb[0].mxu0
        %1555 = vmatprep.mubr.f32.mxu0 0.0
        %1556 = vmatmul.mubr.f32.gmra.mrb[0].mxu0 %v1379
        %v1557 = vpop.f32.mrb[0].mxu0
        %v1558 = vadd.f32 0.0, %v1557
        %v1559 = vpop.f32.mrb[0].mxu0
        %1560 = vmatprep.mubr.f32.mxu0 0.0
        %1561 = vmatmul.mubr.f32.gmra.mrb[0].mxu0 %v1382
        %v1562 = vpop.f32.mrb[0].mxu0
        %v1563 = vadd.f32 0.0, %v1562
        %v1564 = vpop.f32.mrb[0].mxu0
        %1565 = vmatprep.mubr.f32.mxu0 0.0
        %1566 = vmatmul.mubr.f32.gmra.mrb[0].mxu0 %v1385
        %v1567 = vpop.f32.mrb[0].mxu0
        %v1568 = vadd.f32 0.0, %v1567
        %v1569 = vpop.f32.mrb[0].mxu0
        %1570 = vmatprep.mubr.f32.mxu0 0.0
        %1571 = vmatmul.mubr.f32.gmra.mrb[0].mxu0 %v1388
        %v1572 = vpop.f32.mrb[0].mxu0
        %v1573 = vadd.f32 0.0, %v1572
        %v1574 = vpop.f32.mrb[0].mxu0
        %1575 = vmatprep.mubr.f32.mxu0 0.0
        %1576 = vmatmul.mubr.f32.gmra.mrb[0].mxu0 %v1391
        %v1577 = vpop.f32.mrb[0].mxu0
        %v1578 = vadd.f32 0.0, %v1577
        %v1579 = vpop.f32.mrb[0].mxu0
        %1580 = vmatprep.mubr.f32.mxu0 0.0
        %1581 = vmatmul.mubr.f32.gmra.mrb[0].mxu0 %v1394
        %v1582 = vpop.f32.mrb[0].mxu0
        %v1583 = vadd.f32 0.0, %v1582
        %v1584 = vpop.f32.mrb[0].mxu0
        %1585 = vmatprep.mubr.f32.mxu0 0.0
        %1586 = vmatmul.mubr.f32.gmra.mrb[0].mxu0 %v1397
        %v1587 = vpop.f32.mrb[0].mxu0
        %v1588 = vadd.f32 0.0, %v1587
        %v1589 = vpop.f32.mrb[0].mxu0
        %1590 = vmatprep.mubr.f32.mxu0 0.0
        %1591 = vmatmul.mubr.f32.gmra.mrb[0].mxu0 %v1400
        %v1592 = vpop.f32.mrb[0].mxu0
        %v1593 = vadd.f32 0.0, %v1592
        %v1594 = vpop.f32.mrb[0].mxu0
        %1595 = vmatprep.mubr.f32.mxu0 0.0
        %1596 = vmatmul.mubr.f32.gmra.mrb[0].mxu0 %v1403
        %v1597 = vpop.f32.mrb[0].mxu0
        %v1598 = vadd.f32 0.0, %v1597
        %v1599 = vpop.f32.mrb[0].mxu0
        %1600 = vmatprep.mubr.f32.mxu0 0.0
        %1601 = vmatmul.mubr.f32.gmra.mrb[0].mxu0 %v1406
        %v1602 = vpop.f32.mrb[0].mxu0
        %v1603 = vadd.f32 0.0, %v1602
        %v1604 = vpop.f32.mrb[0].mxu0
        %1605 = vmatprep.mubr.f32.mxu0 0.0
        %1606 = vmatmul.mubr.f32.gmra.mrb[0].mxu0 %v1409
        %v1607 = vpop.f32.mrb[0].mxu0
        %v1608 = vadd.f32 0.0, %v1607
        %v1609 = vpop.f32.mrb[0].mxu0
        %1610 = vmatprep.mubr.f32.mxu0 0.0
        %1611 = vmatmul.mubr.f32.gmra.mrb[0].mxu0 %v1412
        %v1612 = vpop.f32.mrb[0].mxu0
        %v1613 = vpop.f32.mrb[0].mxu0
        %1614 = vmatprep.mubr.f32.mxu0 0.0
        %1615 = vmatmul.mubr.f32.gmra.mrb[0].mxu0 %v1415
        %v1616 = vpop.f32.mrb[0].mxu0
        %v1617 = vpop.f32.mrb[0].mxu0
        %1618 = vmatprep.mubr.f32.mxu0 0.0
        %1619 = vmatmul.mubr.f32.gmra.mrb[0].mxu0 %v1418
        %v1620 = vpop.f32.mrb[0].mxu0
        %v1621 = vpop.f32.mrb[0].mxu0
        %1622 = vmatprep.mubr.f32.mxu0 0.0
        %1623 = vmatmul.mubr.f32.gmra.mrb[0].mxu0 %v1421
        %v1624 = vpop.f32.mrb[0].mxu0
        %v1625 = vpop.f32.mrb[0].mxu0
        %1626 = vdwg.mxu0
        %v1627 = vadd.f32 %v1285, %v1493
        %v1628 = vadd.f32 %v1286, %v1498
        %v1629 = vadd.f32 %v1287, %v1503
        %v1630 = vadd.f32 %v1288, %v1508
        %v1631 = vadd.f32 %v1289, %v1513
        %v1632 = vadd.f32 %v1290, %v1518
        %v1633 = vadd.f32 %v1291, %v1523
        %v1634 = vadd.f32 %v1292, %v1528
        %v1635 = vadd.f32 %v1293, %v1533
        %v1636 = vadd.f32 %v1294, %v1538
        %v1637 = vadd.f32 %v1295, %v1543
        %v1638 = vadd.f32 %v1296, %v1548
        %v1639 = vadd.f32 %v1297, %v1553
        %v1640 = vadd.f32 %v1298, %v1558
        %v1641 = vadd.f32 %v1299, %v1563
        %v1642 = vadd.f32 %v1300, %v1568
        %v1643 = vadd.f32 %v1301, %v1573
        %v1644 = vadd.f32 %v1302, %v1578
        %v1645 = vadd.f32 %v1303, %v1583
        %v1646 = vadd.f32 %v1304, %v1588
        %v1647 = vadd.f32 %v1305, %v1593
        %v1648 = vadd.f32 %v1306, %v1598
        %v1649 = vadd.f32 %v1307, %v1603
        %v1650 = vadd.f32 %v1308, %v1608
        %v1651 = vld [vmem:[%s329 + $0x11] sm:$0xff]
        %v1652 = vld [vmem:[%s329 + $0x19] sm:$0xff]
        %v1653 = vld [vmem:[%s329 + $0x21] sm:$0xff]
        %v1654 = vld [vmem:[%s329 + $0x29] sm:$0xff]
        %v1655 = vld [vmem:[%s329 + $0x31] sm:$0xff]
        %v1656 = vld [vmem:[%s329 + $0x39] sm:$0xff]
        %v1657 = vld [vmem:[%s329 + $0x41] sm:$0xff]
        %v1658 = vld [vmem:[%s329 + $0x49] sm:$0xff]
        %v1659 = vld [vmem:[%s329 + $0x51] sm:$0xff]
        %v1660 = vld [vmem:[%s329 + $0x59] sm:$0xff]
        %v1661 = vld [vmem:[%s329 + $0x61] sm:$0xff]
        %v1662 = vld [vmem:[%s329 + $0x69] sm:$0xff]
        %v1663 = vld [vmem:[%s329 + $0x71] sm:$0xff]
        %v1664 = vld [vmem:[%s329 + $0x79] sm:$0xff]
        %v1665 = vld [vmem:[%s329 + $0x81] sm:$0xff]
        %v1666 = vld [vmem:[%s329 + $0x89] sm:$0xff]
        %v1667 = vld [vmem:[%s329 + $0x91] sm:$0xff]
        %v1668 = vld [vmem:[%s329 + $0x99] sm:$0xff]
        %v1669 = vld [vmem:[%s329 + $0xa1] sm:$0xff]
        %v1670 = vld [vmem:[%s329 + $0xa9] sm:$0xff]
        %v1671 = vld [vmem:[%s329 + $0xb1] sm:$0xff]
        %v1672 = vld [vmem:[%s329 + $0xb9] sm:$0xff]
        %v1673 = vld [vmem:[%s329 + $0xc1] sm:$0xff]
        %v1674 = vld [vmem:[%s329 + $0xc9] sm:$0xff]
        %v1675 = vld [vmem:[%s329 + $0xd1] sm:$0xff]
        %v1676 = vld [vmem:[%s329 + $0xd9] sm:$0xff]
        %v1677 = vld [vmem:[%s329 + $0xe1] sm:$0xff]
        %v1678 = vld [vmem:[%s329 + $0xe9] sm:$0xff]
        %s1679 = scalar_lea.vmem %s1, 16
        %v1680 = vld [vmem:[%s1679] sm:$0x7]
        %v1682 = vsel %vm389, %v1651, 0
        %v1685 = vsel %vm389, %v1652, 0
        %v1688 = vsel %vm389, %v1653, 0
        %v1691 = vsel %vm389, %v1654, 0
        %v1694 = vsel %vm389, %v1655, 0
        %v1697 = vsel %vm389, %v1656, 0
        %v1700 = vsel %vm389, %v1657, 0
        %v1703 = vsel %vm389, %v1658, 0
        %v1706 = vsel %vm389, %v1659, 0
        %v1709 = vsel %vm389, %v1660, 0
        %v1712 = vsel %vm389, %v1661, 0
        %v1715 = vsel %vm389, %v1662, 0
        %v1718 = vsel %vm389, %v1663, 0
        %v1721 = vsel %vm389, %v1664, 0
        %v1724 = vsel %vm389, %v1665, 0
        %v1727 = vsel %vm389, %v1666, 0
        %v1730 = vsel %vm389, %v1667, 0
        %v1733 = vsel %vm389, %v1668, 0
        %v1736 = vsel %vm389, %v1669, 0
        %v1739 = vsel %vm389, %v1670, 0
        %v1742 = vsel %vm389, %v1671, 0
        %v1745 = vsel %vm389, %v1672, 0
        %v1748 = vsel %vm389, %v1673, 0
        %v1751 = vsel %vm389, %v1674, 0
        %v1754 = vsel %vm389, %v1675, 0
        %v1757 = vsel %vm389, %v1676, 0
        %v1760 = vsel %vm389, %v1677, 0
        %v1763 = vsel %vm389, %v1678, 0
        %v1766 = vsel %vm474, %v1680, 0
        %1768 = vmatprep.subr.mxu0 0.0
        %1769 = vmatpush1.msra.mxu0 %v1766
        %1770 = vmatprep.subr.mxu0 0.0
        %1771 = vmatpush1.msra.mxu0 0.0
        %1772 = vmatprep.subr.mxu0 0.0
        %1773 = vmatpush1.msra.mxu0 0.0
        %1774 = vmatprep.subr.mxu0 0.0
        %1775 = vmatpush1.msra.mxu0 0.0
        %1776 = vmatprep.subr.mxu0 0.0
        %1777 = vmatpush1.msra.mxu0 0.0
        %1778 = vmatprep.subr.mxu0 0.0
        %1779 = vmatpush1.msra.mxu0 0.0
        %1780 = vmatprep.subr.mxu0 0.0
        %1781 = vmatpush1.msra.mxu0 0.0
        %1782 = vmatprep.subr.mxu0 0.0
        %1783 = vmatpush1.msra.mxu0 0.0
        %1784 = vmatprep.subr.mxu0 0.0
        %1785 = vmatpush1.msra.mxu0 0.0
        %1786 = vmatprep.subr.mxu0 0.0
        %1787 = vmatpush1.msra.mxu0 0.0
        %1788 = vmatprep.subr.mxu0 0.0
        %1789 = vmatpush1.msra.mxu0 0.0
        %1790 = vmatprep.subr.mxu0 0.0
        %1791 = vmatpush1.msra.mxu0 0.0
        %1792 = vmatprep.subr.mxu0 0.0
        %1793 = vmatpush1.msra.mxu0 0.0
        %1794 = vmatprep.subr.mxu0 0.0
        %1795 = vmatpush1.msra.mxu0 0.0
        %1796 = vmatprep.subr.mxu0 0.0
        %1797 = vmatpush1.msra.mxu0 0.0
        %1798 = vmatprep.subr.mxu0 0.0
        %1799 = vmatpush1.msra.mxu0 0.0
        %1800 = vmatprep.subr.mxu0 0.0
        %1801 = vmatpush1.msra.mxu0 0.0
        %1802 = vmatprep.subr.mxu0 0.0
        %1803 = vmatpush1.msra.mxu0 0.0
        %1804 = vmatprep.subr.mxu0 0.0
        %1805 = vmatpush1.msra.mxu0 0.0
        %1806 = vmatprep.subr.mxu0 0.0
        %1807 = vmatpush1.msra.mxu0 0.0
        %1808 = vmatprep.subr.mxu0 0.0
        %1809 = vmatpush1.msra.mxu0 0.0
        %1810 = vmatprep.subr.mxu0 0.0
        %1811 = vmatpush1.msra.mxu0 0.0
        %1812 = vmatprep.subr.mxu0 0.0
        %1813 = vmatpush1.msra.mxu0 0.0
        %1814 = vmatprep.subr.mxu0 0.0
        %1815 = vmatpush1.msra.mxu0 0.0
        %1816 = vmatprep.subr.mxu0 0.0
        %1817 = vmatpush1.msra.mxu0 0.0
        %1818 = vmatprep.subr.mxu0 0.0
        %1819 = vmatpush1.msra.mxu0 0.0
        %1820 = vmatprep.subr.mxu0 0.0
        %1821 = vmatpush1.msra.mxu0 0.0
        %1822 = vmatprep.subr.mxu0 0.0
        %1823 = vmatpush1.msra.mxu0 0.0
        %1824 = vmatprep.subr.mxu0 0.0
        %1825 = vmatpush1.msra.mxu0 0.0
        %1826 = vmatprep.subr.mxu0 0.0
        %1827 = vmatpush1.msra.mxu0 0.0
        %1828 = vmatprep.subr.mxu0 0.0
        %1829 = vmatpush1.msra.mxu0 0.0
        %1830 = vmatprep.subr.mxu0 0.0
        %1831 = vmatpush1.msra.mxu0 0.0
        %1832 = vmatprep.mubr.f32.mxu0 0.0
        %1833 = vmatmul.mubr.f32.gmra.mrb[0].mxu0 %v1682
        %v1834 = vpop.f32.mrb[0].mxu0
        %v1835 = vadd.f32 0.0, %v1834
        %v1836 = vpop.f32.mrb[0].mxu0
        %1837 = vmatprep.mubr.f32.mxu0 0.0
        %1838 = vmatmul.mubr.f32.gmra.mrb[0].mxu0 %v1685
        %v1839 = vpop.f32.mrb[0].mxu0
        %v1840 = vadd.f32 0.0, %v1839
        %v1841 = vpop.f32.mrb[0].mxu0
        %1842 = vmatprep.mubr.f32.mxu0 0.0
        %1843 = vmatmul.mubr.f32.gmra.mrb[0].mxu0 %v1688
        %v1844 = vpop.f32.mrb[0].mxu0
        %v1845 = vadd.f32 0.0, %v1844
        %v1846 = vpop.f32.mrb[0].mxu0
        %1847 = vmatprep.mubr.f32.mxu0 0.0
        %1848 = vmatmul.mubr.f32.gmra.mrb[0].mxu0 %v1691
        %v1849 = vpop.f32.mrb[0].mxu0
        %v1850 = vadd.f32 0.0, %v1849
        %v1851 = vpop.f32.mrb[0].mxu0
        %1852 = vmatprep.mubr.f32.mxu0 0.0
        %1853 = vmatmul.mubr.f32.gmra.mrb[0].mxu0 %v1694
        %v1854 = vpop.f32.mrb[0].mxu0
        %v1855 = vadd.f32 0.0, %v1854
        %v1856 = vpop.f32.mrb[0].mxu0
        %1857 = vmatprep.mubr.f32.mxu0 0.0
        %1858 = vmatmul.mubr.f32.gmra.mrb[0].mxu0 %v1697
        %v1859 = vpop.f32.mrb[0].mxu0
        %v1860 = vadd.f32 0.0, %v1859
        %v1861 = vpop.f32.mrb[0].mxu0
        %1862 = vmatprep.mubr.f32.mxu0 0.0
        %1863 = vmatmul.mubr.f32.gmra.mrb[0].mxu0 %v1700
        %v1864 = vpop.f32.mrb[0].mxu0
        %v1865 = vadd.f32 0.0, %v1864
        %v1866 = vpop.f32.mrb[0].mxu0
        %1867 = vmatprep.mubr.f32.mxu0 0.0
        %1868 = vmatmul.mubr.f32.gmra.mrb[0].mxu0 %v1703
        %v1869 = vpop.f32.mrb[0].mxu0
        %v1870 = vadd.f32 0.0, %v1869
        %v1871 = vpop.f32.mrb[0].mxu0
        %1872 = vmatprep.mubr.f32.mxu0 0.0
        %1873 = vmatmul.mubr.f32.gmra.mrb[0].mxu0 %v1706
        %v1874 = vpop.f32.mrb[0].mxu0
        %v1875 = vadd.f32 0.0, %v1874
        %v1876 = vpop.f32.mrb[0].mxu0
        %1877 = vmatprep.mubr.f32.mxu0 0.0
        %1878 = vmatmul.mubr.f32.gmra.mrb[0].mxu0 %v1709
        %v1879 = vpop.f32.mrb[0].mxu0
        %v1880 = vadd.f32 0.0, %v1879
        %v1881 = vpop.f32.mrb[0].mxu0
        %1882 = vmatprep.mubr.f32.mxu0 0.0
        %1883 = vmatmul.mubr.f32.gmra.mrb[0].mxu0 %v1712
        %v1884 = vpop.f32.mrb[0].mxu0
        %v1885 = vadd.f32 0.0, %v1884
        %v1886 = vpop.f32.mrb[0].mxu0
        %1887 = vmatprep.mubr.f32.mxu0 0.0
        %1888 = vmatmul.mubr.f32.gmra.mrb[0].mxu0 %v1715
        %v1889 = vpop.f32.mrb[0].mxu0
        %v1890 = vadd.f32 0.0, %v1889
        %v1891 = vpop.f32.mrb[0].mxu0
        %1892 = vmatprep.mubr.f32.mxu0 0.0
        %1893 = vmatmul.mubr.f32.gmra.mrb[0].mxu0 %v1718
        %v1894 = vpop.f32.mrb[0].mxu0
        %v1895 = vadd.f32 0.0, %v1894
        %v1896 = vpop.f32.mrb[0].mxu0
        %1897 = vmatprep.mubr.f32.mxu0 0.0
        %1898 = vmatmul.mubr.f32.gmra.mrb[0].mxu0 %v1721
        %v1899 = vpop.f32.mrb[0].mxu0
        %v1900 = vadd.f32 0.0, %v1899
        %v1901 = vpop.f32.mrb[0].mxu0
        %1902 = vmatprep.mubr.f32.mxu0 0.0
        %1903 = vmatmul.mubr.f32.gmra.mrb[0].mxu0 %v1724
        %v1904 = vpop.f32.mrb[0].mxu0
        %v1905 = vadd.f32 0.0, %v1904
        %v1906 = vpop.f32.mrb[0].mxu0
        %1907 = vmatprep.mubr.f32.mxu0 0.0
        %1908 = vmatmul.mubr.f32.gmra.mrb[0].mxu0 %v1727
        %v1909 = vpop.f32.mrb[0].mxu0
        %v1910 = vadd.f32 0.0, %v1909
        %v1911 = vpop.f32.mrb[0].mxu0
        %1912 = vmatprep.mubr.f32.mxu0 0.0
        %1913 = vmatmul.mubr.f32.gmra.mrb[0].mxu0 %v1730
        %v1914 = vpop.f32.mrb[0].mxu0
        %v1915 = vadd.f32 0.0, %v1914
        %v1916 = vpop.f32.mrb[0].mxu0
        %1917 = vmatprep.mubr.f32.mxu0 0.0
        %1918 = vmatmul.mubr.f32.gmra.mrb[0].mxu0 %v1733
        %v1919 = vpop.f32.mrb[0].mxu0
        %v1920 = vadd.f32 0.0, %v1919
        %v1921 = vpop.f32.mrb[0].mxu0
        %1922 = vmatprep.mubr.f32.mxu0 0.0
        %1923 = vmatmul.mubr.f32.gmra.mrb[0].mxu0 %v1736
        %v1924 = vpop.f32.mrb[0].mxu0
        %v1925 = vadd.f32 0.0, %v1924
        %v1926 = vpop.f32.mrb[0].mxu0
        %1927 = vmatprep.mubr.f32.mxu0 0.0
        %1928 = vmatmul.mubr.f32.gmra.mrb[0].mxu0 %v1739
        %v1929 = vpop.f32.mrb[0].mxu0
        %v1930 = vadd.f32 0.0, %v1929
        %v1931 = vpop.f32.mrb[0].mxu0
        %1932 = vmatprep.mubr.f32.mxu0 0.0
        %1933 = vmatmul.mubr.f32.gmra.mrb[0].mxu0 %v1742
        %v1934 = vpop.f32.mrb[0].mxu0
        %v1935 = vadd.f32 0.0, %v1934
        %v1936 = vpop.f32.mrb[0].mxu0
        %1937 = vmatprep.mubr.f32.mxu0 0.0
        %1938 = vmatmul.mubr.f32.gmra.mrb[0].mxu0 %v1745
        %v1939 = vpop.f32.mrb[0].mxu0
        %v1940 = vadd.f32 0.0, %v1939
        %v1941 = vpop.f32.mrb[0].mxu0
        %1942 = vmatprep.mubr.f32.mxu0 0.0
        %1943 = vmatmul.mubr.f32.gmra.mrb[0].mxu0 %v1748
        %v1944 = vpop.f32.mrb[0].mxu0
        %v1945 = vadd.f32 0.0, %v1944
        %v1946 = vpop.f32.mrb[0].mxu0
        %1947 = vmatprep.mubr.f32.mxu0 0.0
        %1948 = vmatmul.mubr.f32.gmra.mrb[0].mxu0 %v1751
        %v1949 = vpop.f32.mrb[0].mxu0
        %v1950 = vadd.f32 0.0, %v1949
        %v1951 = vpop.f32.mrb[0].mxu0
        %1952 = vmatprep.mubr.f32.mxu0 0.0
        %1953 = vmatmul.mubr.f32.gmra.mrb[0].mxu0 %v1754
        %v1954 = vpop.f32.mrb[0].mxu0
        %v1955 = vpop.f32.mrb[0].mxu0
        %1956 = vmatprep.mubr.f32.mxu0 0.0
        %1957 = vmatmul.mubr.f32.gmra.mrb[0].mxu0 %v1757
        %v1958 = vpop.f32.mrb[0].mxu0
        %v1959 = vpop.f32.mrb[0].mxu0
        %1960 = vmatprep.mubr.f32.mxu0 0.0
        %1961 = vmatmul.mubr.f32.gmra.mrb[0].mxu0 %v1760
        %v1962 = vpop.f32.mrb[0].mxu0
        %v1963 = vpop.f32.mrb[0].mxu0
        %1964 = vmatprep.mubr.f32.mxu0 0.0
        %1965 = vmatmul.mubr.f32.gmra.mrb[0].mxu0 %v1763
        %v1966 = vpop.f32.mrb[0].mxu0
        %v1967 = vpop.f32.mrb[0].mxu0
        %1968 = vdwg.mxu0
        %v1969 = vadd.f32 %v1627, %v1835
        %v1970 = vadd.f32 %v1628, %v1840
        %v1971 = vadd.f32 %v1629, %v1845
        %v1972 = vadd.f32 %v1630, %v1850
        %v1973 = vadd.f32 %v1631, %v1855
        %v1974 = vadd.f32 %v1632, %v1860
        %v1975 = vadd.f32 %v1633, %v1865
        %v1976 = vadd.f32 %v1634, %v1870
        %v1977 = vadd.f32 %v1635, %v1875
        %v1978 = vadd.f32 %v1636, %v1880
        %v1979 = vadd.f32 %v1637, %v1885
        %v1980 = vadd.f32 %v1638, %v1890
        %v1981 = vadd.f32 %v1639, %v1895
        %v1982 = vadd.f32 %v1640, %v1900
        %v1983 = vadd.f32 %v1641, %v1905
        %v1984 = vadd.f32 %v1642, %v1910
        %v1985 = vadd.f32 %v1643, %v1915
        %v1986 = vadd.f32 %v1644, %v1920
        %v1987 = vadd.f32 %v1645, %v1925
        %v1988 = vadd.f32 %v1646, %v1930
        %v1989 = vadd.f32 %v1647, %v1935
        %v1990 = vadd.f32 %v1648, %v1940
        %v1991 = vadd.f32 %v1649, %v1945
        %v1992 = vadd.f32 %v1650, %v1950
        %v1993 = vld [vmem:[%s329 + $0x12] sm:$0xff]
        %v1994 = vld [vmem:[%s329 + $0x1a] sm:$0xff]
        %v1995 = vld [vmem:[%s329 + $0x22] sm:$0xff]
        %v1996 = vld [vmem:[%s329 + $0x2a] sm:$0xff]
        %v1997 = vld [vmem:[%s329 + $0x32] sm:$0xff]
        %v1998 = vld [vmem:[%s329 + $0x3a] sm:$0xff]
        %v1999 = vld [vmem:[%s329 + $0x42] sm:$0xff]
        %v2000 = vld [vmem:[%s329 + $0x4a] sm:$0xff]
        %v2001 = vld [vmem:[%s329 + $0x52] sm:$0xff]
        %v2002 = vld [vmem:[%s329 + $0x5a] sm:$0xff]
        %v2003 = vld [vmem:[%s329 + $0x62] sm:$0xff]
        %v2004 = vld [vmem:[%s329 + $0x6a] sm:$0xff]
        %v2005 = vld [vmem:[%s329 + $0x72] sm:$0xff]
        %v2006 = vld [vmem:[%s329 + $0x7a] sm:$0xff]
        %v2007 = vld [vmem:[%s329 + $0x82] sm:$0xff]
        %v2008 = vld [vmem:[%s329 + $0x8a] sm:$0xff]
        %v2009 = vld [vmem:[%s329 + $0x92] sm:$0xff]
        %v2010 = vld [vmem:[%s329 + $0x9a] sm:$0xff]
        %v2011 = vld [vmem:[%s329 + $0xa2] sm:$0xff]
        %v2012 = vld [vmem:[%s329 + $0xaa] sm:$0xff]
        %v2013 = vld [vmem:[%s329 + $0xb2] sm:$0xff]
        %v2014 = vld [vmem:[%s329 + $0xba] sm:$0xff]
        %v2015 = vld [vmem:[%s329 + $0xc2] sm:$0xff]
        %v2016 = vld [vmem:[%s329 + $0xca] sm:$0xff]
        %v2017 = vld [vmem:[%s329 + $0xd2] sm:$0xff]
        %v2018 = vld [vmem:[%s329 + $0xda] sm:$0xff]
        %v2019 = vld [vmem:[%s329 + $0xe2] sm:$0xff]
        %v2020 = vld [vmem:[%s329 + $0xea] sm:$0xff]
        %s2021 = scalar_lea.vmem %s1, 20
        %v2022 = vld [vmem:[%s2021] sm:$0x7]
        %v2024 = vsel %vm389, %v1993, 0
        %v2027 = vsel %vm389, %v1994, 0
        %v2030 = vsel %vm389, %v1995, 0
        %v2033 = vsel %vm389, %v1996, 0
        %v2036 = vsel %vm389, %v1997, 0
        %v2039 = vsel %vm389, %v1998, 0
        %v2042 = vsel %vm389, %v1999, 0
        %v2045 = vsel %vm389, %v2000, 0
        %v2048 = vsel %vm389, %v2001, 0
        %v2051 = vsel %vm389, %v2002, 0
        %v2054 = vsel %vm389, %v2003, 0
        %v2057 = vsel %vm389, %v2004, 0
        %v2060 = vsel %vm389, %v2005, 0
        %v2063 = vsel %vm389, %v2006, 0
        %v2066 = vsel %vm389, %v2007, 0
        %v2069 = vsel %vm389, %v2008, 0
        %v2072 = vsel %vm389, %v2009, 0
        %v2075 = vsel %vm389, %v2010, 0
        %v2078 = vsel %vm389, %v2011, 0
        %v2081 = vsel %vm389, %v2012, 0
        %v2084 = vsel %vm389, %v2013, 0
        %v2087 = vsel %vm389, %v2014, 0
        %v2090 = vsel %vm389, %v2015, 0
        %v2093 = vsel %vm389, %v2016, 0
        %v2096 = vsel %vm389, %v2017, 0
        %v2099 = vsel %vm389, %v2018, 0
        %v2102 = vsel %vm389, %v2019, 0
        %v2105 = vsel %vm389, %v2020, 0
        %v2108 = vsel %vm474, %v2022, 0
        %2110 = vmatprep.subr.mxu0 0.0
        %2111 = vmatpush1.msra.mxu0 %v2108
        %2112 = vmatprep.subr.mxu0 0.0
        %2113 = vmatpush1.msra.mxu0 0.0
        %2114 = vmatprep.subr.mxu0 0.0
        %2115 = vmatpush1.msra.mxu0 0.0
        %2116 = vmatprep.subr.mxu0 0.0
        %2117 = vmatpush1.msra.mxu0 0.0
        %2118 = vmatprep.subr.mxu0 0.0
        %2119 = vmatpush1.msra.mxu0 0.0
        %2120 = vmatprep.subr.mxu0 0.0
        %2121 = vmatpush1.msra.mxu0 0.0
        %2122 = vmatprep.subr.mxu0 0.0
        %2123 = vmatpush1.msra.mxu0 0.0
        %2124 = vmatprep.subr.mxu0 0.0
        %2125 = vmatpush1.msra.mxu0 0.0
        %2126 = vmatprep.subr.mxu0 0.0
        %2127 = vmatpush1.msra.mxu0 0.0
        %2128 = vmatprep.subr.mxu0 0.0
        %2129 = vmatpush1.msra.mxu0 0.0
        %2130 = vmatprep.subr.mxu0 0.0
        %2131 = vmatpush1.msra.mxu0 0.0
        %2132 = vmatprep.subr.mxu0 0.0
        %2133 = vmatpush1.msra.mxu0 0.0
        %2134 = vmatprep.subr.mxu0 0.0
        %2135 = vmatpush1.msra.mxu0 0.0
        %2136 = vmatprep.subr.mxu0 0.0
        %2137 = vmatpush1.msra.mxu0 0.0
        %2138 = vmatprep.subr.mxu0 0.0
        %2139 = vmatpush1.msra.mxu0 0.0
        %2140 = vmatprep.subr.mxu0 0.0
        %2141 = vmatpush1.msra.mxu0 0.0
        %2142 = vmatprep.subr.mxu0 0.0
        %2143 = vmatpush1.msra.mxu0 0.0
        %2144 = vmatprep.subr.mxu0 0.0
        %2145 = vmatpush1.msra.mxu0 0.0
        %2146 = vmatprep.subr.mxu0 0.0
        %2147 = vmatpush1.msra.mxu0 0.0
        %2148 = vmatprep.subr.mxu0 0.0
        %2149 = vmatpush1.msra.mxu0 0.0
        %2150 = vmatprep.subr.mxu0 0.0
        %2151 = vmatpush1.msra.mxu0 0.0
        %2152 = vmatprep.subr.mxu0 0.0
        %2153 = vmatpush1.msra.mxu0 0.0
        %2154 = vmatprep.subr.mxu0 0.0
        %2155 = vmatpush1.msra.mxu0 0.0
        %2156 = vmatprep.subr.mxu0 0.0
        %2157 = vmatpush1.msra.mxu0 0.0
        %2158 = vmatprep.subr.mxu0 0.0
        %2159 = vmatpush1.msra.mxu0 0.0
        %2160 = vmatprep.subr.mxu0 0.0
        %2161 = vmatpush1.msra.mxu0 0.0
        %2162 = vmatprep.subr.mxu0 0.0
        %2163 = vmatpush1.msra.mxu0 0.0
        %2164 = vmatprep.subr.mxu0 0.0
        %2165 = vmatpush1.msra.mxu0 0.0
        %2166 = vmatprep.subr.mxu0 0.0
        %2167 = vmatpush1.msra.mxu0 0.0
        %2168 = vmatprep.subr.mxu0 0.0
        %2169 = vmatpush1.msra.mxu0 0.0
        %2170 = vmatprep.subr.mxu0 0.0
        %2171 = vmatpush1.msra.mxu0 0.0
        %2172 = vmatprep.subr.mxu0 0.0
        %2173 = vmatpush1.msra.mxu0 0.0
        %2174 = vmatprep.mubr.f32.mxu0 0.0
        %2175 = vmatmul.mubr.f32.gmra.mrb[0].mxu0 %v2024
        %v2176 = vpop.f32.mrb[0].mxu0
        %v2177 = vadd.f32 0.0, %v2176
        %v2178 = vpop.f32.mrb[0].mxu0
        %2179 = vmatprep.mubr.f32.mxu0 0.0
        %2180 = vmatmul.mubr.f32.gmra.mrb[0].mxu0 %v2027
        %v2181 = vpop.f32.mrb[0].mxu0
        %v2182 = vadd.f32 0.0, %v2181
        %v2183 = vpop.f32.mrb[0].mxu0
        %2184 = vmatprep.mubr.f32.mxu0 0.0
        %2185 = vmatmul.mubr.f32.gmra.mrb[0].mxu0 %v2030
        %v2186 = vpop.f32.mrb[0].mxu0
        %v2187 = vadd.f32 0.0, %v2186
        %v2188 = vpop.f32.mrb[0].mxu0
        %2189 = vmatprep.mubr.f32.mxu0 0.0
        %2190 = vmatmul.mubr.f32.gmra.mrb[0].mxu0 %v2033
        %v2191 = vpop.f32.mrb[0].mxu0
        %v2192 = vadd.f32 0.0, %v2191
        %v2193 = vpop.f32.mrb[0].mxu0
        %2194 = vmatprep.mubr.f32.mxu0 0.0
        %2195 = vmatmul.mubr.f32.gmra.mrb[0].mxu0 %v2036
        %v2196 = vpop.f32.mrb[0].mxu0
        %v2197 = vadd.f32 0.0, %v2196
        %v2198 = vpop.f32.mrb[0].mxu0
        %2199 = vmatprep.mubr.f32.mxu0 0.0
        %2200 = vmatmul.mubr.f32.gmra.mrb[0].mxu0 %v2039
        %v2201 = vpop.f32.mrb[0].mxu0
        %v2202 = vadd.f32 0.0, %v2201
        %v2203 = vpop.f32.mrb[0].mxu0
        %2204 = vmatprep.mubr.f32.mxu0 0.0
        %2205 = vmatmul.mubr.f32.gmra.mrb[0].mxu0 %v2042
        %v2206 = vpop.f32.mrb[0].mxu0
        %v2207 = vadd.f32 0.0, %v2206
        %v2208 = vpop.f32.mrb[0].mxu0
        %2209 = vmatprep.mubr.f32.mxu0 0.0
        %2210 = vmatmul.mubr.f32.gmra.mrb[0].mxu0 %v2045
        %v2211 = vpop.f32.mrb[0].mxu0
        %v2212 = vadd.f32 0.0, %v2211
        %v2213 = vpop.f32.mrb[0].mxu0
        %2214 = vmatprep.mubr.f32.mxu0 0.0
        %2215 = vmatmul.mubr.f32.gmra.mrb[0].mxu0 %v2048
        %v2216 = vpop.f32.mrb[0].mxu0
        %v2217 = vadd.f32 0.0, %v2216
        %v2218 = vpop.f32.mrb[0].mxu0
        %2219 = vmatprep.mubr.f32.mxu0 0.0
        %2220 = vmatmul.mubr.f32.gmra.mrb[0].mxu0 %v2051
        %v2221 = vpop.f32.mrb[0].mxu0
        %v2222 = vadd.f32 0.0, %v2221
        %v2223 = vpop.f32.mrb[0].mxu0
        %2224 = vmatprep.mubr.f32.mxu0 0.0
        %2225 = vmatmul.mubr.f32.gmra.mrb[0].mxu0 %v2054
        %v2226 = vpop.f32.mrb[0].mxu0
        %v2227 = vadd.f32 0.0, %v2226
        %v2228 = vpop.f32.mrb[0].mxu0
        %2229 = vmatprep.mubr.f32.mxu0 0.0
        %2230 = vmatmul.mubr.f32.gmra.mrb[0].mxu0 %v2057
        %v2231 = vpop.f32.mrb[0].mxu0
        %v2232 = vadd.f32 0.0, %v2231
        %v2233 = vpop.f32.mrb[0].mxu0
        %2234 = vmatprep.mubr.f32.mxu0 0.0
        %2235 = vmatmul.mubr.f32.gmra.mrb[0].mxu0 %v2060
        %v2236 = vpop.f32.mrb[0].mxu0
        %v2237 = vadd.f32 0.0, %v2236
        %v2238 = vpop.f32.mrb[0].mxu0
        %2239 = vmatprep.mubr.f32.mxu0 0.0
        %2240 = vmatmul.mubr.f32.gmra.mrb[0].mxu0 %v2063
        %v2241 = vpop.f32.mrb[0].mxu0
        %v2242 = vadd.f32 0.0, %v2241
        %v2243 = vpop.f32.mrb[0].mxu0
        %2244 = vmatprep.mubr.f32.mxu0 0.0
        %2245 = vmatmul.mubr.f32.gmra.mrb[0].mxu0 %v2066
        %v2246 = vpop.f32.mrb[0].mxu0
        %v2247 = vadd.f32 0.0, %v2246
        %v2248 = vpop.f32.mrb[0].mxu0
        %2249 = vmatprep.mubr.f32.mxu0 0.0
        %2250 = vmatmul.mubr.f32.gmra.mrb[0].mxu0 %v2069
        %v2251 = vpop.f32.mrb[0].mxu0
        %v2252 = vadd.f32 0.0, %v2251
        %v2253 = vpop.f32.mrb[0].mxu0
        %2254 = vmatprep.mubr.f32.mxu0 0.0
        %2255 = vmatmul.mubr.f32.gmra.mrb[0].mxu0 %v2072
        %v2256 = vpop.f32.mrb[0].mxu0
        %v2257 = vadd.f32 0.0, %v2256
        %v2258 = vpop.f32.mrb[0].mxu0
        %2259 = vmatprep.mubr.f32.mxu0 0.0
        %2260 = vmatmul.mubr.f32.gmra.mrb[0].mxu0 %v2075
        %v2261 = vpop.f32.mrb[0].mxu0
        %v2262 = vadd.f32 0.0, %v2261
        %v2263 = vpop.f32.mrb[0].mxu0
        %2264 = vmatprep.mubr.f32.mxu0 0.0
        %2265 = vmatmul.mubr.f32.gmra.mrb[0].mxu0 %v2078
        %v2266 = vpop.f32.mrb[0].mxu0
        %v2267 = vadd.f32 0.0, %v2266
        %v2268 = vpop.f32.mrb[0].mxu0
        %2269 = vmatprep.mubr.f32.mxu0 0.0
        %2270 = vmatmul.mubr.f32.gmra.mrb[0].mxu0 %v2081
        %v2271 = vpop.f32.mrb[0].mxu0
        %v2272 = vadd.f32 0.0, %v2271
        %v2273 = vpop.f32.mrb[0].mxu0
        %2274 = vmatprep.mubr.f32.mxu0 0.0
        %2275 = vmatmul.mubr.f32.gmra.mrb[0].mxu0 %v2084
        %v2276 = vpop.f32.mrb[0].mxu0
        %v2277 = vadd.f32 0.0, %v2276
        %v2278 = vpop.f32.mrb[0].mxu0
        %2279 = vmatprep.mubr.f32.mxu0 0.0
        %2280 = vmatmul.mubr.f32.gmra.mrb[0].mxu0 %v2087
        %v2281 = vpop.f32.mrb[0].mxu0
        %v2282 = vadd.f32 0.0, %v2281
        %v2283 = vpop.f32.mrb[0].mxu0
        %2284 = vmatprep.mubr.f32.mxu0 0.0
        %2285 = vmatmul.mubr.f32.gmra.mrb[0].mxu0 %v2090
        %v2286 = vpop.f32.mrb[0].mxu0
        %v2287 = vadd.f32 0.0, %v2286
        %v2288 = vpop.f32.mrb[0].mxu0
        %2289 = vmatprep.mubr.f32.mxu0 0.0
        %2290 = vmatmul.mubr.f32.gmra.mrb[0].mxu0 %v2093
        %v2291 = vpop.f32.mrb[0].mxu0
        %v2292 = vadd.f32 0.0, %v2291
        %v2293 = vpop.f32.mrb[0].mxu0
        %2294 = vmatprep.mubr.f32.mxu0 0.0
        %2295 = vmatmul.mubr.f32.gmra.mrb[0].mxu0 %v2096
        %v2296 = vpop.f32.mrb[0].mxu0
        %v2297 = vpop.f32.mrb[0].mxu0
        %2298 = vmatprep.mubr.f32.mxu0 0.0
        %2299 = vmatmul.mubr.f32.gmra.mrb[0].mxu0 %v2099
        %v2300 = vpop.f32.mrb[0].mxu0
        %v2301 = vpop.f32.mrb[0].mxu0
        %2302 = vmatprep.mubr.f32.mxu0 0.0
        %2303 = vmatmul.mubr.f32.gmra.mrb[0].mxu0 %v2102
        %v2304 = vpop.f32.mrb[0].mxu0
        %v2305 = vpop.f32.mrb[0].mxu0
        %2306 = vmatprep.mubr.f32.mxu0 0.0
        %2307 = vmatmul.mubr.f32.gmra.mrb[0].mxu0 %v2105
        %v2308 = vpop.f32.mrb[0].mxu0
        %v2309 = vpop.f32.mrb[0].mxu0
        %2310 = vdwg.mxu0
        %v2311 = vadd.f32 %v1969, %v2177
        %v2312 = vadd.f32 %v1970, %v2182
        %v2313 = vadd.f32 %v1971, %v2187
        %v2314 = vadd.f32 %v1972, %v2192
        %v2315 = vadd.f32 %v1973, %v2197
        %v2316 = vadd.f32 %v1974, %v2202
        %v2317 = vadd.f32 %v1975, %v2207
        %v2318 = vadd.f32 %v1976, %v2212
        %v2319 = vadd.f32 %v1977, %v2217
        %v2320 = vadd.f32 %v1978, %v2222
        %v2321 = vadd.f32 %v1979, %v2227
        %v2322 = vadd.f32 %v1980, %v2232
        %v2323 = vadd.f32 %v1981, %v2237
        %v2324 = vadd.f32 %v1982, %v2242
        %v2325 = vadd.f32 %v1983, %v2247
        %v2326 = vadd.f32 %v1984, %v2252
        %v2327 = vadd.f32 %v1985, %v2257
        %v2328 = vadd.f32 %v1986, %v2262
        %v2329 = vadd.f32 %v1987, %v2267
        %v2330 = vadd.f32 %v1988, %v2272
        %v2331 = vadd.f32 %v1989, %v2277
        %v2332 = vadd.f32 %v1990, %v2282
        %v2333 = vadd.f32 %v1991, %v2287
        %v2334 = vadd.f32 %v1992, %v2292
        %v2335 = vld [vmem:[%s329 + $0x20] sm:$0xff]
        %v2336 = vld [vmem:[%s329 + $0x28] sm:$0xff]
        %v2337 = vld [vmem:[%s329 + $0x30] sm:$0xff]
        %v2338 = vld [vmem:[%s329 + $0x38] sm:$0xff]
        %v2339 = vld [vmem:[%s329 + $0x40] sm:$0xff]
        %v2340 = vld [vmem:[%s329 + $0x48] sm:$0xff]
        %v2341 = vld [vmem:[%s329 + $0x50] sm:$0xff]
        %v2342 = vld [vmem:[%s329 + $0x58] sm:$0xff]
        %v2343 = vld [vmem:[%s329 + $0x60] sm:$0xff]
        %v2344 = vld [vmem:[%s329 + $0x68] sm:$0xff]
        %v2345 = vld [vmem:[%s329 + $0x70] sm:$0xff]
        %v2346 = vld [vmem:[%s329 + $0x78] sm:$0xff]
        %v2347 = vld [vmem:[%s329 + $0x80] sm:$0xff]
        %v2348 = vld [vmem:[%s329 + $0x88] sm:$0xff]
        %v2349 = vld [vmem:[%s329 + $0x90] sm:$0xff]
        %v2350 = vld [vmem:[%s329 + $0x98] sm:$0xff]
        %v2351 = vld [vmem:[%s329 + $0xa0] sm:$0xff]
        %v2352 = vld [vmem:[%s329 + $0xa8] sm:$0xff]
        %v2353 = vld [vmem:[%s329 + $0xb0] sm:$0xff]
        %v2354 = vld [vmem:[%s329 + $0xb8] sm:$0xff]
        %v2355 = vld [vmem:[%s329 + $0xc0] sm:$0xff]
        %v2356 = vld [vmem:[%s329 + $0xc8] sm:$0xff]
        %v2357 = vld [vmem:[%s329 + $0xd0] sm:$0xff]
        %v2358 = vld [vmem:[%s329 + $0xd8] sm:$0xff]
        %v2359 = vld [vmem:[%s329 + $0xe0] sm:$0xff]
        %v2360 = vld [vmem:[%s329 + $0xe8] sm:$0xff]
        %v2361 = vld [vmem:[%s329 + $0xf0] sm:$0xff]
        %v2362 = vld [vmem:[%s329 + $0xf8] sm:$0xff]
        %s2363 = scalar_lea.vmem %s1, 24
        %v2364 = vld [vmem:[%s2363] sm:$0x7]
        %v2366 = vsel %vm389, %v2335, 0
        %v2369 = vsel %vm389, %v2336, 0
        %v2372 = vsel %vm389, %v2337, 0
        %v2375 = vsel %vm389, %v2338, 0
        %v2378 = vsel %vm389, %v2339, 0
        %v2381 = vsel %vm389, %v2340, 0
        %v2384 = vsel %vm389, %v2341, 0
        %v2387 = vsel %vm389, %v2342, 0
        %v2390 = vsel %vm389, %v2343, 0
        %v2393 = vsel %vm389, %v2344, 0
        %v2396 = vsel %vm389, %v2345, 0
        %v2399 = vsel %vm389, %v2346, 0
        %v2402 = vsel %vm389, %v2347, 0
        %v2405 = vsel %vm389, %v2348, 0
        %v2408 = vsel %vm389, %v2349, 0
        %v2411 = vsel %vm389, %v2350, 0
        %v2414 = vsel %vm389, %v2351, 0
        %v2417 = vsel %vm389, %v2352, 0
        %v2420 = vsel %vm389, %v2353, 0
        %v2423 = vsel %vm389, %v2354, 0
        %v2426 = vsel %vm389, %v2355, 0
        %v2429 = vsel %vm389, %v2356, 0
        %v2432 = vsel %vm389, %v2357, 0
        %v2435 = vsel %vm389, %v2358, 0
        %v2438 = vsel %vm389, %v2359, 0
        %v2441 = vsel %vm389, %v2360, 0
        %v2444 = vsel %vm389, %v2361, 0
        %v2447 = vsel %vm389, %v2362, 0
        %v2450 = vsel %vm474, %v2364, 0
        %2452 = vmatprep.subr.mxu0 0.0
        %2453 = vmatpush1.msra.mxu0 %v2450
        %2454 = vmatprep.subr.mxu0 0.0
        %2455 = vmatpush1.msra.mxu0 0.0
        %2456 = vmatprep.subr.mxu0 0.0
        %2457 = vmatpush1.msra.mxu0 0.0
        %2458 = vmatprep.subr.mxu0 0.0
        %2459 = vmatpush1.msra.mxu0 0.0
        %2460 = vmatprep.subr.mxu0 0.0
        %2461 = vmatpush1.msra.mxu0 0.0
        %2462 = vmatprep.subr.mxu0 0.0
        %2463 = vmatpush1.msra.mxu0 0.0
        %2464 = vmatprep.subr.mxu0 0.0
        %2465 = vmatpush1.msra.mxu0 0.0
        %2466 = vmatprep.subr.mxu0 0.0
        %2467 = vmatpush1.msra.mxu0 0.0
        %2468 = vmatprep.subr.mxu0 0.0
        %2469 = vmatpush1.msra.mxu0 0.0
        %2470 = vmatprep.subr.mxu0 0.0
        %2471 = vmatpush1.msra.mxu0 0.0
        %2472 = vmatprep.subr.mxu0 0.0
        %2473 = vmatpush1.msra.mxu0 0.0
        %2474 = vmatprep.subr.mxu0 0.0
        %2475 = vmatpush1.msra.mxu0 0.0
        %2476 = vmatprep.subr.mxu0 0.0
        %2477 = vmatpush1.msra.mxu0 0.0
        %2478 = vmatprep.subr.mxu0 0.0
        %2479 = vmatpush1.msra.mxu0 0.0
        %2480 = vmatprep.subr.mxu0 0.0
        %2481 = vmatpush1.msra.mxu0 0.0
        %2482 = vmatprep.subr.mxu0 0.0
        %2483 = vmatpush1.msra.mxu0 0.0
        %2484 = vmatprep.subr.mxu0 0.0
        %2485 = vmatpush1.msra.mxu0 0.0
        %2486 = vmatprep.subr.mxu0 0.0
        %2487 = vmatpush1.msra.mxu0 0.0
        %2488 = vmatprep.subr.mxu0 0.0
        %2489 = vmatpush1.msra.mxu0 0.0
        %2490 = vmatprep.subr.mxu0 0.0
        %2491 = vmatpush1.msra.mxu0 0.0
        %2492 = vmatprep.subr.mxu0 0.0
        %2493 = vmatpush1.msra.mxu0 0.0
        %2494 = vmatprep.subr.mxu0 0.0
        %2495 = vmatpush1.msra.mxu0 0.0
        %2496 = vmatprep.subr.mxu0 0.0
        %2497 = vmatpush1.msra.mxu0 0.0
        %2498 = vmatprep.subr.mxu0 0.0
        %2499 = vmatpush1.msra.mxu0 0.0
        %2500 = vmatprep.subr.mxu0 0.0
        %2501 = vmatpush1.msra.mxu0 0.0
        %2502 = vmatprep.subr.mxu0 0.0
        %2503 = vmatpush1.msra.mxu0 0.0
        %2504 = vmatprep.subr.mxu0 0.0
        %2505 = vmatpush1.msra.mxu0 0.0
        %2506 = vmatprep.subr.mxu0 0.0
        %2507 = vmatpush1.msra.mxu0 0.0
        %2508 = vmatprep.subr.mxu0 0.0
        %2509 = vmatpush1.msra.mxu0 0.0
        %2510 = vmatprep.subr.mxu0 0.0
        %2511 = vmatpush1.msra.mxu0 0.0
        %2512 = vmatprep.subr.mxu0 0.0
        %2513 = vmatpush1.msra.mxu0 0.0
        %2514 = vmatprep.subr.mxu0 0.0
        %2515 = vmatpush1.msra.mxu0 0.0
        %2516 = vmatprep.mubr.f32.mxu0 0.0
        %2517 = vmatmul.mubr.f32.gmra.mrb[0].mxu0 %v2366
        %v2518 = vpop.f32.mrb[0].mxu0
        %v2519 = vadd.f32 0.0, %v2518
        %v2520 = vpop.f32.mrb[0].mxu0
        %2521 = vmatprep.mubr.f32.mxu0 0.0
        %2522 = vmatmul.mubr.f32.gmra.mrb[0].mxu0 %v2369
        %v2523 = vpop.f32.mrb[0].mxu0
        %v2524 = vadd.f32 0.0, %v2523
        %v2525 = vpop.f32.mrb[0].mxu0
        %2526 = vmatprep.mubr.f32.mxu0 0.0
        %2527 = vmatmul.mubr.f32.gmra.mrb[0].mxu0 %v2372
        %v2528 = vpop.f32.mrb[0].mxu0
        %v2529 = vadd.f32 0.0, %v2528
        %v2530 = vpop.f32.mrb[0].mxu0
        %2531 = vmatprep.mubr.f32.mxu0 0.0
        %2532 = vmatmul.mubr.f32.gmra.mrb[0].mxu0 %v2375
        %v2533 = vpop.f32.mrb[0].mxu0
        %v2534 = vadd.f32 0.0, %v2533
        %v2535 = vpop.f32.mrb[0].mxu0
        %2536 = vmatprep.mubr.f32.mxu0 0.0
        %2537 = vmatmul.mubr.f32.gmra.mrb[0].mxu0 %v2378
        %v2538 = vpop.f32.mrb[0].mxu0
        %v2539 = vadd.f32 0.0, %v2538
        %v2540 = vpop.f32.mrb[0].mxu0
        %2541 = vmatprep.mubr.f32.mxu0 0.0
        %2542 = vmatmul.mubr.f32.gmra.mrb[0].mxu0 %v2381
        %v2543 = vpop.f32.mrb[0].mxu0
        %v2544 = vadd.f32 0.0, %v2543
        %v2545 = vpop.f32.mrb[0].mxu0
        %2546 = vmatprep.mubr.f32.mxu0 0.0
        %2547 = vmatmul.mubr.f32.gmra.mrb[0].mxu0 %v2384
        %v2548 = vpop.f32.mrb[0].mxu0
        %v2549 = vadd.f32 0.0, %v2548
        %v2550 = vpop.f32.mrb[0].mxu0
        %2551 = vmatprep.mubr.f32.mxu0 0.0
        %2552 = vmatmul.mubr.f32.gmra.mrb[0].mxu0 %v2387
        %v2553 = vpop.f32.mrb[0].mxu0
        %v2554 = vadd.f32 0.0, %v2553
        %v2555 = vpop.f32.mrb[0].mxu0
        %2556 = vmatprep.mubr.f32.mxu0 0.0
        %2557 = vmatmul.mubr.f32.gmra.mrb[0].mxu0 %v2390
        %v2558 = vpop.f32.mrb[0].mxu0
        %v2559 = vadd.f32 0.0, %v2558
        %v2560 = vpop.f32.mrb[0].mxu0
        %2561 = vmatprep.mubr.f32.mxu0 0.0
        %2562 = vmatmul.mubr.f32.gmra.mrb[0].mxu0 %v2393
        %v2563 = vpop.f32.mrb[0].mxu0
        %v2564 = vadd.f32 0.0, %v2563
        %v2565 = vpop.f32.mrb[0].mxu0
        %2566 = vmatprep.mubr.f32.mxu0 0.0
        %2567 = vmatmul.mubr.f32.gmra.mrb[0].mxu0 %v2396
        %v2568 = vpop.f32.mrb[0].mxu0
        %v2569 = vadd.f32 0.0, %v2568
        %v2570 = vpop.f32.mrb[0].mxu0
        %2571 = vmatprep.mubr.f32.mxu0 0.0
        %2572 = vmatmul.mubr.f32.gmra.mrb[0].mxu0 %v2399
        %v2573 = vpop.f32.mrb[0].mxu0
        %v2574 = vadd.f32 0.0, %v2573
        %v2575 = vpop.f32.mrb[0].mxu0
        %2576 = vmatprep.mubr.f32.mxu0 0.0
        %2577 = vmatmul.mubr.f32.gmra.mrb[0].mxu0 %v2402
        %v2578 = vpop.f32.mrb[0].mxu0
        %v2579 = vadd.f32 0.0, %v2578
        %v2580 = vpop.f32.mrb[0].mxu0
        %2581 = vmatprep.mubr.f32.mxu0 0.0
        %2582 = vmatmul.mubr.f32.gmra.mrb[0].mxu0 %v2405
        %v2583 = vpop.f32.mrb[0].mxu0
        %v2584 = vadd.f32 0.0, %v2583
        %v2585 = vpop.f32.mrb[0].mxu0
        %2586 = vmatprep.mubr.f32.mxu0 0.0
        %2587 = vmatmul.mubr.f32.gmra.mrb[0].mxu0 %v2408
        %v2588 = vpop.f32.mrb[0].mxu0
        %v2589 = vadd.f32 0.0, %v2588
        %v2590 = vpop.f32.mrb[0].mxu0
        %2591 = vmatprep.mubr.f32.mxu0 0.0
        %2592 = vmatmul.mubr.f32.gmra.mrb[0].mxu0 %v2411
        %v2593 = vpop.f32.mrb[0].mxu0
        %v2594 = vadd.f32 0.0, %v2593
        %v2595 = vpop.f32.mrb[0].mxu0
        %2596 = vmatprep.mubr.f32.mxu0 0.0
        %2597 = vmatmul.mubr.f32.gmra.mrb[0].mxu0 %v2414
        %v2598 = vpop.f32.mrb[0].mxu0
        %v2599 = vadd.f32 0.0, %v2598
        %v2600 = vpop.f32.mrb[0].mxu0
        %2601 = vmatprep.mubr.f32.mxu0 0.0
        %2602 = vmatmul.mubr.f32.gmra.mrb[0].mxu0 %v2417
        %v2603 = vpop.f32.mrb[0].mxu0
        %v2604 = vadd.f32 0.0, %v2603
        %v2605 = vpop.f32.mrb[0].mxu0
        %2606 = vmatprep.mubr.f32.mxu0 0.0
        %2607 = vmatmul.mubr.f32.gmra.mrb[0].mxu0 %v2420
        %v2608 = vpop.f32.mrb[0].mxu0
        %v2609 = vadd.f32 0.0, %v2608
        %v2610 = vpop.f32.mrb[0].mxu0
        %2611 = vmatprep.mubr.f32.mxu0 0.0
        %2612 = vmatmul.mubr.f32.gmra.mrb[0].mxu0 %v2423
        %v2613 = vpop.f32.mrb[0].mxu0
        %v2614 = vadd.f32 0.0, %v2613
        %v2615 = vpop.f32.mrb[0].mxu0
        %2616 = vmatprep.mubr.f32.mxu0 0.0
        %2617 = vmatmul.mubr.f32.gmra.mrb[0].mxu0 %v2426
        %v2618 = vpop.f32.mrb[0].mxu0
        %v2619 = vadd.f32 0.0, %v2618
        %v2620 = vpop.f32.mrb[0].mxu0
        %2621 = vmatprep.mubr.f32.mxu0 0.0
        %2622 = vmatmul.mubr.f32.gmra.mrb[0].mxu0 %v2429
        %v2623 = vpop.f32.mrb[0].mxu0
        %v2624 = vadd.f32 0.0, %v2623
        %v2625 = vpop.f32.mrb[0].mxu0
        %2626 = vmatprep.mubr.f32.mxu0 0.0
        %2627 = vmatmul.mubr.f32.gmra.mrb[0].mxu0 %v2432
        %v2628 = vpop.f32.mrb[0].mxu0
        %v2629 = vadd.f32 0.0, %v2628
        %v2630 = vpop.f32.mrb[0].mxu0
        %2631 = vmatprep.mubr.f32.mxu0 0.0
        %2632 = vmatmul.mubr.f32.gmra.mrb[0].mxu0 %v2435
        %v2633 = vpop.f32.mrb[0].mxu0
        %v2634 = vadd.f32 0.0, %v2633
        %v2635 = vpop.f32.mrb[0].mxu0
        %2636 = vmatprep.mubr.f32.mxu0 0.0
        %2637 = vmatmul.mubr.f32.gmra.mrb[0].mxu0 %v2438
        %v2638 = vpop.f32.mrb[0].mxu0
        %v2639 = vpop.f32.mrb[0].mxu0
        %2640 = vmatprep.mubr.f32.mxu0 0.0
        %2641 = vmatmul.mubr.f32.gmra.mrb[0].mxu0 %v2441
        %v2642 = vpop.f32.mrb[0].mxu0
        %v2643 = vpop.f32.mrb[0].mxu0
        %2644 = vmatprep.mubr.f32.mxu0 0.0
        %2645 = vmatmul.mubr.f32.gmra.mrb[0].mxu0 %v2444
        %v2646 = vpop.f32.mrb[0].mxu0
        %v2647 = vpop.f32.mrb[0].mxu0
        %2648 = vmatprep.mubr.f32.mxu0 0.0
        %2649 = vmatmul.mubr.f32.gmra.mrb[0].mxu0 %v2447
        %v2650 = vpop.f32.mrb[0].mxu0
        %v2651 = vpop.f32.mrb[0].mxu0
        %2652 = vdwg.mxu0
        %v2653 = vadd.f32 %v2311, %v2519
        %v2654 = vadd.f32 %v2312, %v2524
        %v2655 = vadd.f32 %v2313, %v2529
        %v2656 = vadd.f32 %v2314, %v2534
        %v2657 = vadd.f32 %v2315, %v2539
        %v2658 = vadd.f32 %v2316, %v2544
        %v2659 = vadd.f32 %v2317, %v2549
        %v2660 = vadd.f32 %v2318, %v2554
        %v2661 = vadd.f32 %v2319, %v2559
        %v2662 = vadd.f32 %v2320, %v2564
        %v2663 = vadd.f32 %v2321, %v2569
        %v2664 = vadd.f32 %v2322, %v2574
        %v2665 = vadd.f32 %v2323, %v2579
        %v2666 = vadd.f32 %v2324, %v2584
        %v2667 = vadd.f32 %v2325, %v2589
        %v2668 = vadd.f32 %v2326, %v2594
        %v2669 = vadd.f32 %v2327, %v2599
        %v2670 = vadd.f32 %v2328, %v2604
        %v2671 = vadd.f32 %v2329, %v2609
        %v2672 = vadd.f32 %v2330, %v2614
        %v2673 = vadd.f32 %v2331, %v2619
        %v2674 = vadd.f32 %v2332, %v2624
        %v2675 = vadd.f32 %v2333, %v2629
        %v2676 = vadd.f32 %v2334, %v2634
        %v2677 = vld [vmem:[%s329 + $0x21] sm:$0xff]
        %v2678 = vld [vmem:[%s329 + $0x29] sm:$0xff]
        %v2679 = vld [vmem:[%s329 + $0x31] sm:$0xff]
        %v2680 = vld [vmem:[%s329 + $0x39] sm:$0xff]
        %v2681 = vld [vmem:[%s329 + $0x41] sm:$0xff]
        %v2682 = vld [vmem:[%s329 + $0x49] sm:$0xff]
        %v2683 = vld [vmem:[%s329 + $0x51] sm:$0xff]
        %v2684 = vld [vmem:[%s329 + $0x59] sm:$0xff]
        %v2685 = vld [vmem:[%s329 + $0x61] sm:$0xff]
        %v2686 = vld [vmem:[%s329 + $0x69] sm:$0xff]
        %v2687 = vld [vmem:[%s329 + $0x71] sm:$0xff]
        %v2688 = vld [vmem:[%s329 + $0x79] sm:$0xff]
        %v2689 = vld [vmem:[%s329 + $0x81] sm:$0xff]
        %v2690 = vld [vmem:[%s329 + $0x89] sm:$0xff]
        %v2691 = vld [vmem:[%s329 + $0x91] sm:$0xff]
        %v2692 = vld [vmem:[%s329 + $0x99] sm:$0xff]
        %v2693 = vld [vmem:[%s329 + $0xa1] sm:$0xff]
        %v2694 = vld [vmem:[%s329 + $0xa9] sm:$0xff]
        %v2695 = vld [vmem:[%s329 + $0xb1] sm:$0xff]
        %v2696 = vld [vmem:[%s329 + $0xb9] sm:$0xff]
        %v2697 = vld [vmem:[%s329 + $0xc1] sm:$0xff]
        %v2698 = vld [vmem:[%s329 + $0xc9] sm:$0xff]
        %v2699 = vld [vmem:[%s329 + $0xd1] sm:$0xff]
        %v2700 = vld [vmem:[%s329 + $0xd9] sm:$0xff]
        %v2701 = vld [vmem:[%s329 + $0xe1] sm:$0xff]
        %v2702 = vld [vmem:[%s329 + $0xe9] sm:$0xff]
        %v2703 = vld [vmem:[%s329 + $0xf1] sm:$0xff]
        %v2704 = vld [vmem:[%s329 + $0xf9] sm:$0xff]
        %s2705 = scalar_lea.vmem %s1, 28
        %v2706 = vld [vmem:[%s2705] sm:$0x7]
        %v2708 = vsel %vm389, %v2677, 0
        %v2711 = vsel %vm389, %v2678, 0
        %v2714 = vsel %vm389, %v2679, 0
        %v2717 = vsel %vm389, %v2680, 0
        %v2720 = vsel %vm389, %v2681, 0
        %v2723 = vsel %vm389, %v2682, 0
        %v2726 = vsel %vm389, %v2683, 0
        %v2729 = vsel %vm389, %v2684, 0
        %v2732 = vsel %vm389, %v2685, 0
        %v2735 = vsel %vm389, %v2686, 0
        %v2738 = vsel %vm389, %v2687, 0
        %v2741 = vsel %vm389, %v2688, 0
        %v2744 = vsel %vm389, %v2689, 0
        %v2747 = vsel %vm389, %v2690, 0
        %v2750 = vsel %vm389, %v2691, 0
        %v2753 = vsel %vm389, %v2692, 0
        %v2756 = vsel %vm389, %v2693, 0
        %v2759 = vsel %vm389, %v2694, 0
        %v2762 = vsel %vm389, %v2695, 0
        %v2765 = vsel %vm389, %v2696, 0
        %v2768 = vsel %vm389, %v2697, 0
        %v2771 = vsel %vm389, %v2698, 0
        %v2774 = vsel %vm389, %v2699, 0
        %v2777 = vsel %vm389, %v2700, 0
        %v2780 = vsel %vm389, %v2701, 0
        %v2783 = vsel %vm389, %v2702, 0
        %v2786 = vsel %vm389, %v2703, 0
        %v2789 = vsel %vm389, %v2704, 0
        %v2792 = vsel %vm474, %v2706, 0
        %2794 = vmatprep.subr.mxu0 0.0
        %2795 = vmatpush1.msra.mxu0 %v2792
        %2796 = vmatprep.subr.mxu0 0.0
        %2797 = vmatpush1.msra.mxu0 0.0
        %2798 = vmatprep.subr.mxu0 0.0
        %2799 = vmatpush1.msra.mxu0 0.0
        %2800 = vmatprep.subr.mxu0 0.0
        %2801 = vmatpush1.msra.mxu0 0.0
        %2802 = vmatprep.subr.mxu0 0.0
        %2803 = vmatpush1.msra.mxu0 0.0
        %2804 = vmatprep.subr.mxu0 0.0
        %2805 = vmatpush1.msra.mxu0 0.0
        %2806 = vmatprep.subr.mxu0 0.0
        %2807 = vmatpush1.msra.mxu0 0.0
        %2808 = vmatprep.subr.mxu0 0.0
        %2809 = vmatpush1.msra.mxu0 0.0
        %2810 = vmatprep.subr.mxu0 0.0
        %2811 = vmatpush1.msra.mxu0 0.0
        %2812 = vmatprep.subr.mxu0 0.0
        %2813 = vmatpush1.msra.mxu0 0.0
        %2814 = vmatprep.subr.mxu0 0.0
        %2815 = vmatpush1.msra.mxu0 0.0
        %2816 = vmatprep.subr.mxu0 0.0
        %2817 = vmatpush1.msra.mxu0 0.0
        %2818 = vmatprep.subr.mxu0 0.0
        %2819 = vmatpush1.msra.mxu0 0.0
        %2820 = vmatprep.subr.mxu0 0.0
        %2821 = vmatpush1.msra.mxu0 0.0
        %2822 = vmatprep.subr.mxu0 0.0
        %2823 = vmatpush1.msra.mxu0 0.0
        %2824 = vmatprep.subr.mxu0 0.0
        %2825 = vmatpush1.msra.mxu0 0.0
        %2826 = vmatprep.subr.mxu0 0.0
        %2827 = vmatpush1.msra.mxu0 0.0
        %2828 = vmatprep.subr.mxu0 0.0
        %2829 = vmatpush1.msra.mxu0 0.0
        %2830 = vmatprep.subr.mxu0 0.0
        %2831 = vmatpush1.msra.mxu0 0.0
        %2832 = vmatprep.subr.mxu0 0.0
        %2833 = vmatpush1.msra.mxu0 0.0
        %2834 = vmatprep.subr.mxu0 0.0
        %2835 = vmatpush1.msra.mxu0 0.0
        %2836 = vmatprep.subr.mxu0 0.0
        %2837 = vmatpush1.msra.mxu0 0.0
        %2838 = vmatprep.subr.mxu0 0.0
        %2839 = vmatpush1.msra.mxu0 0.0
        %2840 = vmatprep.subr.mxu0 0.0
        %2841 = vmatpush1.msra.mxu0 0.0
        %2842 = vmatprep.subr.mxu0 0.0
        %2843 = vmatpush1.msra.mxu0 0.0
        %2844 = vmatprep.subr.mxu0 0.0
        %2845 = vmatpush1.msra.mxu0 0.0
        %2846 = vmatprep.subr.mxu0 0.0
        %2847 = vmatpush1.msra.mxu0 0.0
        %2848 = vmatprep.subr.mxu0 0.0
        %2849 = vmatpush1.msra.mxu0 0.0
        %2850 = vmatprep.subr.mxu0 0.0
        %2851 = vmatpush1.msra.mxu0 0.0
        %2852 = vmatprep.subr.mxu0 0.0
        %2853 = vmatpush1.msra.mxu0 0.0
        %2854 = vmatprep.subr.mxu0 0.0
        %2855 = vmatpush1.msra.mxu0 0.0
        %2856 = vmatprep.subr.mxu0 0.0
        %2857 = vmatpush1.msra.mxu0 0.0
        %2858 = vmatprep.mubr.f32.mxu0 0.0
        %2859 = vmatmul.mubr.f32.gmra.mrb[0].mxu0 %v2708
        %v2860 = vpop.f32.mrb[0].mxu0
        %v2861 = vadd.f32 0.0, %v2860
        %v2862 = vpop.f32.mrb[0].mxu0
        %2863 = vmatprep.mubr.f32.mxu0 0.0
        %2864 = vmatmul.mubr.f32.gmra.mrb[0].mxu0 %v2711
        %v2865 = vpop.f32.mrb[0].mxu0
        %v2866 = vadd.f32 0.0, %v2865
        %v2867 = vpop.f32.mrb[0].mxu0
        %2868 = vmatprep.mubr.f32.mxu0 0.0
        %2869 = vmatmul.mubr.f32.gmra.mrb[0].mxu0 %v2714
        %v2870 = vpop.f32.mrb[0].mxu0
        %v2871 = vadd.f32 0.0, %v2870
        %v2872 = vpop.f32.mrb[0].mxu0
        %2873 = vmatprep.mubr.f32.mxu0 0.0
        %2874 = vmatmul.mubr.f32.gmra.mrb[0].mxu0 %v2717
        %v2875 = vpop.f32.mrb[0].mxu0
        %v2876 = vadd.f32 0.0, %v2875
        %v2877 = vpop.f32.mrb[0].mxu0
        %2878 = vmatprep.mubr.f32.mxu0 0.0
        %2879 = vmatmul.mubr.f32.gmra.mrb[0].mxu0 %v2720
        %v2880 = vpop.f32.mrb[0].mxu0
        %v2881 = vadd.f32 0.0, %v2880
        %v2882 = vpop.f32.mrb[0].mxu0
        %2883 = vmatprep.mubr.f32.mxu0 0.0
        %2884 = vmatmul.mubr.f32.gmra.mrb[0].mxu0 %v2723
        %v2885 = vpop.f32.mrb[0].mxu0
        %v2886 = vadd.f32 0.0, %v2885
        %v2887 = vpop.f32.mrb[0].mxu0
        %2888 = vmatprep.mubr.f32.mxu0 0.0
        %2889 = vmatmul.mubr.f32.gmra.mrb[0].mxu0 %v2726
        %v2890 = vpop.f32.mrb[0].mxu0
        %v2891 = vadd.f32 0.0, %v2890
        %v2892 = vpop.f32.mrb[0].mxu0
        %2893 = vmatprep.mubr.f32.mxu0 0.0
        %2894 = vmatmul.mubr.f32.gmra.mrb[0].mxu0 %v2729
        %v2895 = vpop.f32.mrb[0].mxu0
        %v2896 = vadd.f32 0.0, %v2895
        %v2897 = vpop.f32.mrb[0].mxu0
        %2898 = vmatprep.mubr.f32.mxu0 0.0
        %2899 = vmatmul.mubr.f32.gmra.mrb[0].mxu0 %v2732
        %v2900 = vpop.f32.mrb[0].mxu0
        %v2901 = vadd.f32 0.0, %v2900
        %v2902 = vpop.f32.mrb[0].mxu0
        %2903 = vmatprep.mubr.f32.mxu0 0.0
        %2904 = vmatmul.mubr.f32.gmra.mrb[0].mxu0 %v2735
        %v2905 = vpop.f32.mrb[0].mxu0
        %v2906 = vadd.f32 0.0, %v2905
        %v2907 = vpop.f32.mrb[0].mxu0
        %2908 = vmatprep.mubr.f32.mxu0 0.0
        %2909 = vmatmul.mubr.f32.gmra.mrb[0].mxu0 %v2738
        %v2910 = vpop.f32.mrb[0].mxu0
        %v2911 = vadd.f32 0.0, %v2910
        %v2912 = vpop.f32.mrb[0].mxu0
        %2913 = vmatprep.mubr.f32.mxu0 0.0
        %2914 = vmatmul.mubr.f32.gmra.mrb[0].mxu0 %v2741
        %v2915 = vpop.f32.mrb[0].mxu0
        %v2916 = vadd.f32 0.0, %v2915
        %v2917 = vpop.f32.mrb[0].mxu0
        %2918 = vmatprep.mubr.f32.mxu0 0.0
        %2919 = vmatmul.mubr.f32.gmra.mrb[0].mxu0 %v2744
        %v2920 = vpop.f32.mrb[0].mxu0
        %v2921 = vadd.f32 0.0, %v2920
        %v2922 = vpop.f32.mrb[0].mxu0
        %2923 = vmatprep.mubr.f32.mxu0 0.0
        %2924 = vmatmul.mubr.f32.gmra.mrb[0].mxu0 %v2747
        %v2925 = vpop.f32.mrb[0].mxu0
        %v2926 = vadd.f32 0.0, %v2925
        %v2927 = vpop.f32.mrb[0].mxu0
        %2928 = vmatprep.mubr.f32.mxu0 0.0
        %2929 = vmatmul.mubr.f32.gmra.mrb[0].mxu0 %v2750
        %v2930 = vpop.f32.mrb[0].mxu0
        %v2931 = vadd.f32 0.0, %v2930
        %v2932 = vpop.f32.mrb[0].mxu0
        %2933 = vmatprep.mubr.f32.mxu0 0.0
        %2934 = vmatmul.mubr.f32.gmra.mrb[0].mxu0 %v2753
        %v2935 = vpop.f32.mrb[0].mxu0
        %v2936 = vadd.f32 0.0, %v2935
        %v2937 = vpop.f32.mrb[0].mxu0
        %2938 = vmatprep.mubr.f32.mxu0 0.0
        %2939 = vmatmul.mubr.f32.gmra.mrb[0].mxu0 %v2756
        %v2940 = vpop.f32.mrb[0].mxu0
        %v2941 = vadd.f32 0.0, %v2940
        %v2942 = vpop.f32.mrb[0].mxu0
        %2943 = vmatprep.mubr.f32.mxu0 0.0
        %2944 = vmatmul.mubr.f32.gmra.mrb[0].mxu0 %v2759
        %v2945 = vpop.f32.mrb[0].mxu0
        %v2946 = vadd.f32 0.0, %v2945
        %v2947 = vpop.f32.mrb[0].mxu0
        %2948 = vmatprep.mubr.f32.mxu0 0.0
        %2949 = vmatmul.mubr.f32.gmra.mrb[0].mxu0 %v2762
        %v2950 = vpop.f32.mrb[0].mxu0
        %v2951 = vadd.f32 0.0, %v2950
        %v2952 = vpop.f32.mrb[0].mxu0
        %2953 = vmatprep.mubr.f32.mxu0 0.0
        %2954 = vmatmul.mubr.f32.gmra.mrb[0].mxu0 %v2765
        %v2955 = vpop.f32.mrb[0].mxu0
        %v2956 = vadd.f32 0.0, %v2955
        %v2957 = vpop.f32.mrb[0].mxu0
        %2958 = vmatprep.mubr.f32.mxu0 0.0
        %2959 = vmatmul.mubr.f32.gmra.mrb[0].mxu0 %v2768
        %v2960 = vpop.f32.mrb[0].mxu0
        %v2961 = vadd.f32 0.0, %v2960
        %v2962 = vpop.f32.mrb[0].mxu0
        %2963 = vmatprep.mubr.f32.mxu0 0.0
        %2964 = vmatmul.mubr.f32.gmra.mrb[0].mxu0 %v2771
        %v2965 = vpop.f32.mrb[0].mxu0
        %v2966 = vadd.f32 0.0, %v2965
        %v2967 = vpop.f32.mrb[0].mxu0
        %2968 = vmatprep.mubr.f32.mxu0 0.0
        %2969 = vmatmul.mubr.f32.gmra.mrb[0].mxu0 %v2774
        %v2970 = vpop.f32.mrb[0].mxu0
        %v2971 = vadd.f32 0.0, %v2970
        %v2972 = vpop.f32.mrb[0].mxu0
        %2973 = vmatprep.mubr.f32.mxu0 0.0
        %2974 = vmatmul.mubr.f32.gmra.mrb[0].mxu0 %v2777
        %v2975 = vpop.f32.mrb[0].mxu0
        %v2976 = vadd.f32 0.0, %v2975
        %v2977 = vpop.f32.mrb[0].mxu0
        %2978 = vmatprep.mubr.f32.mxu0 0.0
        %2979 = vmatmul.mubr.f32.gmra.mrb[0].mxu0 %v2780
        %v2980 = vpop.f32.mrb[0].mxu0
        %v2981 = vpop.f32.mrb[0].mxu0
        %2982 = vmatprep.mubr.f32.mxu0 0.0
        %2983 = vmatmul.mubr.f32.gmra.mrb[0].mxu0 %v2783
        %v2984 = vpop.f32.mrb[0].mxu0
        %v2985 = vpop.f32.mrb[0].mxu0
        %2986 = vmatprep.mubr.f32.mxu0 0.0
        %2987 = vmatmul.mubr.f32.gmra.mrb[0].mxu0 %v2786
        %v2988 = vpop.f32.mrb[0].mxu0
        %v2989 = vpop.f32.mrb[0].mxu0
        %2990 = vmatprep.mubr.f32.mxu0 0.0
        %2991 = vmatmul.mubr.f32.gmra.mrb[0].mxu0 %v2789
        %v2992 = vpop.f32.mrb[0].mxu0
        %v2993 = vpop.f32.mrb[0].mxu0
        %2994 = vdwg.mxu0
        %v2995 = vadd.f32 %v2653, %v2861
        %v2996 = vadd.f32 %v2654, %v2866
        %v2997 = vadd.f32 %v2655, %v2871
        %v2998 = vadd.f32 %v2656, %v2876
        %v2999 = vadd.f32 %v2657, %v2881
        %v3000 = vadd.f32 %v2658, %v2886
        %v3001 = vadd.f32 %v2659, %v2891
        %v3002 = vadd.f32 %v2660, %v2896
        %v3003 = vadd.f32 %v2661, %v2901
        %v3004 = vadd.f32 %v2662, %v2906
        %v3005 = vadd.f32 %v2663, %v2911
        %v3006 = vadd.f32 %v2664, %v2916
        %v3007 = vadd.f32 %v2665, %v2921
        %v3008 = vadd.f32 %v2666, %v2926
        %v3009 = vadd.f32 %v2667, %v2931
        %v3010 = vadd.f32 %v2668, %v2936
        %v3011 = vadd.f32 %v2669, %v2941
        %v3012 = vadd.f32 %v2670, %v2946
        %v3013 = vadd.f32 %v2671, %v2951
        %v3014 = vadd.f32 %v2672, %v2956
        %v3015 = vadd.f32 %v2673, %v2961
        %v3016 = vadd.f32 %v2674, %v2966
        %v3017 = vadd.f32 %v2675, %v2971
        %v3018 = vadd.f32 %v2676, %v2976
        %v3019 = vld [vmem:[%s329 + $0x22] sm:$0xff]
        %v3020 = vld [vmem:[%s329 + $0x2a] sm:$0xff]
        %v3021 = vld [vmem:[%s329 + $0x32] sm:$0xff]
        %v3022 = vld [vmem:[%s329 + $0x3a] sm:$0xff]
        %v3023 = vld [vmem:[%s329 + $0x42] sm:$0xff]
        %v3024 = vld [vmem:[%s329 + $0x4a] sm:$0xff]
        %v3025 = vld [vmem:[%s329 + $0x52] sm:$0xff]
        %v3026 = vld [vmem:[%s329 + $0x5a] sm:$0xff]
        %v3027 = vld [vmem:[%s329 + $0x62] sm:$0xff]
        %v3028 = vld [vmem:[%s329 + $0x6a] sm:$0xff]
        %v3029 = vld [vmem:[%s329 + $0x72] sm:$0xff]
        %v3030 = vld [vmem:[%s329 + $0x7a] sm:$0xff]
        %v3031 = vld [vmem:[%s329 + $0x82] sm:$0xff]
        %v3032 = vld [vmem:[%s329 + $0x8a] sm:$0xff]
        %v3033 = vld [vmem:[%s329 + $0x92] sm:$0xff]
        %v3034 = vld [vmem:[%s329 + $0x9a] sm:$0xff]
        %v3035 = vld [vmem:[%s329 + $0xa2] sm:$0xff]
        %v3036 = vld [vmem:[%s329 + $0xaa] sm:$0xff]
        %v3037 = vld [vmem:[%s329 + $0xb2] sm:$0xff]
        %v3038 = vld [vmem:[%s329 + $0xba] sm:$0xff]
        %v3039 = vld [vmem:[%s329 + $0xc2] sm:$0xff]
        %v3040 = vld [vmem:[%s329 + $0xca] sm:$0xff]
        %v3041 = vld [vmem:[%s329 + $0xd2] sm:$0xff]
        %v3042 = vld [vmem:[%s329 + $0xda] sm:$0xff]
        %v3043 = vld [vmem:[%s329 + $0xe2] sm:$0xff]
        %v3044 = vld [vmem:[%s329 + $0xea] sm:$0xff]
        %v3045 = vld [vmem:[%s329 + $0xf2] sm:$0xff]
        %v3046 = vld [vmem:[%s329 + $0xfa] sm:$0xff]
        %s3047 = scalar_lea.vmem %s1, 32
        %v3048 = vld [vmem:[%s3047] sm:$0x7]
        %v3050 = vsel %vm389, %v3019, 0
        %v3053 = vsel %vm389, %v3020, 0
        %v3056 = vsel %vm389, %v3021, 0
        %v3059 = vsel %vm389, %v3022, 0
        %v3062 = vsel %vm389, %v3023, 0
        %v3065 = vsel %vm389, %v3024, 0
        %v3068 = vsel %vm389, %v3025, 0
        %v3071 = vsel %vm389, %v3026, 0
        %v3074 = vsel %vm389, %v3027, 0
        %v3077 = vsel %vm389, %v3028, 0
        %v3080 = vsel %vm389, %v3029, 0
        %v3083 = vsel %vm389, %v3030, 0
        %v3086 = vsel %vm389, %v3031, 0
        %v3089 = vsel %vm389, %v3032, 0
        %v3092 = vsel %vm389, %v3033, 0
        %v3095 = vsel %vm389, %v3034, 0
        %v3098 = vsel %vm389, %v3035, 0
        %v3101 = vsel %vm389, %v3036, 0
        %v3104 = vsel %vm389, %v3037, 0
        %v3107 = vsel %vm389, %v3038, 0
        %v3110 = vsel %vm389, %v3039, 0
        %v3113 = vsel %vm389, %v3040, 0
        %v3116 = vsel %vm389, %v3041, 0
        %v3119 = vsel %vm389, %v3042, 0
        %v3122 = vsel %vm389, %v3043, 0
        %v3125 = vsel %vm389, %v3044, 0
        %v3128 = vsel %vm389, %v3045, 0
        %v3131 = vsel %vm389, %v3046, 0
        %v3134 = vsel %vm474, %v3048, 0
        %3136 = vmatprep.subr.mxu0 0.0
        %3137 = vmatpush1.msra.mxu0 %v3134
        %3138 = vmatprep.subr.mxu0 0.0
        %3139 = vmatpush1.msra.mxu0 0.0
        %3140 = vmatprep.subr.mxu0 0.0
        %3141 = vmatpush1.msra.mxu0 0.0
        %3142 = vmatprep.subr.mxu0 0.0
        %3143 = vmatpush1.msra.mxu0 0.0
        %3144 = vmatprep.subr.mxu0 0.0
        %3145 = vmatpush1.msra.mxu0 0.0
        %3146 = vmatprep.subr.mxu0 0.0
        %3147 = vmatpush1.msra.mxu0 0.0
        %3148 = vmatprep.subr.mxu0 0.0
        %3149 = vmatpush1.msra.mxu0 0.0
        %3150 = vmatprep.subr.mxu0 0.0
        %3151 = vmatpush1.msra.mxu0 0.0
        %3152 = vmatprep.subr.mxu0 0.0
        %3153 = vmatpush1.msra.mxu0 0.0
        %3154 = vmatprep.subr.mxu0 0.0
        %3155 = vmatpush1.msra.mxu0 0.0
        %3156 = vmatprep.subr.mxu0 0.0
        %3157 = vmatpush1.msra.mxu0 0.0
        %3158 = vmatprep.subr.mxu0 0.0
        %3159 = vmatpush1.msra.mxu0 0.0
        %3160 = vmatprep.subr.mxu0 0.0
        %3161 = vmatpush1.msra.mxu0 0.0
        %3162 = vmatprep.subr.mxu0 0.0
        %3163 = vmatpush1.msra.mxu0 0.0
        %3164 = vmatprep.subr.mxu0 0.0
        %3165 = vmatpush1.msra.mxu0 0.0
        %3166 = vmatprep.subr.mxu0 0.0
        %3167 = vmatpush1.msra.mxu0 0.0
        %3168 = vmatprep.subr.mxu0 0.0
        %3169 = vmatpush1.msra.mxu0 0.0
        %3170 = vmatprep.subr.mxu0 0.0
        %3171 = vmatpush1.msra.mxu0 0.0
        %3172 = vmatprep.subr.mxu0 0.0
        %3173 = vmatpush1.msra.mxu0 0.0
        %3174 = vmatprep.subr.mxu0 0.0
        %3175 = vmatpush1.msra.mxu0 0.0
        %3176 = vmatprep.subr.mxu0 0.0
        %3177 = vmatpush1.msra.mxu0 0.0
        %3178 = vmatprep.subr.mxu0 0.0
        %3179 = vmatpush1.msra.mxu0 0.0
        %3180 = vmatprep.subr.mxu0 0.0
        %3181 = vmatpush1.msra.mxu0 0.0
        %3182 = vmatprep.subr.mxu0 0.0
        %3183 = vmatpush1.msra.mxu0 0.0
        %3184 = vmatprep.subr.mxu0 0.0
        %3185 = vmatpush1.msra.mxu0 0.0
        %3186 = vmatprep.subr.mxu0 0.0
        %3187 = vmatpush1.msra.mxu0 0.0
        %3188 = vmatprep.subr.mxu0 0.0
        %3189 = vmatpush1.msra.mxu0 0.0
        %3190 = vmatprep.subr.mxu0 0.0
        %3191 = vmatpush1.msra.mxu0 0.0
        %3192 = vmatprep.subr.mxu0 0.0
        %3193 = vmatpush1.msra.mxu0 0.0
        %3194 = vmatprep.subr.mxu0 0.0
        %3195 = vmatpush1.msra.mxu0 0.0
        %3196 = vmatprep.subr.mxu0 0.0
        %3197 = vmatpush1.msra.mxu0 0.0
        %3198 = vmatprep.subr.mxu0 0.0
        %3199 = vmatpush1.msra.mxu0 0.0
        %3200 = vmatprep.mubr.f32.mxu0 0.0
        %3201 = vmatmul.mubr.f32.gmra.mrb[0].mxu0 %v3050
        %v3202 = vpop.f32.mrb[0].mxu0
        %v3203 = vadd.f32 0.0, %v3202
        %v3204 = vpop.f32.mrb[0].mxu0
        %3205 = vmatprep.mubr.f32.mxu0 0.0
        %3206 = vmatmul.mubr.f32.gmra.mrb[0].mxu0 %v3053
        %v3207 = vpop.f32.mrb[0].mxu0
        %v3208 = vadd.f32 0.0, %v3207
        %v3209 = vpop.f32.mrb[0].mxu0
        %3210 = vmatprep.mubr.f32.mxu0 0.0
        %3211 = vmatmul.mubr.f32.gmra.mrb[0].mxu0 %v3056
        %v3212 = vpop.f32.mrb[0].mxu0
        %v3213 = vadd.f32 0.0, %v3212
        %v3214 = vpop.f32.mrb[0].mxu0
        %3215 = vmatprep.mubr.f32.mxu0 0.0
        %3216 = vmatmul.mubr.f32.gmra.mrb[0].mxu0 %v3059
        %v3217 = vpop.f32.mrb[0].mxu0
        %v3218 = vadd.f32 0.0, %v3217
        %v3219 = vpop.f32.mrb[0].mxu0
        %3220 = vmatprep.mubr.f32.mxu0 0.0
        %3221 = vmatmul.mubr.f32.gmra.mrb[0].mxu0 %v3062
        %v3222 = vpop.f32.mrb[0].mxu0
        %v3223 = vadd.f32 0.0, %v3222
        %v3224 = vpop.f32.mrb[0].mxu0
        %3225 = vmatprep.mubr.f32.mxu0 0.0
        %3226 = vmatmul.mubr.f32.gmra.mrb[0].mxu0 %v3065
        %v3227 = vpop.f32.mrb[0].mxu0
        %v3228 = vadd.f32 0.0, %v3227
        %v3229 = vpop.f32.mrb[0].mxu0
        %3230 = vmatprep.mubr.f32.mxu0 0.0
        %3231 = vmatmul.mubr.f32.gmra.mrb[0].mxu0 %v3068
        %v3232 = vpop.f32.mrb[0].mxu0
        %v3233 = vadd.f32 0.0, %v3232
        %v3234 = vpop.f32.mrb[0].mxu0
        %3235 = vmatprep.mubr.f32.mxu0 0.0
        %3236 = vmatmul.mubr.f32.gmra.mrb[0].mxu0 %v3071
        %v3237 = vpop.f32.mrb[0].mxu0
        %v3238 = vadd.f32 0.0, %v3237
        %v3239 = vpop.f32.mrb[0].mxu0
        %3240 = vmatprep.mubr.f32.mxu0 0.0
        %3241 = vmatmul.mubr.f32.gmra.mrb[0].mxu0 %v3074
        %v3242 = vpop.f32.mrb[0].mxu0
        %v3243 = vadd.f32 0.0, %v3242
        %v3244 = vpop.f32.mrb[0].mxu0
        %3245 = vmatprep.mubr.f32.mxu0 0.0
        %3246 = vmatmul.mubr.f32.gmra.mrb[0].mxu0 %v3077
        %v3247 = vpop.f32.mrb[0].mxu0
        %v3248 = vadd.f32 0.0, %v3247
        %v3249 = vpop.f32.mrb[0].mxu0
        %3250 = vmatprep.mubr.f32.mxu0 0.0
        %3251 = vmatmul.mubr.f32.gmra.mrb[0].mxu0 %v3080
        %v3252 = vpop.f32.mrb[0].mxu0
        %v3253 = vadd.f32 0.0, %v3252
        %v3254 = vpop.f32.mrb[0].mxu0
        %3255 = vmatprep.mubr.f32.mxu0 0.0
        %3256 = vmatmul.mubr.f32.gmra.mrb[0].mxu0 %v3083
        %v3257 = vpop.f32.mrb[0].mxu0
        %v3258 = vadd.f32 0.0, %v3257
        %v3259 = vpop.f32.mrb[0].mxu0
        %3260 = vmatprep.mubr.f32.mxu0 0.0
        %3261 = vmatmul.mubr.f32.gmra.mrb[0].mxu0 %v3086
        %v3262 = vpop.f32.mrb[0].mxu0
        %v3263 = vadd.f32 0.0, %v3262
        %v3264 = vpop.f32.mrb[0].mxu0
        %3265 = vmatprep.mubr.f32.mxu0 0.0
        %3266 = vmatmul.mubr.f32.gmra.mrb[0].mxu0 %v3089
        %v3267 = vpop.f32.mrb[0].mxu0
        %v3268 = vadd.f32 0.0, %v3267
        %v3269 = vpop.f32.mrb[0].mxu0
        %3270 = vmatprep.mubr.f32.mxu0 0.0
        %3271 = vmatmul.mubr.f32.gmra.mrb[0].mxu0 %v3092
        %v3272 = vpop.f32.mrb[0].mxu0
        %v3273 = vadd.f32 0.0, %v3272
        %v3274 = vpop.f32.mrb[0].mxu0
        %3275 = vmatprep.mubr.f32.mxu0 0.0
        %3276 = vmatmul.mubr.f32.gmra.mrb[0].mxu0 %v3095
        %v3277 = vpop.f32.mrb[0].mxu0
        %v3278 = vadd.f32 0.0, %v3277
        %v3279 = vpop.f32.mrb[0].mxu0
        %3280 = vmatprep.mubr.f32.mxu0 0.0
        %3281 = vmatmul.mubr.f32.gmra.mrb[0].mxu0 %v3098
        %v3282 = vpop.f32.mrb[0].mxu0
        %v3283 = vadd.f32 0.0, %v3282
        %v3284 = vpop.f32.mrb[0].mxu0
        %3285 = vmatprep.mubr.f32.mxu0 0.0
        %3286 = vmatmul.mubr.f32.gmra.mrb[0].mxu0 %v3101
        %v3287 = vpop.f32.mrb[0].mxu0
        %v3288 = vadd.f32 0.0, %v3287
        %v3289 = vpop.f32.mrb[0].mxu0
        %3290 = vmatprep.mubr.f32.mxu0 0.0
        %3291 = vmatmul.mubr.f32.gmra.mrb[0].mxu0 %v3104
        %v3292 = vpop.f32.mrb[0].mxu0
        %v3293 = vadd.f32 0.0, %v3292
        %v3294 = vpop.f32.mrb[0].mxu0
        %3295 = vmatprep.mubr.f32.mxu0 0.0
        %3296 = vmatmul.mubr.f32.gmra.mrb[0].mxu0 %v3107
        %v3297 = vpop.f32.mrb[0].mxu0
        %v3298 = vadd.f32 0.0, %v3297
        %v3299 = vpop.f32.mrb[0].mxu0
        %3300 = vmatprep.mubr.f32.mxu0 0.0
        %3301 = vmatmul.mubr.f32.gmra.mrb[0].mxu0 %v3110
        %v3302 = vpop.f32.mrb[0].mxu0
        %v3303 = vadd.f32 0.0, %v3302
        %v3304 = vpop.f32.mrb[0].mxu0
        %3305 = vmatprep.mubr.f32.mxu0 0.0
        %3306 = vmatmul.mubr.f32.gmra.mrb[0].mxu0 %v3113
        %v3307 = vpop.f32.mrb[0].mxu0
        %v3308 = vadd.f32 0.0, %v3307
        %v3309 = vpop.f32.mrb[0].mxu0
        %3310 = vmatprep.mubr.f32.mxu0 0.0
        %3311 = vmatmul.mubr.f32.gmra.mrb[0].mxu0 %v3116
        %v3312 = vpop.f32.mrb[0].mxu0
        %v3313 = vadd.f32 0.0, %v3312
        %v3314 = vpop.f32.mrb[0].mxu0
        %3315 = vmatprep.mubr.f32.mxu0 0.0
        %3316 = vmatmul.mubr.f32.gmra.mrb[0].mxu0 %v3119
        %v3317 = vpop.f32.mrb[0].mxu0
        %v3318 = vadd.f32 0.0, %v3317
        %v3319 = vpop.f32.mrb[0].mxu0
        %3320 = vmatprep.mubr.f32.mxu0 0.0
        %3321 = vmatmul.mubr.f32.gmra.mrb[0].mxu0 %v3122
        %v3322 = vpop.f32.mrb[0].mxu0
        %v3323 = vpop.f32.mrb[0].mxu0
        %3324 = vmatprep.mubr.f32.mxu0 0.0
        %3325 = vmatmul.mubr.f32.gmra.mrb[0].mxu0 %v3125
        %v3326 = vpop.f32.mrb[0].mxu0
        %v3327 = vpop.f32.mrb[0].mxu0
        %3328 = vmatprep.mubr.f32.mxu0 0.0
        %3329 = vmatmul.mubr.f32.gmra.mrb[0].mxu0 %v3128
        %v3330 = vpop.f32.mrb[0].mxu0
        %v3331 = vpop.f32.mrb[0].mxu0
        %3332 = vmatprep.mubr.f32.mxu0 0.0
        %3333 = vmatmul.mubr.f32.gmra.mrb[0].mxu0 %v3131
        %v3334 = vpop.f32.mrb[0].mxu0
        %v3335 = vpop.f32.mrb[0].mxu0
        %3336 = vdwg.mxu0
        %v3337 = vadd.f32 %v2995, %v3203
        %v3338 = vadd.f32 %v2996, %v3208
        %v3339 = vadd.f32 %v2997, %v3213
        %v3340 = vadd.f32 %v2998, %v3218
        %v3341 = vadd.f32 %v2999, %v3223
        %v3342 = vadd.f32 %v3000, %v3228
        %v3343 = vadd.f32 %v3001, %v3233
        %v3344 = vadd.f32 %v3002, %v3238
        %v3345 = vadd.f32 %v3003, %v3243
        %v3346 = vadd.f32 %v3004, %v3248
        %v3347 = vadd.f32 %v3005, %v3253
        %v3348 = vadd.f32 %v3006, %v3258
        %v3349 = vadd.f32 %v3007, %v3263
        %v3350 = vadd.f32 %v3008, %v3268
        %v3351 = vadd.f32 %v3009, %v3273
        %v3352 = vadd.f32 %v3010, %v3278
        %v3353 = vadd.f32 %v3011, %v3283
        %v3354 = vadd.f32 %v3012, %v3288
        %v3355 = vadd.f32 %v3013, %v3293
        %v3356 = vadd.f32 %v3014, %v3298
        %v3357 = vadd.f32 %v3015, %v3303
        %v3358 = vadd.f32 %v3016, %v3308
        %v3359 = vadd.f32 %v3017, %v3313
        %v3360 = vadd.f32 %v3018, %v3318
        %v3361 = vld [vmem:[%s2] sm:$0x1]
        %v3363 = vlaneseq
        %v3364 = vshrl.u32 %v3363, 7
        %v3365 = vsub.s32 0, %v3364
        %v3366 = vrot.slane %v3361, %v3365
        %v3368 = vadd.f32 %v3337, %v3366
        %v3369 = vadd.f32 %v3338, %v3366
        %v3370 = vadd.f32 %v3339, %v3366
        %v3371 = vadd.f32 %v3340, %v3366
        %v3372 = vadd.f32 %v3341, %v3366
        %v3373 = vadd.f32 %v3342, %v3366
        %v3374 = vadd.f32 %v3343, %v3366
        %v3375 = vadd.f32 %v3344, %v3366
        %v3376 = vadd.f32 %v3345, %v3366
        %v3377 = vadd.f32 %v3346, %v3366
        %v3378 = vadd.f32 %v3347, %v3366
        %v3379 = vadd.f32 %v3348, %v3366
        %v3380 = vadd.f32 %v3349, %v3366
        %v3381 = vadd.f32 %v3350, %v3366
        %v3382 = vadd.f32 %v3351, %v3366
        %v3383 = vadd.f32 %v3352, %v3366
        %v3384 = vadd.f32 %v3353, %v3366
        %v3385 = vadd.f32 %v3354, %v3366
        %v3386 = vadd.f32 %v3355, %v3366
        %v3387 = vadd.f32 %v3356, %v3366
        %v3388 = vadd.f32 %v3357, %v3366
        %v3389 = vadd.f32 %v3358, %v3366
        %v3390 = vadd.f32 %v3359, %v3366
        %v3391 = vadd.f32 %v3360, %v3366
        %v3392 = vmax.f32 %v3368, 0.0
        %v3393 = vmax.f32 %v3369, 0.0
        %v3394 = vmax.f32 %v3370, 0.0
        %v3395 = vmax.f32 %v3371, 0.0
        %v3396 = vmax.f32 %v3372, 0.0
        %v3397 = vmax.f32 %v3373, 0.0
        %v3398 = vmax.f32 %v3374, 0.0
        %v3399 = vmax.f32 %v3375, 0.0
        %v3400 = vmax.f32 %v3376, 0.0
        %v3401 = vmax.f32 %v3377, 0.0
        %v3402 = vmax.f32 %v3378, 0.0
        %v3403 = vmax.f32 %v3379, 0.0
        %v3404 = vmax.f32 %v3380, 0.0
        %v3405 = vmax.f32 %v3381, 0.0
        %v3406 = vmax.f32 %v3382, 0.0
        %v3407 = vmax.f32 %v3383, 0.0
        %v3408 = vmax.f32 %v3384, 0.0
        %v3409 = vmax.f32 %v3385, 0.0
        %v3410 = vmax.f32 %v3386, 0.0
        %v3411 = vmax.f32 %v3387, 0.0
        %v3412 = vmax.f32 %v3388, 0.0
        %v3413 = vmax.f32 %v3389, 0.0
        %v3414 = vmax.f32 %v3390, 0.0
        %v3415 = vmax.f32 %v3391, 0.0
        %v3416 = vlaneseq
        %v3417 = vshrl.u32 %v3416, 7
        %v3418 = vlaneseq
        %v3419 = vand.u32 %v3418, 127
        %v3420 = vmul.u32 %v3417, 2
        %vm3421 = vcmp.eq.s32.totalorder %v3419, %v3420
        %v3422 = vsel %vm3421, 1, 0
        %v3423 = vcvt.s32.f32 %v3422
        %v3424 = vadd.s32 %v3420, 1
        %vm3425 = vcmp.eq.s32.totalorder %v3419, %v3424
        %v3426 = vsel %vm3425, 1, 0
        %v3427 = vcvt.s32.f32 %v3426
        %v3428 = vmax.f32 %v3392, %v3394
        %v3429 = vmax.f32 %v3393, %v3395
        %vm3430 = vcmask 130048
        %v3432 = vsel %vm3430, %v3423, 0
        %3434 = vmatprep.subr.mxu0 0.0
        %3435 = vmatpush1.msra.mxu0 %v3428
        %3436 = vmatprep.subr.mxu0 0.0
        %3437 = vmatpush1.msra.mxu0 %v3429
        %3438 = vmatprep.subr.mxu0 0.0
        %3439 = vmatpush1.msra.mxu0 0.0
        %3440 = vmatprep.subr.mxu0 0.0
        %3441 = vmatpush1.msra.mxu0 0.0
        %3442 = vmatprep.subr.mxu0 0.0
        %3443 = vmatpush1.msra.mxu0 0.0
        %3444 = vmatprep.subr.mxu0 0.0
        %3445 = vmatpush1.msra.mxu0 0.0
        %3446 = vmatprep.subr.mxu0 0.0
        %3447 = vmatpush1.msra.mxu0 0.0
        %3448 = vmatprep.subr.mxu0 0.0
        %3449 = vmatpush1.msra.mxu0 0.0
        %3450 = vmatprep.subr.mxu0 0.0
        %3451 = vmatpush1.msra.mxu0 0.0
        %3452 = vmatprep.subr.mxu0 0.0
        %3453 = vmatpush1.msra.mxu0 0.0
        %3454 = vmatprep.subr.mxu0 0.0
        %3455 = vmatpush1.msra.mxu0 0.0
        %3456 = vmatprep.subr.mxu0 0.0
        %3457 = vmatpush1.msra.mxu0 0.0
        %3458 = vmatprep.subr.mxu0 0.0
        %3459 = vmatpush1.msra.mxu0 0.0
        %3460 = vmatprep.subr.mxu0 0.0
        %3461 = vmatpush1.msra.mxu0 0.0
        %3462 = vmatprep.subr.mxu0 0.0
        %3463 = vmatpush1.msra.mxu0 0.0
        %3464 = vmatprep.subr.mxu0 0.0
        %3465 = vmatpush1.msra.mxu0 0.0
        %3466 = vmatprep.subr.mxu0 0.0
        %3467 = vmatpush1.msra.mxu0 0.0
        %3468 = vmatprep.subr.mxu0 0.0
        %3469 = vmatpush1.msra.mxu0 0.0
        %3470 = vmatprep.subr.mxu0 0.0
        %3471 = vmatpush1.msra.mxu0 0.0
        %3472 = vmatprep.subr.mxu0 0.0
        %3473 = vmatpush1.msra.mxu0 0.0
        %3474 = vmatprep.subr.mxu0 0.0
        %3475 = vmatpush1.msra.mxu0 0.0
        %3476 = vmatprep.subr.mxu0 0.0
        %3477 = vmatpush1.msra.mxu0 0.0
        %3478 = vmatprep.subr.mxu0 0.0
        %3479 = vmatpush1.msra.mxu0 0.0
        %3480 = vmatprep.subr.mxu0 0.0
        %3481 = vmatpush1.msra.mxu0 0.0
        %3482 = vmatprep.subr.mxu0 0.0
        %3483 = vmatpush1.msra.mxu0 0.0
        %3484 = vmatprep.subr.mxu0 0.0
        %3485 = vmatpush1.msra.mxu0 0.0
        %3486 = vmatprep.subr.mxu0 0.0
        %3487 = vmatpush1.msra.mxu0 0.0
        %3488 = vmatprep.subr.mxu0 0.0
        %3489 = vmatpush1.msra.mxu0 0.0
        %3490 = vmatprep.subr.mxu0 0.0
        %3491 = vmatpush1.msra.mxu0 0.0
        %3492 = vmatprep.subr.mxu0 0.0
        %3493 = vmatpush1.msra.mxu0 0.0
        %3494 = vmatprep.subr.mxu0 0.0
        %3495 = vmatpush1.msra.mxu0 0.0
        %3496 = vmatprep.subr.mxu0 0.0
        %3497 = vmatpush1.msra.mxu0 0.0
        %3498 = vmatprep.mubr.f32.mxu0 0.0
        %3499 = vmatmul.mubr.f32.gmra.mrb[0].mxu0 %v3432
        %v3500 = vpop.f32.mrb[0].mxu0
        %v3501 = vadd.f32 0.0, %v3500
        %v3502 = vpop.f32.mrb[0].mxu0
        %3503 = vdwg.mxu0
        %v3505 = vsel %vm3430, %v3427, 0
        %3507 = vmatprep.subr.mxu0 0.0
        %3508 = vmatpush1.msra.mxu0 %v3428
        %3509 = vmatprep.subr.mxu0 0.0
        %3510 = vmatpush1.msra.mxu0 %v3429
        %3511 = vmatprep.subr.mxu0 0.0
        %3512 = vmatpush1.msra.mxu0 0.0
        %3513 = vmatprep.subr.mxu0 0.0
        %3514 = vmatpush1.msra.mxu0 0.0
        %3515 = vmatprep.subr.mxu0 0.0
        %3516 = vmatpush1.msra.mxu0 0.0
        %3517 = vmatprep.subr.mxu0 0.0
        %3518 = vmatpush1.msra.mxu0 0.0
        %3519 = vmatprep.subr.mxu0 0.0
        %3520 = vmatpush1.msra.mxu0 0.0
        %3521 = vmatprep.subr.mxu0 0.0
        %3522 = vmatpush1.msra.mxu0 0.0
        %3523 = vmatprep.subr.mxu0 0.0
        %3524 = vmatpush1.msra.mxu0 0.0
        %3525 = vmatprep.subr.mxu0 0.0
        %3526 = vmatpush1.msra.mxu0 0.0
        %3527 = vmatprep.subr.mxu0 0.0
        %3528 = vmatpush1.msra.mxu0 0.0
        %3529 = vmatprep.subr.mxu0 0.0
        %3530 = vmatpush1.msra.mxu0 0.0
        %3531 = vmatprep.subr.mxu0 0.0
        %3532 = vmatpush1.msra.mxu0 0.0
        %3533 = vmatprep.subr.mxu0 0.0
        %3534 = vmatpush1.msra.mxu0 0.0
        %3535 = vmatprep.subr.mxu0 0.0
        %3536 = vmatpush1.msra.mxu0 0.0
        %3537 = vmatprep.subr.mxu0 0.0
        %3538 = vmatpush1.msra.mxu0 0.0
        %3539 = vmatprep.subr.mxu0 0.0
        %3540 = vmatpush1.msra.mxu0 0.0
        %3541 = vmatprep.subr.mxu0 0.0
        %3542 = vmatpush1.msra.mxu0 0.0
        %3543 = vmatprep.subr.mxu0 0.0
        %3544 = vmatpush1.msra.mxu0 0.0
        %3545 = vmatprep.subr.mxu0 0.0
        %3546 = vmatpush1.msra.mxu0 0.0
        %3547 = vmatprep.subr.mxu0 0.0
        %3548 = vmatpush1.msra.mxu0 0.0
        %3549 = vmatprep.subr.mxu0 0.0
        %3550 = vmatpush1.msra.mxu0 0.0
        %3551 = vmatprep.subr.mxu0 0.0
        %3552 = vmatpush1.msra.mxu0 0.0
        %3553 = vmatprep.subr.mxu0 0.0
        %3554 = vmatpush1.msra.mxu0 0.0
        %3555 = vmatprep.subr.mxu0 0.0
        %3556 = vmatpush1.msra.mxu0 0.0
        %3557 = vmatprep.subr.mxu0 0.0
        %3558 = vmatpush1.msra.mxu0 0.0
        %3559 = vmatprep.subr.mxu0 0.0
        %3560 = vmatpush1.msra.mxu0 0.0
        %3561 = vmatprep.subr.mxu0 0.0
        %3562 = vmatpush1.msra.mxu0 0.0
        %3563 = vmatprep.subr.mxu0 0.0
        %3564 = vmatpush1.msra.mxu0 0.0
        %3565 = vmatprep.subr.mxu0 0.0
        %3566 = vmatpush1.msra.mxu0 0.0
        %3567 = vmatprep.subr.mxu0 0.0
        %3568 = vmatpush1.msra.mxu0 0.0
        %3569 = vmatprep.subr.mxu0 0.0
        %3570 = vmatpush1.msra.mxu0 0.0
        %3571 = vmatprep.mubr.f32.mxu0 0.0
        %3572 = vmatmul.mubr.f32.gmra.mrb[0].mxu0 %v3505
        %v3573 = vpop.f32.mrb[0].mxu0
        %v3574 = vadd.f32 0.0, %v3573
        %v3575 = vpop.f32.mrb[0].mxu0
        %3576 = vdwg.mxu0
        %v3577 = vmax.f32 %v3501, %v3574
        %v3578 = vmax.f32 %v3396, %v3398
        %v3579 = vmax.f32 %v3397, %v3399
        %3580 = vmatprep.subr.mxu0 0.0
        %3581 = vmatpush1.msra.mxu0 %v3578
        %3582 = vmatprep.subr.mxu0 0.0
        %3583 = vmatpush1.msra.mxu0 %v3579
        %3584 = vmatprep.subr.mxu0 0.0
        %3585 = vmatpush1.msra.mxu0 0.0
        %3586 = vmatprep.subr.mxu0 0.0
        %3587 = vmatpush1.msra.mxu0 0.0
        %3588 = vmatprep.subr.mxu0 0.0
        %3589 = vmatpush1.msra.mxu0 0.0
        %3590 = vmatprep.subr.mxu0 0.0
        %3591 = vmatpush1.msra.mxu0 0.0
        %3592 = vmatprep.subr.mxu0 0.0
        %3593 = vmatpush1.msra.mxu0 0.0
        %3594 = vmatprep.subr.mxu0 0.0
        %3595 = vmatpush1.msra.mxu0 0.0
        %3596 = vmatprep.subr.mxu0 0.0
        %3597 = vmatpush1.msra.mxu0 0.0
        %3598 = vmatprep.subr.mxu0 0.0
        %3599 = vmatpush1.msra.mxu0 0.0
        %3600 = vmatprep.subr.mxu0 0.0
        %3601 = vmatpush1.msra.mxu0 0.0
        %3602 = vmatprep.subr.mxu0 0.0
        %3603 = vmatpush1.msra.mxu0 0.0
        %3604 = vmatprep.subr.mxu0 0.0
        %3605 = vmatpush1.msra.mxu0 0.0
        %3606 = vmatprep.subr.mxu0 0.0
        %3607 = vmatpush1.msra.mxu0 0.0
        %3608 = vmatprep.subr.mxu0 0.0
        %3609 = vmatpush1.msra.mxu0 0.0
        %3610 = vmatprep.subr.mxu0 0.0
        %3611 = vmatpush1.msra.mxu0 0.0
        %3612 = vmatprep.subr.mxu0 0.0
        %3613 = vmatpush1.msra.mxu0 0.0
        %3614 = vmatprep.subr.mxu0 0.0
        %3615 = vmatpush1.msra.mxu0 0.0
        %3616 = vmatprep.subr.mxu0 0.0
        %3617 = vmatpush1.msra.mxu0 0.0
        %3618 = vmatprep.subr.mxu0 0.0
        %3619 = vmatpush1.msra.mxu0 0.0
        %3620 = vmatprep.subr.mxu0 0.0
        %3621 = vmatpush1.msra.mxu0 0.0
        %3622 = vmatprep.subr.mxu0 0.0
        %3623 = vmatpush1.msra.mxu0 0.0
        %3624 = vmatprep.subr.mxu0 0.0
        %3625 = vmatpush1.msra.mxu0 0.0
        %3626 = vmatprep.subr.mxu0 0.0
        %3627 = vmatpush1.msra.mxu0 0.0
        %3628 = vmatprep.subr.mxu0 0.0
        %3629 = vmatpush1.msra.mxu0 0.0
        %3630 = vmatprep.subr.mxu0 0.0
        %3631 = vmatpush1.msra.mxu0 0.0
        %3632 = vmatprep.subr.mxu0 0.0
        %3633 = vmatpush1.msra.mxu0 0.0
        %3634 = vmatprep.subr.mxu0 0.0
        %3635 = vmatpush1.msra.mxu0 0.0
        %3636 = vmatprep.subr.mxu0 0.0
        %3637 = vmatpush1.msra.mxu0 0.0
        %3638 = vmatprep.subr.mxu0 0.0
        %3639 = vmatpush1.msra.mxu0 0.0
        %3640 = vmatprep.subr.mxu0 0.0
        %3641 = vmatpush1.msra.mxu0 0.0
        %3642 = vmatprep.subr.mxu0 0.0
        %3643 = vmatpush1.msra.mxu0 0.0
        %3644 = vmatprep.mubr.f32.mxu0 0.0
        %3645 = vmatmul.mubr.f32.gmra.mrb[0].mxu0 %v3432
        %v3646 = vpop.f32.mrb[0].mxu0
        %v3647 = vadd.f32 0.0, %v3646
        %v3648 = vpop.f32.mrb[0].mxu0
        %3649 = vdwg.mxu0
        %3650 = vmatprep.subr.mxu0 0.0
        %3651 = vmatpush1.msra.mxu0 %v3578
        %3652 = vmatprep.subr.mxu0 0.0
        %3653 = vmatpush1.msra.mxu0 %v3579
        %3654 = vmatprep.subr.mxu0 0.0
        %3655 = vmatpush1.msra.mxu0 0.0
        %3656 = vmatprep.subr.mxu0 0.0
        %3657 = vmatpush1.msra.mxu0 0.0
        %3658 = vmatprep.subr.mxu0 0.0
        %3659 = vmatpush1.msra.mxu0 0.0
        %3660 = vmatprep.subr.mxu0 0.0
        %3661 = vmatpush1.msra.mxu0 0.0
        %3662 = vmatprep.subr.mxu0 0.0
        %3663 = vmatpush1.msra.mxu0 0.0
        %3664 = vmatprep.subr.mxu0 0.0
        %3665 = vmatpush1.msra.mxu0 0.0
        %3666 = vmatprep.subr.mxu0 0.0
        %3667 = vmatpush1.msra.mxu0 0.0
        %3668 = vmatprep.subr.mxu0 0.0
        %3669 = vmatpush1.msra.mxu0 0.0
        %3670 = vmatprep.subr.mxu0 0.0
        %3671 = vmatpush1.msra.mxu0 0.0
        %3672 = vmatprep.subr.mxu0 0.0
        %3673 = vmatpush1.msra.mxu0 0.0
        %3674 = vmatprep.subr.mxu0 0.0
        %3675 = vmatpush1.msra.mxu0 0.0
        %3676 = vmatprep.subr.mxu0 0.0
        %3677 = vmatpush1.msra.mxu0 0.0
        %3678 = vmatprep.subr.mxu0 0.0
        %3679 = vmatpush1.msra.mxu0 0.0
        %3680 = vmatprep.subr.mxu0 0.0
        %3681 = vmatpush1.msra.mxu0 0.0
        %3682 = vmatprep.subr.mxu0 0.0
        %3683 = vmatpush1.msra.mxu0 0.0
        %3684 = vmatprep.subr.mxu0 0.0
        %3685 = vmatpush1.msra.mxu0 0.0
        %3686 = vmatprep.subr.mxu0 0.0
        %3687 = vmatpush1.msra.mxu0 0.0
        %3688 = vmatprep.subr.mxu0 0.0
        %3689 = vmatpush1.msra.mxu0 0.0
        %3690 = vmatprep.subr.mxu0 0.0
        %3691 = vmatpush1.msra.mxu0 0.0
        %3692 = vmatprep.subr.mxu0 0.0
        %3693 = vmatpush1.msra.mxu0 0.0
        %3694 = vmatprep.subr.mxu0 0.0
        %3695 = vmatpush1.msra.mxu0 0.0
        %3696 = vmatprep.subr.mxu0 0.0
        %3697 = vmatpush1.msra.mxu0 0.0
        %3698 = vmatprep.subr.mxu0 0.0
        %3699 = vmatpush1.msra.mxu0 0.0
        %3700 = vmatprep.subr.mxu0 0.0
        %3701 = vmatpush1.msra.mxu0 0.0
        %3702 = vmatprep.subr.mxu0 0.0
        %3703 = vmatpush1.msra.mxu0 0.0
        %3704 = vmatprep.subr.mxu0 0.0
        %3705 = vmatpush1.msra.mxu0 0.0
        %3706 = vmatprep.subr.mxu0 0.0
        %3707 = vmatpush1.msra.mxu0 0.0
        %3708 = vmatprep.subr.mxu0 0.0
        %3709 = vmatpush1.msra.mxu0 0.0
        %3710 = vmatprep.subr.mxu0 0.0
        %3711 = vmatpush1.msra.mxu0 0.0
        %3712 = vmatprep.subr.mxu0 0.0
        %3713 = vmatpush1.msra.mxu0 0.0
        %3714 = vmatprep.mubr.f32.mxu0 0.0
        %3715 = vmatmul.mubr.f32.gmra.mrb[0].mxu0 %v3505
        %v3716 = vpop.f32.mrb[0].mxu0
        %v3717 = vadd.f32 0.0, %v3716
        %v3718 = vpop.f32.mrb[0].mxu0
        %3719 = vdwg.mxu0
        %v3720 = vmax.f32 %v3647, %v3717
        %v3721 = vmax.f32 %v3400, %v3402
        %v3722 = vmax.f32 %v3401, %v3403
        %3723 = vmatprep.subr.mxu0 0.0
        %3724 = vmatpush1.msra.mxu0 %v3721
        %3725 = vmatprep.subr.mxu0 0.0
        %3726 = vmatpush1.msra.mxu0 %v3722
        %3727 = vmatprep.subr.mxu0 0.0
        %3728 = vmatpush1.msra.mxu0 0.0
        %3729 = vmatprep.subr.mxu0 0.0
        %3730 = vmatpush1.msra.mxu0 0.0
        %3731 = vmatprep.subr.mxu0 0.0
        %3732 = vmatpush1.msra.mxu0 0.0
        %3733 = vmatprep.subr.mxu0 0.0
        %3734 = vmatpush1.msra.mxu0 0.0
        %3735 = vmatprep.subr.mxu0 0.0
        %3736 = vmatpush1.msra.mxu0 0.0
        %3737 = vmatprep.subr.mxu0 0.0
        %3738 = vmatpush1.msra.mxu0 0.0
        %3739 = vmatprep.subr.mxu0 0.0
        %3740 = vmatpush1.msra.mxu0 0.0
        %3741 = vmatprep.subr.mxu0 0.0
        %3742 = vmatpush1.msra.mxu0 0.0
        %3743 = vmatprep.subr.mxu0 0.0
        %3744 = vmatpush1.msra.mxu0 0.0
        %3745 = vmatprep.subr.mxu0 0.0
        %3746 = vmatpush1.msra.mxu0 0.0
        %3747 = vmatprep.subr.mxu0 0.0
        %3748 = vmatpush1.msra.mxu0 0.0
        %3749 = vmatprep.subr.mxu0 0.0
        %3750 = vmatpush1.msra.mxu0 0.0
        %3751 = vmatprep.subr.mxu0 0.0
        %3752 = vmatpush1.msra.mxu0 0.0
        %3753 = vmatprep.subr.mxu0 0.0
        %3754 = vmatpush1.msra.mxu0 0.0
        %3755 = vmatprep.subr.mxu0 0.0
        %3756 = vmatpush1.msra.mxu0 0.0
        %3757 = vmatprep.subr.mxu0 0.0
        %3758 = vmatpush1.msra.mxu0 0.0
        %3759 = vmatprep.subr.mxu0 0.0
        %3760 = vmatpush1.msra.mxu0 0.0
        %3761 = vmatprep.subr.mxu0 0.0
        %3762 = vmatpush1.msra.mxu0 0.0
        %3763 = vmatprep.subr.mxu0 0.0
        %3764 = vmatpush1.msra.mxu0 0.0
        %3765 = vmatprep.subr.mxu0 0.0
        %3766 = vmatpush1.msra.mxu0 0.0
        %3767 = vmatprep.subr.mxu0 0.0
        %3768 = vmatpush1.msra.mxu0 0.0
        %3769 = vmatprep.subr.mxu0 0.0
        %3770 = vmatpush1.msra.mxu0 0.0
        %3771 = vmatprep.subr.mxu0 0.0
        %3772 = vmatpush1.msra.mxu0 0.0
        %3773 = vmatprep.subr.mxu0 0.0
        %3774 = vmatpush1.msra.mxu0 0.0
        %3775 = vmatprep.subr.mxu0 0.0
        %3776 = vmatpush1.msra.mxu0 0.0
        %3777 = vmatprep.subr.mxu0 0.0
        %3778 = vmatpush1.msra.mxu0 0.0
        %3779 = vmatprep.subr.mxu0 0.0
        %3780 = vmatpush1.msra.mxu0 0.0
        %3781 = vmatprep.subr.mxu0 0.0
        %3782 = vmatpush1.msra.mxu0 0.0
        %3783 = vmatprep.subr.mxu0 0.0
        %3784 = vmatpush1.msra.mxu0 0.0
        %3785 = vmatprep.subr.mxu0 0.0
        %3786 = vmatpush1.msra.mxu0 0.0
        %3787 = vmatprep.mubr.f32.mxu0 0.0
        %3788 = vmatmul.mubr.f32.gmra.mrb[0].mxu0 %v3432
        %v3789 = vpop.f32.mrb[0].mxu0
        %v3790 = vadd.f32 0.0, %v3789
        %v3791 = vpop.f32.mrb[0].mxu0
        %3792 = vdwg.mxu0
        %3793 = vmatprep.subr.mxu0 0.0
        %3794 = vmatpush1.msra.mxu0 %v3721
        %3795 = vmatprep.subr.mxu0 0.0
        %3796 = vmatpush1.msra.mxu0 %v3722
        %3797 = vmatprep.subr.mxu0 0.0
        %3798 = vmatpush1.msra.mxu0 0.0
        %3799 = vmatprep.subr.mxu0 0.0
        %3800 = vmatpush1.msra.mxu0 0.0
        %3801 = vmatprep.subr.mxu0 0.0
        %3802 = vmatpush1.msra.mxu0 0.0
        %3803 = vmatprep.subr.mxu0 0.0
        %3804 = vmatpush1.msra.mxu0 0.0
        %3805 = vmatprep.subr.mxu0 0.0
        %3806 = vmatpush1.msra.mxu0 0.0
        %3807 = vmatprep.subr.mxu0 0.0
        %3808 = vmatpush1.msra.mxu0 0.0
        %3809 = vmatprep.subr.mxu0 0.0
        %3810 = vmatpush1.msra.mxu0 0.0
        %3811 = vmatprep.subr.mxu0 0.0
        %3812 = vmatpush1.msra.mxu0 0.0
        %3813 = vmatprep.subr.mxu0 0.0
        %3814 = vmatpush1.msra.mxu0 0.0
        %3815 = vmatprep.subr.mxu0 0.0
        %3816 = vmatpush1.msra.mxu0 0.0
        %3817 = vmatprep.subr.mxu0 0.0
        %3818 = vmatpush1.msra.mxu0 0.0
        %3819 = vmatprep.subr.mxu0 0.0
        %3820 = vmatpush1.msra.mxu0 0.0
        %3821 = vmatprep.subr.mxu0 0.0
        %3822 = vmatpush1.msra.mxu0 0.0
        %3823 = vmatprep.subr.mxu0 0.0
        %3824 = vmatpush1.msra.mxu0 0.0
        %3825 = vmatprep.subr.mxu0 0.0
        %3826 = vmatpush1.msra.mxu0 0.0
        %3827 = vmatprep.subr.mxu0 0.0
        %3828 = vmatpush1.msra.mxu0 0.0
        %3829 = vmatprep.subr.mxu0 0.0
        %3830 = vmatpush1.msra.mxu0 0.0
        %3831 = vmatprep.subr.mxu0 0.0
        %3832 = vmatpush1.msra.mxu0 0.0
        %3833 = vmatprep.subr.mxu0 0.0
        %3834 = vmatpush1.msra.mxu0 0.0
        %3835 = vmatprep.subr.mxu0 0.0
        %3836 = vmatpush1.msra.mxu0 0.0
        %3837 = vmatprep.subr.mxu0 0.0
        %3838 = vmatpush1.msra.mxu0 0.0
        %3839 = vmatprep.subr.mxu0 0.0
        %3840 = vmatpush1.msra.mxu0 0.0
        %3841 = vmatprep.subr.mxu0 0.0
        %3842 = vmatpush1.msra.mxu0 0.0
        %3843 = vmatprep.subr.mxu0 0.0
        %3844 = vmatpush1.msra.mxu0 0.0
        %3845 = vmatprep.subr.mxu0 0.0
        %3846 = vmatpush1.msra.mxu0 0.0
        %3847 = vmatprep.subr.mxu0 0.0
        %3848 = vmatpush1.msra.mxu0 0.0
        %3849 = vmatprep.subr.mxu0 0.0
        %3850 = vmatpush1.msra.mxu0 0.0
        %3851 = vmatprep.subr.mxu0 0.0
        %3852 = vmatpush1.msra.mxu0 0.0
        %3853 = vmatprep.subr.mxu0 0.0
        %3854 = vmatpush1.msra.mxu0 0.0
        %3855 = vmatprep.subr.mxu0 0.0
        %3856 = vmatpush1.msra.mxu0 0.0
        %3857 = vmatprep.mubr.f32.mxu0 0.0
        %3858 = vmatmul.mubr.f32.gmra.mrb[0].mxu0 %v3505
        %v3859 = vpop.f32.mrb[0].mxu0
        %v3860 = vadd.f32 0.0, %v3859
        %v3861 = vpop.f32.mrb[0].mxu0
        %3862 = vdwg.mxu0
        %v3863 = vmax.f32 %v3790, %v3860
        %v3864 = vmax.f32 %v3404, %v3406
        %v3865 = vmax.f32 %v3405, %v3407
        %3866 = vmatprep.subr.mxu0 0.0
        %3867 = vmatpush1.msra.mxu0 %v3864
        %3868 = vmatprep.subr.mxu0 0.0
        %3869 = vmatpush1.msra.mxu0 %v3865
        %3870 = vmatprep.subr.mxu0 0.0
        %3871 = vmatpush1.msra.mxu0 0.0
        %3872 = vmatprep.subr.mxu0 0.0
        %3873 = vmatpush1.msra.mxu0 0.0
        %3874 = vmatprep.subr.mxu0 0.0
        %3875 = vmatpush1.msra.mxu0 0.0
        %3876 = vmatprep.subr.mxu0 0.0
        %3877 = vmatpush1.msra.mxu0 0.0
        %3878 = vmatprep.subr.mxu0 0.0
        %3879 = vmatpush1.msra.mxu0 0.0
        %3880 = vmatprep.subr.mxu0 0.0
        %3881 = vmatpush1.msra.mxu0 0.0
        %3882 = vmatprep.subr.mxu0 0.0
        %3883 = vmatpush1.msra.mxu0 0.0
        %3884 = vmatprep.subr.mxu0 0.0
        %3885 = vmatpush1.msra.mxu0 0.0
        %3886 = vmatprep.subr.mxu0 0.0
        %3887 = vmatpush1.msra.mxu0 0.0
        %3888 = vmatprep.subr.mxu0 0.0
        %3889 = vmatpush1.msra.mxu0 0.0
        %3890 = vmatprep.subr.mxu0 0.0
        %3891 = vmatpush1.msra.mxu0 0.0
        %3892 = vmatprep.subr.mxu0 0.0
        %3893 = vmatpush1.msra.mxu0 0.0
        %3894 = vmatprep.subr.mxu0 0.0
        %3895 = vmatpush1.msra.mxu0 0.0
        %3896 = vmatprep.subr.mxu0 0.0
        %3897 = vmatpush1.msra.mxu0 0.0
        %3898 = vmatprep.subr.mxu0 0.0
        %3899 = vmatpush1.msra.mxu0 0.0
        %3900 = vmatprep.subr.mxu0 0.0
        %3901 = vmatpush1.msra.mxu0 0.0
        %3902 = vmatprep.subr.mxu0 0.0
        %3903 = vmatpush1.msra.mxu0 0.0
        %3904 = vmatprep.subr.mxu0 0.0
        %3905 = vmatpush1.msra.mxu0 0.0
        %3906 = vmatprep.subr.mxu0 0.0
        %3907 = vmatpush1.msra.mxu0 0.0
        %3908 = vmatprep.subr.mxu0 0.0
        %3909 = vmatpush1.msra.mxu0 0.0
        %3910 = vmatprep.subr.mxu0 0.0
        %3911 = vmatpush1.msra.mxu0 0.0
        %3912 = vmatprep.subr.mxu0 0.0
        %3913 = vmatpush1.msra.mxu0 0.0
        %3914 = vmatprep.subr.mxu0 0.0
        %3915 = vmatpush1.msra.mxu0 0.0
        %3916 = vmatprep.subr.mxu0 0.0
        %3917 = vmatpush1.msra.mxu0 0.0
        %3918 = vmatprep.subr.mxu0 0.0
        %3919 = vmatpush1.msra.mxu0 0.0
        %3920 = vmatprep.subr.mxu0 0.0
        %3921 = vmatpush1.msra.mxu0 0.0
        %3922 = vmatprep.subr.mxu0 0.0
        %3923 = vmatpush1.msra.mxu0 0.0
        %3924 = vmatprep.subr.mxu0 0.0
        %3925 = vmatpush1.msra.mxu0 0.0
        %3926 = vmatprep.subr.mxu0 0.0
        %3927 = vmatpush1.msra.mxu0 0.0
        %3928 = vmatprep.subr.mxu0 0.0
        %3929 = vmatpush1.msra.mxu0 0.0
        %3930 = vmatprep.mubr.f32.mxu0 0.0
        %3931 = vmatmul.mubr.f32.gmra.mrb[0].mxu0 %v3432
        %v3932 = vpop.f32.mrb[0].mxu0
        %v3933 = vadd.f32 0.0, %v3932
        %v3934 = vpop.f32.mrb[0].mxu0
        %3935 = vdwg.mxu0
        %3936 = vmatprep.subr.mxu0 0.0
        %3937 = vmatpush1.msra.mxu0 %v3864
        %3938 = vmatprep.subr.mxu0 0.0
        %3939 = vmatpush1.msra.mxu0 %v3865
        %3940 = vmatprep.subr.mxu0 0.0
        %3941 = vmatpush1.msra.mxu0 0.0
        %3942 = vmatprep.subr.mxu0 0.0
        %3943 = vmatpush1.msra.mxu0 0.0
        %3944 = vmatprep.subr.mxu0 0.0
        %3945 = vmatpush1.msra.mxu0 0.0
        %3946 = vmatprep.subr.mxu0 0.0
        %3947 = vmatpush1.msra.mxu0 0.0
        %3948 = vmatprep.subr.mxu0 0.0
        %3949 = vmatpush1.msra.mxu0 0.0
        %3950 = vmatprep.subr.mxu0 0.0
        %3951 = vmatpush1.msra.mxu0 0.0
        %3952 = vmatprep.subr.mxu0 0.0
        %3953 = vmatpush1.msra.mxu0 0.0
        %3954 = vmatprep.subr.mxu0 0.0
        %3955 = vmatpush1.msra.mxu0 0.0
        %3956 = vmatprep.subr.mxu0 0.0
        %3957 = vmatpush1.msra.mxu0 0.0
        %3958 = vmatprep.subr.mxu0 0.0
        %3959 = vmatpush1.msra.mxu0 0.0
        %3960 = vmatprep.subr.mxu0 0.0
        %3961 = vmatpush1.msra.mxu0 0.0
        %3962 = vmatprep.subr.mxu0 0.0
        %3963 = vmatpush1.msra.mxu0 0.0
        %3964 = vmatprep.subr.mxu0 0.0
        %3965 = vmatpush1.msra.mxu0 0.0
        %3966 = vmatprep.subr.mxu0 0.0
        %3967 = vmatpush1.msra.mxu0 0.0
        %3968 = vmatprep.subr.mxu0 0.0
        %3969 = vmatpush1.msra.mxu0 0.0
        %3970 = vmatprep.subr.mxu0 0.0
        %3971 = vmatpush1.msra.mxu0 0.0
        %3972 = vmatprep.subr.mxu0 0.0
        %3973 = vmatpush1.msra.mxu0 0.0
        %3974 = vmatprep.subr.mxu0 0.0
        %3975 = vmatpush1.msra.mxu0 0.0
        %3976 = vmatprep.subr.mxu0 0.0
        %3977 = vmatpush1.msra.mxu0 0.0
        %3978 = vmatprep.subr.mxu0 0.0
        %3979 = vmatpush1.msra.mxu0 0.0
        %3980 = vmatprep.subr.mxu0 0.0
        %3981 = vmatpush1.msra.mxu0 0.0
        %3982 = vmatprep.subr.mxu0 0.0
        %3983 = vmatpush1.msra.mxu0 0.0
        %3984 = vmatprep.subr.mxu0 0.0
        %3985 = vmatpush1.msra.mxu0 0.0
        %3986 = vmatprep.subr.mxu0 0.0
        %3987 = vmatpush1.msra.mxu0 0.0
        %3988 = vmatprep.subr.mxu0 0.0
        %3989 = vmatpush1.msra.mxu0 0.0
        %3990 = vmatprep.subr.mxu0 0.0
        %3991 = vmatpush1.msra.mxu0 0.0
        %3992 = vmatprep.subr.mxu0 0.0
        %3993 = vmatpush1.msra.mxu0 0.0
        %3994 = vmatprep.subr.mxu0 0.0
        %3995 = vmatpush1.msra.mxu0 0.0
        %3996 = vmatprep.subr.mxu0 0.0
        %3997 = vmatpush1.msra.mxu0 0.0
        %3998 = vmatprep.subr.mxu0 0.0
        %3999 = vmatpush1.msra.mxu0 0.0
        %4000 = vmatprep.mubr.f32.mxu0 0.0
        %4001 = vmatmul.mubr.f32.gmra.mrb[0].mxu0 %v3505
        %v4002 = vpop.f32.mrb[0].mxu0
        %v4003 = vadd.f32 0.0, %v4002
        %v4004 = vpop.f32.mrb[0].mxu0
        %4005 = vdwg.mxu0
        %v4006 = vmax.f32 %v3933, %v4003
        %v4007 = vmax.f32 %v3408, %v3410
        %v4008 = vmax.f32 %v3409, %v3411
        %4009 = vmatprep.subr.mxu0 0.0
        %4010 = vmatpush1.msra.mxu0 %v4007
        %4011 = vmatprep.subr.mxu0 0.0
        %4012 = vmatpush1.msra.mxu0 %v4008
        %4013 = vmatprep.subr.mxu0 0.0
        %4014 = vmatpush1.msra.mxu0 0.0
        %4015 = vmatprep.subr.mxu0 0.0
        %4016 = vmatpush1.msra.mxu0 0.0
        %4017 = vmatprep.subr.mxu0 0.0
        %4018 = vmatpush1.msra.mxu0 0.0
        %4019 = vmatprep.subr.mxu0 0.0
        %4020 = vmatpush1.msra.mxu0 0.0
        %4021 = vmatprep.subr.mxu0 0.0
        %4022 = vmatpush1.msra.mxu0 0.0
        %4023 = vmatprep.subr.mxu0 0.0
        %4024 = vmatpush1.msra.mxu0 0.0
        %4025 = vmatprep.subr.mxu0 0.0
        %4026 = vmatpush1.msra.mxu0 0.0
        %4027 = vmatprep.subr.mxu0 0.0
        %4028 = vmatpush1.msra.mxu0 0.0
        %4029 = vmatprep.subr.mxu0 0.0
        %4030 = vmatpush1.msra.mxu0 0.0
        %4031 = vmatprep.subr.mxu0 0.0
        %4032 = vmatpush1.msra.mxu0 0.0
        %4033 = vmatprep.subr.mxu0 0.0
        %4034 = vmatpush1.msra.mxu0 0.0
        %4035 = vmatprep.subr.mxu0 0.0
        %4036 = vmatpush1.msra.mxu0 0.0
        %4037 = vmatprep.subr.mxu0 0.0
        %4038 = vmatpush1.msra.mxu0 0.0
        %4039 = vmatprep.subr.mxu0 0.0
        %4040 = vmatpush1.msra.mxu0 0.0
        %4041 = vmatprep.subr.mxu0 0.0
        %4042 = vmatpush1.msra.mxu0 0.0
        %4043 = vmatprep.subr.mxu0 0.0
        %4044 = vmatpush1.msra.mxu0 0.0
        %4045 = vmatprep.subr.mxu0 0.0
        %4046 = vmatpush1.msra.mxu0 0.0
        %4047 = vmatprep.subr.mxu0 0.0
        %4048 = vmatpush1.msra.mxu0 0.0
        %4049 = vmatprep.subr.mxu0 0.0
        %4050 = vmatpush1.msra.mxu0 0.0
        %4051 = vmatprep.subr.mxu0 0.0
        %4052 = vmatpush1.msra.mxu0 0.0
        %4053 = vmatprep.subr.mxu0 0.0
        %4054 = vmatpush1.msra.mxu0 0.0
        %4055 = vmatprep.subr.mxu0 0.0
        %4056 = vmatpush1.msra.mxu0 0.0
        %4057 = vmatprep.subr.mxu0 0.0
        %4058 = vmatpush1.msra.mxu0 0.0
        %4059 = vmatprep.subr.mxu0 0.0
        %4060 = vmatpush1.msra.mxu0 0.0
        %4061 = vmatprep.subr.mxu0 0.0
        %4062 = vmatpush1.msra.mxu0 0.0
        %4063 = vmatprep.subr.mxu0 0.0
        %4064 = vmatpush1.msra.mxu0 0.0
        %4065 = vmatprep.subr.mxu0 0.0
        %4066 = vmatpush1.msra.mxu0 0.0
        %4067 = vmatprep.subr.mxu0 0.0
        %4068 = vmatpush1.msra.mxu0 0.0
        %4069 = vmatprep.subr.mxu0 0.0
        %4070 = vmatpush1.msra.mxu0 0.0
        %4071 = vmatprep.subr.mxu0 0.0
        %4072 = vmatpush1.msra.mxu0 0.0
        %4073 = vmatprep.mubr.f32.mxu0 0.0
        %4074 = vmatmul.mubr.f32.gmra.mrb[0].mxu0 %v3432
        %v4075 = vpop.f32.mrb[0].mxu0
        %v4076 = vadd.f32 0.0, %v4075
        %v4077 = vpop.f32.mrb[0].mxu0
        %4078 = vdwg.mxu0
        %4079 = vmatprep.subr.mxu0 0.0
        %4080 = vmatpush1.msra.mxu0 %v4007
        %4081 = vmatprep.subr.mxu0 0.0
        %4082 = vmatpush1.msra.mxu0 %v4008
        %4083 = vmatprep.subr.mxu0 0.0
        %4084 = vmatpush1.msra.mxu0 0.0
        %4085 = vmatprep.subr.mxu0 0.0
        %4086 = vmatpush1.msra.mxu0 0.0
        %4087 = vmatprep.subr.mxu0 0.0
        %4088 = vmatpush1.msra.mxu0 0.0
        %4089 = vmatprep.subr.mxu0 0.0
        %4090 = vmatpush1.msra.mxu0 0.0
        %4091 = vmatprep.subr.mxu0 0.0
        %4092 = vmatpush1.msra.mxu0 0.0
        %4093 = vmatprep.subr.mxu0 0.0
        %4094 = vmatpush1.msra.mxu0 0.0
        %4095 = vmatprep.subr.mxu0 0.0
        %4096 = vmatpush1.msra.mxu0 0.0
        %4097 = vmatprep.subr.mxu0 0.0
        %4098 = vmatpush1.msra.mxu0 0.0
        %4099 = vmatprep.subr.mxu0 0.0
        %4100 = vmatpush1.msra.mxu0 0.0
        %4101 = vmatprep.subr.mxu0 0.0
        %4102 = vmatpush1.msra.mxu0 0.0
        %4103 = vmatprep.subr.mxu0 0.0
        %4104 = vmatpush1.msra.mxu0 0.0
        %4105 = vmatprep.subr.mxu0 0.0
        %4106 = vmatpush1.msra.mxu0 0.0
        %4107 = vmatprep.subr.mxu0 0.0
        %4108 = vmatpush1.msra.mxu0 0.0
        %4109 = vmatprep.subr.mxu0 0.0
        %4110 = vmatpush1.msra.mxu0 0.0
        %4111 = vmatprep.subr.mxu0 0.0
        %4112 = vmatpush1.msra.mxu0 0.0
        %4113 = vmatprep.subr.mxu0 0.0
        %4114 = vmatpush1.msra.mxu0 0.0
        %4115 = vmatprep.subr.mxu0 0.0
        %4116 = vmatpush1.msra.mxu0 0.0
        %4117 = vmatprep.subr.mxu0 0.0
        %4118 = vmatpush1.msra.mxu0 0.0
        %4119 = vmatprep.subr.mxu0 0.0
        %4120 = vmatpush1.msra.mxu0 0.0
        %4121 = vmatprep.subr.mxu0 0.0
        %4122 = vmatpush1.msra.mxu0 0.0
        %4123 = vmatprep.subr.mxu0 0.0
        %4124 = vmatpush1.msra.mxu0 0.0
        %4125 = vmatprep.subr.mxu0 0.0
        %4126 = vmatpush1.msra.mxu0 0.0
        %4127 = vmatprep.subr.mxu0 0.0
        %4128 = vmatpush1.msra.mxu0 0.0
        %4129 = vmatprep.subr.mxu0 0.0
        %4130 = vmatpush1.msra.mxu0 0.0
        %4131 = vmatprep.subr.mxu0 0.0
        %4132 = vmatpush1.msra.mxu0 0.0
        %4133 = vmatprep.subr.mxu0 0.0
        %4134 = vmatpush1.msra.mxu0 0.0
        %4135 = vmatprep.subr.mxu0 0.0
        %4136 = vmatpush1.msra.mxu0 0.0
        %4137 = vmatprep.subr.mxu0 0.0
        %4138 = vmatpush1.msra.mxu0 0.0
        %4139 = vmatprep.subr.mxu0 0.0
        %4140 = vmatpush1.msra.mxu0 0.0
        %4141 = vmatprep.subr.mxu0 0.0
        %4142 = vmatpush1.msra.mxu0 0.0
        %4143 = vmatprep.mubr.f32.mxu0 0.0
        %4144 = vmatmul.mubr.f32.gmra.mrb[0].mxu0 %v3505
        %v4145 = vpop.f32.mrb[0].mxu0
        %v4146 = vadd.f32 0.0, %v4145
        %v4147 = vpop.f32.mrb[0].mxu0
        %4148 = vdwg.mxu0
        %v4149 = vmax.f32 %v4076, %v4146
        %v4150 = vmax.f32 %v3412, %v3414
        %v4151 = vmax.f32 %v3413, %v3415
        %4152 = vmatprep.subr.mxu0 0.0
        %4153 = vmatpush1.msra.mxu0 %v4150
        %4154 = vmatprep.subr.mxu0 0.0
        %4155 = vmatpush1.msra.mxu0 %v4151
        %4156 = vmatprep.subr.mxu0 0.0
        %4157 = vmatpush1.msra.mxu0 0.0
        %4158 = vmatprep.subr.mxu0 0.0
        %4159 = vmatpush1.msra.mxu0 0.0
        %4160 = vmatprep.subr.mxu0 0.0
        %4161 = vmatpush1.msra.mxu0 0.0
        %4162 = vmatprep.subr.mxu0 0.0
        %4163 = vmatpush1.msra.mxu0 0.0
        %4164 = vmatprep.subr.mxu0 0.0
        %4165 = vmatpush1.msra.mxu0 0.0
        %4166 = vmatprep.subr.mxu0 0.0
        %4167 = vmatpush1.msra.mxu0 0.0
        %4168 = vmatprep.subr.mxu0 0.0
        %4169 = vmatpush1.msra.mxu0 0.0
        %4170 = vmatprep.subr.mxu0 0.0
        %4171 = vmatpush1.msra.mxu0 0.0
        %4172 = vmatprep.subr.mxu0 0.0
        %4173 = vmatpush1.msra.mxu0 0.0
        %4174 = vmatprep.subr.mxu0 0.0
        %4175 = vmatpush1.msra.mxu0 0.0
        %4176 = vmatprep.subr.mxu0 0.0
        %4177 = vmatpush1.msra.mxu0 0.0
        %4178 = vmatprep.subr.mxu0 0.0
        %4179 = vmatpush1.msra.mxu0 0.0
        %4180 = vmatprep.subr.mxu0 0.0
        %4181 = vmatpush1.msra.mxu0 0.0
        %4182 = vmatprep.subr.mxu0 0.0
        %4183 = vmatpush1.msra.mxu0 0.0
        %4184 = vmatprep.subr.mxu0 0.0
        %4185 = vmatpush1.msra.mxu0 0.0
        %4186 = vmatprep.subr.mxu0 0.0
        %4187 = vmatpush1.msra.mxu0 0.0
        %4188 = vmatprep.subr.mxu0 0.0
        %4189 = vmatpush1.msra.mxu0 0.0
        %4190 = vmatprep.subr.mxu0 0.0
        %4191 = vmatpush1.msra.mxu0 0.0
        %4192 = vmatprep.subr.mxu0 0.0
        %4193 = vmatpush1.msra.mxu0 0.0
        %4194 = vmatprep.subr.mxu0 0.0
        %4195 = vmatpush1.msra.mxu0 0.0
        %4196 = vmatprep.subr.mxu0 0.0
        %4197 = vmatpush1.msra.mxu0 0.0
        %4198 = vmatprep.subr.mxu0 0.0
        %4199 = vmatpush1.msra.mxu0 0.0
        %4200 = vmatprep.subr.mxu0 0.0
        %4201 = vmatpush1.msra.mxu0 0.0
        %4202 = vmatprep.subr.mxu0 0.0
        %4203 = vmatpush1.msra.mxu0 0.0
        %4204 = vmatprep.subr.mxu0 0.0
        %4205 = vmatpush1.msra.mxu0 0.0
        %4206 = vmatprep.subr.mxu0 0.0
        %4207 = vmatpush1.msra.mxu0 0.0
        %4208 = vmatprep.subr.mxu0 0.0
        %4209 = vmatpush1.msra.mxu0 0.0
        %4210 = vmatprep.subr.mxu0 0.0
        %4211 = vmatpush1.msra.mxu0 0.0
        %4212 = vmatprep.subr.mxu0 0.0
        %4213 = vmatpush1.msra.mxu0 0.0
        %4214 = vmatprep.subr.mxu0 0.0
        %4215 = vmatpush1.msra.mxu0 0.0
        %4216 = vmatprep.mubr.f32.mxu0 0.0
        %4217 = vmatmul.mubr.f32.gmra.mrb[0].mxu0 %v3432
        %v4218 = vpop.f32.mrb[0].mxu0
        %v4219 = vadd.f32 0.0, %v4218
        %v4220 = vpop.f32.mrb[0].mxu0
        %4221 = vdwg.mxu0
        %4222 = vmatprep.subr.mxu0 0.0
        %4223 = vmatpush1.msra.mxu0 %v4150
        %4224 = vmatprep.subr.mxu0 0.0
        %4225 = vmatpush1.msra.mxu0 %v4151
        %4226 = vmatprep.subr.mxu0 0.0
        %4227 = vmatpush1.msra.mxu0 0.0
        %4228 = vmatprep.subr.mxu0 0.0
        %4229 = vmatpush1.msra.mxu0 0.0
        %4230 = vmatprep.subr.mxu0 0.0
        %4231 = vmatpush1.msra.mxu0 0.0
        %4232 = vmatprep.subr.mxu0 0.0
        %4233 = vmatpush1.msra.mxu0 0.0
        %4234 = vmatprep.subr.mxu0 0.0
        %4235 = vmatpush1.msra.mxu0 0.0
        %4236 = vmatprep.subr.mxu0 0.0
        %4237 = vmatpush1.msra.mxu0 0.0
        %4238 = vmatprep.subr.mxu0 0.0
        %4239 = vmatpush1.msra.mxu0 0.0
        %4240 = vmatprep.subr.mxu0 0.0
        %4241 = vmatpush1.msra.mxu0 0.0
        %4242 = vmatprep.subr.mxu0 0.0
        %4243 = vmatpush1.msra.mxu0 0.0
        %4244 = vmatprep.subr.mxu0 0.0
        %4245 = vmatpush1.msra.mxu0 0.0
        %4246 = vmatprep.subr.mxu0 0.0
        %4247 = vmatpush1.msra.mxu0 0.0
        %4248 = vmatprep.subr.mxu0 0.0
        %4249 = vmatpush1.msra.mxu0 0.0
        %4250 = vmatprep.subr.mxu0 0.0
        %4251 = vmatpush1.msra.mxu0 0.0
        %4252 = vmatprep.subr.mxu0 0.0
        %4253 = vmatpush1.msra.mxu0 0.0
        %4254 = vmatprep.subr.mxu0 0.0
        %4255 = vmatpush1.msra.mxu0 0.0
        %4256 = vmatprep.subr.mxu0 0.0
        %4257 = vmatpush1.msra.mxu0 0.0
        %4258 = vmatprep.subr.mxu0 0.0
        %4259 = vmatpush1.msra.mxu0 0.0
        %4260 = vmatprep.subr.mxu0 0.0
        %4261 = vmatpush1.msra.mxu0 0.0
        %4262 = vmatprep.subr.mxu0 0.0
        %4263 = vmatpush1.msra.mxu0 0.0
        %4264 = vmatprep.subr.mxu0 0.0
        %4265 = vmatpush1.msra.mxu0 0.0
        %4266 = vmatprep.subr.mxu0 0.0
        %4267 = vmatpush1.msra.mxu0 0.0
        %4268 = vmatprep.subr.mxu0 0.0
        %4269 = vmatpush1.msra.mxu0 0.0
        %4270 = vmatprep.subr.mxu0 0.0
        %4271 = vmatpush1.msra.mxu0 0.0
        %4272 = vmatprep.subr.mxu0 0.0
        %4273 = vmatpush1.msra.mxu0 0.0
        %4274 = vmatprep.subr.mxu0 0.0
        %4275 = vmatpush1.msra.mxu0 0.0
        %4276 = vmatprep.subr.mxu0 0.0
        %4277 = vmatpush1.msra.mxu0 0.0
        %4278 = vmatprep.subr.mxu0 0.0
        %4279 = vmatpush1.msra.mxu0 0.0
        %4280 = vmatprep.subr.mxu0 0.0
        %4281 = vmatpush1.msra.mxu0 0.0
        %4282 = vmatprep.subr.mxu0 0.0
        %4283 = vmatpush1.msra.mxu0 0.0
        %4284 = vmatprep.subr.mxu0 0.0
        %4285 = vmatpush1.msra.mxu0 0.0
        %4286 = vmatprep.mubr.f32.mxu0 0.0
        %4287 = vmatmul.mubr.f32.gmra.mrb[0].mxu0 %v3505
        %v4288 = vpop.f32.mrb[0].mxu0
        %v4289 = vadd.f32 0.0, %v4288
        %v4290 = vpop.f32.mrb[0].mxu0
        %4291 = vdwg.mxu0
        %v4292 = vmax.f32 %v4219, %v4289
        %v4293 = vld [vmem:[%s4] sm:$0x1]
        %v4294 = vld [vmem:[%s3] sm:$0xff]
        %v4295 = vld [vmem:[%s3 + $0x8] sm:$0xff]
        %v4296 = vld [vmem:[%s3 + $0x10] sm:$0xff]
        %v4297 = vld [vmem:[%s3 + $0x18] sm:$0xff]
        %v4298 = vld [vmem:[%s3 + $0x20] sm:$0xff]
        %v4299 = vld [vmem:[%s3 + $0x28] sm:$0xff]
        %v4300 = vld [vmem:[%s3 + $0x30] sm:$0xff]
        %v4301 = vld [vmem:[%s3 + $0x38] sm:$0xff]
        %s4302 = scalar_lea.vmem %s3, 64
        %v4303 = vld [vmem:[%s4302] sm:$0xff]
        %v4304 = vld [vmem:[%s4302 + $0x8] sm:$0xff]
        %v4305 = vld [vmem:[%s4302 + $0x10] sm:$0xff]
        %v4306 = vld [vmem:[%s4302 + $0x18] sm:$0xff]
        %v4307 = vld [vmem:[%s4302 + $0x20] sm:$0xff]
        %v4308 = vld [vmem:[%s4302 + $0x28] sm:$0xff]
        %v4309 = vld [vmem:[%s4302 + $0x30] sm:$0xff]
        %v4310 = vld [vmem:[%s4302 + $0x38] sm:$0xff]
        %v4312 = vrot.slane %v3577, 1
        %vm4313 = vcmask 523264
        %v4314 = vsel %vm4313, %v4312, 0
        %4316 = vmatprep.subr.mxu0 0.0
        %4317 = vmatpush1.msra.mxu0 %v4303
        %4318 = vmatprep.subr.mxu0 0.0
        %4319 = vmatpush1.msra.mxu0 %v4304
        %4320 = vmatprep.subr.mxu0 0.0
        %4321 = vmatpush1.msra.mxu0 %v4305
        %4322 = vmatprep.subr.mxu0 0.0
        %4323 = vmatpush1.msra.mxu0 %v4306
        %4324 = vmatprep.subr.mxu0 0.0
        %4325 = vmatpush1.msra.mxu0 %v4307
        %4326 = vmatprep.subr.mxu0 0.0
        %4327 = vmatpush1.msra.mxu0 %v4308
        %4328 = vmatprep.subr.mxu0 0.0
        %4329 = vmatpush1.msra.mxu0 %v4309
        %4330 = vmatprep.subr.mxu0 0.0
        %4331 = vmatpush1.msra.mxu0 %v4310
        %4332 = vmatprep.subr.mxu0 0.0
        %4333 = vmatpush1.msra.mxu0 0.0
        %4334 = vmatprep.subr.mxu0 0.0
        %4335 = vmatpush1.msra.mxu0 0.0
        %4336 = vmatprep.subr.mxu0 0.0
        %4337 = vmatpush1.msra.mxu0 0.0
        %4338 = vmatprep.subr.mxu0 0.0
        %4339 = vmatpush1.msra.mxu0 0.0
        %4340 = vmatprep.subr.mxu0 0.0
        %4341 = vmatpush1.msra.mxu0 0.0
        %4342 = vmatprep.subr.mxu0 0.0
        %4343 = vmatpush1.msra.mxu0 0.0
        %4344 = vmatprep.subr.mxu0 0.0
        %4345 = vmatpush1.msra.mxu0 0.0
        %4346 = vmatprep.subr.mxu0 0.0
        %4347 = vmatpush1.msra.mxu0 0.0
        %4348 = vmatprep.subr.mxu0 0.0
        %4349 = vmatpush1.msra.mxu0 0.0
        %4350 = vmatprep.subr.mxu0 0.0
        %4351 = vmatpush1.msra.mxu0 0.0
        %4352 = vmatprep.subr.mxu0 0.0
        %4353 = vmatpush1.msra.mxu0 0.0
        %4354 = vmatprep.subr.mxu0 0.0
        %4355 = vmatpush1.msra.mxu0 0.0
        %4356 = vmatprep.subr.mxu0 0.0
        %4357 = vmatpush1.msra.mxu0 0.0
        %4358 = vmatprep.subr.mxu0 0.0
        %4359 = vmatpush1.msra.mxu0 0.0
        %4360 = vmatprep.subr.mxu0 0.0
        %4361 = vmatpush1.msra.mxu0 0.0
        %4362 = vmatprep.subr.mxu0 0.0
        %4363 = vmatpush1.msra.mxu0 0.0
        %4364 = vmatprep.subr.mxu0 0.0
        %4365 = vmatpush1.msra.mxu0 0.0
        %4366 = vmatprep.subr.mxu0 0.0
        %4367 = vmatpush1.msra.mxu0 0.0
        %4368 = vmatprep.subr.mxu0 0.0
        %4369 = vmatpush1.msra.mxu0 0.0
        %4370 = vmatprep.subr.mxu0 0.0
        %4371 = vmatpush1.msra.mxu0 0.0
        %4372 = vmatprep.subr.mxu0 0.0
        %4373 = vmatpush1.msra.mxu0 0.0
        %4374 = vmatprep.subr.mxu0 0.0
        %4375 = vmatpush1.msra.mxu0 0.0
        %4376 = vmatprep.subr.mxu0 0.0
        %4377 = vmatpush1.msra.mxu0 0.0
        %4378 = vmatprep.subr.mxu0 0.0
        %4379 = vmatpush1.msra.mxu0 0.0
        %4380 = vmatprep.mubr.f32.mxu0 0.0
        %4381 = vmatmul.mubr.f32.gmra.mrb[0].mxu0 %v4314
        %v4382 = vpop.f32.mrb[0].mxu0
        %v4383 = vadd.f32 0.0, %v4382
        %v4384 = vpop.f32.mrb[0].mxu0
        %4385 = vdwg.mxu0
        %v4386 = vsel %vm4313, %v3577, 0
        %4388 = vmatprep.subr.mxu0 0.0
        %4389 = vmatpush1.msra.mxu0 %v4294
        %4390 = vmatprep.subr.mxu0 0.0
        %4391 = vmatpush1.msra.mxu0 %v4295
        %4392 = vmatprep.subr.mxu0 0.0
        %4393 = vmatpush1.msra.mxu0 %v4296
        %4394 = vmatprep.subr.mxu0 0.0
        %4395 = vmatpush1.msra.mxu0 %v4297
        %4396 = vmatprep.subr.mxu0 0.0
        %4397 = vmatpush1.msra.mxu0 %v4298
        %4398 = vmatprep.subr.mxu0 0.0
        %4399 = vmatpush1.msra.mxu0 %v4299
        %4400 = vmatprep.subr.mxu0 0.0
        %4401 = vmatpush1.msra.mxu0 %v4300
        %4402 = vmatprep.subr.mxu0 0.0
        %4403 = vmatpush1.msra.mxu0 %v4301
        %4404 = vmatprep.subr.mxu0 0.0
        %4405 = vmatpush1.msra.mxu0 0.0
        %4406 = vmatprep.subr.mxu0 0.0
        %4407 = vmatpush1.msra.mxu0 0.0
        %4408 = vmatprep.subr.mxu0 0.0
        %4409 = vmatpush1.msra.mxu0 0.0
        %4410 = vmatprep.subr.mxu0 0.0
        %4411 = vmatpush1.msra.mxu0 0.0
        %4412 = vmatprep.subr.mxu0 0.0
        %4413 = vmatpush1.msra.mxu0 0.0
        %4414 = vmatprep.subr.mxu0 0.0
        %4415 = vmatpush1.msra.mxu0 0.0
        %4416 = vmatprep.subr.mxu0 0.0
        %4417 = vmatpush1.msra.mxu0 0.0
        %4418 = vmatprep.subr.mxu0 0.0
        %4419 = vmatpush1.msra.mxu0 0.0
        %4420 = vmatprep.subr.mxu0 0.0
        %4421 = vmatpush1.msra.mxu0 0.0
        %4422 = vmatprep.subr.mxu0 0.0
        %4423 = vmatpush1.msra.mxu0 0.0
        %4424 = vmatprep.subr.mxu0 0.0
        %4425 = vmatpush1.msra.mxu0 0.0
        %4426 = vmatprep.subr.mxu0 0.0
        %4427 = vmatpush1.msra.mxu0 0.0
        %4428 = vmatprep.subr.mxu0 0.0
        %4429 = vmatpush1.msra.mxu0 0.0
        %4430 = vmatprep.subr.mxu0 0.0
        %4431 = vmatpush1.msra.mxu0 0.0
        %4432 = vmatprep.subr.mxu0 0.0
        %4433 = vmatpush1.msra.mxu0 0.0
        %4434 = vmatprep.subr.mxu0 0.0
        %4435 = vmatpush1.msra.mxu0 0.0
        %4436 = vmatprep.subr.mxu0 0.0
        %4437 = vmatpush1.msra.mxu0 0.0
        %4438 = vmatprep.subr.mxu0 0.0
        %4439 = vmatpush1.msra.mxu0 0.0
        %4440 = vmatprep.subr.mxu0 0.0
        %4441 = vmatpush1.msra.mxu0 0.0
        %4442 = vmatprep.subr.mxu0 0.0
        %4443 = vmatpush1.msra.mxu0 0.0
        %4444 = vmatprep.subr.mxu0 0.0
        %4445 = vmatpush1.msra.mxu0 0.0
        %4446 = vmatprep.subr.mxu0 0.0
        %4447 = vmatpush1.msra.mxu0 0.0
        %4448 = vmatprep.subr.mxu0 0.0
        %4449 = vmatpush1.msra.mxu0 0.0
        %4450 = vmatprep.subr.mxu0 0.0
        %4451 = vmatpush1.msra.mxu0 0.0
        %4452 = vmatprep.mubr.f32.mxu0 0.0
        %4453 = vmatmul.mubr.f32.gmra.mrb[0].mxu0 %v4386
        %v4454 = vpop.f32.mrb[0].mxu0
        %v4455 = vadd.f32 %v4383, %v4454
        %v4456 = vpop.f32.mrb[0].mxu0
        %4457 = vdwg.mxu0
        %s4458 = scalar_lea.vmem %s3, 128
        %v4459 = vld [vmem:[%s4458] sm:$0xff]
        %v4460 = vld [vmem:[%s4458 + $0x8] sm:$0xff]
        %v4461 = vld [vmem:[%s4458 + $0x10] sm:$0xff]
        %v4462 = vld [vmem:[%s4458 + $0x18] sm:$0xff]
        %v4463 = vld [vmem:[%s4458 + $0x20] sm:$0xff]
        %v4464 = vld [vmem:[%s4458 + $0x28] sm:$0xff]
        %v4465 = vld [vmem:[%s4458 + $0x30] sm:$0xff]
        %v4466 = vld [vmem:[%s4458 + $0x38] sm:$0xff]
        %v4467 = vrot.slane %v3577, 2
        %v4468 = vsel %vm4313, %v4467, 0
        %4470 = vmatprep.subr.mxu0 0.0
        %4471 = vmatpush1.msra.mxu0 %v4459
        %4472 = vmatprep.subr.mxu0 0.0
        %4473 = vmatpush1.msra.mxu0 %v4460
        %4474 = vmatprep.subr.mxu0 0.0
        %4475 = vmatpush1.msra.mxu0 %v4461
        %4476 = vmatprep.subr.mxu0 0.0
        %4477 = vmatpush1.msra.mxu0 %v4462
        %4478 = vmatprep.subr.mxu0 0.0
        %4479 = vmatpush1.msra.mxu0 %v4463
        %4480 = vmatprep.subr.mxu0 0.0
        %4481 = vmatpush1.msra.mxu0 %v4464
        %4482 = vmatprep.subr.mxu0 0.0
        %4483 = vmatpush1.msra.mxu0 %v4465
        %4484 = vmatprep.subr.mxu0 0.0
        %4485 = vmatpush1.msra.mxu0 %v4466
        %4486 = vmatprep.subr.mxu0 0.0
        %4487 = vmatpush1.msra.mxu0 0.0
        %4488 = vmatprep.subr.mxu0 0.0
        %4489 = vmatpush1.msra.mxu0 0.0
        %4490 = vmatprep.subr.mxu0 0.0
        %4491 = vmatpush1.msra.mxu0 0.0
        %4492 = vmatprep.subr.mxu0 0.0
        %4493 = vmatpush1.msra.mxu0 0.0
        %4494 = vmatprep.subr.mxu0 0.0
        %4495 = vmatpush1.msra.mxu0 0.0
        %4496 = vmatprep.subr.mxu0 0.0
        %4497 = vmatpush1.msra.mxu0 0.0
        %4498 = vmatprep.subr.mxu0 0.0
        %4499 = vmatpush1.msra.mxu0 0.0
        %4500 = vmatprep.subr.mxu0 0.0
        %4501 = vmatpush1.msra.mxu0 0.0
        %4502 = vmatprep.subr.mxu0 0.0
        %4503 = vmatpush1.msra.mxu0 0.0
        %4504 = vmatprep.subr.mxu0 0.0
        %4505 = vmatpush1.msra.mxu0 0.0
        %4506 = vmatprep.subr.mxu0 0.0
        %4507 = vmatpush1.msra.mxu0 0.0
        %4508 = vmatprep.subr.mxu0 0.0
        %4509 = vmatpush1.msra.mxu0 0.0
        %4510 = vmatprep.subr.mxu0 0.0
        %4511 = vmatpush1.msra.mxu0 0.0
        %4512 = vmatprep.subr.mxu0 0.0
        %4513 = vmatpush1.msra.mxu0 0.0
        %4514 = vmatprep.subr.mxu0 0.0
        %4515 = vmatpush1.msra.mxu0 0.0
        %4516 = vmatprep.subr.mxu0 0.0
        %4517 = vmatpush1.msra.mxu0 0.0
        %4518 = vmatprep.subr.mxu0 0.0
        %4519 = vmatpush1.msra.mxu0 0.0
        %4520 = vmatprep.subr.mxu0 0.0
        %4521 = vmatpush1.msra.mxu0 0.0
        %4522 = vmatprep.subr.mxu0 0.0
        %4523 = vmatpush1.msra.mxu0 0.0
        %4524 = vmatprep.subr.mxu0 0.0
        %4525 = vmatpush1.msra.mxu0 0.0
        %4526 = vmatprep.subr.mxu0 0.0
        %4527 = vmatpush1.msra.mxu0 0.0
        %4528 = vmatprep.subr.mxu0 0.0
        %4529 = vmatpush1.msra.mxu0 0.0
        %4530 = vmatprep.subr.mxu0 0.0
        %4531 = vmatpush1.msra.mxu0 0.0
        %4532 = vmatprep.subr.mxu0 0.0
        %4533 = vmatpush1.msra.mxu0 0.0
        %4534 = vmatprep.mubr.f32.mxu0 0.0
        %4535 = vmatmul.mubr.f32.gmra.mrb[0].mxu0 %v4468
        %v4536 = vpop.f32.mrb[0].mxu0
        %v4537 = vadd.f32 0.0, %v4536
        %v4538 = vpop.f32.mrb[0].mxu0
        %4539 = vdwg.mxu0
        %v4540 = vadd.f32 %v4455, %v4537
        %s4541 = scalar_lea.vmem %s3, 192
        %v4542 = vld [vmem:[%s4541] sm:$0xff]
        %v4543 = vld [vmem:[%s4541 + $0x8] sm:$0xff]
        %v4544 = vld [vmem:[%s4541 + $0x10] sm:$0xff]
        %v4545 = vld [vmem:[%s4541 + $0x18] sm:$0xff]
        %v4546 = vld [vmem:[%s4541 + $0x20] sm:$0xff]
        %v4547 = vld [vmem:[%s4541 + $0x28] sm:$0xff]
        %v4548 = vld [vmem:[%s4541 + $0x30] sm:$0xff]
        %v4549 = vld [vmem:[%s4541 + $0x38] sm:$0xff]
        %v4551 = vsel %vm4313, %v3720, 0
        %4553 = vmatprep.subr.mxu0 0.0
        %4554 = vmatpush1.msra.mxu0 %v4542
        %4555 = vmatprep.subr.mxu0 0.0
        %4556 = vmatpush1.msra.mxu0 %v4543
        %4557 = vmatprep.subr.mxu0 0.0
        %4558 = vmatpush1.msra.mxu0 %v4544
        %4559 = vmatprep.subr.mxu0 0.0
        %4560 = vmatpush1.msra.mxu0 %v4545
        %4561 = vmatprep.subr.mxu0 0.0
        %4562 = vmatpush1.msra.mxu0 %v4546
        %4563 = vmatprep.subr.mxu0 0.0
        %4564 = vmatpush1.msra.mxu0 %v4547
        %4565 = vmatprep.subr.mxu0 0.0
        %4566 = vmatpush1.msra.mxu0 %v4548
        %4567 = vmatprep.subr.mxu0 0.0
        %4568 = vmatpush1.msra.mxu0 %v4549
        %4569 = vmatprep.subr.mxu0 0.0
        %4570 = vmatpush1.msra.mxu0 0.0
        %4571 = vmatprep.subr.mxu0 0.0
        %4572 = vmatpush1.msra.mxu0 0.0
        %4573 = vmatprep.subr.mxu0 0.0
        %4574 = vmatpush1.msra.mxu0 0.0
        %4575 = vmatprep.subr.mxu0 0.0
        %4576 = vmatpush1.msra.mxu0 0.0
        %4577 = vmatprep.subr.mxu0 0.0
        %4578 = vmatpush1.msra.mxu0 0.0
        %4579 = vmatprep.subr.mxu0 0.0
        %4580 = vmatpush1.msra.mxu0 0.0
        %4581 = vmatprep.subr.mxu0 0.0
        %4582 = vmatpush1.msra.mxu0 0.0
        %4583 = vmatprep.subr.mxu0 0.0
        %4584 = vmatpush1.msra.mxu0 0.0
        %4585 = vmatprep.subr.mxu0 0.0
        %4586 = vmatpush1.msra.mxu0 0.0
        %4587 = vmatprep.subr.mxu0 0.0
        %4588 = vmatpush1.msra.mxu0 0.0
        %4589 = vmatprep.subr.mxu0 0.0
        %4590 = vmatpush1.msra.mxu0 0.0
        %4591 = vmatprep.subr.mxu0 0.0
        %4592 = vmatpush1.msra.mxu0 0.0
        %4593 = vmatprep.subr.mxu0 0.0
        %4594 = vmatpush1.msra.mxu0 0.0
        %4595 = vmatprep.subr.mxu0 0.0
        %4596 = vmatpush1.msra.mxu0 0.0
        %4597 = vmatprep.subr.mxu0 0.0
        %4598 = vmatpush1.msra.mxu0 0.0
        %4599 = vmatprep.subr.mxu0 0.0
        %4600 = vmatpush1.msra.mxu0 0.0
        %4601 = vmatprep.subr.mxu0 0.0
        %4602 = vmatpush1.msra.mxu0 0.0
        %4603 = vmatprep.subr.mxu0 0.0
        %4604 = vmatpush1.msra.mxu0 0.0
        %4605 = vmatprep.subr.mxu0 0.0
        %4606 = vmatpush1.msra.mxu0 0.0
        %4607 = vmatprep.subr.mxu0 0.0
        %4608 = vmatpush1.msra.mxu0 0.0
        %4609 = vmatprep.subr.mxu0 0.0
        %4610 = vmatpush1.msra.mxu0 0.0
        %4611 = vmatprep.subr.mxu0 0.0
        %4612 = vmatpush1.msra.mxu0 0.0
        %4613 = vmatprep.subr.mxu0 0.0
        %4614 = vmatpush1.msra.mxu0 0.0
        %4615 = vmatprep.subr.mxu0 0.0
        %4616 = vmatpush1.msra.mxu0 0.0
        %4617 = vmatprep.mubr.f32.mxu0 0.0
        %4618 = vmatmul.mubr.f32.gmra.mrb[0].mxu0 %v4551
        %v4619 = vpop.f32.mrb[0].mxu0
        %v4620 = vadd.f32 0.0, %v4619
        %v4621 = vpop.f32.mrb[0].mxu0
        %4622 = vdwg.mxu0
        %v4623 = vadd.f32 %v4540, %v4620
        %s4624 = scalar_lea.vmem %s3, 256
        %v4625 = vld [vmem:[%s4624] sm:$0xff]
        %v4626 = vld [vmem:[%s4624 + $0x8] sm:$0xff]
        %v4627 = vld [vmem:[%s4624 + $0x10] sm:$0xff]
        %v4628 = vld [vmem:[%s4624 + $0x18] sm:$0xff]
        %v4629 = vld [vmem:[%s4624 + $0x20] sm:$0xff]
        %v4630 = vld [vmem:[%s4624 + $0x28] sm:$0xff]
        %v4631 = vld [vmem:[%s4624 + $0x30] sm:$0xff]
        %v4632 = vld [vmem:[%s4624 + $0x38] sm:$0xff]
        %v4633 = vrot.slane %v3720, 1
        %v4634 = vsel %vm4313, %v4633, 0
        %4636 = vmatprep.subr.mxu0 0.0
        %4637 = vmatpush1.msra.mxu0 %v4625
        %4638 = vmatprep.subr.mxu0 0.0
        %4639 = vmatpush1.msra.mxu0 %v4626
        %4640 = vmatprep.subr.mxu0 0.0
        %4641 = vmatpush1.msra.mxu0 %v4627
        %4642 = vmatprep.subr.mxu0 0.0
        %4643 = vmatpush1.msra.mxu0 %v4628
        %4644 = vmatprep.subr.mxu0 0.0
        %4645 = vmatpush1.msra.mxu0 %v4629
        %4646 = vmatprep.subr.mxu0 0.0
        %4647 = vmatpush1.msra.mxu0 %v4630
        %4648 = vmatprep.subr.mxu0 0.0
        %4649 = vmatpush1.msra.mxu0 %v4631
        %4650 = vmatprep.subr.mxu0 0.0
        %4651 = vmatpush1.msra.mxu0 %v4632
        %4652 = vmatprep.subr.mxu0 0.0
        %4653 = vmatpush1.msra.mxu0 0.0
        %4654 = vmatprep.subr.mxu0 0.0
        %4655 = vmatpush1.msra.mxu0 0.0
        %4656 = vmatprep.subr.mxu0 0.0
        %4657 = vmatpush1.msra.mxu0 0.0
        %4658 = vmatprep.subr.mxu0 0.0
        %4659 = vmatpush1.msra.mxu0 0.0
        %4660 = vmatprep.subr.mxu0 0.0
        %4661 = vmatpush1.msra.mxu0 0.0
        %4662 = vmatprep.subr.mxu0 0.0
        %4663 = vmatpush1.msra.mxu0 0.0
        %4664 = vmatprep.subr.mxu0 0.0
        %4665 = vmatpush1.msra.mxu0 0.0
        %4666 = vmatprep.subr.mxu0 0.0
        %4667 = vmatpush1.msra.mxu0 0.0
        %4668 = vmatprep.subr.mxu0 0.0
        %4669 = vmatpush1.msra.mxu0 0.0
        %4670 = vmatprep.subr.mxu0 0.0
        %4671 = vmatpush1.msra.mxu0 0.0
        %4672 = vmatprep.subr.mxu0 0.0
        %4673 = vmatpush1.msra.mxu0 0.0
        %4674 = vmatprep.subr.mxu0 0.0
        %4675 = vmatpush1.msra.mxu0 0.0
        %4676 = vmatprep.subr.mxu0 0.0
        %4677 = vmatpush1.msra.mxu0 0.0
        %4678 = vmatprep.subr.mxu0 0.0
        %4679 = vmatpush1.msra.mxu0 0.0
        %4680 = vmatprep.subr.mxu0 0.0
        %4681 = vmatpush1.msra.mxu0 0.0
        %4682 = vmatprep.subr.mxu0 0.0
        %4683 = vmatpush1.msra.mxu0 0.0
        %4684 = vmatprep.subr.mxu0 0.0
        %4685 = vmatpush1.msra.mxu0 0.0
        %4686 = vmatprep.subr.mxu0 0.0
        %4687 = vmatpush1.msra.mxu0 0.0
        %4688 = vmatprep.subr.mxu0 0.0
        %4689 = vmatpush1.msra.mxu0 0.0
        %4690 = vmatprep.subr.mxu0 0.0
        %4691 = vmatpush1.msra.mxu0 0.0
        %4692 = vmatprep.subr.mxu0 0.0
        %4693 = vmatpush1.msra.mxu0 0.0
        %4694 = vmatprep.subr.mxu0 0.0
        %4695 = vmatpush1.msra.mxu0 0.0
        %4696 = vmatprep.subr.mxu0 0.0
        %4697 = vmatpush1.msra.mxu0 0.0
        %4698 = vmatprep.subr.mxu0 0.0
        %4699 = vmatpush1.msra.mxu0 0.0
        %4700 = vmatprep.mubr.f32.mxu0 0.0
        %4701 = vmatmul.mubr.f32.gmra.mrb[0].mxu0 %v4634
        %v4702 = vpop.f32.mrb[0].mxu0
        %v4703 = vadd.f32 0.0, %v4702
        %v4704 = vpop.f32.mrb[0].mxu0
        %4705 = vdwg.mxu0
        %v4706 = vadd.f32 %v4623, %v4703
        %s4707 = scalar_lea.vmem %s3, 320
        %v4708 = vld [vmem:[%s4707] sm:$0xff]
        %v4709 = vld [vmem:[%s4707 + $0x8] sm:$0xff]
        %v4710 = vld [vmem:[%s4707 + $0x10] sm:$0xff]
        %v4711 = vld [vmem:[%s4707 + $0x18] sm:$0xff]
        %v4712 = vld [vmem:[%s4707 + $0x20] sm:$0xff]
        %v4713 = vld [vmem:[%s4707 + $0x28] sm:$0xff]
        %v4714 = vld [vmem:[%s4707 + $0x30] sm:$0xff]
        %v4715 = vld [vmem:[%s4707 + $0x38] sm:$0xff]
        %v4716 = vrot.slane %v3720, 2
        %v4717 = vsel %vm4313, %v4716, 0
        %4719 = vmatprep.subr.mxu0 0.0
        %4720 = vmatpush1.msra.mxu0 %v4708
        %4721 = vmatprep.subr.mxu0 0.0
        %4722 = vmatpush1.msra.mxu0 %v4709
        %4723 = vmatprep.subr.mxu0 0.0
        %4724 = vmatpush1.msra.mxu0 %v4710
        %4725 = vmatprep.subr.mxu0 0.0
        %4726 = vmatpush1.msra.mxu0 %v4711
        %4727 = vmatprep.subr.mxu0 0.0
        %4728 = vmatpush1.msra.mxu0 %v4712
        %4729 = vmatprep.subr.mxu0 0.0
        %4730 = vmatpush1.msra.mxu0 %v4713
        %4731 = vmatprep.subr.mxu0 0.0
        %4732 = vmatpush1.msra.mxu0 %v4714
        %4733 = vmatprep.subr.mxu0 0.0
        %4734 = vmatpush1.msra.mxu0 %v4715
        %4735 = vmatprep.subr.mxu0 0.0
        %4736 = vmatpush1.msra.mxu0 0.0
        %4737 = vmatprep.subr.mxu0 0.0
        %4738 = vmatpush1.msra.mxu0 0.0
        %4739 = vmatprep.subr.mxu0 0.0
        %4740 = vmatpush1.msra.mxu0 0.0
        %4741 = vmatprep.subr.mxu0 0.0
        %4742 = vmatpush1.msra.mxu0 0.0
        %4743 = vmatprep.subr.mxu0 0.0
        %4744 = vmatpush1.msra.mxu0 0.0
        %4745 = vmatprep.subr.mxu0 0.0
        %4746 = vmatpush1.msra.mxu0 0.0
        %4747 = vmatprep.subr.mxu0 0.0
        %4748 = vmatpush1.msra.mxu0 0.0
        %4749 = vmatprep.subr.mxu0 0.0
        %4750 = vmatpush1.msra.mxu0 0.0
        %4751 = vmatprep.subr.mxu0 0.0
        %4752 = vmatpush1.msra.mxu0 0.0
        %4753 = vmatprep.subr.mxu0 0.0
        %4754 = vmatpush1.msra.mxu0 0.0
        %4755 = vmatprep.subr.mxu0 0.0
        %4756 = vmatpush1.msra.mxu0 0.0
        %4757 = vmatprep.subr.mxu0 0.0
        %4758 = vmatpush1.msra.mxu0 0.0
        %4759 = vmatprep.subr.mxu0 0.0
        %4760 = vmatpush1.msra.mxu0 0.0
        %4761 = vmatprep.subr.mxu0 0.0
        %4762 = vmatpush1.msra.mxu0 0.0
        %4763 = vmatprep.subr.mxu0 0.0
        %4764 = vmatpush1.msra.mxu0 0.0
        %4765 = vmatprep.subr.mxu0 0.0
        %4766 = vmatpush1.msra.mxu0 0.0
        %4767 = vmatprep.subr.mxu0 0.0
        %4768 = vmatpush1.msra.mxu0 0.0
        %4769 = vmatprep.subr.mxu0 0.0
        %4770 = vmatpush1.msra.mxu0 0.0
        %4771 = vmatprep.subr.mxu0 0.0
        %4772 = vmatpush1.msra.mxu0 0.0
        %4773 = vmatprep.subr.mxu0 0.0
        %4774 = vmatpush1.msra.mxu0 0.0
        %4775 = vmatprep.subr.mxu0 0.0
        %4776 = vmatpush1.msra.mxu0 0.0
        %4777 = vmatprep.subr.mxu0 0.0
        %4778 = vmatpush1.msra.mxu0 0.0
        %4779 = vmatprep.subr.mxu0 0.0
        %4780 = vmatpush1.msra.mxu0 0.0
        %4781 = vmatprep.subr.mxu0 0.0
        %4782 = vmatpush1.msra.mxu0 0.0
        %4783 = vmatprep.mubr.f32.mxu0 0.0
        %4784 = vmatmul.mubr.f32.gmra.mrb[0].mxu0 %v4717
        %v4785 = vpop.f32.mrb[0].mxu0
        %v4786 = vadd.f32 0.0, %v4785
        %v4787 = vpop.f32.mrb[0].mxu0
        %4788 = vdwg.mxu0
        %v4789 = vadd.f32 %v4706, %v4786
        %s4790 = scalar_lea.vmem %s3, 384
        %v4791 = vld [vmem:[%s4790] sm:$0xff]
        %v4792 = vld [vmem:[%s4790 + $0x8] sm:$0xff]
        %v4793 = vld [vmem:[%s4790 + $0x10] sm:$0xff]
        %v4794 = vld [vmem:[%s4790 + $0x18] sm:$0xff]
        %v4795 = vld [vmem:[%s4790 + $0x20] sm:$0xff]
        %v4796 = vld [vmem:[%s4790 + $0x28] sm:$0xff]
        %v4797 = vld [vmem:[%s4790 + $0x30] sm:$0xff]
        %v4798 = vld [vmem:[%s4790 + $0x38] sm:$0xff]
        %v4800 = vsel %vm4313, %v3863, 0
        %4802 = vmatprep.subr.mxu0 0.0
        %4803 = vmatpush1.msra.mxu0 %v4791
        %4804 = vmatprep.subr.mxu0 0.0
        %4805 = vmatpush1.msra.mxu0 %v4792
        %4806 = vmatprep.subr.mxu0 0.0
        %4807 = vmatpush1.msra.mxu0 %v4793
        %4808 = vmatprep.subr.mxu0 0.0
        %4809 = vmatpush1.msra.mxu0 %v4794
        %4810 = vmatprep.subr.mxu0 0.0
        %4811 = vmatpush1.msra.mxu0 %v4795
        %4812 = vmatprep.subr.mxu0 0.0
        %4813 = vmatpush1.msra.mxu0 %v4796
        %4814 = vmatprep.subr.mxu0 0.0
        %4815 = vmatpush1.msra.mxu0 %v4797
        %4816 = vmatprep.subr.mxu0 0.0
        %4817 = vmatpush1.msra.mxu0 %v4798
        %4818 = vmatprep.subr.mxu0 0.0
        %4819 = vmatpush1.msra.mxu0 0.0
        %4820 = vmatprep.subr.mxu0 0.0
        %4821 = vmatpush1.msra.mxu0 0.0
        %4822 = vmatprep.subr.mxu0 0.0
        %4823 = vmatpush1.msra.mxu0 0.0
        %4824 = vmatprep.subr.mxu0 0.0
        %4825 = vmatpush1.msra.mxu0 0.0
        %4826 = vmatprep.subr.mxu0 0.0
        %4827 = vmatpush1.msra.mxu0 0.0
        %4828 = vmatprep.subr.mxu0 0.0
        %4829 = vmatpush1.msra.mxu0 0.0
        %4830 = vmatprep.subr.mxu0 0.0
        %4831 = vmatpush1.msra.mxu0 0.0
        %4832 = vmatprep.subr.mxu0 0.0
        %4833 = vmatpush1.msra.mxu0 0.0
        %4834 = vmatprep.subr.mxu0 0.0
        %4835 = vmatpush1.msra.mxu0 0.0
        %4836 = vmatprep.subr.mxu0 0.0
        %4837 = vmatpush1.msra.mxu0 0.0
        %4838 = vmatprep.subr.mxu0 0.0
        %4839 = vmatpush1.msra.mxu0 0.0
        %4840 = vmatprep.subr.mxu0 0.0
        %4841 = vmatpush1.msra.mxu0 0.0
        %4842 = vmatprep.subr.mxu0 0.0
        %4843 = vmatpush1.msra.mxu0 0.0
        %4844 = vmatprep.subr.mxu0 0.0
        %4845 = vmatpush1.msra.mxu0 0.0
        %4846 = vmatprep.subr.mxu0 0.0
        %4847 = vmatpush1.msra.mxu0 0.0
        %4848 = vmatprep.subr.mxu0 0.0
        %4849 = vmatpush1.msra.mxu0 0.0
        %4850 = vmatprep.subr.mxu0 0.0
        %4851 = vmatpush1.msra.mxu0 0.0
        %4852 = vmatprep.subr.mxu0 0.0
        %4853 = vmatpush1.msra.mxu0 0.0
        %4854 = vmatprep.subr.mxu0 0.0
        %4855 = vmatpush1.msra.mxu0 0.0
        %4856 = vmatprep.subr.mxu0 0.0
        %4857 = vmatpush1.msra.mxu0 0.0
        %4858 = vmatprep.subr.mxu0 0.0
        %4859 = vmatpush1.msra.mxu0 0.0
        %4860 = vmatprep.subr.mxu0 0.0
        %4861 = vmatpush1.msra.mxu0 0.0
        %4862 = vmatprep.subr.mxu0 0.0
        %4863 = vmatpush1.msra.mxu0 0.0
        %4864 = vmatprep.subr.mxu0 0.0
        %4865 = vmatpush1.msra.mxu0 0.0
        %4866 = vmatprep.mubr.f32.mxu0 0.0
        %4867 = vmatmul.mubr.f32.gmra.mrb[0].mxu0 %v4800
        %v4868 = vpop.f32.mrb[0].mxu0
        %v4869 = vadd.f32 0.0, %v4868
        %v4870 = vpop.f32.mrb[0].mxu0
        %4871 = vdwg.mxu0
        %v4872 = vadd.f32 %v4789, %v4869
        %s4873 = scalar_lea.vmem %s3, 448
        %v4874 = vld [vmem:[%s4873] sm:$0xff]
        %v4875 = vld [vmem:[%s4873 + $0x8] sm:$0xff]
        %v4876 = vld [vmem:[%s4873 + $0x10] sm:$0xff]
        %v4877 = vld [vmem:[%s4873 + $0x18] sm:$0xff]
        %v4878 = vld [vmem:[%s4873 + $0x20] sm:$0xff]
        %v4879 = vld [vmem:[%s4873 + $0x28] sm:$0xff]
        %v4880 = vld [vmem:[%s4873 + $0x30] sm:$0xff]
        %v4881 = vld [vmem:[%s4873 + $0x38] sm:$0xff]
        %v4882 = vrot.slane %v3863, 1
        %v4883 = vsel %vm4313, %v4882, 0
        %4885 = vmatprep.subr.mxu0 0.0
        %4886 = vmatpush1.msra.mxu0 %v4874
        %4887 = vmatprep.subr.mxu0 0.0
        %4888 = vmatpush1.msra.mxu0 %v4875
        %4889 = vmatprep.subr.mxu0 0.0
        %4890 = vmatpush1.msra.mxu0 %v4876
        %4891 = vmatprep.subr.mxu0 0.0
        %4892 = vmatpush1.msra.mxu0 %v4877
        %4893 = vmatprep.subr.mxu0 0.0
        %4894 = vmatpush1.msra.mxu0 %v4878
        %4895 = vmatprep.subr.mxu0 0.0
        %4896 = vmatpush1.msra.mxu0 %v4879
        %4897 = vmatprep.subr.mxu0 0.0
        %4898 = vmatpush1.msra.mxu0 %v4880
        %4899 = vmatprep.subr.mxu0 0.0
        %4900 = vmatpush1.msra.mxu0 %v4881
        %4901 = vmatprep.subr.mxu0 0.0
        %4902 = vmatpush1.msra.mxu0 0.0
        %4903 = vmatprep.subr.mxu0 0.0
        %4904 = vmatpush1.msra.mxu0 0.0
        %4905 = vmatprep.subr.mxu0 0.0
        %4906 = vmatpush1.msra.mxu0 0.0
        %4907 = vmatprep.subr.mxu0 0.0
        %4908 = vmatpush1.msra.mxu0 0.0
        %4909 = vmatprep.subr.mxu0 0.0
        %4910 = vmatpush1.msra.mxu0 0.0
        %4911 = vmatprep.subr.mxu0 0.0
        %4912 = vmatpush1.msra.mxu0 0.0
        %4913 = vmatprep.subr.mxu0 0.0
        %4914 = vmatpush1.msra.mxu0 0.0
        %4915 = vmatprep.subr.mxu0 0.0
        %4916 = vmatpush1.msra.mxu0 0.0
        %4917 = vmatprep.subr.mxu0 0.0
        %4918 = vmatpush1.msra.mxu0 0.0
        %4919 = vmatprep.subr.mxu0 0.0
        %4920 = vmatpush1.msra.mxu0 0.0
        %4921 = vmatprep.subr.mxu0 0.0
        %4922 = vmatpush1.msra.mxu0 0.0
        %4923 = vmatprep.subr.mxu0 0.0
        %4924 = vmatpush1.msra.mxu0 0.0
        %4925 = vmatprep.subr.mxu0 0.0
        %4926 = vmatpush1.msra.mxu0 0.0
        %4927 = vmatprep.subr.mxu0 0.0
        %4928 = vmatpush1.msra.mxu0 0.0
        %4929 = vmatprep.subr.mxu0 0.0
        %4930 = vmatpush1.msra.mxu0 0.0
        %4931 = vmatprep.subr.mxu0 0.0
        %4932 = vmatpush1.msra.mxu0 0.0
        %4933 = vmatprep.subr.mxu0 0.0
        %4934 = vmatpush1.msra.mxu0 0.0
        %4935 = vmatprep.subr.mxu0 0.0
        %4936 = vmatpush1.msra.mxu0 0.0
        %4937 = vmatprep.subr.mxu0 0.0
        %4938 = vmatpush1.msra.mxu0 0.0
        %4939 = vmatprep.subr.mxu0 0.0
        %4940 = vmatpush1.msra.mxu0 0.0
        %4941 = vmatprep.subr.mxu0 0.0
        %4942 = vmatpush1.msra.mxu0 0.0
        %4943 = vmatprep.subr.mxu0 0.0
        %4944 = vmatpush1.msra.mxu0 0.0
        %4945 = vmatprep.subr.mxu0 0.0
        %4946 = vmatpush1.msra.mxu0 0.0
        %4947 = vmatprep.subr.mxu0 0.0
        %4948 = vmatpush1.msra.mxu0 0.0
        %4949 = vmatprep.mubr.f32.mxu0 0.0
        %4950 = vmatmul.mubr.f32.gmra.mrb[0].mxu0 %v4883
        %v4951 = vpop.f32.mrb[0].mxu0
        %v4952 = vadd.f32 0.0, %v4951
        %v4953 = vpop.f32.mrb[0].mxu0
        %4954 = vdwg.mxu0
        %v4955 = vadd.f32 %v4872, %v4952
        %s4956 = scalar_lea.vmem %s3, 512
        %v4957 = vld [vmem:[%s4956] sm:$0xff]
        %v4958 = vld [vmem:[%s4956 + $0x8] sm:$0xff]
        %v4959 = vld [vmem:[%s4956 + $0x10] sm:$0xff]
        %v4960 = vld [vmem:[%s4956 + $0x18] sm:$0xff]
        %v4961 = vld [vmem:[%s4956 + $0x20] sm:$0xff]
        %v4962 = vld [vmem:[%s4956 + $0x28] sm:$0xff]
        %v4963 = vld [vmem:[%s4956 + $0x30] sm:$0xff]
        %v4964 = vld [vmem:[%s4956 + $0x38] sm:$0xff]
        %v4965 = vrot.slane %v3863, 2
        %v4966 = vsel %vm4313, %v4965, 0
        %4968 = vmatprep.subr.mxu0 0.0
        %4969 = vmatpush1.msra.mxu0 %v4957
        %4970 = vmatprep.subr.mxu0 0.0
        %4971 = vmatpush1.msra.mxu0 %v4958
        %4972 = vmatprep.subr.mxu0 0.0
        %4973 = vmatpush1.msra.mxu0 %v4959
        %4974 = vmatprep.subr.mxu0 0.0
        %4975 = vmatpush1.msra.mxu0 %v4960
        %4976 = vmatprep.subr.mxu0 0.0
        %4977 = vmatpush1.msra.mxu0 %v4961
        %4978 = vmatprep.subr.mxu0 0.0
        %4979 = vmatpush1.msra.mxu0 %v4962
        %4980 = vmatprep.subr.mxu0 0.0
        %4981 = vmatpush1.msra.mxu0 %v4963
        %4982 = vmatprep.subr.mxu0 0.0
        %4983 = vmatpush1.msra.mxu0 %v4964
        %4984 = vmatprep.subr.mxu0 0.0
        %4985 = vmatpush1.msra.mxu0 0.0
        %4986 = vmatprep.subr.mxu0 0.0
        %4987 = vmatpush1.msra.mxu0 0.0
        %4988 = vmatprep.subr.mxu0 0.0
        %4989 = vmatpush1.msra.mxu0 0.0
        %4990 = vmatprep.subr.mxu0 0.0
        %4991 = vmatpush1.msra.mxu0 0.0
        %4992 = vmatprep.subr.mxu0 0.0
        %4993 = vmatpush1.msra.mxu0 0.0
        %4994 = vmatprep.subr.mxu0 0.0
        %4995 = vmatpush1.msra.mxu0 0.0
        %4996 = vmatprep.subr.mxu0 0.0
        %4997 = vmatpush1.msra.mxu0 0.0
        %4998 = vmatprep.subr.mxu0 0.0
        %4999 = vmatpush1.msra.mxu0 0.0
        %5000 = vmatprep.subr.mxu0 0.0
        %5001 = vmatpush1.msra.mxu0 0.0
        %5002 = vmatprep.subr.mxu0 0.0
        %5003 = vmatpush1.msra.mxu0 0.0
        %5004 = vmatprep.subr.mxu0 0.0
        %5005 = vmatpush1.msra.mxu0 0.0
        %5006 = vmatprep.subr.mxu0 0.0
        %5007 = vmatpush1.msra.mxu0 0.0
        %5008 = vmatprep.subr.mxu0 0.0
        %5009 = vmatpush1.msra.mxu0 0.0
        %5010 = vmatprep.subr.mxu0 0.0
        %5011 = vmatpush1.msra.mxu0 0.0
        %5012 = vmatprep.subr.mxu0 0.0
        %5013 = vmatpush1.msra.mxu0 0.0
        %5014 = vmatprep.subr.mxu0 0.0
        %5015 = vmatpush1.msra.mxu0 0.0
        %5016 = vmatprep.subr.mxu0 0.0
        %5017 = vmatpush1.msra.mxu0 0.0
        %5018 = vmatprep.subr.mxu0 0.0
        %5019 = vmatpush1.msra.mxu0 0.0
        %5020 = vmatprep.subr.mxu0 0.0
        %5021 = vmatpush1.msra.mxu0 0.0
        %5022 = vmatprep.subr.mxu0 0.0
        %5023 = vmatpush1.msra.mxu0 0.0
        %5024 = vmatprep.subr.mxu0 0.0
        %5025 = vmatpush1.msra.mxu0 0.0
        %5026 = vmatprep.subr.mxu0 0.0
        %5027 = vmatpush1.msra.mxu0 0.0
        %5028 = vmatprep.subr.mxu0 0.0
        %5029 = vmatpush1.msra.mxu0 0.0
        %5030 = vmatprep.subr.mxu0 0.0
        %5031 = vmatpush1.msra.mxu0 0.0
        %5032 = vmatprep.mubr.f32.mxu0 0.0
        %5033 = vmatmul.mubr.f32.gmra.mrb[0].mxu0 %v4966
        %v5034 = vpop.f32.mrb[0].mxu0
        %v5035 = vadd.f32 0.0, %v5034
        %v5036 = vpop.f32.mrb[0].mxu0
        %5037 = vdwg.mxu0
        %v5038 = vadd.f32 %v4955, %v5035
        %v5040 = vlaneseq
        %v5041 = vshrl.u32 %v5040, 7
        %v5042 = vsub.s32 0, %v5041
        %v5043 = vrot.slane %v4293, %v5042
        %v5045 = vadd.f32 %v5038, %v5043
        %v5046 = vmax.f32 %v5045, 0.0
        %5047 = vmatprep.subr.mxu0 0.0
        %5048 = vmatpush1.msra.mxu0 %v4303
        %5049 = vmatprep.subr.mxu0 0.0
        %5050 = vmatpush1.msra.mxu0 %v4304
        %5051 = vmatprep.subr.mxu0 0.0
        %5052 = vmatpush1.msra.mxu0 %v4305
        %5053 = vmatprep.subr.mxu0 0.0
        %5054 = vmatpush1.msra.mxu0 %v4306
        %5055 = vmatprep.subr.mxu0 0.0
        %5056 = vmatpush1.msra.mxu0 %v4307
        %5057 = vmatprep.subr.mxu0 0.0
        %5058 = vmatpush1.msra.mxu0 %v4308
        %5059 = vmatprep.subr.mxu0 0.0
        %5060 = vmatpush1.msra.mxu0 %v4309
        %5061 = vmatprep.subr.mxu0 0.0
        %5062 = vmatpush1.msra.mxu0 %v4310
        %5063 = vmatprep.subr.mxu0 0.0
        %5064 = vmatpush1.msra.mxu0 0.0
        %5065 = vmatprep.subr.mxu0 0.0
        %5066 = vmatpush1.msra.mxu0 0.0
        %5067 = vmatprep.subr.mxu0 0.0
        %5068 = vmatpush1.msra.mxu0 0.0
        %5069 = vmatprep.subr.mxu0 0.0
        %5070 = vmatpush1.msra.mxu0 0.0
        %5071 = vmatprep.subr.mxu0 0.0
        %5072 = vmatpush1.msra.mxu0 0.0
        %5073 = vmatprep.subr.mxu0 0.0
        %5074 = vmatpush1.msra.mxu0 0.0
        %5075 = vmatprep.subr.mxu0 0.0
        %5076 = vmatpush1.msra.mxu0 0.0
        %5077 = vmatprep.subr.mxu0 0.0
        %5078 = vmatpush1.msra.mxu0 0.0
        %5079 = vmatprep.subr.mxu0 0.0
        %5080 = vmatpush1.msra.mxu0 0.0
        %5081 = vmatprep.subr.mxu0 0.0
        %5082 = vmatpush1.msra.mxu0 0.0
        %5083 = vmatprep.subr.mxu0 0.0
        %5084 = vmatpush1.msra.mxu0 0.0
        %5085 = vmatprep.subr.mxu0 0.0
        %5086 = vmatpush1.msra.mxu0 0.0
        %5087 = vmatprep.subr.mxu0 0.0
        %5088 = vmatpush1.msra.mxu0 0.0
        %5089 = vmatprep.subr.mxu0 0.0
        %5090 = vmatpush1.msra.mxu0 0.0
        %5091 = vmatprep.subr.mxu0 0.0
        %5092 = vmatpush1.msra.mxu0 0.0
        %5093 = vmatprep.subr.mxu0 0.0
        %5094 = vmatpush1.msra.mxu0 0.0
        %5095 = vmatprep.subr.mxu0 0.0
        %5096 = vmatpush1.msra.mxu0 0.0
        %5097 = vmatprep.subr.mxu0 0.0
        %5098 = vmatpush1.msra.mxu0 0.0
        %5099 = vmatprep.subr.mxu0 0.0
        %5100 = vmatpush1.msra.mxu0 0.0
        %5101 = vmatprep.subr.mxu0 0.0
        %5102 = vmatpush1.msra.mxu0 0.0
        %5103 = vmatprep.subr.mxu0 0.0
        %5104 = vmatpush1.msra.mxu0 0.0
        %5105 = vmatprep.subr.mxu0 0.0
        %5106 = vmatpush1.msra.mxu0 0.0
        %5107 = vmatprep.subr.mxu0 0.0
        %5108 = vmatpush1.msra.mxu0 0.0
        %5109 = vmatprep.subr.mxu0 0.0
        %5110 = vmatpush1.msra.mxu0 0.0
        %5111 = vmatprep.mubr.f32.mxu0 0.0
        %5112 = vmatmul.mubr.f32.gmra.mrb[0].mxu0 %v4634
        %v5113 = vpop.f32.mrb[0].mxu0
        %v5114 = vadd.f32 0.0, %v5113
        %v5115 = vpop.f32.mrb[0].mxu0
        %5116 = vdwg.mxu0
        %5117 = vmatprep.subr.mxu0 0.0
        %5118 = vmatpush1.msra.mxu0 %v4294
        %5119 = vmatprep.subr.mxu0 0.0
        %5120 = vmatpush1.msra.mxu0 %v4295
        %5121 = vmatprep.subr.mxu0 0.0
        %5122 = vmatpush1.msra.mxu0 %v4296
        %5123 = vmatprep.subr.mxu0 0.0
        %5124 = vmatpush1.msra.mxu0 %v4297
        %5125 = vmatprep.subr.mxu0 0.0
        %5126 = vmatpush1.msra.mxu0 %v4298
        %5127 = vmatprep.subr.mxu0 0.0
        %5128 = vmatpush1.msra.mxu0 %v4299
        %5129 = vmatprep.subr.mxu0 0.0
        %5130 = vmatpush1.msra.mxu0 %v4300
        %5131 = vmatprep.subr.mxu0 0.0
        %5132 = vmatpush1.msra.mxu0 %v4301
        %5133 = vmatprep.subr.mxu0 0.0
        %5134 = vmatpush1.msra.mxu0 0.0
        %5135 = vmatprep.subr.mxu0 0.0
        %5136 = vmatpush1.msra.mxu0 0.0
        %5137 = vmatprep.subr.mxu0 0.0
        %5138 = vmatpush1.msra.mxu0 0.0
        %5139 = vmatprep.subr.mxu0 0.0
        %5140 = vmatpush1.msra.mxu0 0.0
        %5141 = vmatprep.subr.mxu0 0.0
        %5142 = vmatpush1.msra.mxu0 0.0
        %5143 = vmatprep.subr.mxu0 0.0
        %5144 = vmatpush1.msra.mxu0 0.0
        %5145 = vmatprep.subr.mxu0 0.0
        %5146 = vmatpush1.msra.mxu0 0.0
        %5147 = vmatprep.subr.mxu0 0.0
        %5148 = vmatpush1.msra.mxu0 0.0
        %5149 = vmatprep.subr.mxu0 0.0
        %5150 = vmatpush1.msra.mxu0 0.0
        %5151 = vmatprep.subr.mxu0 0.0
        %5152 = vmatpush1.msra.mxu0 0.0
        %5153 = vmatprep.subr.mxu0 0.0
        %5154 = vmatpush1.msra.mxu0 0.0
        %5155 = vmatprep.subr.mxu0 0.0
        %5156 = vmatpush1.msra.mxu0 0.0
        %5157 = vmatprep.subr.mxu0 0.0
        %5158 = vmatpush1.msra.mxu0 0.0
        %5159 = vmatprep.subr.mxu0 0.0
        %5160 = vmatpush1.msra.mxu0 0.0
        %5161 = vmatprep.subr.mxu0 0.0
        %5162 = vmatpush1.msra.mxu0 0.0
        %5163 = vmatprep.subr.mxu0 0.0
        %5164 = vmatpush1.msra.mxu0 0.0
        %5165 = vmatprep.subr.mxu0 0.0
        %5166 = vmatpush1.msra.mxu0 0.0
        %5167 = vmatprep.subr.mxu0 0.0
        %5168 = vmatpush1.msra.mxu0 0.0
        %5169 = vmatprep.subr.mxu0 0.0
        %5170 = vmatpush1.msra.mxu0 0.0
        %5171 = vmatprep.subr.mxu0 0.0
        %5172 = vmatpush1.msra.mxu0 0.0
        %5173 = vmatprep.subr.mxu0 0.0
        %5174 = vmatpush1.msra.mxu0 0.0
        %5175 = vmatprep.subr.mxu0 0.0
        %5176 = vmatpush1.msra.mxu0 0.0
        %5177 = vmatprep.subr.mxu0 0.0
        %5178 = vmatpush1.msra.mxu0 0.0
        %5179 = vmatprep.subr.mxu0 0.0
        %5180 = vmatpush1.msra.mxu0 0.0
        %5181 = vmatprep.mubr.f32.mxu0 0.0
        %5182 = vmatmul.mubr.f32.gmra.mrb[0].mxu0 %v4551
        %v5183 = vpop.f32.mrb[0].mxu0
        %v5184 = vadd.f32 %v5114, %v5183
        %v5185 = vpop.f32.mrb[0].mxu0
        %5186 = vdwg.mxu0
        %5187 = vmatprep.subr.mxu0 0.0
        %5188 = vmatpush1.msra.mxu0 %v4459
        %5189 = vmatprep.subr.mxu0 0.0
        %5190 = vmatpush1.msra.mxu0 %v4460
        %5191 = vmatprep.subr.mxu0 0.0
        %5192 = vmatpush1.msra.mxu0 %v4461
        %5193 = vmatprep.subr.mxu0 0.0
        %5194 = vmatpush1.msra.mxu0 %v4462
        %5195 = vmatprep.subr.mxu0 0.0
        %5196 = vmatpush1.msra.mxu0 %v4463
        %5197 = vmatprep.subr.mxu0 0.0
        %5198 = vmatpush1.msra.mxu0 %v4464
        %5199 = vmatprep.subr.mxu0 0.0
        %5200 = vmatpush1.msra.mxu0 %v4465
        %5201 = vmatprep.subr.mxu0 0.0
        %5202 = vmatpush1.msra.mxu0 %v4466
        %5203 = vmatprep.subr.mxu0 0.0
        %5204 = vmatpush1.msra.mxu0 0.0
        %5205 = vmatprep.subr.mxu0 0.0
        %5206 = vmatpush1.msra.mxu0 0.0
        %5207 = vmatprep.subr.mxu0 0.0
        %5208 = vmatpush1.msra.mxu0 0.0
        %5209 = vmatprep.subr.mxu0 0.0
        %5210 = vmatpush1.msra.mxu0 0.0
        %5211 = vmatprep.subr.mxu0 0.0
        %5212 = vmatpush1.msra.mxu0 0.0
        %5213 = vmatprep.subr.mxu0 0.0
        %5214 = vmatpush1.msra.mxu0 0.0
        %5215 = vmatprep.subr.mxu0 0.0
        %5216 = vmatpush1.msra.mxu0 0.0
        %5217 = vmatprep.subr.mxu0 0.0
        %5218 = vmatpush1.msra.mxu0 0.0
        %5219 = vmatprep.subr.mxu0 0.0
        %5220 = vmatpush1.msra.mxu0 0.0
        %5221 = vmatprep.subr.mxu0 0.0
        %5222 = vmatpush1.msra.mxu0 0.0
        %5223 = vmatprep.subr.mxu0 0.0
        %5224 = vmatpush1.msra.mxu0 0.0
        %5225 = vmatprep.subr.mxu0 0.0
        %5226 = vmatpush1.msra.mxu0 0.0
        %5227 = vmatprep.subr.mxu0 0.0
        %5228 = vmatpush1.msra.mxu0 0.0
        %5229 = vmatprep.subr.mxu0 0.0
        %5230 = vmatpush1.msra.mxu0 0.0
        %5231 = vmatprep.subr.mxu0 0.0
        %5232 = vmatpush1.msra.mxu0 0.0
        %5233 = vmatprep.subr.mxu0 0.0
        %5234 = vmatpush1.msra.mxu0 0.0
        %5235 = vmatprep.subr.mxu0 0.0
        %5236 = vmatpush1.msra.mxu0 0.0
        %5237 = vmatprep.subr.mxu0 0.0
        %5238 = vmatpush1.msra.mxu0 0.0
        %5239 = vmatprep.subr.mxu0 0.0
        %5240 = vmatpush1.msra.mxu0 0.0
        %5241 = vmatprep.subr.mxu0 0.0
        %5242 = vmatpush1.msra.mxu0 0.0
        %5243 = vmatprep.subr.mxu0 0.0
        %5244 = vmatpush1.msra.mxu0 0.0
        %5245 = vmatprep.subr.mxu0 0.0
        %5246 = vmatpush1.msra.mxu0 0.0
        %5247 = vmatprep.subr.mxu0 0.0
        %5248 = vmatpush1.msra.mxu0 0.0
        %5249 = vmatprep.subr.mxu0 0.0
        %5250 = vmatpush1.msra.mxu0 0.0
        %5251 = vmatprep.mubr.f32.mxu0 0.0
        %5252 = vmatmul.mubr.f32.gmra.mrb[0].mxu0 %v4717
        %v5253 = vpop.f32.mrb[0].mxu0
        %v5254 = vadd.f32 0.0, %v5253
        %v5255 = vpop.f32.mrb[0].mxu0
        %5256 = vdwg.mxu0
        %v5257 = vadd.f32 %v5184, %v5254
        %5258 = vmatprep.subr.mxu0 0.0
        %5259 = vmatpush1.msra.mxu0 %v4542
        %5260 = vmatprep.subr.mxu0 0.0
        %5261 = vmatpush1.msra.mxu0 %v4543
        %5262 = vmatprep.subr.mxu0 0.0
        %5263 = vmatpush1.msra.mxu0 %v4544
        %5264 = vmatprep.subr.mxu0 0.0
        %5265 = vmatpush1.msra.mxu0 %v4545
        %5266 = vmatprep.subr.mxu0 0.0
        %5267 = vmatpush1.msra.mxu0 %v4546
        %5268 = vmatprep.subr.mxu0 0.0
        %5269 = vmatpush1.msra.mxu0 %v4547
        %5270 = vmatprep.subr.mxu0 0.0
        %5271 = vmatpush1.msra.mxu0 %v4548
        %5272 = vmatprep.subr.mxu0 0.0
        %5273 = vmatpush1.msra.mxu0 %v4549
        %5274 = vmatprep.subr.mxu0 0.0
        %5275 = vmatpush1.msra.mxu0 0.0
        %5276 = vmatprep.subr.mxu0 0.0
        %5277 = vmatpush1.msra.mxu0 0.0
        %5278 = vmatprep.subr.mxu0 0.0
        %5279 = vmatpush1.msra.mxu0 0.0
        %5280 = vmatprep.subr.mxu0 0.0
        %5281 = vmatpush1.msra.mxu0 0.0
        %5282 = vmatprep.subr.mxu0 0.0
        %5283 = vmatpush1.msra.mxu0 0.0
        %5284 = vmatprep.subr.mxu0 0.0
        %5285 = vmatpush1.msra.mxu0 0.0
        %5286 = vmatprep.subr.mxu0 0.0
        %5287 = vmatpush1.msra.mxu0 0.0
        %5288 = vmatprep.subr.mxu0 0.0
        %5289 = vmatpush1.msra.mxu0 0.0
        %5290 = vmatprep.subr.mxu0 0.0
        %5291 = vmatpush1.msra.mxu0 0.0
        %5292 = vmatprep.subr.mxu0 0.0
        %5293 = vmatpush1.msra.mxu0 0.0
        %5294 = vmatprep.subr.mxu0 0.0
        %5295 = vmatpush1.msra.mxu0 0.0
        %5296 = vmatprep.subr.mxu0 0.0
        %5297 = vmatpush1.msra.mxu0 0.0
        %5298 = vmatprep.subr.mxu0 0.0
        %5299 = vmatpush1.msra.mxu0 0.0
        %5300 = vmatprep.subr.mxu0 0.0
        %5301 = vmatpush1.msra.mxu0 0.0
        %5302 = vmatprep.subr.mxu0 0.0
        %5303 = vmatpush1.msra.mxu0 0.0
        %5304 = vmatprep.subr.mxu0 0.0
        %5305 = vmatpush1.msra.mxu0 0.0
        %5306 = vmatprep.subr.mxu0 0.0
        %5307 = vmatpush1.msra.mxu0 0.0
        %5308 = vmatprep.subr.mxu0 0.0
        %5309 = vmatpush1.msra.mxu0 0.0
        %5310 = vmatprep.subr.mxu0 0.0
        %5311 = vmatpush1.msra.mxu0 0.0
        %5312 = vmatprep.subr.mxu0 0.0
        %5313 = vmatpush1.msra.mxu0 0.0
        %5314 = vmatprep.subr.mxu0 0.0
        %5315 = vmatpush1.msra.mxu0 0.0
        %5316 = vmatprep.subr.mxu0 0.0
        %5317 = vmatpush1.msra.mxu0 0.0
        %5318 = vmatprep.subr.mxu0 0.0
        %5319 = vmatpush1.msra.mxu0 0.0
        %5320 = vmatprep.subr.mxu0 0.0
        %5321 = vmatpush1.msra.mxu0 0.0
        %5322 = vmatprep.mubr.f32.mxu0 0.0
        %5323 = vmatmul.mubr.f32.gmra.mrb[0].mxu0 %v4800
        %v5324 = vpop.f32.mrb[0].mxu0
        %v5325 = vadd.f32 0.0, %v5324
        %v5326 = vpop.f32.mrb[0].mxu0
        %5327 = vdwg.mxu0
        %v5328 = vadd.f32 %v5257, %v5325
        %5329 = vmatprep.subr.mxu0 0.0
        %5330 = vmatpush1.msra.mxu0 %v4625
        %5331 = vmatprep.subr.mxu0 0.0
        %5332 = vmatpush1.msra.mxu0 %v4626
        %5333 = vmatprep.subr.mxu0 0.0
        %5334 = vmatpush1.msra.mxu0 %v4627
        %5335 = vmatprep.subr.mxu0 0.0
        %5336 = vmatpush1.msra.mxu0 %v4628
        %5337 = vmatprep.subr.mxu0 0.0
        %5338 = vmatpush1.msra.mxu0 %v4629
        %5339 = vmatprep.subr.mxu0 0.0
        %5340 = vmatpush1.msra.mxu0 %v4630
        %5341 = vmatprep.subr.mxu0 0.0
        %5342 = vmatpush1.msra.mxu0 %v4631
        %5343 = vmatprep.subr.mxu0 0.0
        %5344 = vmatpush1.msra.mxu0 %v4632
        %5345 = vmatprep.subr.mxu0 0.0
        %5346 = vmatpush1.msra.mxu0 0.0
        %5347 = vmatprep.subr.mxu0 0.0
        %5348 = vmatpush1.msra.mxu0 0.0
        %5349 = vmatprep.subr.mxu0 0.0
        %5350 = vmatpush1.msra.mxu0 0.0
        %5351 = vmatprep.subr.mxu0 0.0
        %5352 = vmatpush1.msra.mxu0 0.0
        %5353 = vmatprep.subr.mxu0 0.0
        %5354 = vmatpush1.msra.mxu0 0.0
        %5355 = vmatprep.subr.mxu0 0.0
        %5356 = vmatpush1.msra.mxu0 0.0
        %5357 = vmatprep.subr.mxu0 0.0
        %5358 = vmatpush1.msra.mxu0 0.0
        %5359 = vmatprep.subr.mxu0 0.0
        %5360 = vmatpush1.msra.mxu0 0.0
        %5361 = vmatprep.subr.mxu0 0.0
        %5362 = vmatpush1.msra.mxu0 0.0
        %5363 = vmatprep.subr.mxu0 0.0
        %5364 = vmatpush1.msra.mxu0 0.0
        %5365 = vmatprep.subr.mxu0 0.0
        %5366 = vmatpush1.msra.mxu0 0.0
        %5367 = vmatprep.subr.mxu0 0.0
        %5368 = vmatpush1.msra.mxu0 0.0
        %5369 = vmatprep.subr.mxu0 0.0
        %5370 = vmatpush1.msra.mxu0 0.0
        %5371 = vmatprep.subr.mxu0 0.0
        %5372 = vmatpush1.msra.mxu0 0.0
        %5373 = vmatprep.subr.mxu0 0.0
        %5374 = vmatpush1.msra.mxu0 0.0
        %5375 = vmatprep.subr.mxu0 0.0
        %5376 = vmatpush1.msra.mxu0 0.0
        %5377 = vmatprep.subr.mxu0 0.0
        %5378 = vmatpush1.msra.mxu0 0.0
        %5379 = vmatprep.subr.mxu0 0.0
        %5380 = vmatpush1.msra.mxu0 0.0
        %5381 = vmatprep.subr.mxu0 0.0
        %5382 = vmatpush1.msra.mxu0 0.0
        %5383 = vmatprep.subr.mxu0 0.0
        %5384 = vmatpush1.msra.mxu0 0.0
        %5385 = vmatprep.subr.mxu0 0.0
        %5386 = vmatpush1.msra.mxu0 0.0
        %5387 = vmatprep.subr.mxu0 0.0
        %5388 = vmatpush1.msra.mxu0 0.0
        %5389 = vmatprep.subr.mxu0 0.0
        %5390 = vmatpush1.msra.mxu0 0.0
        %5391 = vmatprep.subr.mxu0 0.0
        %5392 = vmatpush1.msra.mxu0 0.0
        %5393 = vmatprep.mubr.f32.mxu0 0.0
        %5394 = vmatmul.mubr.f32.gmra.mrb[0].mxu0 %v4883
        %v5395 = vpop.f32.mrb[0].mxu0
        %v5396 = vadd.f32 0.0, %v5395
        %v5397 = vpop.f32.mrb[0].mxu0
        %5398 = vdwg.mxu0
        %v5399 = vadd.f32 %v5328, %v5396
        %5400 = vmatprep.subr.mxu0 0.0
        %5401 = vmatpush1.msra.mxu0 %v4708
        %5402 = vmatprep.subr.mxu0 0.0
        %5403 = vmatpush1.msra.mxu0 %v4709
        %5404 = vmatprep.subr.mxu0 0.0
        %5405 = vmatpush1.msra.mxu0 %v4710
        %5406 = vmatprep.subr.mxu0 0.0
        %5407 = vmatpush1.msra.mxu0 %v4711
        %5408 = vmatprep.subr.mxu0 0.0
        %5409 = vmatpush1.msra.mxu0 %v4712
        %5410 = vmatprep.subr.mxu0 0.0
        %5411 = vmatpush1.msra.mxu0 %v4713
        %5412 = vmatprep.subr.mxu0 0.0
        %5413 = vmatpush1.msra.mxu0 %v4714
        %5414 = vmatprep.subr.mxu0 0.0
        %5415 = vmatpush1.msra.mxu0 %v4715
        %5416 = vmatprep.subr.mxu0 0.0
        %5417 = vmatpush1.msra.mxu0 0.0
        %5418 = vmatprep.subr.mxu0 0.0
        %5419 = vmatpush1.msra.mxu0 0.0
        %5420 = vmatprep.subr.mxu0 0.0
        %5421 = vmatpush1.msra.mxu0 0.0
        %5422 = vmatprep.subr.mxu0 0.0
        %5423 = vmatpush1.msra.mxu0 0.0
        %5424 = vmatprep.subr.mxu0 0.0
        %5425 = vmatpush1.msra.mxu0 0.0
        %5426 = vmatprep.subr.mxu0 0.0
        %5427 = vmatpush1.msra.mxu0 0.0
        %5428 = vmatprep.subr.mxu0 0.0
        %5429 = vmatpush1.msra.mxu0 0.0
        %5430 = vmatprep.subr.mxu0 0.0
        %5431 = vmatpush1.msra.mxu0 0.0
        %5432 = vmatprep.subr.mxu0 0.0
        %5433 = vmatpush1.msra.mxu0 0.0
        %5434 = vmatprep.subr.mxu0 0.0
        %5435 = vmatpush1.msra.mxu0 0.0
        %5436 = vmatprep.subr.mxu0 0.0
        %5437 = vmatpush1.msra.mxu0 0.0
        %5438 = vmatprep.subr.mxu0 0.0
        %5439 = vmatpush1.msra.mxu0 0.0
        %5440 = vmatprep.subr.mxu0 0.0
        %5441 = vmatpush1.msra.mxu0 0.0
        %5442 = vmatprep.subr.mxu0 0.0
        %5443 = vmatpush1.msra.mxu0 0.0
        %5444 = vmatprep.subr.mxu0 0.0
        %5445 = vmatpush1.msra.mxu0 0.0
        %5446 = vmatprep.subr.mxu0 0.0
        %5447 = vmatpush1.msra.mxu0 0.0
        %5448 = vmatprep.subr.mxu0 0.0
        %5449 = vmatpush1.msra.mxu0 0.0
        %5450 = vmatprep.subr.mxu0 0.0
        %5451 = vmatpush1.msra.mxu0 0.0
        %5452 = vmatprep.subr.mxu0 0.0
        %5453 = vmatpush1.msra.mxu0 0.0
        %5454 = vmatprep.subr.mxu0 0.0
        %5455 = vmatpush1.msra.mxu0 0.0
        %5456 = vmatprep.subr.mxu0 0.0
        %5457 = vmatpush1.msra.mxu0 0.0
        %5458 = vmatprep.subr.mxu0 0.0
        %5459 = vmatpush1.msra.mxu0 0.0
        %5460 = vmatprep.subr.mxu0 0.0
        %5461 = vmatpush1.msra.mxu0 0.0
        %5462 = vmatprep.subr.mxu0 0.0
        %5463 = vmatpush1.msra.mxu0 0.0
        %5464 = vmatprep.mubr.f32.mxu0 0.0
        %5465 = vmatmul.mubr.f32.gmra.mrb[0].mxu0 %v4966
        %v5466 = vpop.f32.mrb[0].mxu0
        %v5467 = vadd.f32 0.0, %v5466
        %v5468 = vpop.f32.mrb[0].mxu0
        %5469 = vdwg.mxu0
        %v5470 = vadd.f32 %v5399, %v5467
        %v5472 = vsel %vm4313, %v4006, 0
        %5474 = vmatprep.subr.mxu0 0.0
        %5475 = vmatpush1.msra.mxu0 %v4791
        %5476 = vmatprep.subr.mxu0 0.0
        %5477 = vmatpush1.msra.mxu0 %v4792
        %5478 = vmatprep.subr.mxu0 0.0
        %5479 = vmatpush1.msra.mxu0 %v4793
        %5480 = vmatprep.subr.mxu0 0.0
        %5481 = vmatpush1.msra.mxu0 %v4794
        %5482 = vmatprep.subr.mxu0 0.0
        %5483 = vmatpush1.msra.mxu0 %v4795
        %5484 = vmatprep.subr.mxu0 0.0
        %5485 = vmatpush1.msra.mxu0 %v4796
        %5486 = vmatprep.subr.mxu0 0.0
        %5487 = vmatpush1.msra.mxu0 %v4797
        %5488 = vmatprep.subr.mxu0 0.0
        %5489 = vmatpush1.msra.mxu0 %v4798
        %5490 = vmatprep.subr.mxu0 0.0
        %5491 = vmatpush1.msra.mxu0 0.0
        %5492 = vmatprep.subr.mxu0 0.0
        %5493 = vmatpush1.msra.mxu0 0.0
        %5494 = vmatprep.subr.mxu0 0.0
        %5495 = vmatpush1.msra.mxu0 0.0
        %5496 = vmatprep.subr.mxu0 0.0
        %5497 = vmatpush1.msra.mxu0 0.0
        %5498 = vmatprep.subr.mxu0 0.0
        %5499 = vmatpush1.msra.mxu0 0.0
        %5500 = vmatprep.subr.mxu0 0.0
        %5501 = vmatpush1.msra.mxu0 0.0
        %5502 = vmatprep.subr.mxu0 0.0
        %5503 = vmatpush1.msra.mxu0 0.0
        %5504 = vmatprep.subr.mxu0 0.0
        %5505 = vmatpush1.msra.mxu0 0.0
        %5506 = vmatprep.subr.mxu0 0.0
        %5507 = vmatpush1.msra.mxu0 0.0
        %5508 = vmatprep.subr.mxu0 0.0
        %5509 = vmatpush1.msra.mxu0 0.0
        %5510 = vmatprep.subr.mxu0 0.0
        %5511 = vmatpush1.msra.mxu0 0.0
        %5512 = vmatprep.subr.mxu0 0.0
        %5513 = vmatpush1.msra.mxu0 0.0
        %5514 = vmatprep.subr.mxu0 0.0
        %5515 = vmatpush1.msra.mxu0 0.0
        %5516 = vmatprep.subr.mxu0 0.0
        %5517 = vmatpush1.msra.mxu0 0.0
        %5518 = vmatprep.subr.mxu0 0.0
        %5519 = vmatpush1.msra.mxu0 0.0
        %5520 = vmatprep.subr.mxu0 0.0
        %5521 = vmatpush1.msra.mxu0 0.0
        %5522 = vmatprep.subr.mxu0 0.0
        %5523 = vmatpush1.msra.mxu0 0.0
        %5524 = vmatprep.subr.mxu0 0.0
        %5525 = vmatpush1.msra.mxu0 0.0
        %5526 = vmatprep.subr.mxu0 0.0
        %5527 = vmatpush1.msra.mxu0 0.0
        %5528 = vmatprep.subr.mxu0 0.0
        %5529 = vmatpush1.msra.mxu0 0.0
        %5530 = vmatprep.subr.mxu0 0.0
        %5531 = vmatpush1.msra.mxu0 0.0
        %5532 = vmatprep.subr.mxu0 0.0
        %5533 = vmatpush1.msra.mxu0 0.0
        %5534 = vmatprep.subr.mxu0 0.0
        %5535 = vmatpush1.msra.mxu0 0.0
        %5536 = vmatprep.subr.mxu0 0.0
        %5537 = vmatpush1.msra.mxu0 0.0
        %5538 = vmatprep.mubr.f32.mxu0 0.0
        %5539 = vmatmul.mubr.f32.gmra.mrb[0].mxu0 %v5472
        %v5540 = vpop.f32.mrb[0].mxu0
        %v5541 = vadd.f32 0.0, %v5540
        %v5542 = vpop.f32.mrb[0].mxu0
        %5543 = vdwg.mxu0
        %v5544 = vadd.f32 %v5470, %v5541
        %v5545 = vrot.slane %v4006, 1
        %v5546 = vsel %vm4313, %v5545, 0
        %5548 = vmatprep.subr.mxu0 0.0
        %5549 = vmatpush1.msra.mxu0 %v4874
        %5550 = vmatprep.subr.mxu0 0.0
        %5551 = vmatpush1.msra.mxu0 %v4875
        %5552 = vmatprep.subr.mxu0 0.0
        %5553 = vmatpush1.msra.mxu0 %v4876
        %5554 = vmatprep.subr.mxu0 0.0
        %5555 = vmatpush1.msra.mxu0 %v4877
        %5556 = vmatprep.subr.mxu0 0.0
        %5557 = vmatpush1.msra.mxu0 %v4878
        %5558 = vmatprep.subr.mxu0 0.0
        %5559 = vmatpush1.msra.mxu0 %v4879
        %5560 = vmatprep.subr.mxu0 0.0
        %5561 = vmatpush1.msra.mxu0 %v4880
        %5562 = vmatprep.subr.mxu0 0.0
        %5563 = vmatpush1.msra.mxu0 %v4881
        %5564 = vmatprep.subr.mxu0 0.0
        %5565 = vmatpush1.msra.mxu0 0.0
        %5566 = vmatprep.subr.mxu0 0.0
        %5567 = vmatpush1.msra.mxu0 0.0
        %5568 = vmatprep.subr.mxu0 0.0
        %5569 = vmatpush1.msra.mxu0 0.0
        %5570 = vmatprep.subr.mxu0 0.0
        %5571 = vmatpush1.msra.mxu0 0.0
        %5572 = vmatprep.subr.mxu0 0.0
        %5573 = vmatpush1.msra.mxu0 0.0
        %5574 = vmatprep.subr.mxu0 0.0
        %5575 = vmatpush1.msra.mxu0 0.0
        %5576 = vmatprep.subr.mxu0 0.0
        %5577 = vmatpush1.msra.mxu0 0.0
        %5578 = vmatprep.subr.mxu0 0.0
        %5579 = vmatpush1.msra.mxu0 0.0
        %5580 = vmatprep.subr.mxu0 0.0
        %5581 = vmatpush1.msra.mxu0 0.0
        %5582 = vmatprep.subr.mxu0 0.0
        %5583 = vmatpush1.msra.mxu0 0.0
        %5584 = vmatprep.subr.mxu0 0.0
        %5585 = vmatpush1.msra.mxu0 0.0
        %5586 = vmatprep.subr.mxu0 0.0
        %5587 = vmatpush1.msra.mxu0 0.0
        %5588 = vmatprep.subr.mxu0 0.0
        %5589 = vmatpush1.msra.mxu0 0.0
        %5590 = vmatprep.subr.mxu0 0.0
        %5591 = vmatpush1.msra.mxu0 0.0
        %5592 = vmatprep.subr.mxu0 0.0
        %5593 = vmatpush1.msra.mxu0 0.0
        %5594 = vmatprep.subr.mxu0 0.0
        %5595 = vmatpush1.msra.mxu0 0.0
        %5596 = vmatprep.subr.mxu0 0.0
        %5597 = vmatpush1.msra.mxu0 0.0
        %5598 = vmatprep.subr.mxu0 0.0
        %5599 = vmatpush1.msra.mxu0 0.0
        %5600 = vmatprep.subr.mxu0 0.0
        %5601 = vmatpush1.msra.mxu0 0.0
        %5602 = vmatprep.subr.mxu0 0.0
        %5603 = vmatpush1.msra.mxu0 0.0
        %5604 = vmatprep.subr.mxu0 0.0
        %5605 = vmatpush1.msra.mxu0 0.0
        %5606 = vmatprep.subr.mxu0 0.0
        %5607 = vmatpush1.msra.mxu0 0.0
        %5608 = vmatprep.subr.mxu0 0.0
        %5609 = vmatpush1.msra.mxu0 0.0
        %5610 = vmatprep.subr.mxu0 0.0
        %5611 = vmatpush1.msra.mxu0 0.0
        %5612 = vmatprep.mubr.f32.mxu0 0.0
        %5613 = vmatmul.mubr.f32.gmra.mrb[0].mxu0 %v5546
        %v5614 = vpop.f32.mrb[0].mxu0
        %v5615 = vadd.f32 0.0, %v5614
        %v5616 = vpop.f32.mrb[0].mxu0
        %5617 = vdwg.mxu0
        %v5618 = vadd.f32 %v5544, %v5615
        %v5619 = vrot.slane %v4006, 2
        %v5620 = vsel %vm4313, %v5619, 0
        %5622 = vmatprep.subr.mxu0 0.0
        %5623 = vmatpush1.msra.mxu0 %v4957
        %5624 = vmatprep.subr.mxu0 0.0
        %5625 = vmatpush1.msra.mxu0 %v4958
        %5626 = vmatprep.subr.mxu0 0.0
        %5627 = vmatpush1.msra.mxu0 %v4959
        %5628 = vmatprep.subr.mxu0 0.0
        %5629 = vmatpush1.msra.mxu0 %v4960
        %5630 = vmatprep.subr.mxu0 0.0
        %5631 = vmatpush1.msra.mxu0 %v4961
        %5632 = vmatprep.subr.mxu0 0.0
        %5633 = vmatpush1.msra.mxu0 %v4962
        %5634 = vmatprep.subr.mxu0 0.0
        %5635 = vmatpush1.msra.mxu0 %v4963
        %5636 = vmatprep.subr.mxu0 0.0
        %5637 = vmatpush1.msra.mxu0 %v4964
        %5638 = vmatprep.subr.mxu0 0.0
        %5639 = vmatpush1.msra.mxu0 0.0
        %5640 = vmatprep.subr.mxu0 0.0
        %5641 = vmatpush1.msra.mxu0 0.0
        %5642 = vmatprep.subr.mxu0 0.0
        %5643 = vmatpush1.msra.mxu0 0.0
        %5644 = vmatprep.subr.mxu0 0.0
        %5645 = vmatpush1.msra.mxu0 0.0
        %5646 = vmatprep.subr.mxu0 0.0
        %5647 = vmatpush1.msra.mxu0 0.0
        %5648 = vmatprep.subr.mxu0 0.0
        %5649 = vmatpush1.msra.mxu0 0.0
        %5650 = vmatprep.subr.mxu0 0.0
        %5651 = vmatpush1.msra.mxu0 0.0
        %5652 = vmatprep.subr.mxu0 0.0
        %5653 = vmatpush1.msra.mxu0 0.0
        %5654 = vmatprep.subr.mxu0 0.0
        %5655 = vmatpush1.msra.mxu0 0.0
        %5656 = vmatprep.subr.mxu0 0.0
        %5657 = vmatpush1.msra.mxu0 0.0
        %5658 = vmatprep.subr.mxu0 0.0
        %5659 = vmatpush1.msra.mxu0 0.0
        %5660 = vmatprep.subr.mxu0 0.0
        %5661 = vmatpush1.msra.mxu0 0.0
        %5662 = vmatprep.subr.mxu0 0.0
        %5663 = vmatpush1.msra.mxu0 0.0
        %5664 = vmatprep.subr.mxu0 0.0
        %5665 = vmatpush1.msra.mxu0 0.0
        %5666 = vmatprep.subr.mxu0 0.0
        %5667 = vmatpush1.msra.mxu0 0.0
        %5668 = vmatprep.subr.mxu0 0.0
        %5669 = vmatpush1.msra.mxu0 0.0
        %5670 = vmatprep.subr.mxu0 0.0
        %5671 = vmatpush1.msra.mxu0 0.0
        %5672 = vmatprep.subr.mxu0 0.0
        %5673 = vmatpush1.msra.mxu0 0.0
        %5674 = vmatprep.subr.mxu0 0.0
        %5675 = vmatpush1.msra.mxu0 0.0
        %5676 = vmatprep.subr.mxu0 0.0
        %5677 = vmatpush1.msra.mxu0 0.0
        %5678 = vmatprep.subr.mxu0 0.0
        %5679 = vmatpush1.msra.mxu0 0.0
        %5680 = vmatprep.subr.mxu0 0.0
        %5681 = vmatpush1.msra.mxu0 0.0
        %5682 = vmatprep.subr.mxu0 0.0
        %5683 = vmatpush1.msra.mxu0 0.0
        %5684 = vmatprep.subr.mxu0 0.0
        %5685 = vmatpush1.msra.mxu0 0.0
        %5686 = vmatprep.mubr.f32.mxu0 0.0
        %5687 = vmatmul.mubr.f32.gmra.mrb[0].mxu0 %v5620
        %v5688 = vpop.f32.mrb[0].mxu0
        %v5689 = vadd.f32 0.0, %v5688
        %v5690 = vpop.f32.mrb[0].mxu0
        %5691 = vdwg.mxu0
        %v5692 = vadd.f32 %v5618, %v5689
        %v5693 = vadd.f32 %v5692, %v5043
        %v5694 = vmax.f32 %v5693, 0.0
        %5695 = vmatprep.subr.mxu0 0.0
        %5696 = vmatpush1.msra.mxu0 %v4303
        %5697 = vmatprep.subr.mxu0 0.0
        %5698 = vmatpush1.msra.mxu0 %v4304
        %5699 = vmatprep.subr.mxu0 0.0
        %5700 = vmatpush1.msra.mxu0 %v4305
        %5701 = vmatprep.subr.mxu0 0.0
        %5702 = vmatpush1.msra.mxu0 %v4306
        %5703 = vmatprep.subr.mxu0 0.0
        %5704 = vmatpush1.msra.mxu0 %v4307
        %5705 = vmatprep.subr.mxu0 0.0
        %5706 = vmatpush1.msra.mxu0 %v4308
        %5707 = vmatprep.subr.mxu0 0.0
        %5708 = vmatpush1.msra.mxu0 %v4309
        %5709 = vmatprep.subr.mxu0 0.0
        %5710 = vmatpush1.msra.mxu0 %v4310
        %5711 = vmatprep.subr.mxu0 0.0
        %5712 = vmatpush1.msra.mxu0 0.0
        %5713 = vmatprep.subr.mxu0 0.0
        %5714 = vmatpush1.msra.mxu0 0.0
        %5715 = vmatprep.subr.mxu0 0.0
        %5716 = vmatpush1.msra.mxu0 0.0
        %5717 = vmatprep.subr.mxu0 0.0
        %5718 = vmatpush1.msra.mxu0 0.0
        %5719 = vmatprep.subr.mxu0 0.0
        %5720 = vmatpush1.msra.mxu0 0.0
        %5721 = vmatprep.subr.mxu0 0.0
        %5722 = vmatpush1.msra.mxu0 0.0
        %5723 = vmatprep.subr.mxu0 0.0
        %5724 = vmatpush1.msra.mxu0 0.0
        %5725 = vmatprep.subr.mxu0 0.0
        %5726 = vmatpush1.msra.mxu0 0.0
        %5727 = vmatprep.subr.mxu0 0.0
        %5728 = vmatpush1.msra.mxu0 0.0
        %5729 = vmatprep.subr.mxu0 0.0
        %5730 = vmatpush1.msra.mxu0 0.0
        %5731 = vmatprep.subr.mxu0 0.0
        %5732 = vmatpush1.msra.mxu0 0.0
        %5733 = vmatprep.subr.mxu0 0.0
        %5734 = vmatpush1.msra.mxu0 0.0
        %5735 = vmatprep.subr.mxu0 0.0
        %5736 = vmatpush1.msra.mxu0 0.0
        %5737 = vmatprep.subr.mxu0 0.0
        %5738 = vmatpush1.msra.mxu0 0.0
        %5739 = vmatprep.subr.mxu0 0.0
        %5740 = vmatpush1.msra.mxu0 0.0
        %5741 = vmatprep.subr.mxu0 0.0
        %5742 = vmatpush1.msra.mxu0 0.0
        %5743 = vmatprep.subr.mxu0 0.0
        %5744 = vmatpush1.msra.mxu0 0.0
        %5745 = vmatprep.subr.mxu0 0.0
        %5746 = vmatpush1.msra.mxu0 0.0
        %5747 = vmatprep.subr.mxu0 0.0
        %5748 = vmatpush1.msra.mxu0 0.0
        %5749 = vmatprep.subr.mxu0 0.0
        %5750 = vmatpush1.msra.mxu0 0.0
        %5751 = vmatprep.subr.mxu0 0.0
        %5752 = vmatpush1.msra.mxu0 0.0
        %5753 = vmatprep.subr.mxu0 0.0
        %5754 = vmatpush1.msra.mxu0 0.0
        %5755 = vmatprep.subr.mxu0 0.0
        %5756 = vmatpush1.msra.mxu0 0.0
        %5757 = vmatprep.subr.mxu0 0.0
        %5758 = vmatpush1.msra.mxu0 0.0
        %5759 = vmatprep.mubr.f32.mxu0 0.0
        %5760 = vmatmul.mubr.f32.gmra.mrb[0].mxu0 %v4883
        %v5761 = vpop.f32.mrb[0].mxu0
        %v5762 = vadd.f32 0.0, %v5761
        %v5763 = vpop.f32.mrb[0].mxu0
        %5764 = vdwg.mxu0
        %5765 = vmatprep.subr.mxu0 0.0
        %5766 = vmatpush1.msra.mxu0 %v4294
        %5767 = vmatprep.subr.mxu0 0.0
        %5768 = vmatpush1.msra.mxu0 %v4295
        %5769 = vmatprep.subr.mxu0 0.0
        %5770 = vmatpush1.msra.mxu0 %v4296
        %5771 = vmatprep.subr.mxu0 0.0
        %5772 = vmatpush1.msra.mxu0 %v4297
        %5773 = vmatprep.subr.mxu0 0.0
        %5774 = vmatpush1.msra.mxu0 %v4298
        %5775 = vmatprep.subr.mxu0 0.0
        %5776 = vmatpush1.msra.mxu0 %v4299
        %5777 = vmatprep.subr.mxu0 0.0
        %5778 = vmatpush1.msra.mxu0 %v4300
        %5779 = vmatprep.subr.mxu0 0.0
        %5780 = vmatpush1.msra.mxu0 %v4301
        %5781 = vmatprep.subr.mxu0 0.0
        %5782 = vmatpush1.msra.mxu0 0.0
        %5783 = vmatprep.subr.mxu0 0.0
        %5784 = vmatpush1.msra.mxu0 0.0
        %5785 = vmatprep.subr.mxu0 0.0
        %5786 = vmatpush1.msra.mxu0 0.0
        %5787 = vmatprep.subr.mxu0 0.0
        %5788 = vmatpush1.msra.mxu0 0.0
        %5789 = vmatprep.subr.mxu0 0.0
        %5790 = vmatpush1.msra.mxu0 0.0
        %5791 = vmatprep.subr.mxu0 0.0
        %5792 = vmatpush1.msra.mxu0 0.0
        %5793 = vmatprep.subr.mxu0 0.0
        %5794 = vmatpush1.msra.mxu0 0.0
        %5795 = vmatprep.subr.mxu0 0.0
        %5796 = vmatpush1.msra.mxu0 0.0
        %5797 = vmatprep.subr.mxu0 0.0
        %5798 = vmatpush1.msra.mxu0 0.0
        %5799 = vmatprep.subr.mxu0 0.0
        %5800 = vmatpush1.msra.mxu0 0.0
        %5801 = vmatprep.subr.mxu0 0.0
        %5802 = vmatpush1.msra.mxu0 0.0
        %5803 = vmatprep.subr.mxu0 0.0
        %5804 = vmatpush1.msra.mxu0 0.0
        %5805 = vmatprep.subr.mxu0 0.0
        %5806 = vmatpush1.msra.mxu0 0.0
        %5807 = vmatprep.subr.mxu0 0.0
        %5808 = vmatpush1.msra.mxu0 0.0
        %5809 = vmatprep.subr.mxu0 0.0
        %5810 = vmatpush1.msra.mxu0 0.0
        %5811 = vmatprep.subr.mxu0 0.0
        %5812 = vmatpush1.msra.mxu0 0.0
        %5813 = vmatprep.subr.mxu0 0.0
        %5814 = vmatpush1.msra.mxu0 0.0
        %5815 = vmatprep.subr.mxu0 0.0
        %5816 = vmatpush1.msra.mxu0 0.0
        %5817 = vmatprep.subr.mxu0 0.0
        %5818 = vmatpush1.msra.mxu0 0.0
        %5819 = vmatprep.subr.mxu0 0.0
        %5820 = vmatpush1.msra.mxu0 0.0
        %5821 = vmatprep.subr.mxu0 0.0
        %5822 = vmatpush1.msra.mxu0 0.0
        %5823 = vmatprep.subr.mxu0 0.0
        %5824 = vmatpush1.msra.mxu0 0.0
        %5825 = vmatprep.subr.mxu0 0.0
        %5826 = vmatpush1.msra.mxu0 0.0
        %5827 = vmatprep.subr.mxu0 0.0
        %5828 = vmatpush1.msra.mxu0 0.0
        %5829 = vmatprep.mubr.f32.mxu0 0.0
        %5830 = vmatmul.mubr.f32.gmra.mrb[0].mxu0 %v4800
        %v5831 = vpop.f32.mrb[0].mxu0
        %v5832 = vadd.f32 %v5762, %v5831
        %v5833 = vpop.f32.mrb[0].mxu0
        %5834 = vdwg.mxu0
        %5835 = vmatprep.subr.mxu0 0.0
        %5836 = vmatpush1.msra.mxu0 %v4459
        %5837 = vmatprep.subr.mxu0 0.0
        %5838 = vmatpush1.msra.mxu0 %v4460
        %5839 = vmatprep.subr.mxu0 0.0
        %5840 = vmatpush1.msra.mxu0 %v4461
        %5841 = vmatprep.subr.mxu0 0.0
        %5842 = vmatpush1.msra.mxu0 %v4462
        %5843 = vmatprep.subr.mxu0 0.0
        %5844 = vmatpush1.msra.mxu0 %v4463
        %5845 = vmatprep.subr.mxu0 0.0
        %5846 = vmatpush1.msra.mxu0 %v4464
        %5847 = vmatprep.subr.mxu0 0.0
        %5848 = vmatpush1.msra.mxu0 %v4465
        %5849 = vmatprep.subr.mxu0 0.0
        %5850 = vmatpush1.msra.mxu0 %v4466
        %5851 = vmatprep.subr.mxu0 0.0
        %5852 = vmatpush1.msra.mxu0 0.0
        %5853 = vmatprep.subr.mxu0 0.0
        %5854 = vmatpush1.msra.mxu0 0.0
        %5855 = vmatprep.subr.mxu0 0.0
        %5856 = vmatpush1.msra.mxu0 0.0
        %5857 = vmatprep.subr.mxu0 0.0
        %5858 = vmatpush1.msra.mxu0 0.0
        %5859 = vmatprep.subr.mxu0 0.0
        %5860 = vmatpush1.msra.mxu0 0.0
        %5861 = vmatprep.subr.mxu0 0.0
        %5862 = vmatpush1.msra.mxu0 0.0
        %5863 = vmatprep.subr.mxu0 0.0
        %5864 = vmatpush1.msra.mxu0 0.0
        %5865 = vmatprep.subr.mxu0 0.0
        %5866 = vmatpush1.msra.mxu0 0.0
        %5867 = vmatprep.subr.mxu0 0.0
        %5868 = vmatpush1.msra.mxu0 0.0
        %5869 = vmatprep.subr.mxu0 0.0
        %5870 = vmatpush1.msra.mxu0 0.0
        %5871 = vmatprep.subr.mxu0 0.0
        %5872 = vmatpush1.msra.mxu0 0.0
        %5873 = vmatprep.subr.mxu0 0.0
        %5874 = vmatpush1.msra.mxu0 0.0
        %5875 = vmatprep.subr.mxu0 0.0
        %5876 = vmatpush1.msra.mxu0 0.0
        %5877 = vmatprep.subr.mxu0 0.0
        %5878 = vmatpush1.msra.mxu0 0.0
        %5879 = vmatprep.subr.mxu0 0.0
        %5880 = vmatpush1.msra.mxu0 0.0
        %5881 = vmatprep.subr.mxu0 0.0
        %5882 = vmatpush1.msra.mxu0 0.0
        %5883 = vmatprep.subr.mxu0 0.0
        %5884 = vmatpush1.msra.mxu0 0.0
        %5885 = vmatprep.subr.mxu0 0.0
        %5886 = vmatpush1.msra.mxu0 0.0
        %5887 = vmatprep.subr.mxu0 0.0
        %5888 = vmatpush1.msra.mxu0 0.0
        %5889 = vmatprep.subr.mxu0 0.0
        %5890 = vmatpush1.msra.mxu0 0.0
        %5891 = vmatprep.subr.mxu0 0.0
        %5892 = vmatpush1.msra.mxu0 0.0
        %5893 = vmatprep.subr.mxu0 0.0
        %5894 = vmatpush1.msra.mxu0 0.0
        %5895 = vmatprep.subr.mxu0 0.0
        %5896 = vmatpush1.msra.mxu0 0.0
        %5897 = vmatprep.subr.mxu0 0.0
        %5898 = vmatpush1.msra.mxu0 0.0
        %5899 = vmatprep.mubr.f32.mxu0 0.0
        %5900 = vmatmul.mubr.f32.gmra.mrb[0].mxu0 %v4966
        %v5901 = vpop.f32.mrb[0].mxu0
        %v5902 = vadd.f32 0.0, %v5901
        %v5903 = vpop.f32.mrb[0].mxu0
        %5904 = vdwg.mxu0
        %v5905 = vadd.f32 %v5832, %v5902
        %5906 = vmatprep.subr.mxu0 0.0
        %5907 = vmatpush1.msra.mxu0 %v4542
        %5908 = vmatprep.subr.mxu0 0.0
        %5909 = vmatpush1.msra.mxu0 %v4543
        %5910 = vmatprep.subr.mxu0 0.0
        %5911 = vmatpush1.msra.mxu0 %v4544
        %5912 = vmatprep.subr.mxu0 0.0
        %5913 = vmatpush1.msra.mxu0 %v4545
        %5914 = vmatprep.subr.mxu0 0.0
        %5915 = vmatpush1.msra.mxu0 %v4546
        %5916 = vmatprep.subr.mxu0 0.0
        %5917 = vmatpush1.msra.mxu0 %v4547
        %5918 = vmatprep.subr.mxu0 0.0
        %5919 = vmatpush1.msra.mxu0 %v4548
        %5920 = vmatprep.subr.mxu0 0.0
        %5921 = vmatpush1.msra.mxu0 %v4549
        %5922 = vmatprep.subr.mxu0 0.0
        %5923 = vmatpush1.msra.mxu0 0.0
        %5924 = vmatprep.subr.mxu0 0.0
        %5925 = vmatpush1.msra.mxu0 0.0
        %5926 = vmatprep.subr.mxu0 0.0
        %5927 = vmatpush1.msra.mxu0 0.0
        %5928 = vmatprep.subr.mxu0 0.0
        %5929 = vmatpush1.msra.mxu0 0.0
        %5930 = vmatprep.subr.mxu0 0.0
        %5931 = vmatpush1.msra.mxu0 0.0
        %5932 = vmatprep.subr.mxu0 0.0
        %5933 = vmatpush1.msra.mxu0 0.0
        %5934 = vmatprep.subr.mxu0 0.0
        %5935 = vmatpush1.msra.mxu0 0.0
        %5936 = vmatprep.subr.mxu0 0.0
        %5937 = vmatpush1.msra.mxu0 0.0
        %5938 = vmatprep.subr.mxu0 0.0
        %5939 = vmatpush1.msra.mxu0 0.0
        %5940 = vmatprep.subr.mxu0 0.0
        %5941 = vmatpush1.msra.mxu0 0.0
        %5942 = vmatprep.subr.mxu0 0.0
        %5943 = vmatpush1.msra.mxu0 0.0
        %5944 = vmatprep.subr.mxu0 0.0
        %5945 = vmatpush1.msra.mxu0 0.0
        %5946 = vmatprep.subr.mxu0 0.0
        %5947 = vmatpush1.msra.mxu0 0.0
        %5948 = vmatprep.subr.mxu0 0.0
        %5949 = vmatpush1.msra.mxu0 0.0
        %5950 = vmatprep.subr.mxu0 0.0
        %5951 = vmatpush1.msra.mxu0 0.0
        %5952 = vmatprep.subr.mxu0 0.0
        %5953 = vmatpush1.msra.mxu0 0.0
        %5954 = vmatprep.subr.mxu0 0.0
        %5955 = vmatpush1.msra.mxu0 0.0
        %5956 = vmatprep.subr.mxu0 0.0
        %5957 = vmatpush1.msra.mxu0 0.0
        %5958 = vmatprep.subr.mxu0 0.0
        %5959 = vmatpush1.msra.mxu0 0.0
        %5960 = vmatprep.subr.mxu0 0.0
        %5961 = vmatpush1.msra.mxu0 0.0
        %5962 = vmatprep.subr.mxu0 0.0
        %5963 = vmatpush1.msra.mxu0 0.0
        %5964 = vmatprep.subr.mxu0 0.0
        %5965 = vmatpush1.msra.mxu0 0.0
        %5966 = vmatprep.subr.mxu0 0.0
        %5967 = vmatpush1.msra.mxu0 0.0
        %5968 = vmatprep.subr.mxu0 0.0
        %5969 = vmatpush1.msra.mxu0 0.0
        %5970 = vmatprep.mubr.f32.mxu0 0.0
        %5971 = vmatmul.mubr.f32.gmra.mrb[0].mxu0 %v5472
        %v5972 = vpop.f32.mrb[0].mxu0
        %v5973 = vadd.f32 0.0, %v5972
        %v5974 = vpop.f32.mrb[0].mxu0
        %5975 = vdwg.mxu0
        %v5976 = vadd.f32 %v5905, %v5973
        %5977 = vmatprep.subr.mxu0 0.0
        %5978 = vmatpush1.msra.mxu0 %v4625
        %5979 = vmatprep.subr.mxu0 0.0
        %5980 = vmatpush1.msra.mxu0 %v4626
        %5981 = vmatprep.subr.mxu0 0.0
        %5982 = vmatpush1.msra.mxu0 %v4627
        %5983 = vmatprep.subr.mxu0 0.0
        %5984 = vmatpush1.msra.mxu0 %v4628
        %5985 = vmatprep.subr.mxu0 0.0
        %5986 = vmatpush1.msra.mxu0 %v4629
        %5987 = vmatprep.subr.mxu0 0.0
        %5988 = vmatpush1.msra.mxu0 %v4630
        %5989 = vmatprep.subr.mxu0 0.0
        %5990 = vmatpush1.msra.mxu0 %v4631
        %5991 = vmatprep.subr.mxu0 0.0
        %5992 = vmatpush1.msra.mxu0 %v4632
        %5993 = vmatprep.subr.mxu0 0.0
        %5994 = vmatpush1.msra.mxu0 0.0
        %5995 = vmatprep.subr.mxu0 0.0
        %5996 = vmatpush1.msra.mxu0 0.0
        %5997 = vmatprep.subr.mxu0 0.0
        %5998 = vmatpush1.msra.mxu0 0.0
        %5999 = vmatprep.subr.mxu0 0.0
        %6000 = vmatpush1.msra.mxu0 0.0
        %6001 = vmatprep.subr.mxu0 0.0
        %6002 = vmatpush1.msra.mxu0 0.0
        %6003 = vmatprep.subr.mxu0 0.0
        %6004 = vmatpush1.msra.mxu0 0.0
        %6005 = vmatprep.subr.mxu0 0.0
        %6006 = vmatpush1.msra.mxu0 0.0
        %6007 = vmatprep.subr.mxu0 0.0
        %6008 = vmatpush1.msra.mxu0 0.0
        %6009 = vmatprep.subr.mxu0 0.0
        %6010 = vmatpush1.msra.mxu0 0.0
        %6011 = vmatprep.subr.mxu0 0.0
        %6012 = vmatpush1.msra.mxu0 0.0
        %6013 = vmatprep.subr.mxu0 0.0
        %6014 = vmatpush1.msra.mxu0 0.0
        %6015 = vmatprep.subr.mxu0 0.0
        %6016 = vmatpush1.msra.mxu0 0.0
        %6017 = vmatprep.subr.mxu0 0.0
        %6018 = vmatpush1.msra.mxu0 0.0
        %6019 = vmatprep.subr.mxu0 0.0
        %6020 = vmatpush1.msra.mxu0 0.0
        %6021 = vmatprep.subr.mxu0 0.0
        %6022 = vmatpush1.msra.mxu0 0.0
        %6023 = vmatprep.subr.mxu0 0.0
        %6024 = vmatpush1.msra.mxu0 0.0
        %6025 = vmatprep.subr.mxu0 0.0
        %6026 = vmatpush1.msra.mxu0 0.0
        %6027 = vmatprep.subr.mxu0 0.0
        %6028 = vmatpush1.msra.mxu0 0.0
        %6029 = vmatprep.subr.mxu0 0.0
        %6030 = vmatpush1.msra.mxu0 0.0
        %6031 = vmatprep.subr.mxu0 0.0
        %6032 = vmatpush1.msra.mxu0 0.0
        %6033 = vmatprep.subr.mxu0 0.0
        %6034 = vmatpush1.msra.mxu0 0.0
        %6035 = vmatprep.subr.mxu0 0.0
        %6036 = vmatpush1.msra.mxu0 0.0
        %6037 = vmatprep.subr.mxu0 0.0
        %6038 = vmatpush1.msra.mxu0 0.0
        %6039 = vmatprep.subr.mxu0 0.0
        %6040 = vmatpush1.msra.mxu0 0.0
        %6041 = vmatprep.mubr.f32.mxu0 0.0
        %6042 = vmatmul.mubr.f32.gmra.mrb[0].mxu0 %v5546
        %v6043 = vpop.f32.mrb[0].mxu0
        %v6044 = vadd.f32 0.0, %v6043
        %v6045 = vpop.f32.mrb[0].mxu0
        %6046 = vdwg.mxu0
        %v6047 = vadd.f32 %v5976, %v6044
        %6048 = vmatprep.subr.mxu0 0.0
        %6049 = vmatpush1.msra.mxu0 %v4708
        %6050 = vmatprep.subr.mxu0 0.0
        %6051 = vmatpush1.msra.mxu0 %v4709
        %6052 = vmatprep.subr.mxu0 0.0
        %6053 = vmatpush1.msra.mxu0 %v4710
        %6054 = vmatprep.subr.mxu0 0.0
        %6055 = vmatpush1.msra.mxu0 %v4711
        %6056 = vmatprep.subr.mxu0 0.0
        %6057 = vmatpush1.msra.mxu0 %v4712
        %6058 = vmatprep.subr.mxu0 0.0
        %6059 = vmatpush1.msra.mxu0 %v4713
        %6060 = vmatprep.subr.mxu0 0.0
        %6061 = vmatpush1.msra.mxu0 %v4714
        %6062 = vmatprep.subr.mxu0 0.0
        %6063 = vmatpush1.msra.mxu0 %v4715
        %6064 = vmatprep.subr.mxu0 0.0
        %6065 = vmatpush1.msra.mxu0 0.0
        %6066 = vmatprep.subr.mxu0 0.0
        %6067 = vmatpush1.msra.mxu0 0.0
        %6068 = vmatprep.subr.mxu0 0.0
        %6069 = vmatpush1.msra.mxu0 0.0
        %6070 = vmatprep.subr.mxu0 0.0
        %6071 = vmatpush1.msra.mxu0 0.0
        %6072 = vmatprep.subr.mxu0 0.0
        %6073 = vmatpush1.msra.mxu0 0.0
        %6074 = vmatprep.subr.mxu0 0.0
        %6075 = vmatpush1.msra.mxu0 0.0
        %6076 = vmatprep.subr.mxu0 0.0
        %6077 = vmatpush1.msra.mxu0 0.0
        %6078 = vmatprep.subr.mxu0 0.0
        %6079 = vmatpush1.msra.mxu0 0.0
        %6080 = vmatprep.subr.mxu0 0.0
        %6081 = vmatpush1.msra.mxu0 0.0
        %6082 = vmatprep.subr.mxu0 0.0
        %6083 = vmatpush1.msra.mxu0 0.0
        %6084 = vmatprep.subr.mxu0 0.0
        %6085 = vmatpush1.msra.mxu0 0.0
        %6086 = vmatprep.subr.mxu0 0.0
        %6087 = vmatpush1.msra.mxu0 0.0
        %6088 = vmatprep.subr.mxu0 0.0
        %6089 = vmatpush1.msra.mxu0 0.0
        %6090 = vmatprep.subr.mxu0 0.0
        %6091 = vmatpush1.msra.mxu0 0.0
        %6092 = vmatprep.subr.mxu0 0.0
        %6093 = vmatpush1.msra.mxu0 0.0
        %6094 = vmatprep.subr.mxu0 0.0
        %6095 = vmatpush1.msra.mxu0 0.0
        %6096 = vmatprep.subr.mxu0 0.0
        %6097 = vmatpush1.msra.mxu0 0.0
        %6098 = vmatprep.subr.mxu0 0.0
        %6099 = vmatpush1.msra.mxu0 0.0
        %6100 = vmatprep.subr.mxu0 0.0
        %6101 = vmatpush1.msra.mxu0 0.0
        %6102 = vmatprep.subr.mxu0 0.0
        %6103 = vmatpush1.msra.mxu0 0.0
        %6104 = vmatprep.subr.mxu0 0.0
        %6105 = vmatpush1.msra.mxu0 0.0
        %6106 = vmatprep.subr.mxu0 0.0
        %6107 = vmatpush1.msra.mxu0 0.0
        %6108 = vmatprep.subr.mxu0 0.0
        %6109 = vmatpush1.msra.mxu0 0.0
        %6110 = vmatprep.subr.mxu0 0.0
        %6111 = vmatpush1.msra.mxu0 0.0
        %6112 = vmatprep.mubr.f32.mxu0 0.0
        %6113 = vmatmul.mubr.f32.gmra.mrb[0].mxu0 %v5620
        %v6114 = vpop.f32.mrb[0].mxu0
        %v6115 = vadd.f32 0.0, %v6114
        %v6116 = vpop.f32.mrb[0].mxu0
        %6117 = vdwg.mxu0
        %v6118 = vadd.f32 %v6047, %v6115
        %v6120 = vsel %vm4313, %v4149, 0
        %6122 = vmatprep.subr.mxu0 0.0
        %6123 = vmatpush1.msra.mxu0 %v4791
        %6124 = vmatprep.subr.mxu0 0.0
        %6125 = vmatpush1.msra.mxu0 %v4792
        %6126 = vmatprep.subr.mxu0 0.0
        %6127 = vmatpush1.msra.mxu0 %v4793
        %6128 = vmatprep.subr.mxu0 0.0
        %6129 = vmatpush1.msra.mxu0 %v4794
        %6130 = vmatprep.subr.mxu0 0.0
        %6131 = vmatpush1.msra.mxu0 %v4795
        %6132 = vmatprep.subr.mxu0 0.0
        %6133 = vmatpush1.msra.mxu0 %v4796
        %6134 = vmatprep.subr.mxu0 0.0
        %6135 = vmatpush1.msra.mxu0 %v4797
        %6136 = vmatprep.subr.mxu0 0.0
        %6137 = vmatpush1.msra.mxu0 %v4798
        %6138 = vmatprep.subr.mxu0 0.0
        %6139 = vmatpush1.msra.mxu0 0.0
        %6140 = vmatprep.subr.mxu0 0.0
        %6141 = vmatpush1.msra.mxu0 0.0
        %6142 = vmatprep.subr.mxu0 0.0
        %6143 = vmatpush1.msra.mxu0 0.0
        %6144 = vmatprep.subr.mxu0 0.0
        %6145 = vmatpush1.msra.mxu0 0.0
        %6146 = vmatprep.subr.mxu0 0.0
        %6147 = vmatpush1.msra.mxu0 0.0
        %6148 = vmatprep.subr.mxu0 0.0
        %6149 = vmatpush1.msra.mxu0 0.0
        %6150 = vmatprep.subr.mxu0 0.0
        %6151 = vmatpush1.msra.mxu0 0.0
        %6152 = vmatprep.subr.mxu0 0.0
        %6153 = vmatpush1.msra.mxu0 0.0
        %6154 = vmatprep.subr.mxu0 0.0
        %6155 = vmatpush1.msra.mxu0 0.0
        %6156 = vmatprep.subr.mxu0 0.0
        %6157 = vmatpush1.msra.mxu0 0.0
        %6158 = vmatprep.subr.mxu0 0.0
        %6159 = vmatpush1.msra.mxu0 0.0
        %6160 = vmatprep.subr.mxu0 0.0
        %6161 = vmatpush1.msra.mxu0 0.0
        %6162 = vmatprep.subr.mxu0 0.0
        %6163 = vmatpush1.msra.mxu0 0.0
        %6164 = vmatprep.subr.mxu0 0.0
        %6165 = vmatpush1.msra.mxu0 0.0
        %6166 = vmatprep.subr.mxu0 0.0
        %6167 = vmatpush1.msra.mxu0 0.0
        %6168 = vmatprep.subr.mxu0 0.0
        %6169 = vmatpush1.msra.mxu0 0.0
        %6170 = vmatprep.subr.mxu0 0.0
        %6171 = vmatpush1.msra.mxu0 0.0
        %6172 = vmatprep.subr.mxu0 0.0
        %6173 = vmatpush1.msra.mxu0 0.0
        %6174 = vmatprep.subr.mxu0 0.0
        %6175 = vmatpush1.msra.mxu0 0.0
        %6176 = vmatprep.subr.mxu0 0.0
        %6177 = vmatpush1.msra.mxu0 0.0
        %6178 = vmatprep.subr.mxu0 0.0
        %6179 = vmatpush1.msra.mxu0 0.0
        %6180 = vmatprep.subr.mxu0 0.0
        %6181 = vmatpush1.msra.mxu0 0.0
        %6182 = vmatprep.subr.mxu0 0.0
        %6183 = vmatpush1.msra.mxu0 0.0
        %6184 = vmatprep.subr.mxu0 0.0
        %6185 = vmatpush1.msra.mxu0 0.0
        %6186 = vmatprep.mubr.f32.mxu0 0.0
        %6187 = vmatmul.mubr.f32.gmra.mrb[0].mxu0 %v6120
        %v6188 = vpop.f32.mrb[0].mxu0
        %v6189 = vadd.f32 0.0, %v6188
        %v6190 = vpop.f32.mrb[0].mxu0
        %6191 = vdwg.mxu0
        %v6192 = vadd.f32 %v6118, %v6189
        %v6193 = vrot.slane %v4149, 1
        %v6194 = vsel %vm4313, %v6193, 0
        %6196 = vmatprep.subr.mxu0 0.0
        %6197 = vmatpush1.msra.mxu0 %v4874
        %6198 = vmatprep.subr.mxu0 0.0
        %6199 = vmatpush1.msra.mxu0 %v4875
        %6200 = vmatprep.subr.mxu0 0.0
        %6201 = vmatpush1.msra.mxu0 %v4876
        %6202 = vmatprep.subr.mxu0 0.0
        %6203 = vmatpush1.msra.mxu0 %v4877
        %6204 = vmatprep.subr.mxu0 0.0
        %6205 = vmatpush1.msra.mxu0 %v4878
        %6206 = vmatprep.subr.mxu0 0.0
        %6207 = vmatpush1.msra.mxu0 %v4879
        %6208 = vmatprep.subr.mxu0 0.0
        %6209 = vmatpush1.msra.mxu0 %v4880
        %6210 = vmatprep.subr.mxu0 0.0
        %6211 = vmatpush1.msra.mxu0 %v4881
        %6212 = vmatprep.subr.mxu0 0.0
        %6213 = vmatpush1.msra.mxu0 0.0
        %6214 = vmatprep.subr.mxu0 0.0
        %6215 = vmatpush1.msra.mxu0 0.0
        %6216 = vmatprep.subr.mxu0 0.0
        %6217 = vmatpush1.msra.mxu0 0.0
        %6218 = vmatprep.subr.mxu0 0.0
        %6219 = vmatpush1.msra.mxu0 0.0
        %6220 = vmatprep.subr.mxu0 0.0
        %6221 = vmatpush1.msra.mxu0 0.0
        %6222 = vmatprep.subr.mxu0 0.0
        %6223 = vmatpush1.msra.mxu0 0.0
        %6224 = vmatprep.subr.mxu0 0.0
        %6225 = vmatpush1.msra.mxu0 0.0
        %6226 = vmatprep.subr.mxu0 0.0
        %6227 = vmatpush1.msra.mxu0 0.0
        %6228 = vmatprep.subr.mxu0 0.0
        %6229 = vmatpush1.msra.mxu0 0.0
        %6230 = vmatprep.subr.mxu0 0.0
        %6231 = vmatpush1.msra.mxu0 0.0
        %6232 = vmatprep.subr.mxu0 0.0
        %6233 = vmatpush1.msra.mxu0 0.0
        %6234 = vmatprep.subr.mxu0 0.0
        %6235 = vmatpush1.msra.mxu0 0.0
        %6236 = vmatprep.subr.mxu0 0.0
        %6237 = vmatpush1.msra.mxu0 0.0
        %6238 = vmatprep.subr.mxu0 0.0
        %6239 = vmatpush1.msra.mxu0 0.0
        %6240 = vmatprep.subr.mxu0 0.0
        %6241 = vmatpush1.msra.mxu0 0.0
        %6242 = vmatprep.subr.mxu0 0.0
        %6243 = vmatpush1.msra.mxu0 0.0
        %6244 = vmatprep.subr.mxu0 0.0
        %6245 = vmatpush1.msra.mxu0 0.0
        %6246 = vmatprep.subr.mxu0 0.0
        %6247 = vmatpush1.msra.mxu0 0.0
        %6248 = vmatprep.subr.mxu0 0.0
        %6249 = vmatpush1.msra.mxu0 0.0
        %6250 = vmatprep.subr.mxu0 0.0
        %6251 = vmatpush1.msra.mxu0 0.0
        %6252 = vmatprep.subr.mxu0 0.0
        %6253 = vmatpush1.msra.mxu0 0.0
        %6254 = vmatprep.subr.mxu0 0.0
        %6255 = vmatpush1.msra.mxu0 0.0
        %6256 = vmatprep.subr.mxu0 0.0
        %6257 = vmatpush1.msra.mxu0 0.0
        %6258 = vmatprep.subr.mxu0 0.0
        %6259 = vmatpush1.msra.mxu0 0.0
        %6260 = vmatprep.mubr.f32.mxu0 0.0
        %6261 = vmatmul.mubr.f32.gmra.mrb[0].mxu0 %v6194
        %v6262 = vpop.f32.mrb[0].mxu0
        %v6263 = vadd.f32 0.0, %v6262
        %v6264 = vpop.f32.mrb[0].mxu0
        %6265 = vdwg.mxu0
        %v6266 = vadd.f32 %v6192, %v6263
        %v6267 = vrot.slane %v4149, 2
        %v6268 = vsel %vm4313, %v6267, 0
        %6270 = vmatprep.subr.mxu0 0.0
        %6271 = vmatpush1.msra.mxu0 %v4957
        %6272 = vmatprep.subr.mxu0 0.0
        %6273 = vmatpush1.msra.mxu0 %v4958
        %6274 = vmatprep.subr.mxu0 0.0
        %6275 = vmatpush1.msra.mxu0 %v4959
        %6276 = vmatprep.subr.mxu0 0.0
        %6277 = vmatpush1.msra.mxu0 %v4960
        %6278 = vmatprep.subr.mxu0 0.0
        %6279 = vmatpush1.msra.mxu0 %v4961
        %6280 = vmatprep.subr.mxu0 0.0
        %6281 = vmatpush1.msra.mxu0 %v4962
        %6282 = vmatprep.subr.mxu0 0.0
        %6283 = vmatpush1.msra.mxu0 %v4963
        %6284 = vmatprep.subr.mxu0 0.0
        %6285 = vmatpush1.msra.mxu0 %v4964
        %6286 = vmatprep.subr.mxu0 0.0
        %6287 = vmatpush1.msra.mxu0 0.0
        %6288 = vmatprep.subr.mxu0 0.0
        %6289 = vmatpush1.msra.mxu0 0.0
        %6290 = vmatprep.subr.mxu0 0.0
        %6291 = vmatpush1.msra.mxu0 0.0
        %6292 = vmatprep.subr.mxu0 0.0
        %6293 = vmatpush1.msra.mxu0 0.0
        %6294 = vmatprep.subr.mxu0 0.0
        %6295 = vmatpush1.msra.mxu0 0.0
        %6296 = vmatprep.subr.mxu0 0.0
        %6297 = vmatpush1.msra.mxu0 0.0
        %6298 = vmatprep.subr.mxu0 0.0
        %6299 = vmatpush1.msra.mxu0 0.0
        %6300 = vmatprep.subr.mxu0 0.0
        %6301 = vmatpush1.msra.mxu0 0.0
        %6302 = vmatprep.subr.mxu0 0.0
        %6303 = vmatpush1.msra.mxu0 0.0
        %6304 = vmatprep.subr.mxu0 0.0
        %6305 = vmatpush1.msra.mxu0 0.0
        %6306 = vmatprep.subr.mxu0 0.0
        %6307 = vmatpush1.msra.mxu0 0.0
        %6308 = vmatprep.subr.mxu0 0.0
        %6309 = vmatpush1.msra.mxu0 0.0
        %6310 = vmatprep.subr.mxu0 0.0
        %6311 = vmatpush1.msra.mxu0 0.0
        %6312 = vmatprep.subr.mxu0 0.0
        %6313 = vmatpush1.msra.mxu0 0.0
        %6314 = vmatprep.subr.mxu0 0.0
        %6315 = vmatpush1.msra.mxu0 0.0
        %6316 = vmatprep.subr.mxu0 0.0
        %6317 = vmatpush1.msra.mxu0 0.0
        %6318 = vmatprep.subr.mxu0 0.0
        %6319 = vmatpush1.msra.mxu0 0.0
        %6320 = vmatprep.subr.mxu0 0.0
        %6321 = vmatpush1.msra.mxu0 0.0
        %6322 = vmatprep.subr.mxu0 0.0
        %6323 = vmatpush1.msra.mxu0 0.0
        %6324 = vmatprep.subr.mxu0 0.0
        %6325 = vmatpush1.msra.mxu0 0.0
        %6326 = vmatprep.subr.mxu0 0.0
        %6327 = vmatpush1.msra.mxu0 0.0
        %6328 = vmatprep.subr.mxu0 0.0
        %6329 = vmatpush1.msra.mxu0 0.0
        %6330 = vmatprep.subr.mxu0 0.0
        %6331 = vmatpush1.msra.mxu0 0.0
        %6332 = vmatprep.subr.mxu0 0.0
        %6333 = vmatpush1.msra.mxu0 0.0
        %6334 = vmatprep.mubr.f32.mxu0 0.0
        %6335 = vmatmul.mubr.f32.gmra.mrb[0].mxu0 %v6268
        %v6336 = vpop.f32.mrb[0].mxu0
        %v6337 = vadd.f32 0.0, %v6336
        %v6338 = vpop.f32.mrb[0].mxu0
        %6339 = vdwg.mxu0
        %v6340 = vadd.f32 %v6266, %v6337
        %v6341 = vadd.f32 %v6340, %v5043
        %v6342 = vmax.f32 %v6341, 0.0
        %6343 = vmatprep.subr.mxu0 0.0
        %6344 = vmatpush1.msra.mxu0 %v4303
        %6345 = vmatprep.subr.mxu0 0.0
        %6346 = vmatpush1.msra.mxu0 %v4304
        %6347 = vmatprep.subr.mxu0 0.0
        %6348 = vmatpush1.msra.mxu0 %v4305
        %6349 = vmatprep.subr.mxu0 0.0
        %6350 = vmatpush1.msra.mxu0 %v4306
        %6351 = vmatprep.subr.mxu0 0.0
        %6352 = vmatpush1.msra.mxu0 %v4307
        %6353 = vmatprep.subr.mxu0 0.0
        %6354 = vmatpush1.msra.mxu0 %v4308
        %6355 = vmatprep.subr.mxu0 0.0
        %6356 = vmatpush1.msra.mxu0 %v4309
        %6357 = vmatprep.subr.mxu0 0.0
        %6358 = vmatpush1.msra.mxu0 %v4310
        %6359 = vmatprep.subr.mxu0 0.0
        %6360 = vmatpush1.msra.mxu0 0.0
        %6361 = vmatprep.subr.mxu0 0.0
        %6362 = vmatpush1.msra.mxu0 0.0
        %6363 = vmatprep.subr.mxu0 0.0
        %6364 = vmatpush1.msra.mxu0 0.0
        %6365 = vmatprep.subr.mxu0 0.0
        %6366 = vmatpush1.msra.mxu0 0.0
        %6367 = vmatprep.subr.mxu0 0.0
        %6368 = vmatpush1.msra.mxu0 0.0
        %6369 = vmatprep.subr.mxu0 0.0
        %6370 = vmatpush1.msra.mxu0 0.0
        %6371 = vmatprep.subr.mxu0 0.0
        %6372 = vmatpush1.msra.mxu0 0.0
        %6373 = vmatprep.subr.mxu0 0.0
        %6374 = vmatpush1.msra.mxu0 0.0
        %6375 = vmatprep.subr.mxu0 0.0
        %6376 = vmatpush1.msra.mxu0 0.0
        %6377 = vmatprep.subr.mxu0 0.0
        %6378 = vmatpush1.msra.mxu0 0.0
        %6379 = vmatprep.subr.mxu0 0.0
        %6380 = vmatpush1.msra.mxu0 0.0
        %6381 = vmatprep.subr.mxu0 0.0
        %6382 = vmatpush1.msra.mxu0 0.0
        %6383 = vmatprep.subr.mxu0 0.0
        %6384 = vmatpush1.msra.mxu0 0.0
        %6385 = vmatprep.subr.mxu0 0.0
        %6386 = vmatpush1.msra.mxu0 0.0
        %6387 = vmatprep.subr.mxu0 0.0
        %6388 = vmatpush1.msra.mxu0 0.0
        %6389 = vmatprep.subr.mxu0 0.0
        %6390 = vmatpush1.msra.mxu0 0.0
        %6391 = vmatprep.subr.mxu0 0.0
        %6392 = vmatpush1.msra.mxu0 0.0
        %6393 = vmatprep.subr.mxu0 0.0
        %6394 = vmatpush1.msra.mxu0 0.0
        %6395 = vmatprep.subr.mxu0 0.0
        %6396 = vmatpush1.msra.mxu0 0.0
        %6397 = vmatprep.subr.mxu0 0.0
        %6398 = vmatpush1.msra.mxu0 0.0
        %6399 = vmatprep.subr.mxu0 0.0
        %6400 = vmatpush1.msra.mxu0 0.0
        %6401 = vmatprep.subr.mxu0 0.0
        %6402 = vmatpush1.msra.mxu0 0.0
        %6403 = vmatprep.subr.mxu0 0.0
        %6404 = vmatpush1.msra.mxu0 0.0
        %6405 = vmatprep.subr.mxu0 0.0
        %6406 = vmatpush1.msra.mxu0 0.0
        %6407 = vmatprep.mubr.f32.mxu0 0.0
        %6408 = vmatmul.mubr.f32.gmra.mrb[0].mxu0 %v5546
        %v6409 = vpop.f32.mrb[0].mxu0
        %v6410 = vadd.f32 0.0, %v6409
        %v6411 = vpop.f32.mrb[0].mxu0
        %6412 = vdwg.mxu0
        %6413 = vmatprep.subr.mxu0 0.0
        %6414 = vmatpush1.msra.mxu0 %v4294
        %6415 = vmatprep.subr.mxu0 0.0
        %6416 = vmatpush1.msra.mxu0 %v4295
        %6417 = vmatprep.subr.mxu0 0.0
        %6418 = vmatpush1.msra.mxu0 %v4296
        %6419 = vmatprep.subr.mxu0 0.0
        %6420 = vmatpush1.msra.mxu0 %v4297
        %6421 = vmatprep.subr.mxu0 0.0
        %6422 = vmatpush1.msra.mxu0 %v4298
        %6423 = vmatprep.subr.mxu0 0.0
        %6424 = vmatpush1.msra.mxu0 %v4299
        %6425 = vmatprep.subr.mxu0 0.0
        %6426 = vmatpush1.msra.mxu0 %v4300
        %6427 = vmatprep.subr.mxu0 0.0
        %6428 = vmatpush1.msra.mxu0 %v4301
        %6429 = vmatprep.subr.mxu0 0.0
        %6430 = vmatpush1.msra.mxu0 0.0
        %6431 = vmatprep.subr.mxu0 0.0
        %6432 = vmatpush1.msra.mxu0 0.0
        %6433 = vmatprep.subr.mxu0 0.0
        %6434 = vmatpush1.msra.mxu0 0.0
        %6435 = vmatprep.subr.mxu0 0.0
        %6436 = vmatpush1.msra.mxu0 0.0
        %6437 = vmatprep.subr.mxu0 0.0
        %6438 = vmatpush1.msra.mxu0 0.0
        %6439 = vmatprep.subr.mxu0 0.0
        %6440 = vmatpush1.msra.mxu0 0.0
        %6441 = vmatprep.subr.mxu0 0.0
        %6442 = vmatpush1.msra.mxu0 0.0
        %6443 = vmatprep.subr.mxu0 0.0
        %6444 = vmatpush1.msra.mxu0 0.0
        %6445 = vmatprep.subr.mxu0 0.0
        %6446 = vmatpush1.msra.mxu0 0.0
        %6447 = vmatprep.subr.mxu0 0.0
        %6448 = vmatpush1.msra.mxu0 0.0
        %6449 = vmatprep.subr.mxu0 0.0
        %6450 = vmatpush1.msra.mxu0 0.0
        %6451 = vmatprep.subr.mxu0 0.0
        %6452 = vmatpush1.msra.mxu0 0.0
        %6453 = vmatprep.subr.mxu0 0.0
        %6454 = vmatpush1.msra.mxu0 0.0
        %6455 = vmatprep.subr.mxu0 0.0
        %6456 = vmatpush1.msra.mxu0 0.0
        %6457 = vmatprep.subr.mxu0 0.0
        %6458 = vmatpush1.msra.mxu0 0.0
        %6459 = vmatprep.subr.mxu0 0.0
        %6460 = vmatpush1.msra.mxu0 0.0
        %6461 = vmatprep.subr.mxu0 0.0
        %6462 = vmatpush1.msra.mxu0 0.0
        %6463 = vmatprep.subr.mxu0 0.0
        %6464 = vmatpush1.msra.mxu0 0.0
        %6465 = vmatprep.subr.mxu0 0.0
        %6466 = vmatpush1.msra.mxu0 0.0
        %6467 = vmatprep.subr.mxu0 0.0
        %6468 = vmatpush1.msra.mxu0 0.0
        %6469 = vmatprep.subr.mxu0 0.0
        %6470 = vmatpush1.msra.mxu0 0.0
        %6471 = vmatprep.subr.mxu0 0.0
        %6472 = vmatpush1.msra.mxu0 0.0
        %6473 = vmatprep.subr.mxu0 0.0
        %6474 = vmatpush1.msra.mxu0 0.0
        %6475 = vmatprep.subr.mxu0 0.0
        %6476 = vmatpush1.msra.mxu0 0.0
        %6477 = vmatprep.mubr.f32.mxu0 0.0
        %6478 = vmatmul.mubr.f32.gmra.mrb[0].mxu0 %v5472
        %v6479 = vpop.f32.mrb[0].mxu0
        %v6480 = vadd.f32 %v6410, %v6479
        %v6481 = vpop.f32.mrb[0].mxu0
        %6482 = vdwg.mxu0
        %6483 = vmatprep.subr.mxu0 0.0
        %6484 = vmatpush1.msra.mxu0 %v4459
        %6485 = vmatprep.subr.mxu0 0.0
        %6486 = vmatpush1.msra.mxu0 %v4460
        %6487 = vmatprep.subr.mxu0 0.0
        %6488 = vmatpush1.msra.mxu0 %v4461
        %6489 = vmatprep.subr.mxu0 0.0
        %6490 = vmatpush1.msra.mxu0 %v4462
        %6491 = vmatprep.subr.mxu0 0.0
        %6492 = vmatpush1.msra.mxu0 %v4463
        %6493 = vmatprep.subr.mxu0 0.0
        %6494 = vmatpush1.msra.mxu0 %v4464
        %6495 = vmatprep.subr.mxu0 0.0
        %6496 = vmatpush1.msra.mxu0 %v4465
        %6497 = vmatprep.subr.mxu0 0.0
        %6498 = vmatpush1.msra.mxu0 %v4466
        %6499 = vmatprep.subr.mxu0 0.0
        %6500 = vmatpush1.msra.mxu0 0.0
        %6501 = vmatprep.subr.mxu0 0.0
        %6502 = vmatpush1.msra.mxu0 0.0
        %6503 = vmatprep.subr.mxu0 0.0
        %6504 = vmatpush1.msra.mxu0 0.0
        %6505 = vmatprep.subr.mxu0 0.0
        %6506 = vmatpush1.msra.mxu0 0.0
        %6507 = vmatprep.subr.mxu0 0.0
        %6508 = vmatpush1.msra.mxu0 0.0
        %6509 = vmatprep.subr.mxu0 0.0
        %6510 = vmatpush1.msra.mxu0 0.0
        %6511 = vmatprep.subr.mxu0 0.0
        %6512 = vmatpush1.msra.mxu0 0.0
        %6513 = vmatprep.subr.mxu0 0.0
        %6514 = vmatpush1.msra.mxu0 0.0
        %6515 = vmatprep.subr.mxu0 0.0
        %6516 = vmatpush1.msra.mxu0 0.0
        %6517 = vmatprep.subr.mxu0 0.0
        %6518 = vmatpush1.msra.mxu0 0.0
        %6519 = vmatprep.subr.mxu0 0.0
        %6520 = vmatpush1.msra.mxu0 0.0
        %6521 = vmatprep.subr.mxu0 0.0
        %6522 = vmatpush1.msra.mxu0 0.0
        %6523 = vmatprep.subr.mxu0 0.0
        %6524 = vmatpush1.msra.mxu0 0.0
        %6525 = vmatprep.subr.mxu0 0.0
        %6526 = vmatpush1.msra.mxu0 0.0
        %6527 = vmatprep.subr.mxu0 0.0
        %6528 = vmatpush1.msra.mxu0 0.0
        %6529 = vmatprep.subr.mxu0 0.0
        %6530 = vmatpush1.msra.mxu0 0.0
        %6531 = vmatprep.subr.mxu0 0.0
        %6532 = vmatpush1.msra.mxu0 0.0
        %6533 = vmatprep.subr.mxu0 0.0
        %6534 = vmatpush1.msra.mxu0 0.0
        %6535 = vmatprep.subr.mxu0 0.0
        %6536 = vmatpush1.msra.mxu0 0.0
        %6537 = vmatprep.subr.mxu0 0.0
        %6538 = vmatpush1.msra.mxu0 0.0
        %6539 = vmatprep.subr.mxu0 0.0
        %6540 = vmatpush1.msra.mxu0 0.0
        %6541 = vmatprep.subr.mxu0 0.0
        %6542 = vmatpush1.msra.mxu0 0.0
        %6543 = vmatprep.subr.mxu0 0.0
        %6544 = vmatpush1.msra.mxu0 0.0
        %6545 = vmatprep.subr.mxu0 0.0
        %6546 = vmatpush1.msra.mxu0 0.0
        %6547 = vmatprep.mubr.f32.mxu0 0.0
        %6548 = vmatmul.mubr.f32.gmra.mrb[0].mxu0 %v5620
        %v6549 = vpop.f32.mrb[0].mxu0
        %v6550 = vadd.f32 0.0, %v6549
        %v6551 = vpop.f32.mrb[0].mxu0
        %6552 = vdwg.mxu0
        %v6553 = vadd.f32 %v6480, %v6550
        %6554 = vmatprep.subr.mxu0 0.0
        %6555 = vmatpush1.msra.mxu0 %v4542
        %6556 = vmatprep.subr.mxu0 0.0
        %6557 = vmatpush1.msra.mxu0 %v4543
        %6558 = vmatprep.subr.mxu0 0.0
        %6559 = vmatpush1.msra.mxu0 %v4544
        %6560 = vmatprep.subr.mxu0 0.0
        %6561 = vmatpush1.msra.mxu0 %v4545
        %6562 = vmatprep.subr.mxu0 0.0
        %6563 = vmatpush1.msra.mxu0 %v4546
        %6564 = vmatprep.subr.mxu0 0.0
        %6565 = vmatpush1.msra.mxu0 %v4547
        %6566 = vmatprep.subr.mxu0 0.0
        %6567 = vmatpush1.msra.mxu0 %v4548
        %6568 = vmatprep.subr.mxu0 0.0
        %6569 = vmatpush1.msra.mxu0 %v4549
        %6570 = vmatprep.subr.mxu0 0.0
        %6571 = vmatpush1.msra.mxu0 0.0
        %6572 = vmatprep.subr.mxu0 0.0
        %6573 = vmatpush1.msra.mxu0 0.0
        %6574 = vmatprep.subr.mxu0 0.0
        %6575 = vmatpush1.msra.mxu0 0.0
        %6576 = vmatprep.subr.mxu0 0.0
        %6577 = vmatpush1.msra.mxu0 0.0
        %6578 = vmatprep.subr.mxu0 0.0
        %6579 = vmatpush1.msra.mxu0 0.0
        %6580 = vmatprep.subr.mxu0 0.0
        %6581 = vmatpush1.msra.mxu0 0.0
        %6582 = vmatprep.subr.mxu0 0.0
        %6583 = vmatpush1.msra.mxu0 0.0
        %6584 = vmatprep.subr.mxu0 0.0
        %6585 = vmatpush1.msra.mxu0 0.0
        %6586 = vmatprep.subr.mxu0 0.0
        %6587 = vmatpush1.msra.mxu0 0.0
        %6588 = vmatprep.subr.mxu0 0.0
        %6589 = vmatpush1.msra.mxu0 0.0
        %6590 = vmatprep.subr.mxu0 0.0
        %6591 = vmatpush1.msra.mxu0 0.0
        %6592 = vmatprep.subr.mxu0 0.0
        %6593 = vmatpush1.msra.mxu0 0.0
        %6594 = vmatprep.subr.mxu0 0.0
        %6595 = vmatpush1.msra.mxu0 0.0
        %6596 = vmatprep.subr.mxu0 0.0
        %6597 = vmatpush1.msra.mxu0 0.0
        %6598 = vmatprep.subr.mxu0 0.0
        %6599 = vmatpush1.msra.mxu0 0.0
        %6600 = vmatprep.subr.mxu0 0.0
        %6601 = vmatpush1.msra.mxu0 0.0
        %6602 = vmatprep.subr.mxu0 0.0
        %6603 = vmatpush1.msra.mxu0 0.0
        %6604 = vmatprep.subr.mxu0 0.0
        %6605 = vmatpush1.msra.mxu0 0.0
        %6606 = vmatprep.subr.mxu0 0.0
        %6607 = vmatpush1.msra.mxu0 0.0
        %6608 = vmatprep.subr.mxu0 0.0
        %6609 = vmatpush1.msra.mxu0 0.0
        %6610 = vmatprep.subr.mxu0 0.0
        %6611 = vmatpush1.msra.mxu0 0.0
        %6612 = vmatprep.subr.mxu0 0.0
        %6613 = vmatpush1.msra.mxu0 0.0
        %6614 = vmatprep.subr.mxu0 0.0
        %6615 = vmatpush1.msra.mxu0 0.0
        %6616 = vmatprep.subr.mxu0 0.0
        %6617 = vmatpush1.msra.mxu0 0.0
        %6618 = vmatprep.mubr.f32.mxu0 0.0
        %6619 = vmatmul.mubr.f32.gmra.mrb[0].mxu0 %v6120
        %v6620 = vpop.f32.mrb[0].mxu0
        %v6621 = vadd.f32 0.0, %v6620
        %v6622 = vpop.f32.mrb[0].mxu0
        %6623 = vdwg.mxu0
        %v6624 = vadd.f32 %v6553, %v6621
        %6625 = vmatprep.subr.mxu0 0.0
        %6626 = vmatpush1.msra.mxu0 %v4625
        %6627 = vmatprep.subr.mxu0 0.0
        %6628 = vmatpush1.msra.mxu0 %v4626
        %6629 = vmatprep.subr.mxu0 0.0
        %6630 = vmatpush1.msra.mxu0 %v4627
        %6631 = vmatprep.subr.mxu0 0.0
        %6632 = vmatpush1.msra.mxu0 %v4628
        %6633 = vmatprep.subr.mxu0 0.0
        %6634 = vmatpush1.msra.mxu0 %v4629
        %6635 = vmatprep.subr.mxu0 0.0
        %6636 = vmatpush1.msra.mxu0 %v4630
        %6637 = vmatprep.subr.mxu0 0.0
        %6638 = vmatpush1.msra.mxu0 %v4631
        %6639 = vmatprep.subr.mxu0 0.0
        %6640 = vmatpush1.msra.mxu0 %v4632
        %6641 = vmatprep.subr.mxu0 0.0
        %6642 = vmatpush1.msra.mxu0 0.0
        %6643 = vmatprep.subr.mxu0 0.0
        %6644 = vmatpush1.msra.mxu0 0.0
        %6645 = vmatprep.subr.mxu0 0.0
        %6646 = vmatpush1.msra.mxu0 0.0
        %6647 = vmatprep.subr.mxu0 0.0
        %6648 = vmatpush1.msra.mxu0 0.0
        %6649 = vmatprep.subr.mxu0 0.0
        %6650 = vmatpush1.msra.mxu0 0.0
        %6651 = vmatprep.subr.mxu0 0.0
        %6652 = vmatpush1.msra.mxu0 0.0
        %6653 = vmatprep.subr.mxu0 0.0
        %6654 = vmatpush1.msra.mxu0 0.0
        %6655 = vmatprep.subr.mxu0 0.0
        %6656 = vmatpush1.msra.mxu0 0.0
        %6657 = vmatprep.subr.mxu0 0.0
        %6658 = vmatpush1.msra.mxu0 0.0
        %6659 = vmatprep.subr.mxu0 0.0
        %6660 = vmatpush1.msra.mxu0 0.0
        %6661 = vmatprep.subr.mxu0 0.0
        %6662 = vmatpush1.msra.mxu0 0.0
        %6663 = vmatprep.subr.mxu0 0.0
        %6664 = vmatpush1.msra.mxu0 0.0
        %6665 = vmatprep.subr.mxu0 0.0
        %6666 = vmatpush1.msra.mxu0 0.0
        %6667 = vmatprep.subr.mxu0 0.0
        %6668 = vmatpush1.msra.mxu0 0.0
        %6669 = vmatprep.subr.mxu0 0.0
        %6670 = vmatpush1.msra.mxu0 0.0
        %6671 = vmatprep.subr.mxu0 0.0
        %6672 = vmatpush1.msra.mxu0 0.0
        %6673 = vmatprep.subr.mxu0 0.0
        %6674 = vmatpush1.msra.mxu0 0.0
        %6675 = vmatprep.subr.mxu0 0.0
        %6676 = vmatpush1.msra.mxu0 0.0
        %6677 = vmatprep.subr.mxu0 0.0
        %6678 = vmatpush1.msra.mxu0 0.0
        %6679 = vmatprep.subr.mxu0 0.0
        %6680 = vmatpush1.msra.mxu0 0.0
        %6681 = vmatprep.subr.mxu0 0.0
        %6682 = vmatpush1.msra.mxu0 0.0
        %6683 = vmatprep.subr.mxu0 0.0
        %6684 = vmatpush1.msra.mxu0 0.0
        %6685 = vmatprep.subr.mxu0 0.0
        %6686 = vmatpush1.msra.mxu0 0.0
        %6687 = vmatprep.subr.mxu0 0.0
        %6688 = vmatpush1.msra.mxu0 0.0
        %6689 = vmatprep.mubr.f32.mxu0 0.0
        %6690 = vmatmul.mubr.f32.gmra.mrb[0].mxu0 %v6194
        %v6691 = vpop.f32.mrb[0].mxu0
        %v6692 = vadd.f32 0.0, %v6691
        %v6693 = vpop.f32.mrb[0].mxu0
        %6694 = vdwg.mxu0
        %v6695 = vadd.f32 %v6624, %v6692
        %6696 = vmatprep.subr.mxu0 0.0
        %6697 = vmatpush1.msra.mxu0 %v4708
        %6698 = vmatprep.subr.mxu0 0.0
        %6699 = vmatpush1.msra.mxu0 %v4709
        %6700 = vmatprep.subr.mxu0 0.0
        %6701 = vmatpush1.msra.mxu0 %v4710
        %6702 = vmatprep.subr.mxu0 0.0
        %6703 = vmatpush1.msra.mxu0 %v4711
        %6704 = vmatprep.subr.mxu0 0.0
        %6705 = vmatpush1.msra.mxu0 %v4712
        %6706 = vmatprep.subr.mxu0 0.0
        %6707 = vmatpush1.msra.mxu0 %v4713
        %6708 = vmatprep.subr.mxu0 0.0
        %6709 = vmatpush1.msra.mxu0 %v4714
        %6710 = vmatprep.subr.mxu0 0.0
        %6711 = vmatpush1.msra.mxu0 %v4715
        %6712 = vmatprep.subr.mxu0 0.0
        %6713 = vmatpush1.msra.mxu0 0.0
        %6714 = vmatprep.subr.mxu0 0.0
        %6715 = vmatpush1.msra.mxu0 0.0
        %6716 = vmatprep.subr.mxu0 0.0
        %6717 = vmatpush1.msra.mxu0 0.0
        %6718 = vmatprep.subr.mxu0 0.0
        %6719 = vmatpush1.msra.mxu0 0.0
        %6720 = vmatprep.subr.mxu0 0.0
        %6721 = vmatpush1.msra.mxu0 0.0
        %6722 = vmatprep.subr.mxu0 0.0
        %6723 = vmatpush1.msra.mxu0 0.0
        %6724 = vmatprep.subr.mxu0 0.0
        %6725 = vmatpush1.msra.mxu0 0.0
        %6726 = vmatprep.subr.mxu0 0.0
        %6727 = vmatpush1.msra.mxu0 0.0
        %6728 = vmatprep.subr.mxu0 0.0
        %6729 = vmatpush1.msra.mxu0 0.0
        %6730 = vmatprep.subr.mxu0 0.0
        %6731 = vmatpush1.msra.mxu0 0.0
        %6732 = vmatprep.subr.mxu0 0.0
        %6733 = vmatpush1.msra.mxu0 0.0
        %6734 = vmatprep.subr.mxu0 0.0
        %6735 = vmatpush1.msra.mxu0 0.0
        %6736 = vmatprep.subr.mxu0 0.0
        %6737 = vmatpush1.msra.mxu0 0.0
        %6738 = vmatprep.subr.mxu0 0.0
        %6739 = vmatpush1.msra.mxu0 0.0
        %6740 = vmatprep.subr.mxu0 0.0
        %6741 = vmatpush1.msra.mxu0 0.0
        %6742 = vmatprep.subr.mxu0 0.0
        %6743 = vmatpush1.msra.mxu0 0.0
        %6744 = vmatprep.subr.mxu0 0.0
        %6745 = vmatpush1.msra.mxu0 0.0
        %6746 = vmatprep.subr.mxu0 0.0
        %6747 = vmatpush1.msra.mxu0 0.0
        %6748 = vmatprep.subr.mxu0 0.0
        %6749 = vmatpush1.msra.mxu0 0.0
        %6750 = vmatprep.subr.mxu0 0.0
        %6751 = vmatpush1.msra.mxu0 0.0
        %6752 = vmatprep.subr.mxu0 0.0
        %6753 = vmatpush1.msra.mxu0 0.0
        %6754 = vmatprep.subr.mxu0 0.0
        %6755 = vmatpush1.msra.mxu0 0.0
        %6756 = vmatprep.subr.mxu0 0.0
        %6757 = vmatpush1.msra.mxu0 0.0
        %6758 = vmatprep.subr.mxu0 0.0
        %6759 = vmatpush1.msra.mxu0 0.0
        %6760 = vmatprep.mubr.f32.mxu0 0.0
        %6761 = vmatmul.mubr.f32.gmra.mrb[0].mxu0 %v6268
        %v6762 = vpop.f32.mrb[0].mxu0
        %v6763 = vadd.f32 0.0, %v6762
        %v6764 = vpop.f32.mrb[0].mxu0
        %6765 = vdwg.mxu0
        %v6766 = vadd.f32 %v6695, %v6763
        %v6768 = vsel %vm4313, %v4292, 0
        %6770 = vmatprep.subr.mxu0 0.0
        %6771 = vmatpush1.msra.mxu0 %v4791
        %6772 = vmatprep.subr.mxu0 0.0
        %6773 = vmatpush1.msra.mxu0 %v4792
        %6774 = vmatprep.subr.mxu0 0.0
        %6775 = vmatpush1.msra.mxu0 %v4793
        %6776 = vmatprep.subr.mxu0 0.0
        %6777 = vmatpush1.msra.mxu0 %v4794
        %6778 = vmatprep.subr.mxu0 0.0
        %6779 = vmatpush1.msra.mxu0 %v4795
        %6780 = vmatprep.subr.mxu0 0.0
        %6781 = vmatpush1.msra.mxu0 %v4796
        %6782 = vmatprep.subr.mxu0 0.0
        %6783 = vmatpush1.msra.mxu0 %v4797
        %6784 = vmatprep.subr.mxu0 0.0
        %6785 = vmatpush1.msra.mxu0 %v4798
        %6786 = vmatprep.subr.mxu0 0.0
        %6787 = vmatpush1.msra.mxu0 0.0
        %6788 = vmatprep.subr.mxu0 0.0
        %6789 = vmatpush1.msra.mxu0 0.0
        %6790 = vmatprep.subr.mxu0 0.0
        %6791 = vmatpush1.msra.mxu0 0.0
        %6792 = vmatprep.subr.mxu0 0.0
        %6793 = vmatpush1.msra.mxu0 0.0
        %6794 = vmatprep.subr.mxu0 0.0
        %6795 = vmatpush1.msra.mxu0 0.0
        %6796 = vmatprep.subr.mxu0 0.0
        %6797 = vmatpush1.msra.mxu0 0.0
        %6798 = vmatprep.subr.mxu0 0.0
        %6799 = vmatpush1.msra.mxu0 0.0
        %6800 = vmatprep.subr.mxu0 0.0
        %6801 = vmatpush1.msra.mxu0 0.0
        %6802 = vmatprep.subr.mxu0 0.0
        %6803 = vmatpush1.msra.mxu0 0.0
        %6804 = vmatprep.subr.mxu0 0.0
        %6805 = vmatpush1.msra.mxu0 0.0
        %6806 = vmatprep.subr.mxu0 0.0
        %6807 = vmatpush1.msra.mxu0 0.0
        %6808 = vmatprep.subr.mxu0 0.0
        %6809 = vmatpush1.msra.mxu0 0.0
        %6810 = vmatprep.subr.mxu0 0.0
        %6811 = vmatpush1.msra.mxu0 0.0
        %6812 = vmatprep.subr.mxu0 0.0
        %6813 = vmatpush1.msra.mxu0 0.0
        %6814 = vmatprep.subr.mxu0 0.0
        %6815 = vmatpush1.msra.mxu0 0.0
        %6816 = vmatprep.subr.mxu0 0.0
        %6817 = vmatpush1.msra.mxu0 0.0
        %6818 = vmatprep.subr.mxu0 0.0
        %6819 = vmatpush1.msra.mxu0 0.0
        %6820 = vmatprep.subr.mxu0 0.0
        %6821 = vmatpush1.msra.mxu0 0.0
        %6822 = vmatprep.subr.mxu0 0.0
        %6823 = vmatpush1.msra.mxu0 0.0
        %6824 = vmatprep.subr.mxu0 0.0
        %6825 = vmatpush1.msra.mxu0 0.0
        %6826 = vmatprep.subr.mxu0 0.0
        %6827 = vmatpush1.msra.mxu0 0.0
        %6828 = vmatprep.subr.mxu0 0.0
        %6829 = vmatpush1.msra.mxu0 0.0
        %6830 = vmatprep.subr.mxu0 0.0
        %6831 = vmatpush1.msra.mxu0 0.0
        %6832 = vmatprep.subr.mxu0 0.0
        %6833 = vmatpush1.msra.mxu0 0.0
        %6834 = vmatprep.mubr.f32.mxu0 0.0
        %6835 = vmatmul.mubr.f32.gmra.mrb[0].mxu0 %v6768
        %v6836 = vpop.f32.mrb[0].mxu0
        %v6837 = vadd.f32 0.0, %v6836
        %v6838 = vpop.f32.mrb[0].mxu0
        %6839 = vdwg.mxu0
        %v6840 = vadd.f32 %v6766, %v6837
        %v6841 = vrot.slane %v4292, 1
        %v6842 = vsel %vm4313, %v6841, 0
        %6844 = vmatprep.subr.mxu0 0.0
        %6845 = vmatpush1.msra.mxu0 %v4874
        %6846 = vmatprep.subr.mxu0 0.0
        %6847 = vmatpush1.msra.mxu0 %v4875
        %6848 = vmatprep.subr.mxu0 0.0
        %6849 = vmatpush1.msra.mxu0 %v4876
        %6850 = vmatprep.subr.mxu0 0.0
        %6851 = vmatpush1.msra.mxu0 %v4877
        %6852 = vmatprep.subr.mxu0 0.0
        %6853 = vmatpush1.msra.mxu0 %v4878
        %6854 = vmatprep.subr.mxu0 0.0
        %6855 = vmatpush1.msra.mxu0 %v4879
        %6856 = vmatprep.subr.mxu0 0.0
        %6857 = vmatpush1.msra.mxu0 %v4880
        %6858 = vmatprep.subr.mxu0 0.0
        %6859 = vmatpush1.msra.mxu0 %v4881
        %6860 = vmatprep.subr.mxu0 0.0
        %6861 = vmatpush1.msra.mxu0 0.0
        %6862 = vmatprep.subr.mxu0 0.0
        %6863 = vmatpush1.msra.mxu0 0.0
        %6864 = vmatprep.subr.mxu0 0.0
        %6865 = vmatpush1.msra.mxu0 0.0
        %6866 = vmatprep.subr.mxu0 0.0
        %6867 = vmatpush1.msra.mxu0 0.0
        %6868 = vmatprep.subr.mxu0 0.0
        %6869 = vmatpush1.msra.mxu0 0.0
        %6870 = vmatprep.subr.mxu0 0.0
        %6871 = vmatpush1.msra.mxu0 0.0
        %6872 = vmatprep.subr.mxu0 0.0
        %6873 = vmatpush1.msra.mxu0 0.0
        %6874 = vmatprep.subr.mxu0 0.0
        %6875 = vmatpush1.msra.mxu0 0.0
        %6876 = vmatprep.subr.mxu0 0.0
        %6877 = vmatpush1.msra.mxu0 0.0
        %6878 = vmatprep.subr.mxu0 0.0
        %6879 = vmatpush1.msra.mxu0 0.0
        %6880 = vmatprep.subr.mxu0 0.0
        %6881 = vmatpush1.msra.mxu0 0.0
        %6882 = vmatprep.subr.mxu0 0.0
        %6883 = vmatpush1.msra.mxu0 0.0
        %6884 = vmatprep.subr.mxu0 0.0
        %6885 = vmatpush1.msra.mxu0 0.0
        %6886 = vmatprep.subr.mxu0 0.0
        %6887 = vmatpush1.msra.mxu0 0.0
        %6888 = vmatprep.subr.mxu0 0.0
        %6889 = vmatpush1.msra.mxu0 0.0
        %6890 = vmatprep.subr.mxu0 0.0
        %6891 = vmatpush1.msra.mxu0 0.0
        %6892 = vmatprep.subr.mxu0 0.0
        %6893 = vmatpush1.msra.mxu0 0.0
        %6894 = vmatprep.subr.mxu0 0.0
        %6895 = vmatpush1.msra.mxu0 0.0
        %6896 = vmatprep.subr.mxu0 0.0
        %6897 = vmatpush1.msra.mxu0 0.0
        %6898 = vmatprep.subr.mxu0 0.0
        %6899 = vmatpush1.msra.mxu0 0.0
        %6900 = vmatprep.subr.mxu0 0.0
        %6901 = vmatpush1.msra.mxu0 0.0
        %6902 = vmatprep.subr.mxu0 0.0
        %6903 = vmatpush1.msra.mxu0 0.0
        %6904 = vmatprep.subr.mxu0 0.0
        %6905 = vmatpush1.msra.mxu0 0.0
        %6906 = vmatprep.subr.mxu0 0.0
        %6907 = vmatpush1.msra.mxu0 0.0
        %6908 = vmatprep.mubr.f32.mxu0 0.0
        %6909 = vmatmul.mubr.f32.gmra.mrb[0].mxu0 %v6842
        %v6910 = vpop.f32.mrb[0].mxu0
        %v6911 = vadd.f32 0.0, %v6910
        %v6912 = vpop.f32.mrb[0].mxu0
        %6913 = vdwg.mxu0
        %v6914 = vadd.f32 %v6840, %v6911
        %v6915 = vrot.slane %v4292, 2
        %v6916 = vsel %vm4313, %v6915, 0
        %6918 = vmatprep.subr.mxu0 0.0
        %6919 = vmatpush1.msra.mxu0 %v4957
        %6920 = vmatprep.subr.mxu0 0.0
        %6921 = vmatpush1.msra.mxu0 %v4958
        %6922 = vmatprep.subr.mxu0 0.0
        %6923 = vmatpush1.msra.mxu0 %v4959
        %6924 = vmatprep.subr.mxu0 0.0
        %6925 = vmatpush1.msra.mxu0 %v4960
        %6926 = vmatprep.subr.mxu0 0.0
        %6927 = vmatpush1.msra.mxu0 %v4961
        %6928 = vmatprep.subr.mxu0 0.0
        %6929 = vmatpush1.msra.mxu0 %v4962
        %6930 = vmatprep.subr.mxu0 0.0
        %6931 = vmatpush1.msra.mxu0 %v4963
        %6932 = vmatprep.subr.mxu0 0.0
        %6933 = vmatpush1.msra.mxu0 %v4964
        %6934 = vmatprep.subr.mxu0 0.0
        %6935 = vmatpush1.msra.mxu0 0.0
        %6936 = vmatprep.subr.mxu0 0.0
        %6937 = vmatpush1.msra.mxu0 0.0
        %6938 = vmatprep.subr.mxu0 0.0
        %6939 = vmatpush1.msra.mxu0 0.0
        %6940 = vmatprep.subr.mxu0 0.0
        %6941 = vmatpush1.msra.mxu0 0.0
        %6942 = vmatprep.subr.mxu0 0.0
        %6943 = vmatpush1.msra.mxu0 0.0
        %6944 = vmatprep.subr.mxu0 0.0
        %6945 = vmatpush1.msra.mxu0 0.0
        %6946 = vmatprep.subr.mxu0 0.0
        %6947 = vmatpush1.msra.mxu0 0.0
        %6948 = vmatprep.subr.mxu0 0.0
        %6949 = vmatpush1.msra.mxu0 0.0
        %6950 = vmatprep.subr.mxu0 0.0
        %6951 = vmatpush1.msra.mxu0 0.0
        %6952 = vmatprep.subr.mxu0 0.0
        %6953 = vmatpush1.msra.mxu0 0.0
        %6954 = vmatprep.subr.mxu0 0.0
        %6955 = vmatpush1.msra.mxu0 0.0
        %6956 = vmatprep.subr.mxu0 0.0
        %6957 = vmatpush1.msra.mxu0 0.0
        %6958 = vmatprep.subr.mxu0 0.0
        %6959 = vmatpush1.msra.mxu0 0.0
        %6960 = vmatprep.subr.mxu0 0.0
        %6961 = vmatpush1.msra.mxu0 0.0
        %6962 = vmatprep.subr.mxu0 0.0
        %6963 = vmatpush1.msra.mxu0 0.0
        %6964 = vmatprep.subr.mxu0 0.0
        %6965 = vmatpush1.msra.mxu0 0.0
        %6966 = vmatprep.subr.mxu0 0.0
        %6967 = vmatpush1.msra.mxu0 0.0
        %6968 = vmatprep.subr.mxu0 0.0
        %6969 = vmatpush1.msra.mxu0 0.0
        %6970 = vmatprep.subr.mxu0 0.0
        %6971 = vmatpush1.msra.mxu0 0.0
        %6972 = vmatprep.subr.mxu0 0.0
        %6973 = vmatpush1.msra.mxu0 0.0
        %6974 = vmatprep.subr.mxu0 0.0
        %6975 = vmatpush1.msra.mxu0 0.0
        %6976 = vmatprep.subr.mxu0 0.0
        %6977 = vmatpush1.msra.mxu0 0.0
        %6978 = vmatprep.subr.mxu0 0.0
        %6979 = vmatpush1.msra.mxu0 0.0
        %6980 = vmatprep.subr.mxu0 0.0
        %6981 = vmatpush1.msra.mxu0 0.0
        %6982 = vmatprep.mubr.f32.mxu0 0.0
        %6983 = vmatmul.mubr.f32.gmra.mrb[0].mxu0 %v6916
        %v6984 = vpop.f32.mrb[0].mxu0
        %v6985 = vadd.f32 0.0, %v6984
        %v6986 = vpop.f32.mrb[0].mxu0
        %6987 = vdwg.mxu0
        %v6988 = vadd.f32 %v6914, %v6985
        %v6989 = vadd.f32 %v6988, %v5043
        %v6990 = vmax.f32 %v6989, 0.0
        %v6991 = vld [vmem:[%s6] sm:$0x1]
        %v6992 = vld [vmem:[%s5] sm:$0xff]
        %v6993 = vld [vmem:[%s5 + $0x8] sm:$0xff]
        %v6994 = vld [vmem:[%s5 + $0x10] sm:$0xff]
        %v6995 = vld [vmem:[%s5 + $0x18] sm:$0xff]
        %v6996 = vld [vmem:[%s5 + $0x20] sm:$0xff]
        %v6997 = vld [vmem:[%s5 + $0x28] sm:$0xff]
        %v6998 = vld [vmem:[%s5 + $0x30] sm:$0xff]
        %v6999 = vld [vmem:[%s5 + $0x38] sm:$0xff]
        %v7000 = vld [vmem:[%s5 + $0x40] sm:$0xff]
        %v7001 = vld [vmem:[%s5 + $0x48] sm:$0xff]
        %v7002 = vld [vmem:[%s5 + $0x50] sm:$0xff]
        %v7003 = vld [vmem:[%s5 + $0x58] sm:$0xff]
        %v7004 = vld [vmem:[%s5 + $0x60] sm:$0xff]
        %v7005 = vld [vmem:[%s5 + $0x68] sm:$0xff]
        %v7006 = vld [vmem:[%s5 + $0x70] sm:$0xff]
        %v7007 = vld [vmem:[%s5 + $0x78] sm:$0xff]
        %s7008 = scalar_lea.vmem %s5, 128
        %v7009 = vld [vmem:[%s7008] sm:$0xff]
        %v7010 = vld [vmem:[%s7008 + $0x8] sm:$0xff]
        %v7011 = vld [vmem:[%s7008 + $0x10] sm:$0xff]
        %v7012 = vld [vmem:[%s7008 + $0x18] sm:$0xff]
        %v7013 = vld [vmem:[%s7008 + $0x20] sm:$0xff]
        %v7014 = vld [vmem:[%s7008 + $0x28] sm:$0xff]
        %v7015 = vld [vmem:[%s7008 + $0x30] sm:$0xff]
        %v7016 = vld [vmem:[%s7008 + $0x38] sm:$0xff]
        %v7017 = vld [vmem:[%s7008 + $0x40] sm:$0xff]
        %v7018 = vld [vmem:[%s7008 + $0x48] sm:$0xff]
        %v7019 = vld [vmem:[%s7008 + $0x50] sm:$0xff]
        %v7020 = vld [vmem:[%s7008 + $0x58] sm:$0xff]
        %v7021 = vld [vmem:[%s7008 + $0x60] sm:$0xff]
        %v7022 = vld [vmem:[%s7008 + $0x68] sm:$0xff]
        %v7023 = vld [vmem:[%s7008 + $0x70] sm:$0xff]
        %v7024 = vld [vmem:[%s7008 + $0x78] sm:$0xff]
        %v7026 = vrot.slane %v5046, 1
        %7028 = vmatprep.subr.mxu0 0.0
        %7029 = vmatpush1.msra.mxu0 %v7009
        %7030 = vmatprep.subr.mxu0 0.0
        %7031 = vmatpush1.msra.mxu0 %v7010
        %7032 = vmatprep.subr.mxu0 0.0
        %7033 = vmatpush1.msra.mxu0 %v7011
        %7034 = vmatprep.subr.mxu0 0.0
        %7035 = vmatpush1.msra.mxu0 %v7012
        %7036 = vmatprep.subr.mxu0 0.0
        %7037 = vmatpush1.msra.mxu0 %v7013
        %7038 = vmatprep.subr.mxu0 0.0
        %7039 = vmatpush1.msra.mxu0 %v7014
        %7040 = vmatprep.subr.mxu0 0.0
        %7041 = vmatpush1.msra.mxu0 %v7015
        %7042 = vmatprep.subr.mxu0 0.0
        %7043 = vmatpush1.msra.mxu0 %v7016
        %7044 = vmatprep.subr.mxu0 0.0
        %7045 = vmatpush1.msra.mxu0 %v7017
        %7046 = vmatprep.subr.mxu0 0.0
        %7047 = vmatpush1.msra.mxu0 %v7018
        %7048 = vmatprep.subr.mxu0 0.0
        %7049 = vmatpush1.msra.mxu0 %v7019
        %7050 = vmatprep.subr.mxu0 0.0
        %7051 = vmatpush1.msra.mxu0 %v7020
        %7052 = vmatprep.subr.mxu0 0.0
        %7053 = vmatpush1.msra.mxu0 %v7021
        %7054 = vmatprep.subr.mxu0 0.0
        %7055 = vmatpush1.msra.mxu0 %v7022
        %7056 = vmatprep.subr.mxu0 0.0
        %7057 = vmatpush1.msra.mxu0 %v7023
        %7058 = vmatprep.subr.mxu0 0.0
        %7059 = vmatpush1.msra.mxu0 %v7024
        %7060 = vmatprep.subr.mxu0 0.0
        %7061 = vmatpush1.msra.mxu0 0.0
        %7062 = vmatprep.subr.mxu0 0.0
        %7063 = vmatpush1.msra.mxu0 0.0
        %7064 = vmatprep.subr.mxu0 0.0
        %7065 = vmatpush1.msra.mxu0 0.0
        %7066 = vmatprep.subr.mxu0 0.0
        %7067 = vmatpush1.msra.mxu0 0.0
        %7068 = vmatprep.subr.mxu0 0.0
        %7069 = vmatpush1.msra.mxu0 0.0
        %7070 = vmatprep.subr.mxu0 0.0
        %7071 = vmatpush1.msra.mxu0 0.0
        %7072 = vmatprep.subr.mxu0 0.0
        %7073 = vmatpush1.msra.mxu0 0.0
        %7074 = vmatprep.subr.mxu0 0.0
        %7075 = vmatpush1.msra.mxu0 0.0
        %7076 = vmatprep.subr.mxu0 0.0
        %7077 = vmatpush1.msra.mxu0 0.0
        %7078 = vmatprep.subr.mxu0 0.0
        %7079 = vmatpush1.msra.mxu0 0.0
        %7080 = vmatprep.subr.mxu0 0.0
        %7081 = vmatpush1.msra.mxu0 0.0
        %7082 = vmatprep.subr.mxu0 0.0
        %7083 = vmatpush1.msra.mxu0 0.0
        %7084 = vmatprep.subr.mxu0 0.0
        %7085 = vmatpush1.msra.mxu0 0.0
        %7086 = vmatprep.subr.mxu0 0.0
        %7087 = vmatpush1.msra.mxu0 0.0
        %7088 = vmatprep.subr.mxu0 0.0
        %7089 = vmatpush1.msra.mxu0 0.0
        %7090 = vmatprep.subr.mxu0 0.0
        %7091 = vmatpush1.msra.mxu0 0.0
        %7092 = vmatprep.mubr.f32.mxu0 0.0
        %7093 = vmatmul.mubr.f32.gmra.mrb[0].mxu0 %v7026
        %v7094 = vpop.f32.mrb[0].mxu0
        %v7095 = vadd.f32 0.0, %v7094
        %v7096 = vpop.f32.mrb[0].mxu0
        %7097 = vdwg.mxu0
        %7098 = vmatprep.subr.mxu0 0.0
        %7099 = vmatpush1.msra.mxu0 %v6992
        %7100 = vmatprep.subr.mxu0 0.0
        %7101 = vmatpush1.msra.mxu0 %v6993
        %7102 = vmatprep.subr.mxu0 0.0
        %7103 = vmatpush1.msra.mxu0 %v6994
        %7104 = vmatprep.subr.mxu0 0.0
        %7105 = vmatpush1.msra.mxu0 %v6995
        %7106 = vmatprep.subr.mxu0 0.0
        %7107 = vmatpush1.msra.mxu0 %v6996
        %7108 = vmatprep.subr.mxu0 0.0
        %7109 = vmatpush1.msra.mxu0 %v6997
        %7110 = vmatprep.subr.mxu0 0.0
        %7111 = vmatpush1.msra.mxu0 %v6998
        %7112 = vmatprep.subr.mxu0 0.0
        %7113 = vmatpush1.msra.mxu0 %v6999
        %7114 = vmatprep.subr.mxu0 0.0
        %7115 = vmatpush1.msra.mxu0 %v7000
        %7116 = vmatprep.subr.mxu0 0.0
        %7117 = vmatpush1.msra.mxu0 %v7001
        %7118 = vmatprep.subr.mxu0 0.0
        %7119 = vmatpush1.msra.mxu0 %v7002
        %7120 = vmatprep.subr.mxu0 0.0
        %7121 = vmatpush1.msra.mxu0 %v7003
        %7122 = vmatprep.subr.mxu0 0.0
        %7123 = vmatpush1.msra.mxu0 %v7004
        %7124 = vmatprep.subr.mxu0 0.0
        %7125 = vmatpush1.msra.mxu0 %v7005
        %7126 = vmatprep.subr.mxu0 0.0
        %7127 = vmatpush1.msra.mxu0 %v7006
        %7128 = vmatprep.subr.mxu0 0.0
        %7129 = vmatpush1.msra.mxu0 %v7007
        %7130 = vmatprep.subr.mxu0 0.0
        %7131 = vmatpush1.msra.mxu0 0.0
        %7132 = vmatprep.subr.mxu0 0.0
        %7133 = vmatpush1.msra.mxu0 0.0
        %7134 = vmatprep.subr.mxu0 0.0
        %7135 = vmatpush1.msra.mxu0 0.0
        %7136 = vmatprep.subr.mxu0 0.0
        %7137 = vmatpush1.msra.mxu0 0.0
        %7138 = vmatprep.subr.mxu0 0.0
        %7139 = vmatpush1.msra.mxu0 0.0
        %7140 = vmatprep.subr.mxu0 0.0
        %7141 = vmatpush1.msra.mxu0 0.0
        %7142 = vmatprep.subr.mxu0 0.0
        %7143 = vmatpush1.msra.mxu0 0.0
        %7144 = vmatprep.subr.mxu0 0.0
        %7145 = vmatpush1.msra.mxu0 0.0
        %7146 = vmatprep.subr.mxu0 0.0
        %7147 = vmatpush1.msra.mxu0 0.0
        %7148 = vmatprep.subr.mxu0 0.0
        %7149 = vmatpush1.msra.mxu0 0.0
        %7150 = vmatprep.subr.mxu0 0.0
        %7151 = vmatpush1.msra.mxu0 0.0
        %7152 = vmatprep.subr.mxu0 0.0
        %7153 = vmatpush1.msra.mxu0 0.0
        %7154 = vmatprep.subr.mxu0 0.0
        %7155 = vmatpush1.msra.mxu0 0.0
        %7156 = vmatprep.subr.mxu0 0.0
        %7157 = vmatpush1.msra.mxu0 0.0
        %7158 = vmatprep.subr.mxu0 0.0
        %7159 = vmatpush1.msra.mxu0 0.0
        %7160 = vmatprep.subr.mxu0 0.0
        %7161 = vmatpush1.msra.mxu0 0.0
        %7162 = vmatprep.mubr.f32.mxu0 0.0
        %7163 = vmatmul.mubr.f32.gmra.mrb[0].mxu0 %v5046
        %v7164 = vpop.f32.mrb[0].mxu0
        %v7165 = vadd.f32 %v7095, %v7164
        %v7166 = vpop.f32.mrb[0].mxu0
        %7167 = vdwg.mxu0
        %s7168 = scalar_lea.vmem %s5, 256
        %v7169 = vld [vmem:[%s7168] sm:$0xff]
        %v7170 = vld [vmem:[%s7168 + $0x8] sm:$0xff]
        %v7171 = vld [vmem:[%s7168 + $0x10] sm:$0xff]
        %v7172 = vld [vmem:[%s7168 + $0x18] sm:$0xff]
        %v7173 = vld [vmem:[%s7168 + $0x20] sm:$0xff]
        %v7174 = vld [vmem:[%s7168 + $0x28] sm:$0xff]
        %v7175 = vld [vmem:[%s7168 + $0x30] sm:$0xff]
        %v7176 = vld [vmem:[%s7168 + $0x38] sm:$0xff]
        %v7177 = vld [vmem:[%s7168 + $0x40] sm:$0xff]
        %v7178 = vld [vmem:[%s7168 + $0x48] sm:$0xff]
        %v7179 = vld [vmem:[%s7168 + $0x50] sm:$0xff]
        %v7180 = vld [vmem:[%s7168 + $0x58] sm:$0xff]
        %v7181 = vld [vmem:[%s7168 + $0x60] sm:$0xff]
        %v7182 = vld [vmem:[%s7168 + $0x68] sm:$0xff]
        %v7183 = vld [vmem:[%s7168 + $0x70] sm:$0xff]
        %v7184 = vld [vmem:[%s7168 + $0x78] sm:$0xff]
        %v7185 = vrot.slane %v5046, 2
        %7187 = vmatprep.subr.mxu0 0.0
        %7188 = vmatpush1.msra.mxu0 %v7169
        %7189 = vmatprep.subr.mxu0 0.0
        %7190 = vmatpush1.msra.mxu0 %v7170
        %7191 = vmatprep.subr.mxu0 0.0
        %7192 = vmatpush1.msra.mxu0 %v7171
        %7193 = vmatprep.subr.mxu0 0.0
        %7194 = vmatpush1.msra.mxu0 %v7172
        %7195 = vmatprep.subr.mxu0 0.0
        %7196 = vmatpush1.msra.mxu0 %v7173
        %7197 = vmatprep.subr.mxu0 0.0
        %7198 = vmatpush1.msra.mxu0 %v7174
        %7199 = vmatprep.subr.mxu0 0.0
        %7200 = vmatpush1.msra.mxu0 %v7175
        %7201 = vmatprep.subr.mxu0 0.0
        %7202 = vmatpush1.msra.mxu0 %v7176
        %7203 = vmatprep.subr.mxu0 0.0
        %7204 = vmatpush1.msra.mxu0 %v7177
        %7205 = vmatprep.subr.mxu0 0.0
        %7206 = vmatpush1.msra.mxu0 %v7178
        %7207 = vmatprep.subr.mxu0 0.0
        %7208 = vmatpush1.msra.mxu0 %v7179
        %7209 = vmatprep.subr.mxu0 0.0
        %7210 = vmatpush1.msra.mxu0 %v7180
        %7211 = vmatprep.subr.mxu0 0.0
        %7212 = vmatpush1.msra.mxu0 %v7181
        %7213 = vmatprep.subr.mxu0 0.0
        %7214 = vmatpush1.msra.mxu0 %v7182
        %7215 = vmatprep.subr.mxu0 0.0
        %7216 = vmatpush1.msra.mxu0 %v7183
        %7217 = vmatprep.subr.mxu0 0.0
        %7218 = vmatpush1.msra.mxu0 %v7184
        %7219 = vmatprep.subr.mxu0 0.0
        %7220 = vmatpush1.msra.mxu0 0.0
        %7221 = vmatprep.subr.mxu0 0.0
        %7222 = vmatpush1.msra.mxu0 0.0
        %7223 = vmatprep.subr.mxu0 0.0
        %7224 = vmatpush1.msra.mxu0 0.0
        %7225 = vmatprep.subr.mxu0 0.0
        %7226 = vmatpush1.msra.mxu0 0.0
        %7227 = vmatprep.subr.mxu0 0.0
        %7228 = vmatpush1.msra.mxu0 0.0
        %7229 = vmatprep.subr.mxu0 0.0
        %7230 = vmatpush1.msra.mxu0 0.0
        %7231 = vmatprep.subr.mxu0 0.0
        %7232 = vmatpush1.msra.mxu0 0.0
        %7233 = vmatprep.subr.mxu0 0.0
        %7234 = vmatpush1.msra.mxu0 0.0
        %7235 = vmatprep.subr.mxu0 0.0
        %7236 = vmatpush1.msra.mxu0 0.0
        %7237 = vmatprep.subr.mxu0 0.0
        %7238 = vmatpush1.msra.mxu0 0.0
        %7239 = vmatprep.subr.mxu0 0.0
        %7240 = vmatpush1.msra.mxu0 0.0
        %7241 = vmatprep.subr.mxu0 0.0
        %7242 = vmatpush1.msra.mxu0 0.0
        %7243 = vmatprep.subr.mxu0 0.0
        %7244 = vmatpush1.msra.mxu0 0.0
        %7245 = vmatprep.subr.mxu0 0.0
        %7246 = vmatpush1.msra.mxu0 0.0
        %7247 = vmatprep.subr.mxu0 0.0
        %7248 = vmatpush1.msra.mxu0 0.0
        %7249 = vmatprep.subr.mxu0 0.0
        %7250 = vmatpush1.msra.mxu0 0.0
        %7251 = vmatprep.mubr.f32.mxu0 0.0
        %7252 = vmatmul.mubr.f32.gmra.mrb[0].mxu0 %v7185
        %v7253 = vpop.f32.mrb[0].mxu0
        %v7254 = vadd.f32 0.0, %v7253
        %v7255 = vpop.f32.mrb[0].mxu0
        %7256 = vdwg.mxu0
        %v7257 = vadd.f32 %v7165, %v7254
        %s7258 = scalar_lea.vmem %s5, 384
        %v7259 = vld [vmem:[%s7258] sm:$0xff]
        %v7260 = vld [vmem:[%s7258 + $0x8] sm:$0xff]
        %v7261 = vld [vmem:[%s7258 + $0x10] sm:$0xff]
        %v7262 = vld [vmem:[%s7258 + $0x18] sm:$0xff]
        %v7263 = vld [vmem:[%s7258 + $0x20] sm:$0xff]
        %v7264 = vld [vmem:[%s7258 + $0x28] sm:$0xff]
        %v7265 = vld [vmem:[%s7258 + $0x30] sm:$0xff]
        %v7266 = vld [vmem:[%s7258 + $0x38] sm:$0xff]
        %v7267 = vld [vmem:[%s7258 + $0x40] sm:$0xff]
        %v7268 = vld [vmem:[%s7258 + $0x48] sm:$0xff]
        %v7269 = vld [vmem:[%s7258 + $0x50] sm:$0xff]
        %v7270 = vld [vmem:[%s7258 + $0x58] sm:$0xff]
        %v7271 = vld [vmem:[%s7258 + $0x60] sm:$0xff]
        %v7272 = vld [vmem:[%s7258 + $0x68] sm:$0xff]
        %v7273 = vld [vmem:[%s7258 + $0x70] sm:$0xff]
        %v7274 = vld [vmem:[%s7258 + $0x78] sm:$0xff]
        %7275 = vmatprep.subr.mxu0 0.0
        %7276 = vmatpush1.msra.mxu0 %v7259
        %7277 = vmatprep.subr.mxu0 0.0
        %7278 = vmatpush1.msra.mxu0 %v7260
        %7279 = vmatprep.subr.mxu0 0.0
        %7280 = vmatpush1.msra.mxu0 %v7261
        %7281 = vmatprep.subr.mxu0 0.0
        %7282 = vmatpush1.msra.mxu0 %v7262
        %7283 = vmatprep.subr.mxu0 0.0
        %7284 = vmatpush1.msra.mxu0 %v7263
        %7285 = vmatprep.subr.mxu0 0.0
        %7286 = vmatpush1.msra.mxu0 %v7264
        %7287 = vmatprep.subr.mxu0 0.0
        %7288 = vmatpush1.msra.mxu0 %v7265
        %7289 = vmatprep.subr.mxu0 0.0
        %7290 = vmatpush1.msra.mxu0 %v7266
        %7291 = vmatprep.subr.mxu0 0.0
        %7292 = vmatpush1.msra.mxu0 %v7267
        %7293 = vmatprep.subr.mxu0 0.0
        %7294 = vmatpush1.msra.mxu0 %v7268
        %7295 = vmatprep.subr.mxu0 0.0
        %7296 = vmatpush1.msra.mxu0 %v7269
        %7297 = vmatprep.subr.mxu0 0.0
        %7298 = vmatpush1.msra.mxu0 %v7270
        %7299 = vmatprep.subr.mxu0 0.0
        %7300 = vmatpush1.msra.mxu0 %v7271
        %7301 = vmatprep.subr.mxu0 0.0
        %7302 = vmatpush1.msra.mxu0 %v7272
        %7303 = vmatprep.subr.mxu0 0.0
        %7304 = vmatpush1.msra.mxu0 %v7273
        %7305 = vmatprep.subr.mxu0 0.0
        %7306 = vmatpush1.msra.mxu0 %v7274
        %7307 = vmatprep.subr.mxu0 0.0
        %7308 = vmatpush1.msra.mxu0 0.0
        %7309 = vmatprep.subr.mxu0 0.0
        %7310 = vmatpush1.msra.mxu0 0.0
        %7311 = vmatprep.subr.mxu0 0.0
        %7312 = vmatpush1.msra.mxu0 0.0
        %7313 = vmatprep.subr.mxu0 0.0
        %7314 = vmatpush1.msra.mxu0 0.0
        %7315 = vmatprep.subr.mxu0 0.0
        %7316 = vmatpush1.msra.mxu0 0.0
        %7317 = vmatprep.subr.mxu0 0.0
        %7318 = vmatpush1.msra.mxu0 0.0
        %7319 = vmatprep.subr.mxu0 0.0
        %7320 = vmatpush1.msra.mxu0 0.0
        %7321 = vmatprep.subr.mxu0 0.0
        %7322 = vmatpush1.msra.mxu0 0.0
        %7323 = vmatprep.subr.mxu0 0.0
        %7324 = vmatpush1.msra.mxu0 0.0
        %7325 = vmatprep.subr.mxu0 0.0
        %7326 = vmatpush1.msra.mxu0 0.0
        %7327 = vmatprep.subr.mxu0 0.0
        %7328 = vmatpush1.msra.mxu0 0.0
        %7329 = vmatprep.subr.mxu0 0.0
        %7330 = vmatpush1.msra.mxu0 0.0
        %7331 = vmatprep.subr.mxu0 0.0
        %7332 = vmatpush1.msra.mxu0 0.0
        %7333 = vmatprep.subr.mxu0 0.0
        %7334 = vmatpush1.msra.mxu0 0.0
        %7335 = vmatprep.subr.mxu0 0.0
        %7336 = vmatpush1.msra.mxu0 0.0
        %7337 = vmatprep.subr.mxu0 0.0
        %7338 = vmatpush1.msra.mxu0 0.0
        %7339 = vmatprep.mubr.f32.mxu0 0.0
        %7340 = vmatmul.mubr.f32.gmra.mrb[0].mxu0 %v5694
        %v7341 = vpop.f32.mrb[0].mxu0
        %v7342 = vadd.f32 0.0, %v7341
        %v7343 = vpop.f32.mrb[0].mxu0
        %7344 = vdwg.mxu0
        %v7345 = vadd.f32 %v7257, %v7342
        %s7346 = scalar_lea.vmem %s5, 512
        %v7347 = vld [vmem:[%s7346] sm:$0xff]
        %v7348 = vld [vmem:[%s7346 + $0x8] sm:$0xff]
        %v7349 = vld [vmem:[%s7346 + $0x10] sm:$0xff]
        %v7350 = vld [vmem:[%s7346 + $0x18] sm:$0xff]
        %v7351 = vld [vmem:[%s7346 + $0x20] sm:$0xff]
        %v7352 = vld [vmem:[%s7346 + $0x28] sm:$0xff]
        %v7353 = vld [vmem:[%s7346 + $0x30] sm:$0xff]
        %v7354 = vld [vmem:[%s7346 + $0x38] sm:$0xff]
        %v7355 = vld [vmem:[%s7346 + $0x40] sm:$0xff]
        %v7356 = vld [vmem:[%s7346 + $0x48] sm:$0xff]
        %v7357 = vld [vmem:[%s7346 + $0x50] sm:$0xff]
        %v7358 = vld [vmem:[%s7346 + $0x58] sm:$0xff]
        %v7359 = vld [vmem:[%s7346 + $0x60] sm:$0xff]
        %v7360 = vld [vmem:[%s7346 + $0x68] sm:$0xff]
        %v7361 = vld [vmem:[%s7346 + $0x70] sm:$0xff]
        %v7362 = vld [vmem:[%s7346 + $0x78] sm:$0xff]
        %v7364 = vrot.slane %v5694, 1
        %7366 = vmatprep.subr.mxu0 0.0
        %7367 = vmatpush1.msra.mxu0 %v7347
        %7368 = vmatprep.subr.mxu0 0.0
        %7369 = vmatpush1.msra.mxu0 %v7348
        %7370 = vmatprep.subr.mxu0 0.0
        %7371 = vmatpush1.msra.mxu0 %v7349
        %7372 = vmatprep.subr.mxu0 0.0
        %7373 = vmatpush1.msra.mxu0 %v7350
        %7374 = vmatprep.subr.mxu0 0.0
        %7375 = vmatpush1.msra.mxu0 %v7351
        %7376 = vmatprep.subr.mxu0 0.0
        %7377 = vmatpush1.msra.mxu0 %v7352
        %7378 = vmatprep.subr.mxu0 0.0
        %7379 = vmatpush1.msra.mxu0 %v7353
        %7380 = vmatprep.subr.mxu0 0.0
        %7381 = vmatpush1.msra.mxu0 %v7354
        %7382 = vmatprep.subr.mxu0 0.0
        %7383 = vmatpush1.msra.mxu0 %v7355
        %7384 = vmatprep.subr.mxu0 0.0
        %7385 = vmatpush1.msra.mxu0 %v7356
        %7386 = vmatprep.subr.mxu0 0.0
        %7387 = vmatpush1.msra.mxu0 %v7357
        %7388 = vmatprep.subr.mxu0 0.0
        %7389 = vmatpush1.msra.mxu0 %v7358
        %7390 = vmatprep.subr.mxu0 0.0
        %7391 = vmatpush1.msra.mxu0 %v7359
        %7392 = vmatprep.subr.mxu0 0.0
        %7393 = vmatpush1.msra.mxu0 %v7360
        %7394 = vmatprep.subr.mxu0 0.0
        %7395 = vmatpush1.msra.mxu0 %v7361
        %7396 = vmatprep.subr.mxu0 0.0
        %7397 = vmatpush1.msra.mxu0 %v7362
        %7398 = vmatprep.subr.mxu0 0.0
        %7399 = vmatpush1.msra.mxu0 0.0
        %7400 = vmatprep.subr.mxu0 0.0
        %7401 = vmatpush1.msra.mxu0 0.0
        %7402 = vmatprep.subr.mxu0 0.0
        %7403 = vmatpush1.msra.mxu0 0.0
        %7404 = vmatprep.subr.mxu0 0.0
        %7405 = vmatpush1.msra.mxu0 0.0
        %7406 = vmatprep.subr.mxu0 0.0
        %7407 = vmatpush1.msra.mxu0 0.0
        %7408 = vmatprep.subr.mxu0 0.0
        %7409 = vmatpush1.msra.mxu0 0.0
        %7410 = vmatprep.subr.mxu0 0.0
        %7411 = vmatpush1.msra.mxu0 0.0
        %7412 = vmatprep.subr.mxu0 0.0
        %7413 = vmatpush1.msra.mxu0 0.0
        %7414 = vmatprep.subr.mxu0 0.0
        %7415 = vmatpush1.msra.mxu0 0.0
        %7416 = vmatprep.subr.mxu0 0.0
        %7417 = vmatpush1.msra.mxu0 0.0
        %7418 = vmatprep.subr.mxu0 0.0
        %7419 = vmatpush1.msra.mxu0 0.0
        %7420 = vmatprep.subr.mxu0 0.0
        %7421 = vmatpush1.msra.mxu0 0.0
        %7422 = vmatprep.subr.mxu0 0.0
        %7423 = vmatpush1.msra.mxu0 0.0
        %7424 = vmatprep.subr.mxu0 0.0
        %7425 = vmatpush1.msra.mxu0 0.0
        %7426 = vmatprep.subr.mxu0 0.0
        %7427 = vmatpush1.msra.mxu0 0.0
        %7428 = vmatprep.subr.mxu0 0.0
        %7429 = vmatpush1.msra.mxu0 0.0
        %7430 = vmatprep.mubr.f32.mxu0 0.0
        %7431 = vmatmul.mubr.f32.gmra.mrb[0].mxu0 %v7364
        %v7432 = vpop.f32.mrb[0].mxu0
        %v7433 = vadd.f32 0.0, %v7432
        %v7434 = vpop.f32.mrb[0].mxu0
        %7435 = vdwg.mxu0
        %v7436 = vadd.f32 %v7345, %v7433
        %s7437 = scalar_lea.vmem %s5, 640
        %v7438 = vld [vmem:[%s7437] sm:$0xff]
        %v7439 = vld [vmem:[%s7437 + $0x8] sm:$0xff]
        %v7440 = vld [vmem:[%s7437 + $0x10] sm:$0xff]
        %v7441 = vld [vmem:[%s7437 + $0x18] sm:$0xff]
        %v7442 = vld [vmem:[%s7437 + $0x20] sm:$0xff]
        %v7443 = vld [vmem:[%s7437 + $0x28] sm:$0xff]
        %v7444 = vld [vmem:[%s7437 + $0x30] sm:$0xff]
        %v7445 = vld [vmem:[%s7437 + $0x38] sm:$0xff]
        %v7446 = vld [vmem:[%s7437 + $0x40] sm:$0xff]
        %v7447 = vld [vmem:[%s7437 + $0x48] sm:$0xff]
        %v7448 = vld [vmem:[%s7437 + $0x50] sm:$0xff]
        %v7449 = vld [vmem:[%s7437 + $0x58] sm:$0xff]
        %v7450 = vld [vmem:[%s7437 + $0x60] sm:$0xff]
        %v7451 = vld [vmem:[%s7437 + $0x68] sm:$0xff]
        %v7452 = vld [vmem:[%s7437 + $0x70] sm:$0xff]
        %v7453 = vld [vmem:[%s7437 + $0x78] sm:$0xff]
        %v7454 = vrot.slane %v5694, 2
        %7456 = vmatprep.subr.mxu0 0.0
        %7457 = vmatpush1.msra.mxu0 %v7438
        %7458 = vmatprep.subr.mxu0 0.0
        %7459 = vmatpush1.msra.mxu0 %v7439
        %7460 = vmatprep.subr.mxu0 0.0
        %7461 = vmatpush1.msra.mxu0 %v7440
        %7462 = vmatprep.subr.mxu0 0.0
        %7463 = vmatpush1.msra.mxu0 %v7441
        %7464 = vmatprep.subr.mxu0 0.0
        %7465 = vmatpush1.msra.mxu0 %v7442
        %7466 = vmatprep.subr.mxu0 0.0
        %7467 = vmatpush1.msra.mxu0 %v7443
        %7468 = vmatprep.subr.mxu0 0.0
        %7469 = vmatpush1.msra.mxu0 %v7444
        %7470 = vmatprep.subr.mxu0 0.0
        %7471 = vmatpush1.msra.mxu0 %v7445
        %7472 = vmatprep.subr.mxu0 0.0
        %7473 = vmatpush1.msra.mxu0 %v7446
        %7474 = vmatprep.subr.mxu0 0.0
        %7475 = vmatpush1.msra.mxu0 %v7447
        %7476 = vmatprep.subr.mxu0 0.0
        %7477 = vmatpush1.msra.mxu0 %v7448
        %7478 = vmatprep.subr.mxu0 0.0
        %7479 = vmatpush1.msra.mxu0 %v7449
        %7480 = vmatprep.subr.mxu0 0.0
        %7481 = vmatpush1.msra.mxu0 %v7450
        %7482 = vmatprep.subr.mxu0 0.0
        %7483 = vmatpush1.msra.mxu0 %v7451
        %7484 = vmatprep.subr.mxu0 0.0
        %7485 = vmatpush1.msra.mxu0 %v7452
        %7486 = vmatprep.subr.mxu0 0.0
        %7487 = vmatpush1.msra.mxu0 %v7453
        %7488 = vmatprep.subr.mxu0 0.0
        %7489 = vmatpush1.msra.mxu0 0.0
        %7490 = vmatprep.subr.mxu0 0.0
        %7491 = vmatpush1.msra.mxu0 0.0
        %7492 = vmatprep.subr.mxu0 0.0
        %7493 = vmatpush1.msra.mxu0 0.0
        %7494 = vmatprep.subr.mxu0 0.0
        %7495 = vmatpush1.msra.mxu0 0.0
        %7496 = vmatprep.subr.mxu0 0.0
        %7497 = vmatpush1.msra.mxu0 0.0
        %7498 = vmatprep.subr.mxu0 0.0
        %7499 = vmatpush1.msra.mxu0 0.0
        %7500 = vmatprep.subr.mxu0 0.0
        %7501 = vmatpush1.msra.mxu0 0.0
        %7502 = vmatprep.subr.mxu0 0.0
        %7503 = vmatpush1.msra.mxu0 0.0
        %7504 = vmatprep.subr.mxu0 0.0
        %7505 = vmatpush1.msra.mxu0 0.0
        %7506 = vmatprep.subr.mxu0 0.0
        %7507 = vmatpush1.msra.mxu0 0.0
        %7508 = vmatprep.subr.mxu0 0.0
        %7509 = vmatpush1.msra.mxu0 0.0
        %7510 = vmatprep.subr.mxu0 0.0
        %7511 = vmatpush1.msra.mxu0 0.0
        %7512 = vmatprep.subr.mxu0 0.0
        %7513 = vmatpush1.msra.mxu0 0.0
        %7514 = vmatprep.subr.mxu0 0.0
        %7515 = vmatpush1.msra.mxu0 0.0
        %7516 = vmatprep.subr.mxu0 0.0
        %7517 = vmatpush1.msra.mxu0 0.0
        %7518 = vmatprep.subr.mxu0 0.0
        %7519 = vmatpush1.msra.mxu0 0.0
        %7520 = vmatprep.mubr.f32.mxu0 0.0
        %7521 = vmatmul.mubr.f32.gmra.mrb[0].mxu0 %v7454
        %v7522 = vpop.f32.mrb[0].mxu0
        %v7523 = vadd.f32 0.0, %v7522
        %v7524 = vpop.f32.mrb[0].mxu0
        %7525 = vdwg.mxu0
        %v7526 = vadd.f32 %v7436, %v7523
        %s7527 = scalar_lea.vmem %s5, 768
        %v7528 = vld [vmem:[%s7527] sm:$0xff]
        %v7529 = vld [vmem:[%s7527 + $0x8] sm:$0xff]
        %v7530 = vld [vmem:[%s7527 + $0x10] sm:$0xff]
        %v7531 = vld [vmem:[%s7527 + $0x18] sm:$0xff]
        %v7532 = vld [vmem:[%s7527 + $0x20] sm:$0xff]
        %v7533 = vld [vmem:[%s7527 + $0x28] sm:$0xff]
        %v7534 = vld [vmem:[%s7527 + $0x30] sm:$0xff]
        %v7535 = vld [vmem:[%s7527 + $0x38] sm:$0xff]
        %v7536 = vld [vmem:[%s7527 + $0x40] sm:$0xff]
        %v7537 = vld [vmem:[%s7527 + $0x48] sm:$0xff]
        %v7538 = vld [vmem:[%s7527 + $0x50] sm:$0xff]
        %v7539 = vld [vmem:[%s7527 + $0x58] sm:$0xff]
        %v7540 = vld [vmem:[%s7527 + $0x60] sm:$0xff]
        %v7541 = vld [vmem:[%s7527 + $0x68] sm:$0xff]
        %v7542 = vld [vmem:[%s7527 + $0x70] sm:$0xff]
        %v7543 = vld [vmem:[%s7527 + $0x78] sm:$0xff]
        %7544 = vmatprep.subr.mxu0 0.0
        %7545 = vmatpush1.msra.mxu0 %v7528
        %7546 = vmatprep.subr.mxu0 0.0
        %7547 = vmatpush1.msra.mxu0 %v7529
        %7548 = vmatprep.subr.mxu0 0.0
        %7549 = vmatpush1.msra.mxu0 %v7530
        %7550 = vmatprep.subr.mxu0 0.0
        %7551 = vmatpush1.msra.mxu0 %v7531
        %7552 = vmatprep.subr.mxu0 0.0
        %7553 = vmatpush1.msra.mxu0 %v7532
        %7554 = vmatprep.subr.mxu0 0.0
        %7555 = vmatpush1.msra.mxu0 %v7533
        %7556 = vmatprep.subr.mxu0 0.0
        %7557 = vmatpush1.msra.mxu0 %v7534
        %7558 = vmatprep.subr.mxu0 0.0
        %7559 = vmatpush1.msra.mxu0 %v7535
        %7560 = vmatprep.subr.mxu0 0.0
        %7561 = vmatpush1.msra.mxu0 %v7536
        %7562 = vmatprep.subr.mxu0 0.0
        %7563 = vmatpush1.msra.mxu0 %v7537
        %7564 = vmatprep.subr.mxu0 0.0
        %7565 = vmatpush1.msra.mxu0 %v7538
        %7566 = vmatprep.subr.mxu0 0.0
        %7567 = vmatpush1.msra.mxu0 %v7539
        %7568 = vmatprep.subr.mxu0 0.0
        %7569 = vmatpush1.msra.mxu0 %v7540
        %7570 = vmatprep.subr.mxu0 0.0
        %7571 = vmatpush1.msra.mxu0 %v7541
        %7572 = vmatprep.subr.mxu0 0.0
        %7573 = vmatpush1.msra.mxu0 %v7542
        %7574 = vmatprep.subr.mxu0 0.0
        %7575 = vmatpush1.msra.mxu0 %v7543
        %7576 = vmatprep.subr.mxu0 0.0
        %7577 = vmatpush1.msra.mxu0 0.0
        %7578 = vmatprep.subr.mxu0 0.0
        %7579 = vmatpush1.msra.mxu0 0.0
        %7580 = vmatprep.subr.mxu0 0.0
        %7581 = vmatpush1.msra.mxu0 0.0
        %7582 = vmatprep.subr.mxu0 0.0
        %7583 = vmatpush1.msra.mxu0 0.0
        %7584 = vmatprep.subr.mxu0 0.0
        %7585 = vmatpush1.msra.mxu0 0.0
        %7586 = vmatprep.subr.mxu0 0.0
        %7587 = vmatpush1.msra.mxu0 0.0
        %7588 = vmatprep.subr.mxu0 0.0
        %7589 = vmatpush1.msra.mxu0 0.0
        %7590 = vmatprep.subr.mxu0 0.0
        %7591 = vmatpush1.msra.mxu0 0.0
        %7592 = vmatprep.subr.mxu0 0.0
        %7593 = vmatpush1.msra.mxu0 0.0
        %7594 = vmatprep.subr.mxu0 0.0
        %7595 = vmatpush1.msra.mxu0 0.0
        %7596 = vmatprep.subr.mxu0 0.0
        %7597 = vmatpush1.msra.mxu0 0.0
        %7598 = vmatprep.subr.mxu0 0.0
        %7599 = vmatpush1.msra.mxu0 0.0
        %7600 = vmatprep.subr.mxu0 0.0
        %7601 = vmatpush1.msra.mxu0 0.0
        %7602 = vmatprep.subr.mxu0 0.0
        %7603 = vmatpush1.msra.mxu0 0.0
        %7604 = vmatprep.subr.mxu0 0.0
        %7605 = vmatpush1.msra.mxu0 0.0
        %7606 = vmatprep.subr.mxu0 0.0
        %7607 = vmatpush1.msra.mxu0 0.0
        %7608 = vmatprep.mubr.f32.mxu0 0.0
        %7609 = vmatmul.mubr.f32.gmra.mrb[0].mxu0 %v6342
        %v7610 = vpop.f32.mrb[0].mxu0
        %v7611 = vadd.f32 0.0, %v7610
        %v7612 = vpop.f32.mrb[0].mxu0
        %7613 = vdwg.mxu0
        %v7614 = vadd.f32 %v7526, %v7611
        %s7615 = scalar_lea.vmem %s5, 896
        %v7616 = vld [vmem:[%s7615] sm:$0xff]
        %v7617 = vld [vmem:[%s7615 + $0x8] sm:$0xff]
        %v7618 = vld [vmem:[%s7615 + $0x10] sm:$0xff]
        %v7619 = vld [vmem:[%s7615 + $0x18] sm:$0xff]
        %v7620 = vld [vmem:[%s7615 + $0x20] sm:$0xff]
        %v7621 = vld [vmem:[%s7615 + $0x28] sm:$0xff]
        %v7622 = vld [vmem:[%s7615 + $0x30] sm:$0xff]
        %v7623 = vld [vmem:[%s7615 + $0x38] sm:$0xff]
        %v7624 = vld [vmem:[%s7615 + $0x40] sm:$0xff]
        %v7625 = vld [vmem:[%s7615 + $0x48] sm:$0xff]
        %v7626 = vld [vmem:[%s7615 + $0x50] sm:$0xff]
        %v7627 = vld [vmem:[%s7615 + $0x58] sm:$0xff]
        %v7628 = vld [vmem:[%s7615 + $0x60] sm:$0xff]
        %v7629 = vld [vmem:[%s7615 + $0x68] sm:$0xff]
        %v7630 = vld [vmem:[%s7615 + $0x70] sm:$0xff]
        %v7631 = vld [vmem:[%s7615 + $0x78] sm:$0xff]
        %v7633 = vrot.slane %v6342, 1
        %7635 = vmatprep.subr.mxu0 0.0
        %7636 = vmatpush1.msra.mxu0 %v7616
        %7637 = vmatprep.subr.mxu0 0.0
        %7638 = vmatpush1.msra.mxu0 %v7617
        %7639 = vmatprep.subr.mxu0 0.0
        %7640 = vmatpush1.msra.mxu0 %v7618
        %7641 = vmatprep.subr.mxu0 0.0
        %7642 = vmatpush1.msra.mxu0 %v7619
        %7643 = vmatprep.subr.mxu0 0.0
        %7644 = vmatpush1.msra.mxu0 %v7620
        %7645 = vmatprep.subr.mxu0 0.0
        %7646 = vmatpush1.msra.mxu0 %v7621
        %7647 = vmatprep.subr.mxu0 0.0
        %7648 = vmatpush1.msra.mxu0 %v7622
        %7649 = vmatprep.subr.mxu0 0.0
        %7650 = vmatpush1.msra.mxu0 %v7623
        %7651 = vmatprep.subr.mxu0 0.0
        %7652 = vmatpush1.msra.mxu0 %v7624
        %7653 = vmatprep.subr.mxu0 0.0
        %7654 = vmatpush1.msra.mxu0 %v7625
        %7655 = vmatprep.subr.mxu0 0.0
        %7656 = vmatpush1.msra.mxu0 %v7626
        %7657 = vmatprep.subr.mxu0 0.0
        %7658 = vmatpush1.msra.mxu0 %v7627
        %7659 = vmatprep.subr.mxu0 0.0
        %7660 = vmatpush1.msra.mxu0 %v7628
        %7661 = vmatprep.subr.mxu0 0.0
        %7662 = vmatpush1.msra.mxu0 %v7629
        %7663 = vmatprep.subr.mxu0 0.0
        %7664 = vmatpush1.msra.mxu0 %v7630
        %7665 = vmatprep.subr.mxu0 0.0
        %7666 = vmatpush1.msra.mxu0 %v7631
        %7667 = vmatprep.subr.mxu0 0.0
        %7668 = vmatpush1.msra.mxu0 0.0
        %7669 = vmatprep.subr.mxu0 0.0
        %7670 = vmatpush1.msra.mxu0 0.0
        %7671 = vmatprep.subr.mxu0 0.0
        %7672 = vmatpush1.msra.mxu0 0.0
        %7673 = vmatprep.subr.mxu0 0.0
        %7674 = vmatpush1.msra.mxu0 0.0
        %7675 = vmatprep.subr.mxu0 0.0
        %7676 = vmatpush1.msra.mxu0 0.0
        %7677 = vmatprep.subr.mxu0 0.0
        %7678 = vmatpush1.msra.mxu0 0.0
        %7679 = vmatprep.subr.mxu0 0.0
        %7680 = vmatpush1.msra.mxu0 0.0
        %7681 = vmatprep.subr.mxu0 0.0
        %7682 = vmatpush1.msra.mxu0 0.0
        %7683 = vmatprep.subr.mxu0 0.0
        %7684 = vmatpush1.msra.mxu0 0.0
        %7685 = vmatprep.subr.mxu0 0.0
        %7686 = vmatpush1.msra.mxu0 0.0
        %7687 = vmatprep.subr.mxu0 0.0
        %7688 = vmatpush1.msra.mxu0 0.0
        %7689 = vmatprep.subr.mxu0 0.0
        %7690 = vmatpush1.msra.mxu0 0.0
        %7691 = vmatprep.subr.mxu0 0.0
        %7692 = vmatpush1.msra.mxu0 0.0
        %7693 = vmatprep.subr.mxu0 0.0
        %7694 = vmatpush1.msra.mxu0 0.0
        %7695 = vmatprep.subr.mxu0 0.0
        %7696 = vmatpush1.msra.mxu0 0.0
        %7697 = vmatprep.subr.mxu0 0.0
        %7698 = vmatpush1.msra.mxu0 0.0
        %7699 = vmatprep.mubr.f32.mxu0 0.0
        %7700 = vmatmul.mubr.f32.gmra.mrb[0].mxu0 %v7633
        %v7701 = vpop.f32.mrb[0].mxu0
        %v7702 = vadd.f32 0.0, %v7701
        %v7703 = vpop.f32.mrb[0].mxu0
        %7704 = vdwg.mxu0
        %v7705 = vadd.f32 %v7614, %v7702
        %s7706 = scalar_lea.vmem %s5, 1024
        %v7707 = vld [vmem:[%s7706] sm:$0xff]
        %v7708 = vld [vmem:[%s7706 + $0x8] sm:$0xff]
        %v7709 = vld [vmem:[%s7706 + $0x10] sm:$0xff]
        %v7710 = vld [vmem:[%s7706 + $0x18] sm:$0xff]
        %v7711 = vld [vmem:[%s7706 + $0x20] sm:$0xff]
        %v7712 = vld [vmem:[%s7706 + $0x28] sm:$0xff]
        %v7713 = vld [vmem:[%s7706 + $0x30] sm:$0xff]
        %v7714 = vld [vmem:[%s7706 + $0x38] sm:$0xff]
        %v7715 = vld [vmem:[%s7706 + $0x40] sm:$0xff]
        %v7716 = vld [vmem:[%s7706 + $0x48] sm:$0xff]
        %v7717 = vld [vmem:[%s7706 + $0x50] sm:$0xff]
        %v7718 = vld [vmem:[%s7706 + $0x58] sm:$0xff]
        %v7719 = vld [vmem:[%s7706 + $0x60] sm:$0xff]
        %v7720 = vld [vmem:[%s7706 + $0x68] sm:$0xff]
        %v7721 = vld [vmem:[%s7706 + $0x70] sm:$0xff]
        %v7722 = vld [vmem:[%s7706 + $0x78] sm:$0xff]
        %v7723 = vrot.slane %v6342, 2
        %7725 = vmatprep.subr.mxu0 0.0
        %7726 = vmatpush1.msra.mxu0 %v7707
        %7727 = vmatprep.subr.mxu0 0.0
        %7728 = vmatpush1.msra.mxu0 %v7708
        %7729 = vmatprep.subr.mxu0 0.0
        %7730 = vmatpush1.msra.mxu0 %v7709
        %7731 = vmatprep.subr.mxu0 0.0
        %7732 = vmatpush1.msra.mxu0 %v7710
        %7733 = vmatprep.subr.mxu0 0.0
        %7734 = vmatpush1.msra.mxu0 %v7711
        %7735 = vmatprep.subr.mxu0 0.0
        %7736 = vmatpush1.msra.mxu0 %v7712
        %7737 = vmatprep.subr.mxu0 0.0
        %7738 = vmatpush1.msra.mxu0 %v7713
        %7739 = vmatprep.subr.mxu0 0.0
        %7740 = vmatpush1.msra.mxu0 %v7714
        %7741 = vmatprep.subr.mxu0 0.0
        %7742 = vmatpush1.msra.mxu0 %v7715
        %7743 = vmatprep.subr.mxu0 0.0
        %7744 = vmatpush1.msra.mxu0 %v7716
        %7745 = vmatprep.subr.mxu0 0.0
        %7746 = vmatpush1.msra.mxu0 %v7717
        %7747 = vmatprep.subr.mxu0 0.0
        %7748 = vmatpush1.msra.mxu0 %v7718
        %7749 = vmatprep.subr.mxu0 0.0
        %7750 = vmatpush1.msra.mxu0 %v7719
        %7751 = vmatprep.subr.mxu0 0.0
        %7752 = vmatpush1.msra.mxu0 %v7720
        %7753 = vmatprep.subr.mxu0 0.0
        %7754 = vmatpush1.msra.mxu0 %v7721
        %7755 = vmatprep.subr.mxu0 0.0
        %7756 = vmatpush1.msra.mxu0 %v7722
        %7757 = vmatprep.subr.mxu0 0.0
        %7758 = vmatpush1.msra.mxu0 0.0
        %7759 = vmatprep.subr.mxu0 0.0
        %7760 = vmatpush1.msra.mxu0 0.0
        %7761 = vmatprep.subr.mxu0 0.0
        %7762 = vmatpush1.msra.mxu0 0.0
        %7763 = vmatprep.subr.mxu0 0.0
        %7764 = vmatpush1.msra.mxu0 0.0
        %7765 = vmatprep.subr.mxu0 0.0
        %7766 = vmatpush1.msra.mxu0 0.0
        %7767 = vmatprep.subr.mxu0 0.0
        %7768 = vmatpush1.msra.mxu0 0.0
        %7769 = vmatprep.subr.mxu0 0.0
        %7770 = vmatpush1.msra.mxu0 0.0
        %7771 = vmatprep.subr.mxu0 0.0
        %7772 = vmatpush1.msra.mxu0 0.0
        %7773 = vmatprep.subr.mxu0 0.0
        %7774 = vmatpush1.msra.mxu0 0.0
        %7775 = vmatprep.subr.mxu0 0.0
        %7776 = vmatpush1.msra.mxu0 0.0
        %7777 = vmatprep.subr.mxu0 0.0
        %7778 = vmatpush1.msra.mxu0 0.0
        %7779 = vmatprep.subr.mxu0 0.0
        %7780 = vmatpush1.msra.mxu0 0.0
        %7781 = vmatprep.subr.mxu0 0.0
        %7782 = vmatpush1.msra.mxu0 0.0
        %7783 = vmatprep.subr.mxu0 0.0
        %7784 = vmatpush1.msra.mxu0 0.0
        %7785 = vmatprep.subr.mxu0 0.0
        %7786 = vmatpush1.msra.mxu0 0.0
        %7787 = vmatprep.subr.mxu0 0.0
        %7788 = vmatpush1.msra.mxu0 0.0
        %7789 = vmatprep.mubr.f32.mxu0 0.0
        %7790 = vmatmul.mubr.f32.gmra.mrb[0].mxu0 %v7723
        %v7791 = vpop.f32.mrb[0].mxu0
        %v7792 = vadd.f32 0.0, %v7791
        %v7793 = vpop.f32.mrb[0].mxu0
        %7794 = vdwg.mxu0
        %v7795 = vadd.f32 %v7705, %v7792
        %v7797 = vlaneseq
        %v7798 = vshrl.u32 %v7797, 7
        %v7799 = vsub.s32 0, %v7798
        %v7800 = vrot.slane %v6991, %v7799
        %v7802 = vadd.f32 %v7795, %v7800
        %v7803 = vmax.f32 %v7802, 0.0
        %7804 = vmatprep.subr.mxu0 0.0
        %7805 = vmatpush1.msra.mxu0 %v7009
        %7806 = vmatprep.subr.mxu0 0.0
        %7807 = vmatpush1.msra.mxu0 %v7010
        %7808 = vmatprep.subr.mxu0 0.0
        %7809 = vmatpush1.msra.mxu0 %v7011
        %7810 = vmatprep.subr.mxu0 0.0
        %7811 = vmatpush1.msra.mxu0 %v7012
        %7812 = vmatprep.subr.mxu0 0.0
        %7813 = vmatpush1.msra.mxu0 %v7013
        %7814 = vmatprep.subr.mxu0 0.0
        %7815 = vmatpush1.msra.mxu0 %v7014
        %7816 = vmatprep.subr.mxu0 0.0
        %7817 = vmatpush1.msra.mxu0 %v7015
        %7818 = vmatprep.subr.mxu0 0.0
        %7819 = vmatpush1.msra.mxu0 %v7016
        %7820 = vmatprep.subr.mxu0 0.0
        %7821 = vmatpush1.msra.mxu0 %v7017
        %7822 = vmatprep.subr.mxu0 0.0
        %7823 = vmatpush1.msra.mxu0 %v7018
        %7824 = vmatprep.subr.mxu0 0.0
        %7825 = vmatpush1.msra.mxu0 %v7019
        %7826 = vmatprep.subr.mxu0 0.0
        %7827 = vmatpush1.msra.mxu0 %v7020
        %7828 = vmatprep.subr.mxu0 0.0
        %7829 = vmatpush1.msra.mxu0 %v7021
        %7830 = vmatprep.subr.mxu0 0.0
        %7831 = vmatpush1.msra.mxu0 %v7022
        %7832 = vmatprep.subr.mxu0 0.0
        %7833 = vmatpush1.msra.mxu0 %v7023
        %7834 = vmatprep.subr.mxu0 0.0
        %7835 = vmatpush1.msra.mxu0 %v7024
        %7836 = vmatprep.subr.mxu0 0.0
        %7837 = vmatpush1.msra.mxu0 0.0
        %7838 = vmatprep.subr.mxu0 0.0
        %7839 = vmatpush1.msra.mxu0 0.0
        %7840 = vmatprep.subr.mxu0 0.0
        %7841 = vmatpush1.msra.mxu0 0.0
        %7842 = vmatprep.subr.mxu0 0.0
        %7843 = vmatpush1.msra.mxu0 0.0
        %7844 = vmatprep.subr.mxu0 0.0
        %7845 = vmatpush1.msra.mxu0 0.0
        %7846 = vmatprep.subr.mxu0 0.0
        %7847 = vmatpush1.msra.mxu0 0.0
        %7848 = vmatprep.subr.mxu0 0.0
        %7849 = vmatpush1.msra.mxu0 0.0
        %7850 = vmatprep.subr.mxu0 0.0
        %7851 = vmatpush1.msra.mxu0 0.0
        %7852 = vmatprep.subr.mxu0 0.0
        %7853 = vmatpush1.msra.mxu0 0.0
        %7854 = vmatprep.subr.mxu0 0.0
        %7855 = vmatpush1.msra.mxu0 0.0
        %7856 = vmatprep.subr.mxu0 0.0
        %7857 = vmatpush1.msra.mxu0 0.0
        %7858 = vmatprep.subr.mxu0 0.0
        %7859 = vmatpush1.msra.mxu0 0.0
        %7860 = vmatprep.subr.mxu0 0.0
        %7861 = vmatpush1.msra.mxu0 0.0
        %7862 = vmatprep.subr.mxu0 0.0
        %7863 = vmatpush1.msra.mxu0 0.0
        %7864 = vmatprep.subr.mxu0 0.0
        %7865 = vmatpush1.msra.mxu0 0.0
        %7866 = vmatprep.subr.mxu0 0.0
        %7867 = vmatpush1.msra.mxu0 0.0
        %7868 = vmatprep.mubr.f32.mxu0 0.0
        %7869 = vmatmul.mubr.f32.gmra.mrb[0].mxu0 %v7364
        %v7870 = vpop.f32.mrb[0].mxu0
        %v7871 = vadd.f32 0.0, %v7870
        %v7872 = vpop.f32.mrb[0].mxu0
        %7873 = vdwg.mxu0
        %7874 = vmatprep.subr.mxu0 0.0
        %7875 = vmatpush1.msra.mxu0 %v6992
        %7876 = vmatprep.subr.mxu0 0.0
        %7877 = vmatpush1.msra.mxu0 %v6993
        %7878 = vmatprep.subr.mxu0 0.0
        %7879 = vmatpush1.msra.mxu0 %v6994
        %7880 = vmatprep.subr.mxu0 0.0
        %7881 = vmatpush1.msra.mxu0 %v6995
        %7882 = vmatprep.subr.mxu0 0.0
        %7883 = vmatpush1.msra.mxu0 %v6996
        %7884 = vmatprep.subr.mxu0 0.0
        %7885 = vmatpush1.msra.mxu0 %v6997
        %7886 = vmatprep.subr.mxu0 0.0
        %7887 = vmatpush1.msra.mxu0 %v6998
        %7888 = vmatprep.subr.mxu0 0.0
        %7889 = vmatpush1.msra.mxu0 %v6999
        %7890 = vmatprep.subr.mxu0 0.0
        %7891 = vmatpush1.msra.mxu0 %v7000
        %7892 = vmatprep.subr.mxu0 0.0
        %7893 = vmatpush1.msra.mxu0 %v7001
        %7894 = vmatprep.subr.mxu0 0.0
        %7895 = vmatpush1.msra.mxu0 %v7002
        %7896 = vmatprep.subr.mxu0 0.0
        %7897 = vmatpush1.msra.mxu0 %v7003
        %7898 = vmatprep.subr.mxu0 0.0
        %7899 = vmatpush1.msra.mxu0 %v7004
        %7900 = vmatprep.subr.mxu0 0.0
        %7901 = vmatpush1.msra.mxu0 %v7005
        %7902 = vmatprep.subr.mxu0 0.0
        %7903 = vmatpush1.msra.mxu0 %v7006
        %7904 = vmatprep.subr.mxu0 0.0
        %7905 = vmatpush1.msra.mxu0 %v7007
        %7906 = vmatprep.subr.mxu0 0.0
        %7907 = vmatpush1.msra.mxu0 0.0
        %7908 = vmatprep.subr.mxu0 0.0
        %7909 = vmatpush1.msra.mxu0 0.0
        %7910 = vmatprep.subr.mxu0 0.0
        %7911 = vmatpush1.msra.mxu0 0.0
        %7912 = vmatprep.subr.mxu0 0.0
        %7913 = vmatpush1.msra.mxu0 0.0
        %7914 = vmatprep.subr.mxu0 0.0
        %7915 = vmatpush1.msra.mxu0 0.0
        %7916 = vmatprep.subr.mxu0 0.0
        %7917 = vmatpush1.msra.mxu0 0.0
        %7918 = vmatprep.subr.mxu0 0.0
        %7919 = vmatpush1.msra.mxu0 0.0
        %7920 = vmatprep.subr.mxu0 0.0
        %7921 = vmatpush1.msra.mxu0 0.0
        %7922 = vmatprep.subr.mxu0 0.0
        %7923 = vmatpush1.msra.mxu0 0.0
        %7924 = vmatprep.subr.mxu0 0.0
        %7925 = vmatpush1.msra.mxu0 0.0
        %7926 = vmatprep.subr.mxu0 0.0
        %7927 = vmatpush1.msra.mxu0 0.0
        %7928 = vmatprep.subr.mxu0 0.0
        %7929 = vmatpush1.msra.mxu0 0.0
        %7930 = vmatprep.subr.mxu0 0.0
        %7931 = vmatpush1.msra.mxu0 0.0
        %7932 = vmatprep.subr.mxu0 0.0
        %7933 = vmatpush1.msra.mxu0 0.0
        %7934 = vmatprep.subr.mxu0 0.0
        %7935 = vmatpush1.msra.mxu0 0.0
        %7936 = vmatprep.subr.mxu0 0.0
        %7937 = vmatpush1.msra.mxu0 0.0
        %7938 = vmatprep.mubr.f32.mxu0 0.0
        %7939 = vmatmul.mubr.f32.gmra.mrb[0].mxu0 %v5694
        %v7940 = vpop.f32.mrb[0].mxu0
        %v7941 = vadd.f32 %v7871, %v7940
        %v7942 = vpop.f32.mrb[0].mxu0
        %7943 = vdwg.mxu0
        %7944 = vmatprep.subr.mxu0 0.0
        %7945 = vmatpush1.msra.mxu0 %v7169
        %7946 = vmatprep.subr.mxu0 0.0
        %7947 = vmatpush1.msra.mxu0 %v7170
        %7948 = vmatprep.subr.mxu0 0.0
        %7949 = vmatpush1.msra.mxu0 %v7171
        %7950 = vmatprep.subr.mxu0 0.0
        %7951 = vmatpush1.msra.mxu0 %v7172
        %7952 = vmatprep.subr.mxu0 0.0
        %7953 = vmatpush1.msra.mxu0 %v7173
        %7954 = vmatprep.subr.mxu0 0.0
        %7955 = vmatpush1.msra.mxu0 %v7174
        %7956 = vmatprep.subr.mxu0 0.0
        %7957 = vmatpush1.msra.mxu0 %v7175
        %7958 = vmatprep.subr.mxu0 0.0
        %7959 = vmatpush1.msra.mxu0 %v7176
        %7960 = vmatprep.subr.mxu0 0.0
        %7961 = vmatpush1.msra.mxu0 %v7177
        %7962 = vmatprep.subr.mxu0 0.0
        %7963 = vmatpush1.msra.mxu0 %v7178
        %7964 = vmatprep.subr.mxu0 0.0
        %7965 = vmatpush1.msra.mxu0 %v7179
        %7966 = vmatprep.subr.mxu0 0.0
        %7967 = vmatpush1.msra.mxu0 %v7180
        %7968 = vmatprep.subr.mxu0 0.0
        %7969 = vmatpush1.msra.mxu0 %v7181
        %7970 = vmatprep.subr.mxu0 0.0
        %7971 = vmatpush1.msra.mxu0 %v7182
        %7972 = vmatprep.subr.mxu0 0.0
        %7973 = vmatpush1.msra.mxu0 %v7183
        %7974 = vmatprep.subr.mxu0 0.0
        %7975 = vmatpush1.msra.mxu0 %v7184
        %7976 = vmatprep.subr.mxu0 0.0
        %7977 = vmatpush1.msra.mxu0 0.0
        %7978 = vmatprep.subr.mxu0 0.0
        %7979 = vmatpush1.msra.mxu0 0.0
        %7980 = vmatprep.subr.mxu0 0.0
        %7981 = vmatpush1.msra.mxu0 0.0
        %7982 = vmatprep.subr.mxu0 0.0
        %7983 = vmatpush1.msra.mxu0 0.0
        %7984 = vmatprep.subr.mxu0 0.0
        %7985 = vmatpush1.msra.mxu0 0.0
        %7986 = vmatprep.subr.mxu0 0.0
        %7987 = vmatpush1.msra.mxu0 0.0
        %7988 = vmatprep.subr.mxu0 0.0
        %7989 = vmatpush1.msra.mxu0 0.0
        %7990 = vmatprep.subr.mxu0 0.0
        %7991 = vmatpush1.msra.mxu0 0.0
        %7992 = vmatprep.subr.mxu0 0.0
        %7993 = vmatpush1.msra.mxu0 0.0
        %7994 = vmatprep.subr.mxu0 0.0
        %7995 = vmatpush1.msra.mxu0 0.0
        %7996 = vmatprep.subr.mxu0 0.0
        %7997 = vmatpush1.msra.mxu0 0.0
        %7998 = vmatprep.subr.mxu0 0.0
        %7999 = vmatpush1.msra.mxu0 0.0
        %8000 = vmatprep.subr.mxu0 0.0
        %8001 = vmatpush1.msra.mxu0 0.0
        %8002 = vmatprep.subr.mxu0 0.0
        %8003 = vmatpush1.msra.mxu0 0.0
        %8004 = vmatprep.subr.mxu0 0.0
        %8005 = vmatpush1.msra.mxu0 0.0
        %8006 = vmatprep.subr.mxu0 0.0
        %8007 = vmatpush1.msra.mxu0 0.0
        %8008 = vmatprep.mubr.f32.mxu0 0.0
        %8009 = vmatmul.mubr.f32.gmra.mrb[0].mxu0 %v7454
        %v8010 = vpop.f32.mrb[0].mxu0
        %v8011 = vadd.f32 0.0, %v8010
        %v8012 = vpop.f32.mrb[0].mxu0
        %8013 = vdwg.mxu0
        %v8014 = vadd.f32 %v7941, %v8011
        %8015 = vmatprep.subr.mxu0 0.0
        %8016 = vmatpush1.msra.mxu0 %v7259
        %8017 = vmatprep.subr.mxu0 0.0
        %8018 = vmatpush1.msra.mxu0 %v7260
        %8019 = vmatprep.subr.mxu0 0.0
        %8020 = vmatpush1.msra.mxu0 %v7261
        %8021 = vmatprep.subr.mxu0 0.0
        %8022 = vmatpush1.msra.mxu0 %v7262
        %8023 = vmatprep.subr.mxu0 0.0
        %8024 = vmatpush1.msra.mxu0 %v7263
        %8025 = vmatprep.subr.mxu0 0.0
        %8026 = vmatpush1.msra.mxu0 %v7264
        %8027 = vmatprep.subr.mxu0 0.0
        %8028 = vmatpush1.msra.mxu0 %v7265
        %8029 = vmatprep.subr.mxu0 0.0
        %8030 = vmatpush1.msra.mxu0 %v7266
        %8031 = vmatprep.subr.mxu0 0.0
        %8032 = vmatpush1.msra.mxu0 %v7267
        %8033 = vmatprep.subr.mxu0 0.0
        %8034 = vmatpush1.msra.mxu0 %v7268
        %8035 = vmatprep.subr.mxu0 0.0
        %8036 = vmatpush1.msra.mxu0 %v7269
        %8037 = vmatprep.subr.mxu0 0.0
        %8038 = vmatpush1.msra.mxu0 %v7270
        %8039 = vmatprep.subr.mxu0 0.0
        %8040 = vmatpush1.msra.mxu0 %v7271
        %8041 = vmatprep.subr.mxu0 0.0
        %8042 = vmatpush1.msra.mxu0 %v7272
        %8043 = vmatprep.subr.mxu0 0.0
        %8044 = vmatpush1.msra.mxu0 %v7273
        %8045 = vmatprep.subr.mxu0 0.0
        %8046 = vmatpush1.msra.mxu0 %v7274
        %8047 = vmatprep.subr.mxu0 0.0
        %8048 = vmatpush1.msra.mxu0 0.0
        %8049 = vmatprep.subr.mxu0 0.0
        %8050 = vmatpush1.msra.mxu0 0.0
        %8051 = vmatprep.subr.mxu0 0.0
        %8052 = vmatpush1.msra.mxu0 0.0
        %8053 = vmatprep.subr.mxu0 0.0
        %8054 = vmatpush1.msra.mxu0 0.0
        %8055 = vmatprep.subr.mxu0 0.0
        %8056 = vmatpush1.msra.mxu0 0.0
        %8057 = vmatprep.subr.mxu0 0.0
        %8058 = vmatpush1.msra.mxu0 0.0
        %8059 = vmatprep.subr.mxu0 0.0
        %8060 = vmatpush1.msra.mxu0 0.0
        %8061 = vmatprep.subr.mxu0 0.0
        %8062 = vmatpush1.msra.mxu0 0.0
        %8063 = vmatprep.subr.mxu0 0.0
        %8064 = vmatpush1.msra.mxu0 0.0
        %8065 = vmatprep.subr.mxu0 0.0
        %8066 = vmatpush1.msra.mxu0 0.0
        %8067 = vmatprep.subr.mxu0 0.0
        %8068 = vmatpush1.msra.mxu0 0.0
        %8069 = vmatprep.subr.mxu0 0.0
        %8070 = vmatpush1.msra.mxu0 0.0
        %8071 = vmatprep.subr.mxu0 0.0
        %8072 = vmatpush1.msra.mxu0 0.0
        %8073 = vmatprep.subr.mxu0 0.0
        %8074 = vmatpush1.msra.mxu0 0.0
        %8075 = vmatprep.subr.mxu0 0.0
        %8076 = vmatpush1.msra.mxu0 0.0
        %8077 = vmatprep.subr.mxu0 0.0
        %8078 = vmatpush1.msra.mxu0 0.0
        %8079 = vmatprep.mubr.f32.mxu0 0.0
        %8080 = vmatmul.mubr.f32.gmra.mrb[0].mxu0 %v6342
        %v8081 = vpop.f32.mrb[0].mxu0
        %v8082 = vadd.f32 0.0, %v8081
        %v8083 = vpop.f32.mrb[0].mxu0
        %8084 = vdwg.mxu0
        %v8085 = vadd.f32 %v8014, %v8082
        %8086 = vmatprep.subr.mxu0 0.0
        %8087 = vmatpush1.msra.mxu0 %v7347
        %8088 = vmatprep.subr.mxu0 0.0
        %8089 = vmatpush1.msra.mxu0 %v7348
        %8090 = vmatprep.subr.mxu0 0.0
        %8091 = vmatpush1.msra.mxu0 %v7349
        %8092 = vmatprep.subr.mxu0 0.0
        %8093 = vmatpush1.msra.mxu0 %v7350
        %8094 = vmatprep.subr.mxu0 0.0
        %8095 = vmatpush1.msra.mxu0 %v7351
        %8096 = vmatprep.subr.mxu0 0.0
        %8097 = vmatpush1.msra.mxu0 %v7352
        %8098 = vmatprep.subr.mxu0 0.0
        %8099 = vmatpush1.msra.mxu0 %v7353
        %8100 = vmatprep.subr.mxu0 0.0
        %8101 = vmatpush1.msra.mxu0 %v7354
        %8102 = vmatprep.subr.mxu0 0.0
        %8103 = vmatpush1.msra.mxu0 %v7355
        %8104 = vmatprep.subr.mxu0 0.0
        %8105 = vmatpush1.msra.mxu0 %v7356
        %8106 = vmatprep.subr.mxu0 0.0
        %8107 = vmatpush1.msra.mxu0 %v7357
        %8108 = vmatprep.subr.mxu0 0.0
        %8109 = vmatpush1.msra.mxu0 %v7358
        %8110 = vmatprep.subr.mxu0 0.0
        %8111 = vmatpush1.msra.mxu0 %v7359
        %8112 = vmatprep.subr.mxu0 0.0
        %8113 = vmatpush1.msra.mxu0 %v7360
        %8114 = vmatprep.subr.mxu0 0.0
        %8115 = vmatpush1.msra.mxu0 %v7361
        %8116 = vmatprep.subr.mxu0 0.0
        %8117 = vmatpush1.msra.mxu0 %v7362
        %8118 = vmatprep.subr.mxu0 0.0
        %8119 = vmatpush1.msra.mxu0 0.0
        %8120 = vmatprep.subr.mxu0 0.0
        %8121 = vmatpush1.msra.mxu0 0.0
        %8122 = vmatprep.subr.mxu0 0.0
        %8123 = vmatpush1.msra.mxu0 0.0
        %8124 = vmatprep.subr.mxu0 0.0
        %8125 = vmatpush1.msra.mxu0 0.0
        %8126 = vmatprep.subr.mxu0 0.0
        %8127 = vmatpush1.msra.mxu0 0.0
        %8128 = vmatprep.subr.mxu0 0.0
        %8129 = vmatpush1.msra.mxu0 0.0
        %8130 = vmatprep.subr.mxu0 0.0
        %8131 = vmatpush1.msra.mxu0 0.0
        %8132 = vmatprep.subr.mxu0 0.0
        %8133 = vmatpush1.msra.mxu0 0.0
        %8134 = vmatprep.subr.mxu0 0.0
        %8135 = vmatpush1.msra.mxu0 0.0
        %8136 = vmatprep.subr.mxu0 0.0
        %8137 = vmatpush1.msra.mxu0 0.0
        %8138 = vmatprep.subr.mxu0 0.0
        %8139 = vmatpush1.msra.mxu0 0.0
        %8140 = vmatprep.subr.mxu0 0.0
        %8141 = vmatpush1.msra.mxu0 0.0
        %8142 = vmatprep.subr.mxu0 0.0
        %8143 = vmatpush1.msra.mxu0 0.0
        %8144 = vmatprep.subr.mxu0 0.0
        %8145 = vmatpush1.msra.mxu0 0.0
        %8146 = vmatprep.subr.mxu0 0.0
        %8147 = vmatpush1.msra.mxu0 0.0
        %8148 = vmatprep.subr.mxu0 0.0
        %8149 = vmatpush1.msra.mxu0 0.0
        %8150 = vmatprep.mubr.f32.mxu0 0.0
        %8151 = vmatmul.mubr.f32.gmra.mrb[0].mxu0 %v7633
        %v8152 = vpop.f32.mrb[0].mxu0
        %v8153 = vadd.f32 0.0, %v8152
        %v8154 = vpop.f32.mrb[0].mxu0
        %8155 = vdwg.mxu0
        %v8156 = vadd.f32 %v8085, %v8153
        %8157 = vmatprep.subr.mxu0 0.0
        %8158 = vmatpush1.msra.mxu0 %v7438
        %8159 = vmatprep.subr.mxu0 0.0
        %8160 = vmatpush1.msra.mxu0 %v7439
        %8161 = vmatprep.subr.mxu0 0.0
        %8162 = vmatpush1.msra.mxu0 %v7440
        %8163 = vmatprep.subr.mxu0 0.0
        %8164 = vmatpush1.msra.mxu0 %v7441
        %8165 = vmatprep.subr.mxu0 0.0
        %8166 = vmatpush1.msra.mxu0 %v7442
        %8167 = vmatprep.subr.mxu0 0.0
        %8168 = vmatpush1.msra.mxu0 %v7443
        %8169 = vmatprep.subr.mxu0 0.0
        %8170 = vmatpush1.msra.mxu0 %v7444
        %8171 = vmatprep.subr.mxu0 0.0
        %8172 = vmatpush1.msra.mxu0 %v7445
        %8173 = vmatprep.subr.mxu0 0.0
        %8174 = vmatpush1.msra.mxu0 %v7446
        %8175 = vmatprep.subr.mxu0 0.0
        %8176 = vmatpush1.msra.mxu0 %v7447
        %8177 = vmatprep.subr.mxu0 0.0
        %8178 = vmatpush1.msra.mxu0 %v7448
        %8179 = vmatprep.subr.mxu0 0.0
        %8180 = vmatpush1.msra.mxu0 %v7449
        %8181 = vmatprep.subr.mxu0 0.0
        %8182 = vmatpush1.msra.mxu0 %v7450
        %8183 = vmatprep.subr.mxu0 0.0
        %8184 = vmatpush1.msra.mxu0 %v7451
        %8185 = vmatprep.subr.mxu0 0.0
        %8186 = vmatpush1.msra.mxu0 %v7452
        %8187 = vmatprep.subr.mxu0 0.0
        %8188 = vmatpush1.msra.mxu0 %v7453
        %8189 = vmatprep.subr.mxu0 0.0
        %8190 = vmatpush1.msra.mxu0 0.0
        %8191 = vmatprep.subr.mxu0 0.0
        %8192 = vmatpush1.msra.mxu0 0.0
        %8193 = vmatprep.subr.mxu0 0.0
        %8194 = vmatpush1.msra.mxu0 0.0
        %8195 = vmatprep.subr.mxu0 0.0
        %8196 = vmatpush1.msra.mxu0 0.0
        %8197 = vmatprep.subr.mxu0 0.0
        %8198 = vmatpush1.msra.mxu0 0.0
        %8199 = vmatprep.subr.mxu0 0.0
        %8200 = vmatpush1.msra.mxu0 0.0
        %8201 = vmatprep.subr.mxu0 0.0
        %8202 = vmatpush1.msra.mxu0 0.0
        %8203 = vmatprep.subr.mxu0 0.0
        %8204 = vmatpush1.msra.mxu0 0.0
        %8205 = vmatprep.subr.mxu0 0.0
        %8206 = vmatpush1.msra.mxu0 0.0
        %8207 = vmatprep.subr.mxu0 0.0
        %8208 = vmatpush1.msra.mxu0 0.0
        %8209 = vmatprep.subr.mxu0 0.0
        %8210 = vmatpush1.msra.mxu0 0.0
        %8211 = vmatprep.subr.mxu0 0.0
        %8212 = vmatpush1.msra.mxu0 0.0
        %8213 = vmatprep.subr.mxu0 0.0
        %8214 = vmatpush1.msra.mxu0 0.0
        %8215 = vmatprep.subr.mxu0 0.0
        %8216 = vmatpush1.msra.mxu0 0.0
        %8217 = vmatprep.subr.mxu0 0.0
        %8218 = vmatpush1.msra.mxu0 0.0
        %8219 = vmatprep.subr.mxu0 0.0
        %8220 = vmatpush1.msra.mxu0 0.0
        %8221 = vmatprep.mubr.f32.mxu0 0.0
        %8222 = vmatmul.mubr.f32.gmra.mrb[0].mxu0 %v7723
        %v8223 = vpop.f32.mrb[0].mxu0
        %v8224 = vadd.f32 0.0, %v8223
        %v8225 = vpop.f32.mrb[0].mxu0
        %8226 = vdwg.mxu0
        %v8227 = vadd.f32 %v8156, %v8224
        %8228 = vmatprep.subr.mxu0 0.0
        %8229 = vmatpush1.msra.mxu0 %v7528
        %8230 = vmatprep.subr.mxu0 0.0
        %8231 = vmatpush1.msra.mxu0 %v7529
        %8232 = vmatprep.subr.mxu0 0.0
        %8233 = vmatpush1.msra.mxu0 %v7530
        %8234 = vmatprep.subr.mxu0 0.0
        %8235 = vmatpush1.msra.mxu0 %v7531
        %8236 = vmatprep.subr.mxu0 0.0
        %8237 = vmatpush1.msra.mxu0 %v7532
        %8238 = vmatprep.subr.mxu0 0.0
        %8239 = vmatpush1.msra.mxu0 %v7533
        %8240 = vmatprep.subr.mxu0 0.0
        %8241 = vmatpush1.msra.mxu0 %v7534
        %8242 = vmatprep.subr.mxu0 0.0
        %8243 = vmatpush1.msra.mxu0 %v7535
        %8244 = vmatprep.subr.mxu0 0.0
        %8245 = vmatpush1.msra.mxu0 %v7536
        %8246 = vmatprep.subr.mxu0 0.0
        %8247 = vmatpush1.msra.mxu0 %v7537
        %8248 = vmatprep.subr.mxu0 0.0
        %8249 = vmatpush1.msra.mxu0 %v7538
        %8250 = vmatprep.subr.mxu0 0.0
        %8251 = vmatpush1.msra.mxu0 %v7539
        %8252 = vmatprep.subr.mxu0 0.0
        %8253 = vmatpush1.msra.mxu0 %v7540
        %8254 = vmatprep.subr.mxu0 0.0
        %8255 = vmatpush1.msra.mxu0 %v7541
        %8256 = vmatprep.subr.mxu0 0.0
        %8257 = vmatpush1.msra.mxu0 %v7542
        %8258 = vmatprep.subr.mxu0 0.0
        %8259 = vmatpush1.msra.mxu0 %v7543
        %8260 = vmatprep.subr.mxu0 0.0
        %8261 = vmatpush1.msra.mxu0 0.0
        %8262 = vmatprep.subr.mxu0 0.0
        %8263 = vmatpush1.msra.mxu0 0.0
        %8264 = vmatprep.subr.mxu0 0.0
        %8265 = vmatpush1.msra.mxu0 0.0
        %8266 = vmatprep.subr.mxu0 0.0
        %8267 = vmatpush1.msra.mxu0 0.0
        %8268 = vmatprep.subr.mxu0 0.0
        %8269 = vmatpush1.msra.mxu0 0.0
        %8270 = vmatprep.subr.mxu0 0.0
        %8271 = vmatpush1.msra.mxu0 0.0
        %8272 = vmatprep.subr.mxu0 0.0
        %8273 = vmatpush1.msra.mxu0 0.0
        %8274 = vmatprep.subr.mxu0 0.0
        %8275 = vmatpush1.msra.mxu0 0.0
        %8276 = vmatprep.subr.mxu0 0.0
        %8277 = vmatpush1.msra.mxu0 0.0
        %8278 = vmatprep.subr.mxu0 0.0
        %8279 = vmatpush1.msra.mxu0 0.0
        %8280 = vmatprep.subr.mxu0 0.0
        %8281 = vmatpush1.msra.mxu0 0.0
        %8282 = vmatprep.subr.mxu0 0.0
        %8283 = vmatpush1.msra.mxu0 0.0
        %8284 = vmatprep.subr.mxu0 0.0
        %8285 = vmatpush1.msra.mxu0 0.0
        %8286 = vmatprep.subr.mxu0 0.0
        %8287 = vmatpush1.msra.mxu0 0.0
        %8288 = vmatprep.subr.mxu0 0.0
        %8289 = vmatpush1.msra.mxu0 0.0
        %8290 = vmatprep.subr.mxu0 0.0
        %8291 = vmatpush1.msra.mxu0 0.0
        %8292 = vmatprep.mubr.f32.mxu0 0.0
        %8293 = vmatmul.mubr.f32.gmra.mrb[0].mxu0 %v6990
        %v8294 = vpop.f32.mrb[0].mxu0
        %v8295 = vadd.f32 0.0, %v8294
        %v8296 = vpop.f32.mrb[0].mxu0
        %8297 = vdwg.mxu0
        %v8298 = vadd.f32 %v8227, %v8295
        %v8300 = vrot.slane %v6990, 1
        %8302 = vmatprep.subr.mxu0 0.0
        %8303 = vmatpush1.msra.mxu0 %v7616
        %8304 = vmatprep.subr.mxu0 0.0
        %8305 = vmatpush1.msra.mxu0 %v7617
        %8306 = vmatprep.subr.mxu0 0.0
        %8307 = vmatpush1.msra.mxu0 %v7618
        %8308 = vmatprep.subr.mxu0 0.0
        %8309 = vmatpush1.msra.mxu0 %v7619
        %8310 = vmatprep.subr.mxu0 0.0
        %8311 = vmatpush1.msra.mxu0 %v7620
        %8312 = vmatprep.subr.mxu0 0.0
        %8313 = vmatpush1.msra.mxu0 %v7621
        %8314 = vmatprep.subr.mxu0 0.0
        %8315 = vmatpush1.msra.mxu0 %v7622
        %8316 = vmatprep.subr.mxu0 0.0
        %8317 = vmatpush1.msra.mxu0 %v7623
        %8318 = vmatprep.subr.mxu0 0.0
        %8319 = vmatpush1.msra.mxu0 %v7624
        %8320 = vmatprep.subr.mxu0 0.0
        %8321 = vmatpush1.msra.mxu0 %v7625
        %8322 = vmatprep.subr.mxu0 0.0
        %8323 = vmatpush1.msra.mxu0 %v7626
        %8324 = vmatprep.subr.mxu0 0.0
        %8325 = vmatpush1.msra.mxu0 %v7627
        %8326 = vmatprep.subr.mxu0 0.0
        %8327 = vmatpush1.msra.mxu0 %v7628
        %8328 = vmatprep.subr.mxu0 0.0
        %8329 = vmatpush1.msra.mxu0 %v7629
        %8330 = vmatprep.subr.mxu0 0.0
        %8331 = vmatpush1.msra.mxu0 %v7630
        %8332 = vmatprep.subr.mxu0 0.0
        %8333 = vmatpush1.msra.mxu0 %v7631
        %8334 = vmatprep.subr.mxu0 0.0
        %8335 = vmatpush1.msra.mxu0 0.0
        %8336 = vmatprep.subr.mxu0 0.0
        %8337 = vmatpush1.msra.mxu0 0.0
        %8338 = vmatprep.subr.mxu0 0.0
        %8339 = vmatpush1.msra.mxu0 0.0
        %8340 = vmatprep.subr.mxu0 0.0
        %8341 = vmatpush1.msra.mxu0 0.0
        %8342 = vmatprep.subr.mxu0 0.0
        %8343 = vmatpush1.msra.mxu0 0.0
        %8344 = vmatprep.subr.mxu0 0.0
        %8345 = vmatpush1.msra.mxu0 0.0
        %8346 = vmatprep.subr.mxu0 0.0
        %8347 = vmatpush1.msra.mxu0 0.0
        %8348 = vmatprep.subr.mxu0 0.0
        %8349 = vmatpush1.msra.mxu0 0.0
        %8350 = vmatprep.subr.mxu0 0.0
        %8351 = vmatpush1.msra.mxu0 0.0
        %8352 = vmatprep.subr.mxu0 0.0
        %8353 = vmatpush1.msra.mxu0 0.0
        %8354 = vmatprep.subr.mxu0 0.0
        %8355 = vmatpush1.msra.mxu0 0.0
        %8356 = vmatprep.subr.mxu0 0.0
        %8357 = vmatpush1.msra.mxu0 0.0
        %8358 = vmatprep.subr.mxu0 0.0
        %8359 = vmatpush1.msra.mxu0 0.0
        %8360 = vmatprep.subr.mxu0 0.0
        %8361 = vmatpush1.msra.mxu0 0.0
        %8362 = vmatprep.subr.mxu0 0.0
        %8363 = vmatpush1.msra.mxu0 0.0
        %8364 = vmatprep.subr.mxu0 0.0
        %8365 = vmatpush1.msra.mxu0 0.0
        %8366 = vmatprep.mubr.f32.mxu0 0.0
        %8367 = vmatmul.mubr.f32.gmra.mrb[0].mxu0 %v8300
        %v8368 = vpop.f32.mrb[0].mxu0
        %v8369 = vadd.f32 0.0, %v8368
        %v8370 = vpop.f32.mrb[0].mxu0
        %8371 = vdwg.mxu0
        %v8372 = vadd.f32 %v8298, %v8369
        %v8373 = vrot.slane %v6990, 2
        %8375 = vmatprep.subr.mxu0 0.0
        %8376 = vmatpush1.msra.mxu0 %v7707
        %8377 = vmatprep.subr.mxu0 0.0
        %8378 = vmatpush1.msra.mxu0 %v7708
        %8379 = vmatprep.subr.mxu0 0.0
        %8380 = vmatpush1.msra.mxu0 %v7709
        %8381 = vmatprep.subr.mxu0 0.0
        %8382 = vmatpush1.msra.mxu0 %v7710
        %8383 = vmatprep.subr.mxu0 0.0
        %8384 = vmatpush1.msra.mxu0 %v7711
        %8385 = vmatprep.subr.mxu0 0.0
        %8386 = vmatpush1.msra.mxu0 %v7712
        %8387 = vmatprep.subr.mxu0 0.0
        %8388 = vmatpush1.msra.mxu0 %v7713
        %8389 = vmatprep.subr.mxu0 0.0
        %8390 = vmatpush1.msra.mxu0 %v7714
        %8391 = vmatprep.subr.mxu0 0.0
        %8392 = vmatpush1.msra.mxu0 %v7715
        %8393 = vmatprep.subr.mxu0 0.0
        %8394 = vmatpush1.msra.mxu0 %v7716
        %8395 = vmatprep.subr.mxu0 0.0
        %8396 = vmatpush1.msra.mxu0 %v7717
        %8397 = vmatprep.subr.mxu0 0.0
        %8398 = vmatpush1.msra.mxu0 %v7718
        %8399 = vmatprep.subr.mxu0 0.0
        %8400 = vmatpush1.msra.mxu0 %v7719
        %8401 = vmatprep.subr.mxu0 0.0
        %8402 = vmatpush1.msra.mxu0 %v7720
        %8403 = vmatprep.subr.mxu0 0.0
        %8404 = vmatpush1.msra.mxu0 %v7721
        %8405 = vmatprep.subr.mxu0 0.0
        %8406 = vmatpush1.msra.mxu0 %v7722
        %8407 = vmatprep.subr.mxu0 0.0
        %8408 = vmatpush1.msra.mxu0 0.0
        %8409 = vmatprep.subr.mxu0 0.0
        %8410 = vmatpush1.msra.mxu0 0.0
        %8411 = vmatprep.subr.mxu0 0.0
        %8412 = vmatpush1.msra.mxu0 0.0
        %8413 = vmatprep.subr.mxu0 0.0
        %8414 = vmatpush1.msra.mxu0 0.0
        %8415 = vmatprep.subr.mxu0 0.0
        %8416 = vmatpush1.msra.mxu0 0.0
        %8417 = vmatprep.subr.mxu0 0.0
        %8418 = vmatpush1.msra.mxu0 0.0
        %8419 = vmatprep.subr.mxu0 0.0
        %8420 = vmatpush1.msra.mxu0 0.0
        %8421 = vmatprep.subr.mxu0 0.0
        %8422 = vmatpush1.msra.mxu0 0.0
        %8423 = vmatprep.subr.mxu0 0.0
        %8424 = vmatpush1.msra.mxu0 0.0
        %8425 = vmatprep.subr.mxu0 0.0
        %8426 = vmatpush1.msra.mxu0 0.0
        %8427 = vmatprep.subr.mxu0 0.0
        %8428 = vmatpush1.msra.mxu0 0.0
        %8429 = vmatprep.subr.mxu0 0.0
        %8430 = vmatpush1.msra.mxu0 0.0
        %8431 = vmatprep.subr.mxu0 0.0
        %8432 = vmatpush1.msra.mxu0 0.0
        %8433 = vmatprep.subr.mxu0 0.0
        %8434 = vmatpush1.msra.mxu0 0.0
        %8435 = vmatprep.subr.mxu0 0.0
        %8436 = vmatpush1.msra.mxu0 0.0
        %8437 = vmatprep.subr.mxu0 0.0
        %8438 = vmatpush1.msra.mxu0 0.0
        %8439 = vmatprep.mubr.f32.mxu0 0.0
        %8440 = vmatmul.mubr.f32.gmra.mrb[0].mxu0 %v8373
        %v8441 = vpop.f32.mrb[0].mxu0
        %v8442 = vadd.f32 0.0, %v8441
        %v8443 = vpop.f32.mrb[0].mxu0
        %8444 = vdwg.mxu0
        %v8445 = vadd.f32 %v8372, %v8442
        %v8446 = vadd.f32 %v8445, %v7800
        %v8447 = vmax.f32 %v8446, 0.0
        %v8448 = vmax.f32 %v7803, %v8447
        %v8450 = vrot.slane %v8448, 1
        %v8452 = vmax.f32 %v8448, %v8450
        %v8453 = vld [vmem:[%s7] sm:$0xff]
        %v8454 = vld [vmem:[%s7 + $0x8] sm:$0xff]
        %v8455 = vld [vmem:[%s7 + $0x10] sm:$0xff]
        %v8456 = vld [vmem:[%s7 + $0x18] sm:$0xff]
        %v8457 = vld [vmem:[%s7 + $0x20] sm:$0xff]
        %v8458 = vld [vmem:[%s7 + $0x28] sm:$0xff]
        %v8459 = vld [vmem:[%s7 + $0x30] sm:$0xff]
        %v8460 = vld [vmem:[%s7 + $0x38] sm:$0xff]
        %v8461 = vld [vmem:[%s7 + $0x40] sm:$0xff]
        %v8462 = vld [vmem:[%s7 + $0x48] sm:$0xff]
        %v8463 = vld [vmem:[%s7 + $0x50] sm:$0xff]
        %v8464 = vld [vmem:[%s7 + $0x58] sm:$0xff]
        %v8465 = vld [vmem:[%s7 + $0x60] sm:$0xff]
        %v8466 = vld [vmem:[%s7 + $0x68] sm:$0xff]
        %v8467 = vld [vmem:[%s7 + $0x70] sm:$0xff]
        %v8468 = vld [vmem:[%s7 + $0x78] sm:$0xff]
        %v8469 = vld [vmem:[%s8] sm:$0x1]
        %8470 = vmatprep.subr.mxu0 0.0
        %8471 = vmatpush1.msra.mxu0 %v8453
        %8472 = vmatprep.subr.mxu0 0.0
        %8473 = vmatpush1.msra.mxu0 %v8454
        %8474 = vmatprep.subr.mxu0 0.0
        %8475 = vmatpush1.msra.mxu0 %v8455
        %8476 = vmatprep.subr.mxu0 0.0
        %8477 = vmatpush1.msra.mxu0 %v8456
        %8478 = vmatprep.subr.mxu0 0.0
        %8479 = vmatpush1.msra.mxu0 %v8457
        %8480 = vmatprep.subr.mxu0 0.0
        %8481 = vmatpush1.msra.mxu0 %v8458
        %8482 = vmatprep.subr.mxu0 0.0
        %8483 = vmatpush1.msra.mxu0 %v8459
        %8484 = vmatprep.subr.mxu0 0.0
        %8485 = vmatpush1.msra.mxu0 %v8460
        %8486 = vmatprep.subr.mxu0 0.0
        %8487 = vmatpush1.msra.mxu0 %v8461
        %8488 = vmatprep.subr.mxu0 0.0
        %8489 = vmatpush1.msra.mxu0 %v8462
        %8490 = vmatprep.subr.mxu0 0.0
        %8491 = vmatpush1.msra.mxu0 %v8463
        %8492 = vmatprep.subr.mxu0 0.0
        %8493 = vmatpush1.msra.mxu0 %v8464
        %8494 = vmatprep.subr.mxu0 0.0
        %8495 = vmatpush1.msra.mxu0 %v8465
        %8496 = vmatprep.subr.mxu0 0.0
        %8497 = vmatpush1.msra.mxu0 %v8466
        %8498 = vmatprep.subr.mxu0 0.0
        %8499 = vmatpush1.msra.mxu0 %v8467
        %8500 = vmatprep.subr.mxu0 0.0
        %8501 = vmatpush1.msra.mxu0 %v8468
        %8502 = vmatprep.subr.mxu0 0.0
        %8503 = vmatpush1.msra.mxu0 0.0
        %8504 = vmatprep.subr.mxu0 0.0
        %8505 = vmatpush1.msra.mxu0 0.0
        %8506 = vmatprep.subr.mxu0 0.0
        %8507 = vmatpush1.msra.mxu0 0.0
        %8508 = vmatprep.subr.mxu0 0.0
        %8509 = vmatpush1.msra.mxu0 0.0
        %8510 = vmatprep.subr.mxu0 0.0
        %8511 = vmatpush1.msra.mxu0 0.0
        %8512 = vmatprep.subr.mxu0 0.0
        %8513 = vmatpush1.msra.mxu0 0.0
        %8514 = vmatprep.subr.mxu0 0.0
        %8515 = vmatpush1.msra.mxu0 0.0
        %8516 = vmatprep.subr.mxu0 0.0
        %8517 = vmatpush1.msra.mxu0 0.0
        %8518 = vmatprep.subr.mxu0 0.0
        %8519 = vmatpush1.msra.mxu0 0.0
        %8520 = vmatprep.subr.mxu0 0.0
        %8521 = vmatpush1.msra.mxu0 0.0
        %8522 = vmatprep.subr.mxu0 0.0
        %8523 = vmatpush1.msra.mxu0 0.0
        %8524 = vmatprep.subr.mxu0 0.0
        %8525 = vmatpush1.msra.mxu0 0.0
        %8526 = vmatprep.subr.mxu0 0.0
        %8527 = vmatpush1.msra.mxu0 0.0
        %8528 = vmatprep.subr.mxu0 0.0
        %8529 = vmatpush1.msra.mxu0 0.0
        %8530 = vmatprep.subr.mxu0 0.0
        %8531 = vmatpush1.msra.mxu0 0.0
        %8532 = vmatprep.subr.mxu0 0.0
        %8533 = vmatpush1.msra.mxu0 0.0
        %8534 = vmatprep.mubr.f32.mxu0 0.0
        %8535 = vmatmul.mubr.f32.gmra.mrb[0].mxu0 %v8452
        %v8536 = vpop.f32.mrb[0].mxu0
        %v8537 = vadd.f32 %v8469, %v8536
        %v8538 = vpop.f32.mrb[0].mxu0
        %8539 = vdwg.mxu0
        %v8540 = vmax.f32 %v8537, 0.0
        %vm8541 = vcmask 516096
        %8542 = vst.msk [vmem:[%s324] sm:$0x1] %vm8541, %v8540
        %s8543 = sand.u32 %s225, 1
        %s8544 = scalar_lea.sflag [#allocation3], %s8543
        %s8545 = sand.u32 %s225, 1
        %s8546 = scalar_lea.vmem [#allocation2], %s8545
        // Predicated region
        $region57: #{image_embedding_forward.1} parent=55 // pred_check
          %p8547 = pneg %p235
        $region58: #{image_embedding_forward.1} parent=55 // pred_check_branch
          %8549 = sbr.rel (%p8547) target = $region60
        $region59: #{image_embedding_forward.1} parent=55 // pred_region
          %s8551 = ssub.s32 16, 16
          %8552 = vsyncadd %s8544, %s8551
          %s8553 = smul.addr %s23, 16
          %s8554 = scalar_lea.hbm %s9, %s8553
          %s8556 = sshll.u32 %s8546, 4
          %s8557 = int_to_ptr.vmem [resolvable:$true] %s8556
          %8559 = dma.vmem_to_hbm [thread:$0]  %s8557, 16, %s8554, %s8544
        $region60: #{image_embedding_forward.1} parent=55 // pred_fallthru
          _
      $region56: #{image_embedding_forward.1} parent=5 // pred_fallthru
        _
      %p8560 = scmp.le.s32.totalorder 2, %s18
      // Predicated region
      $region61: #{image_embedding_forward.1} parent=5 // pred_check
        %p8561 = pneg %p8560
      $region62: #{image_embedding_forward.1} parent=5 // pred_check_branch
        %8563 = sbr.rel (%p8561) target = $region64
      $region63: #{image_embedding_forward.1} parent=5 // pred_region
        %s8564 = ssub.s32 %s18, 2
        // Predicated region
        $region65: #{image_embedding_forward.1} parent=63 // pred_check
          %p8565 = pneg %p241
        $region66: #{image_embedding_forward.1} parent=63 // pred_check_branch
          %8567 = sbr.rel (%p8565) target = $region68
        $region67: #{image_embedding_forward.1} parent=63 // pred_region
          %s8568 = sand.u32 %s226, 1
          %s8569 = scalar_lea.sflag [#allocation3], %s8568
          %s8570 = sand.u32 %s226, 1
          %s8571 = scalar_lea.vmem [#allocation2], %s8570
          %8572 = dma.done %s8569, 16
        $region68: #{image_embedding_forward.1} parent=63 // pred_fallthru
          _
      $region64: #{image_embedding_forward.1} parent=5 // pred_fallthru
        _
    $region6: #{image_embedding_forward.1} parent=1 // loop_footer
      %s22 = sadd.s32 1, %s18
    $region7: #{image_embedding_forward.1} parent=1 // loop_footer_branch
      %17 = sbr.rel target = $region3
    $region8: #{image_embedding_forward.1} parent=1 // loop_exit
      _
    %8573 = vsyncpa [#allocation3], 1
    %s8574 = scalar_lea.sflag [#allocation3], 1
    %8575 = vsyncpa %s8574, 1

</llo_original>
